<compile_context>
chip_gen: v7x
topology: tpu7x:2x2x1
jax: 0.10.0
libtpu: 0.0.40
codegen_flags: <defaults>
</compile_context>

<pallas_src>
import functools

import jax
import jax.numpy as jnp
from jax import lax
from jax.experimental import pallas as pl
from jax.experimental.pallas import tpu as pltpu

LANE = 128
SUBLANE = 8
SMALL_NUMEL = 64 * 1024          # below this: plain-JAX reduce (launch bound anyway)
BLOCK_BYTES = 4 * 1024 * 1024    # ~4 MiB streamed block
MAX_COLS = 16 * 1024             # wider weights fall back (keeps accumulator tiny)
NC_MIN_BLOCKS = 8                # only use 2 per-core partials for big streams


def _abs_pow(x, p):
    """Elementwise |x|**p, keeping small integer powers on the VPU."""
    if p == 1.0:
        return jnp.abs(x)
    if p == 2.0:
        return x * x
    if float(p).is_integer() and 2.0 < p <= 8.0:
        ip = int(p)
        if ip % 2 == 0:
            base, e = x * x, ip // 2          # even p: skip the abs
        else:
            base, e = jnp.abs(x), ip
        v = base
        for _ in range(e - 1):
            v = v * base
        return v
    return jnp.abs(x) ** jnp.float32(p)       # general non-integer p (EUP pow)


def _reg_kernel(x_ref, o_ref, *, p, row_tile, total_rows, nblocks, bpc,
                mask_last, guard_dup):
    """Accumulate sum(|x|^p) of one (row_tile, C) block into a resident (1,8,C) tile."""
    c = pl.program_id(0)      # "parallel" axis: independent per-core partials
    i = pl.program_id(1)      # "arbitrary" axis: reduction sweep
    blk = c * bpc + i         # global row-block index

    @pl.when(i == 0)
    def _init():
        o_ref[...] = jnp.zeros_like(o_ref)

    x = x_ref[...].astype(jnp.float32)        # (row_tile, C): upcast on-chip only
    v = _abs_pow(x, p)

    def _accum(u):
        # (rt, C) -> (rt//8, 8, C) splits only the major dim (tile-aligned
        # relabel, free); the axis-0 sum is pure cross-vreg VPU adds into the
        # lane-dense resident accumulator -- no cross-lane / XLU work.
        o_ref[...] += u.reshape(row_tile // SUBLANE, SUBLANE,
                                u.shape[-1]).sum(axis=0)[None]

    if mask_last:
        @pl.when(blk < nblocks - 1)           # full blocks: zero masking cost
        def _full():
            _accum(v)

        @pl.when(blk == nblocks - 1)          # ragged last block: row-level mask
        def _last():
            row_id = blk * row_tile + lax.broadcasted_iota(jnp.int32, v.shape, 0)
            # Select (not multiply) after the power -> OOB NaN/Inf garbage is
            # dropped exactly for any p > 0.
            _accum(jnp.where(row_id < total_rows, v, 0.0))
    elif guard_dup:
        @pl.when(blk < nblocks)               # skip clamped duplicate blocks
        def _acc():
            _accum(v)
    else:
        _accum(v)


def _sum_abs_pow_pallas(x2d, p):
    """sum(|x2d|^p) for a 2-D array whose trailing dim is a multiple of 128."""
    R, C = int(x2d.shape[0]), int(x2d.shape[1])
    itemsize = jnp.dtype(x2d.dtype).itemsize
    # Second-minor block multiple: 8 for 32-bit, 16 for 16-bit, 32 for 8-bit.
    base = max(SUBLANE, 32 // itemsize)
    # Byte-budgeted row tile (multiple of `base`, no larger than the array).
    rt = (BLOCK_BYTES // (C * itemsize)) // base * base
    rt = max(base, min(rt, (R // base) * base))
    nblocks = -(-R // rt)
    nc = 2 if nblocks >= NC_MIN_BLOCKS else 1
    bpc = -(-nblocks // nc)
    mask_last = (nblocks * rt) != R
    guard_dup = (nc * bpc) != nblocks

    if guard_dup:
        # Clamp so the DMA never targets a nonexistent block; the kernel skips
        # the duplicated accumulation via `blk < nblocks`.
        in_index = lambda c, i: (jnp.minimum(c * bpc + i, nblocks - 1), 0)
    else:
        in_index = lambda c, i: (c * bpc + i, 0)

    kernel = functools.partial(
        _reg_kernel, p=float(p), row_tile=rt, total_rows=R, nblocks=nblocks,
        bpc=bpc, mask_last=mask_last, guard_dup=guard_dup)

    out = pl.pallas_call(
        kernel,
        out_shape=jax.ShapeDtypeStruct((nc, SUBLANE, C), jnp.float32),
        grid_spec=pltpu.PrefetchScalarGridSpec(
            num_scalar_prefetch=0,
            grid=(nc, bpc),
            in_specs=[pl.BlockSpec((rt, C), in_index)],
            out_specs=pl.BlockSpec((1, SUBLANE, C), lambda c, i: (c, 0, 0)),
        ),
        compiler_params=pltpu.CompilerParams(
            # Reduction axis last; leading axis = independent per-core partials.
            # TODO(synk): on v7x, sweep pltpu.CORE_PARALLEL and
            # pipeline_mode=pl.Buffered(3) for true 2-TC sharding / deeper buffering.
            dimension_semantics=("parallel", "arbitrary"),
            vmem_limit_bytes=32 * 1024 * 1024,   # lifts v5e's 16 MiB scoped default
        ),
    )(x2d)
    # Tiny final (nc, 8, C) -> scalar reduce in plain JAX.
    return jnp.sum(out)


def _plain_sum(w, p):
    return jnp.sum(_abs_pow(w.astype(jnp.float32), float(p)))


def _sum_abs_pow_weight(w, p):
    """Dispatch one weight tensor to the Pallas stream or the plain-JAX reduce."""
    n = int(w.size)
    if n == 0:
        return jnp.float32(0.0)
    if (n >= SMALL_NUMEL and w.ndim >= 2
            and w.shape[-1] % LANE == 0 and w.shape[-1] <= MAX_COLS):
        C = int(w.shape[-1])
        R = n // C
        base = max(SUBLANE, 32 // jnp.dtype(w.dtype).itemsize)
        if R >= base:
            x2d = w if w.ndim == 2 else w.reshape(R, C)  # collapse leading dims
            return _sum_abs_pow_pallas(x2d, p)
    # TODO(synk): very wide (> MAX_COLS) or non-128-multiple trailing-dim weights
    # (e.g. small conv kernels) use a plain-JAX reduce; a column-tiled Pallas
    # variant could cover them too.
    return _plain_sum(w, p)


def regularization_loss(params, p):
    """Pallas equivalent of Regularization(p).forward(model) for p > 0.

    params: dict of name -> array; only names containing 'weight' contribute.
    Returns a scalar float32.
    """
    # TODO(synk): torch iterates model.named_parameters(); in JAX the caller
    # supplies the name -> param dict explicitly (no nn.Module traversal).
    total = jnp.float32(0.0)
    for name, w in params.items():
        if "weight" in name:
            total = total + _sum_abs_pow_weight(w, p)
    return total


if __name__ == "__main__":
    key = jax.random.PRNGKey(0)
    ks = jax.random.split(key, 7)

    # Deterministic synthetic "model" parameters.
    #  - encoder.weight: large f32 -> Pallas path, 3 blocks, ragged last block.
    #  - decoder.weight: large bf16 -> Pallas path in native bf16, ragged last block.
    #  - the rest are small -> plain-JAX path (or excluded: biases).
    params = {
        "conv1.weight": jax.random.normal(ks[0], (4, 3, 3, 3), jnp.float32) * 0.1,
        "conv1.bias": jax.random.normal(ks[1], (4,), jnp.float32) * 0.1,
        "fc.weight": jax.random.normal(ks[2], (32, 16), jnp.float32) * 0.1,
        "fc.bias": jax.random.normal(ks[3], (32,), jnp.float32) * 0.1,
        "encoder.weight": jax.random.normal(ks[4], (9000, 256), jnp.float32) * 0.02,
        "decoder.weight": (jax.random.normal(ks[5], (3000, 384), jnp.float32) * 0.05
                           ).astype(jnp.bfloat16),
        "proj.weight": (jax.random.normal(ks[6], (8, 32), jnp.float32) * 0.1
                        ).astype(jnp.bfloat16),
    }

    def reference(params, p):
        return sum(
            jnp.sum(jnp.abs(v.astype(jnp.float32)) ** p)
            for name, v in params.items() if "weight" in name)

    for p in (1.0, 2.0, 3.0):
        loss = jax.block_until_ready(regularization_loss(params, p))
        ref = jax.block_until_ready(reference(params, p))
        assert jnp.allclose(loss, ref, rtol=2e-5, atol=1e-6), (p, loss, ref)

    print("KERNEL_OK")
</pallas_src>

<mosaic_0001>
module attributes {stable_mosaic.version = 11 : i64} {
  func.func @_reg_kernel(%arg0: i32, %arg1: i32, %arg2: memref<4096x256xf32, #tpu.memory_space<vmem>>, %arg3: memref<1x8x256xf32, #tpu.memory_space<vmem>>) attributes {dimension_semantics = [#tpu.dimension_semantics<parallel>, #tpu.dimension_semantics<arbitrary>], iteration_bounds = array<i64: 1, 3>, scalar_prefetch = 0 : i64, scratch_operands = 0 : i64, tpu.core_type = #tpu.core_type<tc>, window_params = [{transform_indices = @transform_0, window_bounds = array<i64: 4096, 256>}, {transform_indices = @transform_1, window_bounds = array<i64: 1, 8, 256>}]} {
    %c3_i32 = arith.constant 3 : i32
    %0 = arith.muli %arg0, %c3_i32 : i32
    %1 = arith.addi %0, %arg1 : i32
    %c0_i32 = arith.constant 0 : i32
    %2 = arith.cmpi eq, %arg1, %c0_i32 : i32
    %3 = arith.extui %2 : i1 to i32
    %c0_i32_0 = arith.constant 0 : i32
    %4 = arith.cmpi ne, %3, %c0_i32_0 : i32
    scf.if %4 {
      %cst = arith.constant 0.000000e+00 : f32
      %13 = vector.broadcast %cst : f32 to vector<1x8x256xf32>
      %c0_5 = arith.constant 0 : index
      %c0_6 = arith.constant 0 : index
      %c0_7 = arith.constant 0 : index
      %14 = vector.load %arg3[%c0_5, %c0_6, %c0_7] : memref<1x8x256xf32, #tpu.memory_space<vmem>>, vector<1x8x256xf32>
      tpu.vector_store %arg3[%c0_5, %c0_6, %c0_7], %13 {strides = array<i32>} : memref<1x8x256xf32, #tpu.memory_space<vmem>>, vector<1x8x256xf32>,
    } else {
    }
    %c0 = arith.constant 0 : index
    %c0_1 = arith.constant 0 : index
    %5 = vector.load %arg2[%c0, %c0_1] : memref<4096x256xf32, #tpu.memory_space<vmem>>, vector<4096x256xf32>
    %6 = math.absf %5 : vector<4096x256xf32>
    %c2_i32 = arith.constant 2 : i32
    %7 = arith.cmpi slt, %1, %c2_i32 : i32
    %8 = arith.extui %7 : i1 to i32
    %c0_i32_2 = arith.constant 0 : i32
    %9 = arith.cmpi ne, %8, %c0_i32_2 : i32
    scf.if %9 {
      %c0_5 = arith.constant 0 : index
      %c0_6 = arith.constant 0 : index
      %c0_7 = arith.constant 0 : index
      %13 = vector.load %arg3[%c0_5, %c0_6, %c0_7] : memref<1x8x256xf32, #tpu.memory_space<vmem>>, vector<1x8x256xf32>
      %14 = vector.shape_cast %6 : vector<4096x256xf32> to vector<512x8x256xf32>
      %cst = arith.constant dense<0.000000e+00> : vector<8x256xf32>
      %15 = vector.multi_reduction <add>, %14, %cst [0] : vector<512x8x256xf32> to vector<8x256xf32>
      %16 = vector.shape_cast %15 : vector<8x256xf32> to vector<1x8x256xf32>
      %17 = arith.addf %13, %16 : vector<1x8x256xf32>
      %c0_8 = arith.constant 0 : index
      %c0_9 = arith.constant 0 : index
      %c0_10 = arith.constant 0 : index
      %18 = vector.load %arg3[%c0_8, %c0_9, %c0_10] : memref<1x8x256xf32, #tpu.memory_space<vmem>>, vector<1x8x256xf32>
      tpu.vector_store %arg3[%c0_8, %c0_9, %c0_10], %17 {strides = array<i32>} : memref<1x8x256xf32, #tpu.memory_space<vmem>>, vector<1x8x256xf32>,
    } else {
    }
    %c2_i32_3 = arith.constant 2 : i32
    %10 = arith.cmpi eq, %1, %c2_i32_3 : i32
    %11 = arith.extui %10 : i1 to i32
    %c0_i32_4 = arith.constant 0 : i32
    %12 = arith.cmpi ne, %11, %c0_i32_4 : i32
    scf.if %12 {
      %c4096_i32 = arith.constant 4096 : i32
      %13 = arith.muli %1, %c4096_i32 : i32
      %14 = tpu.iota {dimensions = array<i32: 0>} : vector<4096x256xi32>
      %15 = vector.broadcast %13 : i32 to vector<4096x256xi32>
      %16 = arith.addi %15, %14 : vector<4096x256xi32>
      %c9000_i32 = arith.constant 9000 : i32
      %17 = vector.broadcast %c9000_i32 : i32 to vector<4096x256xi32>
      %18 = arith.cmpi slt, %16, %17 : vector<4096x256xi32>
      %cst = arith.constant 0.000000e+00 : f32
      %19 = vector.broadcast %cst : f32 to vector<4096x256xf32>
      %20 = arith.select %18, %6, %19 : vector<4096x256xi1>, vector<4096x256xf32>
      %c0_5 = arith.constant 0 : index
      %c0_6 = arith.constant 0 : index
      %c0_7 = arith.constant 0 : index
      %21 = vector.load %arg3[%c0_5, %c0_6, %c0_7] : memref<1x8x256xf32, #tpu.memory_space<vmem>>, vector<1x8x256xf32>
      %22 = vector.shape_cast %20 : vector<4096x256xf32> to vector<512x8x256xf32>
      %cst_8 = arith.constant dense<0.000000e+00> : vector<8x256xf32>
      %23 = vector.multi_reduction <add>, %22, %cst_8 [0] : vector<512x8x256xf32> to vector<8x256xf32>
      %24 = vector.shape_cast %23 : vector<8x256xf32> to vector<1x8x256xf32>
      %25 = arith.addf %21, %24 : vector<1x8x256xf32>
      %c0_9 = arith.constant 0 : index
      %c0_10 = arith.constant 0 : index
      %c0_11 = arith.constant 0 : index
      %26 = vector.load %arg3[%c0_9, %c0_10, %c0_11] : memref<1x8x256xf32, #tpu.memory_space<vmem>>, vector<1x8x256xf32>
      tpu.vector_store %arg3[%c0_9, %c0_10, %c0_11], %25 {strides = array<i32>} : memref<1x8x256xf32, #tpu.memory_space<vmem>>, vector<1x8x256xf32>,
    } else {
    }
    return
  }
  func.func @transform_0(%arg0: i32, %arg1: i32) -> (i32, i32) {
    %c3_i32 = arith.constant 3 : i32
    %0 = arith.muli %arg0, %c3_i32 : i32
    %1 = arith.addi %0, %arg1 : i32
    %c0_i32 = arith.constant 0 : i32
    %c0_i32_0 = arith.constant 0 : i32
    return %1, %c0_i32 : i32, i32
  }
  func.func @transform_1(%arg0: i32, %arg1: i32) -> (i32, i32, i32) {
    %c0_i32 = arith.constant 0 : i32
    %c0_i32_0 = arith.constant 0 : i32
    %c0_i32_1 = arith.constant 0 : i32
    return %arg0, %c0_i32, %c0_i32_0 : i32, i32, i32
  }
}

</mosaic_0001>

<llo_original>
// kernel: tpu_custom_call.1
$region0: #{tpu_custom_call.1}
  #allocation0 [shape = 'u32[]', space=smem, size = 0x4, offset = 0x4, fixed_abs, tag = 'smem constant byte address 0x4 - core index']
  #allocation1 [shape = 'u32[144,128]{1,0:T(1,128)}', space=vmem, size = 0x12000, scoped, tag = 'internal scratch']
  %s0 = inlined_call_operand.hbm [shape: f32[9000,256], index: 0, kind: input, shape index: {}]
  %s1 = inlined_call_operand.hbm [shape: f32[1,8,256], index: 1, kind: output, shape index: {}]
  %s2 = sld [smem:[#allocation0]]
  $region53: #{tpu_custom_call.1} parent=0
    _
  %s4 = ssub.s32 1, %s2
  %s5 = scalar_select 0, %s4, %s2
  $region1: #{tpu_custom_call.1} parent=0
    #allocation2 [shape = 'u8[8388608]{0}', space=vmem, size = 0x800000, scoped, tag = 'input window, operand 0']
    #allocation3 [shape = 's32[2]{0}', space=sflag, size = 0x8, scoped, tag = 'scoped memory for tpu_custom_call.1']
    #allocation4 [shape = 's32[2]{0}', space=sflag, size = 0x8, scoped, tag = 'scoped memory for tpu_custom_call.1']
    #allocation5 [shape = 'u8[8192]{0}', space=vmem, size = 0x2000, scoped, tag = 'output window, operand 0, single buffered']
    %6 = vsyncpa [#allocation3], 0
    %s7 = scalar_lea.sflag [#allocation3], 1
    %8 = vsyncpa %s7, 0
    %9 = vsyncpa [#allocation4], 0
    loop: start=0, step=1, limit=5
    $region2: #{tpu_custom_call.1} parent=1 // loop_pre_header
      _
    $region3: #{tpu_custom_call.1} parent=1 // loop_header
      %s11 = sphi 0, %s15
      %p12 = scmp.ge.s32.totalorder %s11, 5
      %s18 = sphi 0, %s30
      %s19 = sphi 0, %s26
      %s20 = sphi 0, %s18
      %s21 = sphi 0, %s19
      %s22 = sphi 0, %s20
      %s23 = sphi 0, %s21
      %s37 = sphi 0, %s39
      %s40 = sphi 0, %s37
      %s41 = sphi 0, %s40
      %s57 = sphi 0, %s41
      %s63 = sphi 0, %s65
      %s66 = sphi 0, %s63
      %s67 = sphi 0, %s66
      %s83 = sphi 0, %s67
    $region4: #{tpu_custom_call.1} parent=1 // loop_header_branch
      %14 = sbr.rel (%p12) target = $region8
    $region5: #{tpu_custom_call.1} parent=1 // loop_body
      %s16 = ssub.s32 %s11, 1
      %s17 = ssub.s32 %s11, 2
      %s24 = sadd.s32 1, %s19
      %p25 = scmp.ge.s32.totalorder %s24, 3
      %s26 = scalar_select %p25, 0, %s24
      %s27 = sadd.s32 1, %s18
      %s28 = scalar_select %p25, %s27, %s18
      %p29 = scmp.ge.s32.totalorder %s28, 1
      %s30 = scalar_select %p29, 0, %s28
      %s31 = smul.u32 %s18, 3
      %s32 = sadd.s32 %s31, %s19
      %s33 = smul.u32 %s30, 3
      %s34 = sadd.s32 %s33, %s26
      %s35 = ssub.s32 %s32, %s34
      %p36 = scmp.eq.s32.totalorder %s35, 0
      %s38 = sadd.s32 %s37, 1
      %s39 = scalar_select %p36, %s37, %s38
      %p42 = pneg %p36
      %p43 = scmp.eq.s32.totalorder %s11, 2
      %p44 = por %p42, %p43
      %p45 = scmp.ne.s32.totalorder %s37, %s40
      %p46 = scmp.eq.s32.totalorder %s11, 0
      %p47 = por %p45, %p46
      %p48 = scmp.ne.s32.totalorder %s37, %s40
      %p49 = scmp.eq.s32.totalorder %s16, 2
      %p50 = por %p48, %p49
      %p51 = scmp.ne.s32.totalorder %s40, %s41
      %p52 = scmp.eq.s32.totalorder %s16, 0
      %p53 = por %p51, %p52
      %p54 = scmp.ne.s32.totalorder %s40, %s41
      %p55 = scmp.eq.s32.totalorder %s17, 2
      %p56 = por %p54, %p55
      %p58 = scmp.ne.s32.totalorder %s41, %s57
      %p59 = scmp.eq.s32.totalorder %s17, 0
      %p60 = por %p58, %p59
      %s61 = ssub.s32 %s18, %s30
      %p62 = scmp.eq.s32.totalorder %s61, 0
      %s64 = sadd.s32 %s63, 1
      %s65 = scalar_select %p62, %s63, %s64
      %p68 = pneg %p62
      %p69 = scmp.eq.s32.totalorder %s11, 2
      %p70 = por %p68, %p69
      %p71 = scmp.ne.s32.totalorder %s63, %s66
      %p72 = scmp.eq.s32.totalorder %s11, 0
      %p73 = por %p71, %p72
      %p74 = scmp.ne.s32.totalorder %s63, %s66
      %p75 = scmp.eq.s32.totalorder %s16, 2
      %p76 = por %p74, %p75
      %p77 = scmp.ne.s32.totalorder %s66, %s67
      %p78 = scmp.eq.s32.totalorder %s16, 0
      %p79 = por %p77, %p78
      %p80 = scmp.ne.s32.totalorder %s66, %s67
      %p81 = scmp.eq.s32.totalorder %s17, 2
      %p82 = por %p80, %p81
      %p84 = scmp.ne.s32.totalorder %s67, %s83
      %p85 = scmp.eq.s32.totalorder %s17, 0
      %p86 = por %p84, %p85
      %p87 = scmp.le.s32.totalorder 1, %s11
      %p88 = scmp.lt.s32.totalorder %s11, 4
      %p89 = pnand %p87, %p88
      %p90 = pneg %p89
      // Predicated region
      $region9: #{tpu_custom_call.1} parent=5 // pred_check
        _
      $region10: #{tpu_custom_call.1} parent=5 // pred_check_branch
        %92 = sbr.rel (%p89) target = $region12
      $region11: #{tpu_custom_call.1} parent=5 // pred_region
        %s93 = ssub.s32 %s11, 1
      $region12: #{tpu_custom_call.1} parent=5 // pred_fallthru
        _
      %p94 = scmp.lt.s32.totalorder %s11, 3
      // Predicated region
      $region13: #{tpu_custom_call.1} parent=5 // pred_check
        %p95 = pneg %p94
      $region14: #{tpu_custom_call.1} parent=5 // pred_check_branch
        %97 = sbr.rel (%p95) target = $region16
      $region15: #{tpu_custom_call.1} parent=5 // pred_region
        // Predicated region
        $region17: #{tpu_custom_call.1} parent=15 // pred_check
          %p98 = pneg %p47
        $region18: #{tpu_custom_call.1} parent=15 // pred_check_branch
          %100 = sbr.rel (%p98) target = $region20
        $region19: #{tpu_custom_call.1} parent=15 // pred_region
          %s101 = sand.u32 %s37, 1
          %s102 = scalar_lea.sflag [#allocation3], %s101
          %s103 = sand.u32 %s37, 1
          %s104 = smul.addr %s103, 8192
          %s105 = scalar_lea.vmem [#allocation2], %s104
          %s106 = smul.u32 %s18, 3
          %s107 = sadd.s32 %s106, %s19
          %s108 = smul.u32 512, %s107
          %s109 = ssub.s32 1125, %s108
          %p110 = scmp.lt.s32.totalorder %s109, 512
          %s111 = scalar_select %p110, %s109, 512
          %s112 = smul.u32 128, %s111
          %s113 = smul.u32 %s112, 2
          %s115 = ssub.s32 131072, %s113
          %116 = vsyncadd %s102, %s115
          %p117 = scmp.ne.s32.totalorder 0, %s113
          %s118 = smul.addr %s108, 2
          %s119 = smul.addr %s118, 128
          %s120 = scalar_lea.hbm %s0, %s119
          %s121 = smul.u32 16, %s111
          %s122 = sshll.u32 %s105, 4
          %s123 = int_to_ptr.vmem [resolvable:$true] %s122
          %s124 = sshll.u32 %s121, 4
          %128 = dma.hbm_to_vmem [thread:$0]  (%p117), %s120, %s124, %s123, %s102, 256, 256, 16
        $region20: #{tpu_custom_call.1} parent=15 // pred_fallthru
          _
      $region16: #{tpu_custom_call.1} parent=5 // pred_fallthru
        _
      %p129 = scmp.le.s32.totalorder 1, %s11
      %p130 = scmp.lt.s32.totalorder %s11, 4
      %p131 = pnand %p129, %p130
      %p132 = pneg %p131
      // Predicated region
      $region21: #{tpu_custom_call.1} parent=5 // pred_check
        _
      $region22: #{tpu_custom_call.1} parent=5 // pred_check_branch
        %134 = sbr.rel (%p131) target = $region24
      $region23: #{tpu_custom_call.1} parent=5 // pred_region
        %s135 = ssub.s32 %s11, 1
        %s136 = sand.u32 %s40, 1
        %s137 = scalar_lea.sflag [#allocation3], %s136
        %s138 = sand.u32 %s40, 1
        %s139 = smul.addr %s138, 8192
        %s140 = scalar_lea.vmem [#allocation2], %s139
        // Predicated region
        $region25: #{tpu_custom_call.1} parent=23 // pred_check
          %p141 = pneg %p53
        $region26: #{tpu_custom_call.1} parent=23 // pred_check_branch
          %143 = sbr.rel (%p141) target = $region28
        $region27: #{tpu_custom_call.1} parent=23 // pred_region
          %144 = dma.done %s137, 131072
        $region28: #{tpu_custom_call.1} parent=23 // pred_fallthru
          _
        %s145 = sand.u32 %s40, 1
        %s146 = scalar_lea.sflag [#allocation3], %s145
        %s147 = sand.u32 %s40, 1
        %s148 = smul.addr %s147, 8192
        %s149 = scalar_lea.vmem [#allocation2], %s148
        %p150 = pneg %p53
        %p151 = pneg %p50
        %p152 = pneg %p79
        %p153 = pneg %p76
        %s154 = smul.u32 %s20, 3
        %s155 = sadd.s32 %s154, %s21
        %s156 = smul.u32 512, %s155
        %s157 = ssub.s32 1125, %s156
        %p158 = scmp.lt.s32.totalorder %s157, 512
        %s159 = scalar_select %p158, %s157, 512
        %s160 = smul.u32 128, %s159
        %s161 = smul.u32 %s160, 2
        %s162 = smul.u32 %s20, 3
        %s163 = sadd.s32 %s162, %s21
        %p164 = scmp.eq.s32.totalorder %s21, 0
        // Predicated region
        $region29: #{tpu_custom_call.1} parent=23 // pred_check
          %p165 = pneg %p164
        $region30: #{tpu_custom_call.1} parent=23 // pred_check_branch
          %167 = sbr.rel (%p165) target = $region32
        $region31: #{tpu_custom_call.1} parent=23 // pred_region
          %168 = vst [vmem:[#allocation5] sm:$0xff] 0.0
          %169 = vst [vmem:[#allocation5 + $0x8] sm:$0xff] 0.0
        $region32: #{tpu_custom_call.1} parent=23 // pred_fallthru
          _
        %v170 = vld [vmem:[%s140] sm:$0xff]
        %v171 = vld [vmem:[%s140 + $0x8] sm:$0xff]
        %v172 = vld [vmem:[%s140 + $0x10] sm:$0xff]
        %v173 = vld [vmem:[%s140 + $0x18] sm:$0xff]
        %v174 = vld [vmem:[%s140 + $0x20] sm:$0xff]
        %v175 = vld [vmem:[%s140 + $0x28] sm:$0xff]
        %v176 = vld [vmem:[%s140 + $0x30] sm:$0xff]
        %v177 = vld [vmem:[%s140 + $0x38] sm:$0xff]
        %v178 = vld [vmem:[%s140 + $0x40] sm:$0xff]
        %v179 = vld [vmem:[%s140 + $0x48] sm:$0xff]
        %v180 = vld [vmem:[%s140 + $0x50] sm:$0xff]
        %v181 = vld [vmem:[%s140 + $0x58] sm:$0xff]
        %v182 = vld [vmem:[%s140 + $0x60] sm:$0xff]
        %v183 = vld [vmem:[%s140 + $0x68] sm:$0xff]
        %v184 = vld [vmem:[%s140 + $0x70] sm:$0xff]
        %v185 = vld [vmem:[%s140 + $0x78] sm:$0xff]
        %v186 = vld [vmem:[%s140 + $0x80] sm:$0xff]
        %v187 = vld [vmem:[%s140 + $0x88] sm:$0xff]
        %v188 = vld [vmem:[%s140 + $0x90] sm:$0xff]
        %v189 = vld [vmem:[%s140 + $0x98] sm:$0xff]
        %v190 = vld [vmem:[%s140 + $0xa0] sm:$0xff]
        %v191 = vld [vmem:[%s140 + $0xa8] sm:$0xff]
        %v192 = vld [vmem:[%s140 + $0xb0] sm:$0xff]
        %v193 = vld [vmem:[%s140 + $0xb8] sm:$0xff]
        %v194 = vld [vmem:[%s140 + $0xc0] sm:$0xff]
        %v195 = vld [vmem:[%s140 + $0xc8] sm:$0xff]
        %v196 = vld [vmem:[%s140 + $0xd0] sm:$0xff]
        %v197 = vld [vmem:[%s140 + $0xd8] sm:$0xff]
        %v198 = vld [vmem:[%s140 + $0xe0] sm:$0xff]
        %v199 = vld [vmem:[%s140 + $0xe8] sm:$0xff]
        %v200 = vld [vmem:[%s140 + $0xf0] sm:$0xff]
        %v201 = vld [vmem:[%s140 + $0xf8] sm:$0xff]
        %v202 = vld [vmem:[%s140 + $0x100] sm:$0xff]
        %v203 = vld [vmem:[%s140 + $0x108] sm:$0xff]
        %v204 = vld [vmem:[%s140 + $0x110] sm:$0xff]
        %v205 = vld [vmem:[%s140 + $0x118] sm:$0xff]
        %v206 = vld [vmem:[%s140 + $0x120] sm:$0xff]
        %v207 = vld [vmem:[%s140 + $0x128] sm:$0xff]
        %v208 = vld [vmem:[%s140 + $0x130] sm:$0xff]
        %v209 = vld [vmem:[%s140 + $0x138] sm:$0xff]
        %v210 = vld [vmem:[%s140 + $0x140] sm:$0xff]
        %v211 = vld [vmem:[%s140 + $0x148] sm:$0xff]
        %v212 = vld [vmem:[%s140 + $0x150] sm:$0xff]
        %v213 = vld [vmem:[%s140 + $0x158] sm:$0xff]
        %v214 = vld [vmem:[%s140 + $0x160] sm:$0xff]
        %v215 = vld [vmem:[%s140 + $0x168] sm:$0xff]
        %v216 = vld [vmem:[%s140 + $0x170] sm:$0xff]
        %v217 = vld [vmem:[%s140 + $0x178] sm:$0xff]
        %v218 = vld [vmem:[%s140 + $0x180] sm:$0xff]
        %v219 = vld [vmem:[%s140 + $0x188] sm:$0xff]
        %v220 = vld [vmem:[%s140 + $0x190] sm:$0xff]
        %v221 = vld [vmem:[%s140 + $0x198] sm:$0xff]
        %v222 = vld [vmem:[%s140 + $0x1a0] sm:$0xff]
        %v223 = vld [vmem:[%s140 + $0x1a8] sm:$0xff]
        %v224 = vld [vmem:[%s140 + $0x1b0] sm:$0xff]
        %v225 = vld [vmem:[%s140 + $0x1b8] sm:$0xff]
        %v226 = vld [vmem:[%s140 + $0x1c0] sm:$0xff]
        %v227 = vld [vmem:[%s140 + $0x1c8] sm:$0xff]
        %v228 = vld [vmem:[%s140 + $0x1d0] sm:$0xff]
        %v229 = vld [vmem:[%s140 + $0x1d8] sm:$0xff]
        %v230 = vld [vmem:[%s140 + $0x1e0] sm:$0xff]
        %v231 = vld [vmem:[%s140 + $0x1e8] sm:$0xff]
        %v232 = vld [vmem:[%s140 + $0x1f0] sm:$0xff]
        %v233 = vld [vmem:[%s140 + $0x1f8] sm:$0xff]
        %v234 = vld [vmem:[%s140 + $0x200] sm:$0xff]
        %v235 = vld [vmem:[%s140 + $0x208] sm:$0xff]
        %v236 = vld [vmem:[%s140 + $0x210] sm:$0xff]
        %v237 = vld [vmem:[%s140 + $0x218] sm:$0xff]
        %v238 = vld [vmem:[%s140 + $0x220] sm:$0xff]
        %v239 = vld [vmem:[%s140 + $0x228] sm:$0xff]
        %v240 = vld [vmem:[%s140 + $0x230] sm:$0xff]
        %v241 = vld [vmem:[%s140 + $0x238] sm:$0xff]
        %v242 = vld [vmem:[%s140 + $0x240] sm:$0xff]
        %v243 = vld [vmem:[%s140 + $0x248] sm:$0xff]
        %v244 = vld [vmem:[%s140 + $0x250] sm:$0xff]
        %v245 = vld [vmem:[%s140 + $0x258] sm:$0xff]
        %v246 = vld [vmem:[%s140 + $0x260] sm:$0xff]
        %v247 = vld [vmem:[%s140 + $0x268] sm:$0xff]
        %v248 = vld [vmem:[%s140 + $0x270] sm:$0xff]
        %v249 = vld [vmem:[%s140 + $0x278] sm:$0xff]
        %v250 = vld [vmem:[%s140 + $0x280] sm:$0xff]
        %v251 = vld [vmem:[%s140 + $0x288] sm:$0xff]
        %v252 = vld [vmem:[%s140 + $0x290] sm:$0xff]
        %v253 = vld [vmem:[%s140 + $0x298] sm:$0xff]
        %v254 = vld [vmem:[%s140 + $0x2a0] sm:$0xff]
        %v255 = vld [vmem:[%s140 + $0x2a8] sm:$0xff]
        %v256 = vld [vmem:[%s140 + $0x2b0] sm:$0xff]
        %v257 = vld [vmem:[%s140 + $0x2b8] sm:$0xff]
        %v258 = vld [vmem:[%s140 + $0x2c0] sm:$0xff]
        %v259 = vld [vmem:[%s140 + $0x2c8] sm:$0xff]
        %v260 = vld [vmem:[%s140 + $0x2d0] sm:$0xff]
        %v261 = vld [vmem:[%s140 + $0x2d8] sm:$0xff]
        %v262 = vld [vmem:[%s140 + $0x2e0] sm:$0xff]
        %v263 = vld [vmem:[%s140 + $0x2e8] sm:$0xff]
        %v264 = vld [vmem:[%s140 + $0x2f0] sm:$0xff]
        %v265 = vld [vmem:[%s140 + $0x2f8] sm:$0xff]
        %v266 = vld [vmem:[%s140 + $0x300] sm:$0xff]
        %v267 = vld [vmem:[%s140 + $0x308] sm:$0xff]
        %v268 = vld [vmem:[%s140 + $0x310] sm:$0xff]
        %v269 = vld [vmem:[%s140 + $0x318] sm:$0xff]
        %v270 = vld [vmem:[%s140 + $0x320] sm:$0xff]
        %v271 = vld [vmem:[%s140 + $0x328] sm:$0xff]
        %v272 = vld [vmem:[%s140 + $0x330] sm:$0xff]
        %v273 = vld [vmem:[%s140 + $0x338] sm:$0xff]
        %v274 = vld [vmem:[%s140 + $0x340] sm:$0xff]
        %v275 = vld [vmem:[%s140 + $0x348] sm:$0xff]
        %v276 = vld [vmem:[%s140 + $0x350] sm:$0xff]
        %v277 = vld [vmem:[%s140 + $0x358] sm:$0xff]
        %v278 = vld [vmem:[%s140 + $0x360] sm:$0xff]
        %v279 = vld [vmem:[%s140 + $0x368] sm:$0xff]
        %v280 = vld [vmem:[%s140 + $0x370] sm:$0xff]
        %v281 = vld [vmem:[%s140 + $0x378] sm:$0xff]
        %v282 = vld [vmem:[%s140 + $0x380] sm:$0xff]
        %v283 = vld [vmem:[%s140 + $0x388] sm:$0xff]
        %v284 = vld [vmem:[%s140 + $0x390] sm:$0xff]
        %v285 = vld [vmem:[%s140 + $0x398] sm:$0xff]
        %v286 = vld [vmem:[%s140 + $0x3a0] sm:$0xff]
        %v287 = vld [vmem:[%s140 + $0x3a8] sm:$0xff]
        %v288 = vld [vmem:[%s140 + $0x3b0] sm:$0xff]
        %v289 = vld [vmem:[%s140 + $0x3b8] sm:$0xff]
        %v290 = vld [vmem:[%s140 + $0x3c0] sm:$0xff]
        %v291 = vld [vmem:[%s140 + $0x3c8] sm:$0xff]
        %v292 = vld [vmem:[%s140 + $0x3d0] sm:$0xff]
        %v293 = vld [vmem:[%s140 + $0x3d8] sm:$0xff]
        %v294 = vld [vmem:[%s140 + $0x3e0] sm:$0xff]
        %v295 = vld [vmem:[%s140 + $0x3e8] sm:$0xff]
        %v296 = vld [vmem:[%s140 + $0x3f0] sm:$0xff]
        %v297 = vld [vmem:[%s140 + $0x3f8] sm:$0xff]
        %v298 = vld [vmem:[%s140 + $0x400] sm:$0xff]
        %v299 = vld [vmem:[%s140 + $0x408] sm:$0xff]
        %v300 = vld [vmem:[%s140 + $0x410] sm:$0xff]
        %v301 = vld [vmem:[%s140 + $0x418] sm:$0xff]
        %v302 = vld [vmem:[%s140 + $0x420] sm:$0xff]
        %v303 = vld [vmem:[%s140 + $0x428] sm:$0xff]
        %v304 = vld [vmem:[%s140 + $0x430] sm:$0xff]
        %v305 = vld [vmem:[%s140 + $0x438] sm:$0xff]
        %v306 = vld [vmem:[%s140 + $0x440] sm:$0xff]
        %v307 = vld [vmem:[%s140 + $0x448] sm:$0xff]
        %v308 = vld [vmem:[%s140 + $0x450] sm:$0xff]
        %v309 = vld [vmem:[%s140 + $0x458] sm:$0xff]
        %v310 = vld [vmem:[%s140 + $0x460] sm:$0xff]
        %v311 = vld [vmem:[%s140 + $0x468] sm:$0xff]
        %v312 = vld [vmem:[%s140 + $0x470] sm:$0xff]
        %v313 = vld [vmem:[%s140 + $0x478] sm:$0xff]
        %v314 = vld [vmem:[%s140 + $0x480] sm:$0xff]
        %v315 = vld [vmem:[%s140 + $0x488] sm:$0xff]
        %v316 = vld [vmem:[%s140 + $0x490] sm:$0xff]
        %v317 = vld [vmem:[%s140 + $0x498] sm:$0xff]
        %v318 = vld [vmem:[%s140 + $0x4a0] sm:$0xff]
        %v319 = vld [vmem:[%s140 + $0x4a8] sm:$0xff]
        %v320 = vld [vmem:[%s140 + $0x4b0] sm:$0xff]
        %v321 = vld [vmem:[%s140 + $0x4b8] sm:$0xff]
        %v322 = vld [vmem:[%s140 + $0x4c0] sm:$0xff]
        %v323 = vld [vmem:[%s140 + $0x4c8] sm:$0xff]
        %v324 = vld [vmem:[%s140 + $0x4d0] sm:$0xff]
        %v325 = vld [vmem:[%s140 + $0x4d8] sm:$0xff]
        %v326 = vld [vmem:[%s140 + $0x4e0] sm:$0xff]
        %v327 = vld [vmem:[%s140 + $0x4e8] sm:$0xff]
        %v328 = vld [vmem:[%s140 + $0x4f0] sm:$0xff]
        %v329 = vld [vmem:[%s140 + $0x4f8] sm:$0xff]
        %v330 = vld [vmem:[%s140 + $0x500] sm:$0xff]
        %v331 = vld [vmem:[%s140 + $0x508] sm:$0xff]
        %v332 = vld [vmem:[%s140 + $0x510] sm:$0xff]
        %v333 = vld [vmem:[%s140 + $0x518] sm:$0xff]
        %v334 = vld [vmem:[%s140 + $0x520] sm:$0xff]
        %v335 = vld [vmem:[%s140 + $0x528] sm:$0xff]
        %v336 = vld [vmem:[%s140 + $0x530] sm:$0xff]
        %v337 = vld [vmem:[%s140 + $0x538] sm:$0xff]
        %v338 = vld [vmem:[%s140 + $0x540] sm:$0xff]
        %v339 = vld [vmem:[%s140 + $0x548] sm:$0xff]
        %v340 = vld [vmem:[%s140 + $0x550] sm:$0xff]
        %v341 = vld [vmem:[%s140 + $0x558] sm:$0xff]
        %v342 = vld [vmem:[%s140 + $0x560] sm:$0xff]
        %v343 = vld [vmem:[%s140 + $0x568] sm:$0xff]
        %v344 = vld [vmem:[%s140 + $0x570] sm:$0xff]
        %v345 = vld [vmem:[%s140 + $0x578] sm:$0xff]
        %v346 = vld [vmem:[%s140 + $0x580] sm:$0xff]
        %v347 = vld [vmem:[%s140 + $0x588] sm:$0xff]
        %v348 = vld [vmem:[%s140 + $0x590] sm:$0xff]
        %v349 = vld [vmem:[%s140 + $0x598] sm:$0xff]
        %v350 = vld [vmem:[%s140 + $0x5a0] sm:$0xff]
        %v351 = vld [vmem:[%s140 + $0x5a8] sm:$0xff]
        %v352 = vld [vmem:[%s140 + $0x5b0] sm:$0xff]
        %v353 = vld [vmem:[%s140 + $0x5b8] sm:$0xff]
        %v354 = vld [vmem:[%s140 + $0x5c0] sm:$0xff]
        %v355 = vld [vmem:[%s140 + $0x5c8] sm:$0xff]
        %v356 = vld [vmem:[%s140 + $0x5d0] sm:$0xff]
        %v357 = vld [vmem:[%s140 + $0x5d8] sm:$0xff]
        %v358 = vld [vmem:[%s140 + $0x5e0] sm:$0xff]
        %v359 = vld [vmem:[%s140 + $0x5e8] sm:$0xff]
        %v360 = vld [vmem:[%s140 + $0x5f0] sm:$0xff]
        %v361 = vld [vmem:[%s140 + $0x5f8] sm:$0xff]
        %v362 = vld [vmem:[%s140 + $0x600] sm:$0xff]
        %v363 = vld [vmem:[%s140 + $0x608] sm:$0xff]
        %v364 = vld [vmem:[%s140 + $0x610] sm:$0xff]
        %v365 = vld [vmem:[%s140 + $0x618] sm:$0xff]
        %v366 = vld [vmem:[%s140 + $0x620] sm:$0xff]
        %v367 = vld [vmem:[%s140 + $0x628] sm:$0xff]
        %v368 = vld [vmem:[%s140 + $0x630] sm:$0xff]
        %v369 = vld [vmem:[%s140 + $0x638] sm:$0xff]
        %v370 = vld [vmem:[%s140 + $0x640] sm:$0xff]
        %v371 = vld [vmem:[%s140 + $0x648] sm:$0xff]
        %v372 = vld [vmem:[%s140 + $0x650] sm:$0xff]
        %v373 = vld [vmem:[%s140 + $0x658] sm:$0xff]
        %v374 = vld [vmem:[%s140 + $0x660] sm:$0xff]
        %v375 = vld [vmem:[%s140 + $0x668] sm:$0xff]
        %v376 = vld [vmem:[%s140 + $0x670] sm:$0xff]
        %v377 = vld [vmem:[%s140 + $0x678] sm:$0xff]
        %v378 = vld [vmem:[%s140 + $0x680] sm:$0xff]
        %v379 = vld [vmem:[%s140 + $0x688] sm:$0xff]
        %v380 = vld [vmem:[%s140 + $0x690] sm:$0xff]
        %v381 = vld [vmem:[%s140 + $0x698] sm:$0xff]
        %v382 = vld [vmem:[%s140 + $0x6a0] sm:$0xff]
        %v383 = vld [vmem:[%s140 + $0x6a8] sm:$0xff]
        %v384 = vld [vmem:[%s140 + $0x6b0] sm:$0xff]
        %v385 = vld [vmem:[%s140 + $0x6b8] sm:$0xff]
        %v386 = vld [vmem:[%s140 + $0x6c0] sm:$0xff]
        %v387 = vld [vmem:[%s140 + $0x6c8] sm:$0xff]
        %v388 = vld [vmem:[%s140 + $0x6d0] sm:$0xff]
        %v389 = vld [vmem:[%s140 + $0x6d8] sm:$0xff]
        %v390 = vld [vmem:[%s140 + $0x6e0] sm:$0xff]
        %v391 = vld [vmem:[%s140 + $0x6e8] sm:$0xff]
        %v392 = vld [vmem:[%s140 + $0x6f0] sm:$0xff]
        %v393 = vld [vmem:[%s140 + $0x6f8] sm:$0xff]
        %v394 = vld [vmem:[%s140 + $0x700] sm:$0xff]
        %v395 = vld [vmem:[%s140 + $0x708] sm:$0xff]
        %v396 = vld [vmem:[%s140 + $0x710] sm:$0xff]
        %v397 = vld [vmem:[%s140 + $0x718] sm:$0xff]
        %v398 = vld [vmem:[%s140 + $0x720] sm:$0xff]
        %v399 = vld [vmem:[%s140 + $0x728] sm:$0xff]
        %v400 = vld [vmem:[%s140 + $0x730] sm:$0xff]
        %v401 = vld [vmem:[%s140 + $0x738] sm:$0xff]
        %v402 = vld [vmem:[%s140 + $0x740] sm:$0xff]
        %v403 = vld [vmem:[%s140 + $0x748] sm:$0xff]
        %v404 = vld [vmem:[%s140 + $0x750] sm:$0xff]
        %v405 = vld [vmem:[%s140 + $0x758] sm:$0xff]
        %v406 = vld [vmem:[%s140 + $0x760] sm:$0xff]
        %v407 = vld [vmem:[%s140 + $0x768] sm:$0xff]
        %v408 = vld [vmem:[%s140 + $0x770] sm:$0xff]
        %v409 = vld [vmem:[%s140 + $0x778] sm:$0xff]
        %v410 = vld [vmem:[%s140 + $0x780] sm:$0xff]
        %v411 = vld [vmem:[%s140 + $0x788] sm:$0xff]
        %v412 = vld [vmem:[%s140 + $0x790] sm:$0xff]
        %v413 = vld [vmem:[%s140 + $0x798] sm:$0xff]
        %v414 = vld [vmem:[%s140 + $0x7a0] sm:$0xff]
        %v415 = vld [vmem:[%s140 + $0x7a8] sm:$0xff]
        %v416 = vld [vmem:[%s140 + $0x7b0] sm:$0xff]
        %v417 = vld [vmem:[%s140 + $0x7b8] sm:$0xff]
        %v418 = vld [vmem:[%s140 + $0x7c0] sm:$0xff]
        %v419 = vld [vmem:[%s140 + $0x7c8] sm:$0xff]
        %v420 = vld [vmem:[%s140 + $0x7d0] sm:$0xff]
        %v421 = vld [vmem:[%s140 + $0x7d8] sm:$0xff]
        %v422 = vld [vmem:[%s140 + $0x7e0] sm:$0xff]
        %v423 = vld [vmem:[%s140 + $0x7e8] sm:$0xff]
        %v424 = vld [vmem:[%s140 + $0x7f0] sm:$0xff]
        %v425 = vld [vmem:[%s140 + $0x7f8] sm:$0xff]
        %v426 = vld [vmem:[%s140 + $0x800] sm:$0xff]
        %v427 = vld [vmem:[%s140 + $0x808] sm:$0xff]
        %v428 = vld [vmem:[%s140 + $0x810] sm:$0xff]
        %v429 = vld [vmem:[%s140 + $0x818] sm:$0xff]
        %v430 = vld [vmem:[%s140 + $0x820] sm:$0xff]
        %v431 = vld [vmem:[%s140 + $0x828] sm:$0xff]
        %v432 = vld [vmem:[%s140 + $0x830] sm:$0xff]
        %v433 = vld [vmem:[%s140 + $0x838] sm:$0xff]
        %v434 = vld [vmem:[%s140 + $0x840] sm:$0xff]
        %v435 = vld [vmem:[%s140 + $0x848] sm:$0xff]
        %v436 = vld [vmem:[%s140 + $0x850] sm:$0xff]
        %v437 = vld [vmem:[%s140 + $0x858] sm:$0xff]
        %v438 = vld [vmem:[%s140 + $0x860] sm:$0xff]
        %v439 = vld [vmem:[%s140 + $0x868] sm:$0xff]
        %v440 = vld [vmem:[%s140 + $0x870] sm:$0xff]
        %v441 = vld [vmem:[%s140 + $0x878] sm:$0xff]
        %v442 = vld [vmem:[%s140 + $0x880] sm:$0xff]
        %v443 = vld [vmem:[%s140 + $0x888] sm:$0xff]
        %v444 = vld [vmem:[%s140 + $0x890] sm:$0xff]
        %v445 = vld [vmem:[%s140 + $0x898] sm:$0xff]
        %v446 = vld [vmem:[%s140 + $0x8a0] sm:$0xff]
        %v447 = vld [vmem:[%s140 + $0x8a8] sm:$0xff]
        %v448 = vld [vmem:[%s140 + $0x8b0] sm:$0xff]
        %v449 = vld [vmem:[%s140 + $0x8b8] sm:$0xff]
        %v450 = vld [vmem:[%s140 + $0x8c0] sm:$0xff]
        %v451 = vld [vmem:[%s140 + $0x8c8] sm:$0xff]
        %v452 = vld [vmem:[%s140 + $0x8d0] sm:$0xff]
        %v453 = vld [vmem:[%s140 + $0x8d8] sm:$0xff]
        %v454 = vld [vmem:[%s140 + $0x8e0] sm:$0xff]
        %v455 = vld [vmem:[%s140 + $0x8e8] sm:$0xff]
        %v456 = vld [vmem:[%s140 + $0x8f0] sm:$0xff]
        %v457 = vld [vmem:[%s140 + $0x8f8] sm:$0xff]
        %v458 = vld [vmem:[%s140 + $0x900] sm:$0xff]
        %v459 = vld [vmem:[%s140 + $0x908] sm:$0xff]
        %v460 = vld [vmem:[%s140 + $0x910] sm:$0xff]
        %v461 = vld [vmem:[%s140 + $0x918] sm:$0xff]
        %v462 = vld [vmem:[%s140 + $0x920] sm:$0xff]
        %v463 = vld [vmem:[%s140 + $0x928] sm:$0xff]
        %v464 = vld [vmem:[%s140 + $0x930] sm:$0xff]
        %v465 = vld [vmem:[%s140 + $0x938] sm:$0xff]
        %v466 = vld [vmem:[%s140 + $0x940] sm:$0xff]
        %v467 = vld [vmem:[%s140 + $0x948] sm:$0xff]
        %v468 = vld [vmem:[%s140 + $0x950] sm:$0xff]
        %v469 = vld [vmem:[%s140 + $0x958] sm:$0xff]
        %v470 = vld [vmem:[%s140 + $0x960] sm:$0xff]
        %v471 = vld [vmem:[%s140 + $0x968] sm:$0xff]
        %v472 = vld [vmem:[%s140 + $0x970] sm:$0xff]
        %v473 = vld [vmem:[%s140 + $0x978] sm:$0xff]
        %v474 = vld [vmem:[%s140 + $0x980] sm:$0xff]
        %v475 = vld [vmem:[%s140 + $0x988] sm:$0xff]
        %v476 = vld [vmem:[%s140 + $0x990] sm:$0xff]
        %v477 = vld [vmem:[%s140 + $0x998] sm:$0xff]
        %v478 = vld [vmem:[%s140 + $0x9a0] sm:$0xff]
        %v479 = vld [vmem:[%s140 + $0x9a8] sm:$0xff]
        %v480 = vld [vmem:[%s140 + $0x9b0] sm:$0xff]
        %v481 = vld [vmem:[%s140 + $0x9b8] sm:$0xff]
        %v482 = vld [vmem:[%s140 + $0x9c0] sm:$0xff]
        %v483 = vld [vmem:[%s140 + $0x9c8] sm:$0xff]
        %v484 = vld [vmem:[%s140 + $0x9d0] sm:$0xff]
        %v485 = vld [vmem:[%s140 + $0x9d8] sm:$0xff]
        %v486 = vld [vmem:[%s140 + $0x9e0] sm:$0xff]
        %v487 = vld [vmem:[%s140 + $0x9e8] sm:$0xff]
        %v488 = vld [vmem:[%s140 + $0x9f0] sm:$0xff]
        %v489 = vld [vmem:[%s140 + $0x9f8] sm:$0xff]
        %v490 = vld [vmem:[%s140 + $0xa00] sm:$0xff]
        %v491 = vld [vmem:[%s140 + $0xa08] sm:$0xff]
        %v492 = vld [vmem:[%s140 + $0xa10] sm:$0xff]
        %v493 = vld [vmem:[%s140 + $0xa18] sm:$0xff]
        %v494 = vld [vmem:[%s140 + $0xa20] sm:$0xff]
        %v495 = vld [vmem:[%s140 + $0xa28] sm:$0xff]
        %v496 = vld [vmem:[%s140 + $0xa30] sm:$0xff]
        %v497 = vld [vmem:[%s140 + $0xa38] sm:$0xff]
        %v498 = vld [vmem:[%s140 + $0xa40] sm:$0xff]
        %v499 = vld [vmem:[%s140 + $0xa48] sm:$0xff]
        %v500 = vld [vmem:[%s140 + $0xa50] sm:$0xff]
        %v501 = vld [vmem:[%s140 + $0xa58] sm:$0xff]
        %v502 = vld [vmem:[%s140 + $0xa60] sm:$0xff]
        %v503 = vld [vmem:[%s140 + $0xa68] sm:$0xff]
        %v504 = vld [vmem:[%s140 + $0xa70] sm:$0xff]
        %v505 = vld [vmem:[%s140 + $0xa78] sm:$0xff]
        %v506 = vld [vmem:[%s140 + $0xa80] sm:$0xff]
        %v507 = vld [vmem:[%s140 + $0xa88] sm:$0xff]
        %v508 = vld [vmem:[%s140 + $0xa90] sm:$0xff]
        %v509 = vld [vmem:[%s140 + $0xa98] sm:$0xff]
        %v510 = vld [vmem:[%s140 + $0xaa0] sm:$0xff]
        %v511 = vld [vmem:[%s140 + $0xaa8] sm:$0xff]
        %v512 = vld [vmem:[%s140 + $0xab0] sm:$0xff]
        %v513 = vld [vmem:[%s140 + $0xab8] sm:$0xff]
        %v514 = vld [vmem:[%s140 + $0xac0] sm:$0xff]
        %v515 = vld [vmem:[%s140 + $0xac8] sm:$0xff]
        %v516 = vld [vmem:[%s140 + $0xad0] sm:$0xff]
        %v517 = vld [vmem:[%s140 + $0xad8] sm:$0xff]
        %v518 = vld [vmem:[%s140 + $0xae0] sm:$0xff]
        %v519 = vld [vmem:[%s140 + $0xae8] sm:$0xff]
        %v520 = vld [vmem:[%s140 + $0xaf0] sm:$0xff]
        %v521 = vld [vmem:[%s140 + $0xaf8] sm:$0xff]
        %v522 = vld [vmem:[%s140 + $0xb00] sm:$0xff]
        %v523 = vld [vmem:[%s140 + $0xb08] sm:$0xff]
        %v524 = vld [vmem:[%s140 + $0xb10] sm:$0xff]
        %v525 = vld [vmem:[%s140 + $0xb18] sm:$0xff]
        %v526 = vld [vmem:[%s140 + $0xb20] sm:$0xff]
        %v527 = vld [vmem:[%s140 + $0xb28] sm:$0xff]
        %v528 = vld [vmem:[%s140 + $0xb30] sm:$0xff]
        %v529 = vld [vmem:[%s140 + $0xb38] sm:$0xff]
        %v530 = vld [vmem:[%s140 + $0xb40] sm:$0xff]
        %v531 = vld [vmem:[%s140 + $0xb48] sm:$0xff]
        %v532 = vld [vmem:[%s140 + $0xb50] sm:$0xff]
        %v533 = vld [vmem:[%s140 + $0xb58] sm:$0xff]
        %v534 = vld [vmem:[%s140 + $0xb60] sm:$0xff]
        %v535 = vld [vmem:[%s140 + $0xb68] sm:$0xff]
        %v536 = vld [vmem:[%s140 + $0xb70] sm:$0xff]
        %v537 = vld [vmem:[%s140 + $0xb78] sm:$0xff]
        %v538 = vld [vmem:[%s140 + $0xb80] sm:$0xff]
        %v539 = vld [vmem:[%s140 + $0xb88] sm:$0xff]
        %v540 = vld [vmem:[%s140 + $0xb90] sm:$0xff]
        %v541 = vld [vmem:[%s140 + $0xb98] sm:$0xff]
        %v542 = vld [vmem:[%s140 + $0xba0] sm:$0xff]
        %v543 = vld [vmem:[%s140 + $0xba8] sm:$0xff]
        %v544 = vld [vmem:[%s140 + $0xbb0] sm:$0xff]
        %v545 = vld [vmem:[%s140 + $0xbb8] sm:$0xff]
        %v546 = vld [vmem:[%s140 + $0xbc0] sm:$0xff]
        %v547 = vld [vmem:[%s140 + $0xbc8] sm:$0xff]
        %v548 = vld [vmem:[%s140 + $0xbd0] sm:$0xff]
        %v549 = vld [vmem:[%s140 + $0xbd8] sm:$0xff]
        %v550 = vld [vmem:[%s140 + $0xbe0] sm:$0xff]
        %v551 = vld [vmem:[%s140 + $0xbe8] sm:$0xff]
        %v552 = vld [vmem:[%s140 + $0xbf0] sm:$0xff]
        %v553 = vld [vmem:[%s140 + $0xbf8] sm:$0xff]
        %v554 = vld [vmem:[%s140 + $0xc00] sm:$0xff]
        %v555 = vld [vmem:[%s140 + $0xc08] sm:$0xff]
        %v556 = vld [vmem:[%s140 + $0xc10] sm:$0xff]
        %v557 = vld [vmem:[%s140 + $0xc18] sm:$0xff]
        %v558 = vld [vmem:[%s140 + $0xc20] sm:$0xff]
        %v559 = vld [vmem:[%s140 + $0xc28] sm:$0xff]
        %v560 = vld [vmem:[%s140 + $0xc30] sm:$0xff]
        %v561 = vld [vmem:[%s140 + $0xc38] sm:$0xff]
        %v562 = vld [vmem:[%s140 + $0xc40] sm:$0xff]
        %v563 = vld [vmem:[%s140 + $0xc48] sm:$0xff]
        %v564 = vld [vmem:[%s140 + $0xc50] sm:$0xff]
        %v565 = vld [vmem:[%s140 + $0xc58] sm:$0xff]
        %v566 = vld [vmem:[%s140 + $0xc60] sm:$0xff]
        %v567 = vld [vmem:[%s140 + $0xc68] sm:$0xff]
        %v568 = vld [vmem:[%s140 + $0xc70] sm:$0xff]
        %v569 = vld [vmem:[%s140 + $0xc78] sm:$0xff]
        %v570 = vld [vmem:[%s140 + $0xc80] sm:$0xff]
        %v571 = vld [vmem:[%s140 + $0xc88] sm:$0xff]
        %v572 = vld [vmem:[%s140 + $0xc90] sm:$0xff]
        %v573 = vld [vmem:[%s140 + $0xc98] sm:$0xff]
        %v574 = vld [vmem:[%s140 + $0xca0] sm:$0xff]
        %v575 = vld [vmem:[%s140 + $0xca8] sm:$0xff]
        %v576 = vld [vmem:[%s140 + $0xcb0] sm:$0xff]
        %v577 = vld [vmem:[%s140 + $0xcb8] sm:$0xff]
        %v578 = vld [vmem:[%s140 + $0xcc0] sm:$0xff]
        %v579 = vld [vmem:[%s140 + $0xcc8] sm:$0xff]
        %v580 = vld [vmem:[%s140 + $0xcd0] sm:$0xff]
        %v581 = vld [vmem:[%s140 + $0xcd8] sm:$0xff]
        %v582 = vld [vmem:[%s140 + $0xce0] sm:$0xff]
        %v583 = vld [vmem:[%s140 + $0xce8] sm:$0xff]
        %v584 = vld [vmem:[%s140 + $0xcf0] sm:$0xff]
        %v585 = vld [vmem:[%s140 + $0xcf8] sm:$0xff]
        %v586 = vld [vmem:[%s140 + $0xd00] sm:$0xff]
        %v587 = vld [vmem:[%s140 + $0xd08] sm:$0xff]
        %v588 = vld [vmem:[%s140 + $0xd10] sm:$0xff]
        %v589 = vld [vmem:[%s140 + $0xd18] sm:$0xff]
        %v590 = vld [vmem:[%s140 + $0xd20] sm:$0xff]
        %v591 = vld [vmem:[%s140 + $0xd28] sm:$0xff]
        %v592 = vld [vmem:[%s140 + $0xd30] sm:$0xff]
        %v593 = vld [vmem:[%s140 + $0xd38] sm:$0xff]
        %v594 = vld [vmem:[%s140 + $0xd40] sm:$0xff]
        %v595 = vld [vmem:[%s140 + $0xd48] sm:$0xff]
        %v596 = vld [vmem:[%s140 + $0xd50] sm:$0xff]
        %v597 = vld [vmem:[%s140 + $0xd58] sm:$0xff]
        %v598 = vld [vmem:[%s140 + $0xd60] sm:$0xff]
        %v599 = vld [vmem:[%s140 + $0xd68] sm:$0xff]
        %v600 = vld [vmem:[%s140 + $0xd70] sm:$0xff]
        %v601 = vld [vmem:[%s140 + $0xd78] sm:$0xff]
        %v602 = vld [vmem:[%s140 + $0xd80] sm:$0xff]
        %v603 = vld [vmem:[%s140 + $0xd88] sm:$0xff]
        %v604 = vld [vmem:[%s140 + $0xd90] sm:$0xff]
        %v605 = vld [vmem:[%s140 + $0xd98] sm:$0xff]
        %v606 = vld [vmem:[%s140 + $0xda0] sm:$0xff]
        %v607 = vld [vmem:[%s140 + $0xda8] sm:$0xff]
        %v608 = vld [vmem:[%s140 + $0xdb0] sm:$0xff]
        %v609 = vld [vmem:[%s140 + $0xdb8] sm:$0xff]
        %v610 = vld [vmem:[%s140 + $0xdc0] sm:$0xff]
        %v611 = vld [vmem:[%s140 + $0xdc8] sm:$0xff]
        %v612 = vld [vmem:[%s140 + $0xdd0] sm:$0xff]
        %v613 = vld [vmem:[%s140 + $0xdd8] sm:$0xff]
        %v614 = vld [vmem:[%s140 + $0xde0] sm:$0xff]
        %v615 = vld [vmem:[%s140 + $0xde8] sm:$0xff]
        %v616 = vld [vmem:[%s140 + $0xdf0] sm:$0xff]
        %v617 = vld [vmem:[%s140 + $0xdf8] sm:$0xff]
        %v618 = vld [vmem:[%s140 + $0xe00] sm:$0xff]
        %v619 = vld [vmem:[%s140 + $0xe08] sm:$0xff]
        %v620 = vld [vmem:[%s140 + $0xe10] sm:$0xff]
        %v621 = vld [vmem:[%s140 + $0xe18] sm:$0xff]
        %v622 = vld [vmem:[%s140 + $0xe20] sm:$0xff]
        %v623 = vld [vmem:[%s140 + $0xe28] sm:$0xff]
        %v624 = vld [vmem:[%s140 + $0xe30] sm:$0xff]
        %v625 = vld [vmem:[%s140 + $0xe38] sm:$0xff]
        %v626 = vld [vmem:[%s140 + $0xe40] sm:$0xff]
        %v627 = vld [vmem:[%s140 + $0xe48] sm:$0xff]
        %v628 = vld [vmem:[%s140 + $0xe50] sm:$0xff]
        %v629 = vld [vmem:[%s140 + $0xe58] sm:$0xff]
        %v630 = vld [vmem:[%s140 + $0xe60] sm:$0xff]
        %v631 = vld [vmem:[%s140 + $0xe68] sm:$0xff]
        %v632 = vld [vmem:[%s140 + $0xe70] sm:$0xff]
        %v633 = vld [vmem:[%s140 + $0xe78] sm:$0xff]
        %v634 = vld [vmem:[%s140 + $0xe80] sm:$0xff]
        %v635 = vld [vmem:[%s140 + $0xe88] sm:$0xff]
        %v636 = vld [vmem:[%s140 + $0xe90] sm:$0xff]
        %v637 = vld [vmem:[%s140 + $0xe98] sm:$0xff]
        %v638 = vld [vmem:[%s140 + $0xea0] sm:$0xff]
        %v639 = vld [vmem:[%s140 + $0xea8] sm:$0xff]
        %v640 = vld [vmem:[%s140 + $0xeb0] sm:$0xff]
        %v641 = vld [vmem:[%s140 + $0xeb8] sm:$0xff]
        %v642 = vld [vmem:[%s140 + $0xec0] sm:$0xff]
        %v643 = vld [vmem:[%s140 + $0xec8] sm:$0xff]
        %v644 = vld [vmem:[%s140 + $0xed0] sm:$0xff]
        %v645 = vld [vmem:[%s140 + $0xed8] sm:$0xff]
        %v646 = vld [vmem:[%s140 + $0xee0] sm:$0xff]
        %v647 = vld [vmem:[%s140 + $0xee8] sm:$0xff]
        %v648 = vld [vmem:[%s140 + $0xef0] sm:$0xff]
        %v649 = vld [vmem:[%s140 + $0xef8] sm:$0xff]
        %v650 = vld [vmem:[%s140 + $0xf00] sm:$0xff]
        %v651 = vld [vmem:[%s140 + $0xf08] sm:$0xff]
        %v652 = vld [vmem:[%s140 + $0xf10] sm:$0xff]
        %v653 = vld [vmem:[%s140 + $0xf18] sm:$0xff]
        %v654 = vld [vmem:[%s140 + $0xf20] sm:$0xff]
        %v655 = vld [vmem:[%s140 + $0xf28] sm:$0xff]
        %v656 = vld [vmem:[%s140 + $0xf30] sm:$0xff]
        %v657 = vld [vmem:[%s140 + $0xf38] sm:$0xff]
        %v658 = vld [vmem:[%s140 + $0xf40] sm:$0xff]
        %v659 = vld [vmem:[%s140 + $0xf48] sm:$0xff]
        %v660 = vld [vmem:[%s140 + $0xf50] sm:$0xff]
        %v661 = vld [vmem:[%s140 + $0xf58] sm:$0xff]
        %v662 = vld [vmem:[%s140 + $0xf60] sm:$0xff]
        %v663 = vld [vmem:[%s140 + $0xf68] sm:$0xff]
        %v664 = vld [vmem:[%s140 + $0xf70] sm:$0xff]
        %v665 = vld [vmem:[%s140 + $0xf78] sm:$0xff]
        %v666 = vld [vmem:[%s140 + $0xf80] sm:$0xff]
        %v667 = vld [vmem:[%s140 + $0xf88] sm:$0xff]
        %v668 = vld [vmem:[%s140 + $0xf90] sm:$0xff]
        %v669 = vld [vmem:[%s140 + $0xf98] sm:$0xff]
        %v670 = vld [vmem:[%s140 + $0xfa0] sm:$0xff]
        %v671 = vld [vmem:[%s140 + $0xfa8] sm:$0xff]
        %v672 = vld [vmem:[%s140 + $0xfb0] sm:$0xff]
        %v673 = vld [vmem:[%s140 + $0xfb8] sm:$0xff]
        %v674 = vld [vmem:[%s140 + $0xfc0] sm:$0xff]
        %v675 = vld [vmem:[%s140 + $0xfc8] sm:$0xff]
        %v676 = vld [vmem:[%s140 + $0xfd0] sm:$0xff]
        %v677 = vld [vmem:[%s140 + $0xfd8] sm:$0xff]
        %v678 = vld [vmem:[%s140 + $0xfe0] sm:$0xff]
        %v679 = vld [vmem:[%s140 + $0xfe8] sm:$0xff]
        %v680 = vld [vmem:[%s140 + $0xff0] sm:$0xff]
        %v681 = vld [vmem:[%s140 + $0xff8] sm:$0xff]
        %v682 = vld [vmem:[%s140 + $0x1000] sm:$0xff]
        %v683 = vld [vmem:[%s140 + $0x1008] sm:$0xff]
        %v684 = vld [vmem:[%s140 + $0x1010] sm:$0xff]
        %v685 = vld [vmem:[%s140 + $0x1018] sm:$0xff]
        %v686 = vld [vmem:[%s140 + $0x1020] sm:$0xff]
        %v687 = vld [vmem:[%s140 + $0x1028] sm:$0xff]
        %v688 = vld [vmem:[%s140 + $0x1030] sm:$0xff]
        %v689 = vld [vmem:[%s140 + $0x1038] sm:$0xff]
        %v690 = vld [vmem:[%s140 + $0x1040] sm:$0xff]
        %v691 = vld [vmem:[%s140 + $0x1048] sm:$0xff]
        %v692 = vld [vmem:[%s140 + $0x1050] sm:$0xff]
        %v693 = vld [vmem:[%s140 + $0x1058] sm:$0xff]
        %v694 = vld [vmem:[%s140 + $0x1060] sm:$0xff]
        %v695 = vld [vmem:[%s140 + $0x1068] sm:$0xff]
        %v696 = vld [vmem:[%s140 + $0x1070] sm:$0xff]
        %v697 = vld [vmem:[%s140 + $0x1078] sm:$0xff]
        %v698 = vld [vmem:[%s140 + $0x1080] sm:$0xff]
        %v699 = vld [vmem:[%s140 + $0x1088] sm:$0xff]
        %v700 = vld [vmem:[%s140 + $0x1090] sm:$0xff]
        %v701 = vld [vmem:[%s140 + $0x1098] sm:$0xff]
        %v702 = vld [vmem:[%s140 + $0x10a0] sm:$0xff]
        %v703 = vld [vmem:[%s140 + $0x10a8] sm:$0xff]
        %v704 = vld [vmem:[%s140 + $0x10b0] sm:$0xff]
        %v705 = vld [vmem:[%s140 + $0x10b8] sm:$0xff]
        %v706 = vld [vmem:[%s140 + $0x10c0] sm:$0xff]
        %v707 = vld [vmem:[%s140 + $0x10c8] sm:$0xff]
        %v708 = vld [vmem:[%s140 + $0x10d0] sm:$0xff]
        %v709 = vld [vmem:[%s140 + $0x10d8] sm:$0xff]
        %v710 = vld [vmem:[%s140 + $0x10e0] sm:$0xff]
        %v711 = vld [vmem:[%s140 + $0x10e8] sm:$0xff]
        %v712 = vld [vmem:[%s140 + $0x10f0] sm:$0xff]
        %v713 = vld [vmem:[%s140 + $0x10f8] sm:$0xff]
        %v714 = vld [vmem:[%s140 + $0x1100] sm:$0xff]
        %v715 = vld [vmem:[%s140 + $0x1108] sm:$0xff]
        %v716 = vld [vmem:[%s140 + $0x1110] sm:$0xff]
        %v717 = vld [vmem:[%s140 + $0x1118] sm:$0xff]
        %v718 = vld [vmem:[%s140 + $0x1120] sm:$0xff]
        %v719 = vld [vmem:[%s140 + $0x1128] sm:$0xff]
        %v720 = vld [vmem:[%s140 + $0x1130] sm:$0xff]
        %v721 = vld [vmem:[%s140 + $0x1138] sm:$0xff]
        %v722 = vld [vmem:[%s140 + $0x1140] sm:$0xff]
        %v723 = vld [vmem:[%s140 + $0x1148] sm:$0xff]
        %v724 = vld [vmem:[%s140 + $0x1150] sm:$0xff]
        %v725 = vld [vmem:[%s140 + $0x1158] sm:$0xff]
        %v726 = vld [vmem:[%s140 + $0x1160] sm:$0xff]
        %v727 = vld [vmem:[%s140 + $0x1168] sm:$0xff]
        %v728 = vld [vmem:[%s140 + $0x1170] sm:$0xff]
        %v729 = vld [vmem:[%s140 + $0x1178] sm:$0xff]
        %v730 = vld [vmem:[%s140 + $0x1180] sm:$0xff]
        %v731 = vld [vmem:[%s140 + $0x1188] sm:$0xff]
        %v732 = vld [vmem:[%s140 + $0x1190] sm:$0xff]
        %v733 = vld [vmem:[%s140 + $0x1198] sm:$0xff]
        %v734 = vld [vmem:[%s140 + $0x11a0] sm:$0xff]
        %v735 = vld [vmem:[%s140 + $0x11a8] sm:$0xff]
        %v736 = vld [vmem:[%s140 + $0x11b0] sm:$0xff]
        %v737 = vld [vmem:[%s140 + $0x11b8] sm:$0xff]
        %v738 = vld [vmem:[%s140 + $0x11c0] sm:$0xff]
        %v739 = vld [vmem:[%s140 + $0x11c8] sm:$0xff]
        %v740 = vld [vmem:[%s140 + $0x11d0] sm:$0xff]
        %v741 = vld [vmem:[%s140 + $0x11d8] sm:$0xff]
        %v742 = vld [vmem:[%s140 + $0x11e0] sm:$0xff]
        %v743 = vld [vmem:[%s140 + $0x11e8] sm:$0xff]
        %v744 = vld [vmem:[%s140 + $0x11f0] sm:$0xff]
        %v745 = vld [vmem:[%s140 + $0x11f8] sm:$0xff]
        %v746 = vld [vmem:[%s140 + $0x1200] sm:$0xff]
        %v747 = vld [vmem:[%s140 + $0x1208] sm:$0xff]
        %v748 = vld [vmem:[%s140 + $0x1210] sm:$0xff]
        %v749 = vld [vmem:[%s140 + $0x1218] sm:$0xff]
        %v750 = vld [vmem:[%s140 + $0x1220] sm:$0xff]
        %v751 = vld [vmem:[%s140 + $0x1228] sm:$0xff]
        %v752 = vld [vmem:[%s140 + $0x1230] sm:$0xff]
        %v753 = vld [vmem:[%s140 + $0x1238] sm:$0xff]
        %v754 = vld [vmem:[%s140 + $0x1240] sm:$0xff]
        %v755 = vld [vmem:[%s140 + $0x1248] sm:$0xff]
        %v756 = vld [vmem:[%s140 + $0x1250] sm:$0xff]
        %v757 = vld [vmem:[%s140 + $0x1258] sm:$0xff]
        %v758 = vld [vmem:[%s140 + $0x1260] sm:$0xff]
        %v759 = vld [vmem:[%s140 + $0x1268] sm:$0xff]
        %v760 = vld [vmem:[%s140 + $0x1270] sm:$0xff]
        %v761 = vld [vmem:[%s140 + $0x1278] sm:$0xff]
        %v762 = vld [vmem:[%s140 + $0x1280] sm:$0xff]
        %v763 = vld [vmem:[%s140 + $0x1288] sm:$0xff]
        %v764 = vld [vmem:[%s140 + $0x1290] sm:$0xff]
        %v765 = vld [vmem:[%s140 + $0x1298] sm:$0xff]
        %v766 = vld [vmem:[%s140 + $0x12a0] sm:$0xff]
        %v767 = vld [vmem:[%s140 + $0x12a8] sm:$0xff]
        %v768 = vld [vmem:[%s140 + $0x12b0] sm:$0xff]
        %v769 = vld [vmem:[%s140 + $0x12b8] sm:$0xff]
        %v770 = vld [vmem:[%s140 + $0x12c0] sm:$0xff]
        %v771 = vld [vmem:[%s140 + $0x12c8] sm:$0xff]
        %v772 = vld [vmem:[%s140 + $0x12d0] sm:$0xff]
        %v773 = vld [vmem:[%s140 + $0x12d8] sm:$0xff]
        %v774 = vld [vmem:[%s140 + $0x12e0] sm:$0xff]
        %v775 = vld [vmem:[%s140 + $0x12e8] sm:$0xff]
        %v776 = vld [vmem:[%s140 + $0x12f0] sm:$0xff]
        %v777 = vld [vmem:[%s140 + $0x12f8] sm:$0xff]
        %v778 = vld [vmem:[%s140 + $0x1300] sm:$0xff]
        %v779 = vld [vmem:[%s140 + $0x1308] sm:$0xff]
        %v780 = vld [vmem:[%s140 + $0x1310] sm:$0xff]
        %v781 = vld [vmem:[%s140 + $0x1318] sm:$0xff]
        %v782 = vld [vmem:[%s140 + $0x1320] sm:$0xff]
        %v783 = vld [vmem:[%s140 + $0x1328] sm:$0xff]
        %v784 = vld [vmem:[%s140 + $0x1330] sm:$0xff]
        %v785 = vld [vmem:[%s140 + $0x1338] sm:$0xff]
        %v786 = vld [vmem:[%s140 + $0x1340] sm:$0xff]
        %v787 = vld [vmem:[%s140 + $0x1348] sm:$0xff]
        %v788 = vld [vmem:[%s140 + $0x1350] sm:$0xff]
        %v789 = vld [vmem:[%s140 + $0x1358] sm:$0xff]
        %v790 = vld [vmem:[%s140 + $0x1360] sm:$0xff]
        %v791 = vld [vmem:[%s140 + $0x1368] sm:$0xff]
        %v792 = vld [vmem:[%s140 + $0x1370] sm:$0xff]
        %v793 = vld [vmem:[%s140 + $0x1378] sm:$0xff]
        %v794 = vld [vmem:[%s140 + $0x1380] sm:$0xff]
        %v795 = vld [vmem:[%s140 + $0x1388] sm:$0xff]
        %v796 = vld [vmem:[%s140 + $0x1390] sm:$0xff]
        %v797 = vld [vmem:[%s140 + $0x1398] sm:$0xff]
        %v798 = vld [vmem:[%s140 + $0x13a0] sm:$0xff]
        %v799 = vld [vmem:[%s140 + $0x13a8] sm:$0xff]
        %v800 = vld [vmem:[%s140 + $0x13b0] sm:$0xff]
        %v801 = vld [vmem:[%s140 + $0x13b8] sm:$0xff]
        %v802 = vld [vmem:[%s140 + $0x13c0] sm:$0xff]
        %v803 = vld [vmem:[%s140 + $0x13c8] sm:$0xff]
        %v804 = vld [vmem:[%s140 + $0x13d0] sm:$0xff]
        %v805 = vld [vmem:[%s140 + $0x13d8] sm:$0xff]
        %v806 = vld [vmem:[%s140 + $0x13e0] sm:$0xff]
        %v807 = vld [vmem:[%s140 + $0x13e8] sm:$0xff]
        %v808 = vld [vmem:[%s140 + $0x13f0] sm:$0xff]
        %v809 = vld [vmem:[%s140 + $0x13f8] sm:$0xff]
        %v810 = vld [vmem:[%s140 + $0x1400] sm:$0xff]
        %v811 = vld [vmem:[%s140 + $0x1408] sm:$0xff]
        %v812 = vld [vmem:[%s140 + $0x1410] sm:$0xff]
        %v813 = vld [vmem:[%s140 + $0x1418] sm:$0xff]
        %v814 = vld [vmem:[%s140 + $0x1420] sm:$0xff]
        %v815 = vld [vmem:[%s140 + $0x1428] sm:$0xff]
        %v816 = vld [vmem:[%s140 + $0x1430] sm:$0xff]
        %v817 = vld [vmem:[%s140 + $0x1438] sm:$0xff]
        %v818 = vld [vmem:[%s140 + $0x1440] sm:$0xff]
        %v819 = vld [vmem:[%s140 + $0x1448] sm:$0xff]
        %v820 = vld [vmem:[%s140 + $0x1450] sm:$0xff]
        %v821 = vld [vmem:[%s140 + $0x1458] sm:$0xff]
        %v822 = vld [vmem:[%s140 + $0x1460] sm:$0xff]
        %v823 = vld [vmem:[%s140 + $0x1468] sm:$0xff]
        %v824 = vld [vmem:[%s140 + $0x1470] sm:$0xff]
        %v825 = vld [vmem:[%s140 + $0x1478] sm:$0xff]
        %v826 = vld [vmem:[%s140 + $0x1480] sm:$0xff]
        %v827 = vld [vmem:[%s140 + $0x1488] sm:$0xff]
        %v828 = vld [vmem:[%s140 + $0x1490] sm:$0xff]
        %v829 = vld [vmem:[%s140 + $0x1498] sm:$0xff]
        %v830 = vld [vmem:[%s140 + $0x14a0] sm:$0xff]
        %v831 = vld [vmem:[%s140 + $0x14a8] sm:$0xff]
        %v832 = vld [vmem:[%s140 + $0x14b0] sm:$0xff]
        %v833 = vld [vmem:[%s140 + $0x14b8] sm:$0xff]
        %v834 = vld [vmem:[%s140 + $0x14c0] sm:$0xff]
        %v835 = vld [vmem:[%s140 + $0x14c8] sm:$0xff]
        %v836 = vld [vmem:[%s140 + $0x14d0] sm:$0xff]
        %v837 = vld [vmem:[%s140 + $0x14d8] sm:$0xff]
        %v838 = vld [vmem:[%s140 + $0x14e0] sm:$0xff]
        %v839 = vld [vmem:[%s140 + $0x14e8] sm:$0xff]
        %v840 = vld [vmem:[%s140 + $0x14f0] sm:$0xff]
        %v841 = vld [vmem:[%s140 + $0x14f8] sm:$0xff]
        %v842 = vld [vmem:[%s140 + $0x1500] sm:$0xff]
        %v843 = vld [vmem:[%s140 + $0x1508] sm:$0xff]
        %v844 = vld [vmem:[%s140 + $0x1510] sm:$0xff]
        %v845 = vld [vmem:[%s140 + $0x1518] sm:$0xff]
        %v846 = vld [vmem:[%s140 + $0x1520] sm:$0xff]
        %v847 = vld [vmem:[%s140 + $0x1528] sm:$0xff]
        %v848 = vld [vmem:[%s140 + $0x1530] sm:$0xff]
        %v849 = vld [vmem:[%s140 + $0x1538] sm:$0xff]
        %v850 = vld [vmem:[%s140 + $0x1540] sm:$0xff]
        %v851 = vld [vmem:[%s140 + $0x1548] sm:$0xff]
        %v852 = vld [vmem:[%s140 + $0x1550] sm:$0xff]
        %v853 = vld [vmem:[%s140 + $0x1558] sm:$0xff]
        %v854 = vld [vmem:[%s140 + $0x1560] sm:$0xff]
        %v855 = vld [vmem:[%s140 + $0x1568] sm:$0xff]
        %v856 = vld [vmem:[%s140 + $0x1570] sm:$0xff]
        %v857 = vld [vmem:[%s140 + $0x1578] sm:$0xff]
        %v858 = vld [vmem:[%s140 + $0x1580] sm:$0xff]
        %v859 = vld [vmem:[%s140 + $0x1588] sm:$0xff]
        %v860 = vld [vmem:[%s140 + $0x1590] sm:$0xff]
        %v861 = vld [vmem:[%s140 + $0x1598] sm:$0xff]
        %v862 = vld [vmem:[%s140 + $0x15a0] sm:$0xff]
        %v863 = vld [vmem:[%s140 + $0x15a8] sm:$0xff]
        %v864 = vld [vmem:[%s140 + $0x15b0] sm:$0xff]
        %v865 = vld [vmem:[%s140 + $0x15b8] sm:$0xff]
        %v866 = vld [vmem:[%s140 + $0x15c0] sm:$0xff]
        %v867 = vld [vmem:[%s140 + $0x15c8] sm:$0xff]
        %v868 = vld [vmem:[%s140 + $0x15d0] sm:$0xff]
        %v869 = vld [vmem:[%s140 + $0x15d8] sm:$0xff]
        %v870 = vld [vmem:[%s140 + $0x15e0] sm:$0xff]
        %v871 = vld [vmem:[%s140 + $0x15e8] sm:$0xff]
        %v872 = vld [vmem:[%s140 + $0x15f0] sm:$0xff]
        %v873 = vld [vmem:[%s140 + $0x15f8] sm:$0xff]
        %v874 = vld [vmem:[%s140 + $0x1600] sm:$0xff]
        %v875 = vld [vmem:[%s140 + $0x1608] sm:$0xff]
        %v876 = vld [vmem:[%s140 + $0x1610] sm:$0xff]
        %v877 = vld [vmem:[%s140 + $0x1618] sm:$0xff]
        %v878 = vld [vmem:[%s140 + $0x1620] sm:$0xff]
        %v879 = vld [vmem:[%s140 + $0x1628] sm:$0xff]
        %v880 = vld [vmem:[%s140 + $0x1630] sm:$0xff]
        %v881 = vld [vmem:[%s140 + $0x1638] sm:$0xff]
        %v882 = vld [vmem:[%s140 + $0x1640] sm:$0xff]
        %v883 = vld [vmem:[%s140 + $0x1648] sm:$0xff]
        %v884 = vld [vmem:[%s140 + $0x1650] sm:$0xff]
        %v885 = vld [vmem:[%s140 + $0x1658] sm:$0xff]
        %v886 = vld [vmem:[%s140 + $0x1660] sm:$0xff]
        %v887 = vld [vmem:[%s140 + $0x1668] sm:$0xff]
        %v888 = vld [vmem:[%s140 + $0x1670] sm:$0xff]
        %v889 = vld [vmem:[%s140 + $0x1678] sm:$0xff]
        %v890 = vld [vmem:[%s140 + $0x1680] sm:$0xff]
        %v891 = vld [vmem:[%s140 + $0x1688] sm:$0xff]
        %v892 = vld [vmem:[%s140 + $0x1690] sm:$0xff]
        %v893 = vld [vmem:[%s140 + $0x1698] sm:$0xff]
        %v894 = vld [vmem:[%s140 + $0x16a0] sm:$0xff]
        %v895 = vld [vmem:[%s140 + $0x16a8] sm:$0xff]
        %v896 = vld [vmem:[%s140 + $0x16b0] sm:$0xff]
        %v897 = vld [vmem:[%s140 + $0x16b8] sm:$0xff]
        %v898 = vld [vmem:[%s140 + $0x16c0] sm:$0xff]
        %v899 = vld [vmem:[%s140 + $0x16c8] sm:$0xff]
        %v900 = vld [vmem:[%s140 + $0x16d0] sm:$0xff]
        %v901 = vld [vmem:[%s140 + $0x16d8] sm:$0xff]
        %v902 = vld [vmem:[%s140 + $0x16e0] sm:$0xff]
        %v903 = vld [vmem:[%s140 + $0x16e8] sm:$0xff]
        %v904 = vld [vmem:[%s140 + $0x16f0] sm:$0xff]
        %v905 = vld [vmem:[%s140 + $0x16f8] sm:$0xff]
        %v906 = vld [vmem:[%s140 + $0x1700] sm:$0xff]
        %v907 = vld [vmem:[%s140 + $0x1708] sm:$0xff]
        %v908 = vld [vmem:[%s140 + $0x1710] sm:$0xff]
        %v909 = vld [vmem:[%s140 + $0x1718] sm:$0xff]
        %v910 = vld [vmem:[%s140 + $0x1720] sm:$0xff]
        %v911 = vld [vmem:[%s140 + $0x1728] sm:$0xff]
        %v912 = vld [vmem:[%s140 + $0x1730] sm:$0xff]
        %v913 = vld [vmem:[%s140 + $0x1738] sm:$0xff]
        %v914 = vld [vmem:[%s140 + $0x1740] sm:$0xff]
        %v915 = vld [vmem:[%s140 + $0x1748] sm:$0xff]
        %v916 = vld [vmem:[%s140 + $0x1750] sm:$0xff]
        %v917 = vld [vmem:[%s140 + $0x1758] sm:$0xff]
        %v918 = vld [vmem:[%s140 + $0x1760] sm:$0xff]
        %v919 = vld [vmem:[%s140 + $0x1768] sm:$0xff]
        %v920 = vld [vmem:[%s140 + $0x1770] sm:$0xff]
        %v921 = vld [vmem:[%s140 + $0x1778] sm:$0xff]
        %v922 = vld [vmem:[%s140 + $0x1780] sm:$0xff]
        %v923 = vld [vmem:[%s140 + $0x1788] sm:$0xff]
        %v924 = vld [vmem:[%s140 + $0x1790] sm:$0xff]
        %v925 = vld [vmem:[%s140 + $0x1798] sm:$0xff]
        %v926 = vld [vmem:[%s140 + $0x17a0] sm:$0xff]
        %v927 = vld [vmem:[%s140 + $0x17a8] sm:$0xff]
        %v928 = vld [vmem:[%s140 + $0x17b0] sm:$0xff]
        %v929 = vld [vmem:[%s140 + $0x17b8] sm:$0xff]
        %v930 = vld [vmem:[%s140 + $0x17c0] sm:$0xff]
        %v931 = vld [vmem:[%s140 + $0x17c8] sm:$0xff]
        %v932 = vld [vmem:[%s140 + $0x17d0] sm:$0xff]
        %v933 = vld [vmem:[%s140 + $0x17d8] sm:$0xff]
        %v934 = vld [vmem:[%s140 + $0x17e0] sm:$0xff]
        %v935 = vld [vmem:[%s140 + $0x17e8] sm:$0xff]
        %v936 = vld [vmem:[%s140 + $0x17f0] sm:$0xff]
        %v937 = vld [vmem:[%s140 + $0x17f8] sm:$0xff]
        %v938 = vld [vmem:[%s140 + $0x1800] sm:$0xff]
        %v939 = vld [vmem:[%s140 + $0x1808] sm:$0xff]
        %v940 = vld [vmem:[%s140 + $0x1810] sm:$0xff]
        %v941 = vld [vmem:[%s140 + $0x1818] sm:$0xff]
        %v942 = vld [vmem:[%s140 + $0x1820] sm:$0xff]
        %v943 = vld [vmem:[%s140 + $0x1828] sm:$0xff]
        %v944 = vld [vmem:[%s140 + $0x1830] sm:$0xff]
        %v945 = vld [vmem:[%s140 + $0x1838] sm:$0xff]
        %v946 = vld [vmem:[%s140 + $0x1840] sm:$0xff]
        %v947 = vld [vmem:[%s140 + $0x1848] sm:$0xff]
        %v948 = vld [vmem:[%s140 + $0x1850] sm:$0xff]
        %v949 = vld [vmem:[%s140 + $0x1858] sm:$0xff]
        %v950 = vld [vmem:[%s140 + $0x1860] sm:$0xff]
        %v951 = vld [vmem:[%s140 + $0x1868] sm:$0xff]
        %v952 = vld [vmem:[%s140 + $0x1870] sm:$0xff]
        %v953 = vld [vmem:[%s140 + $0x1878] sm:$0xff]
        %v954 = vld [vmem:[%s140 + $0x1880] sm:$0xff]
        %v955 = vld [vmem:[%s140 + $0x1888] sm:$0xff]
        %v956 = vld [vmem:[%s140 + $0x1890] sm:$0xff]
        %v957 = vld [vmem:[%s140 + $0x1898] sm:$0xff]
        %v958 = vld [vmem:[%s140 + $0x18a0] sm:$0xff]
        %v959 = vld [vmem:[%s140 + $0x18a8] sm:$0xff]
        %v960 = vld [vmem:[%s140 + $0x18b0] sm:$0xff]
        %v961 = vld [vmem:[%s140 + $0x18b8] sm:$0xff]
        %v962 = vld [vmem:[%s140 + $0x18c0] sm:$0xff]
        %v963 = vld [vmem:[%s140 + $0x18c8] sm:$0xff]
        %v964 = vld [vmem:[%s140 + $0x18d0] sm:$0xff]
        %v965 = vld [vmem:[%s140 + $0x18d8] sm:$0xff]
        %v966 = vld [vmem:[%s140 + $0x18e0] sm:$0xff]
        %v967 = vld [vmem:[%s140 + $0x18e8] sm:$0xff]
        %v968 = vld [vmem:[%s140 + $0x18f0] sm:$0xff]
        %v969 = vld [vmem:[%s140 + $0x18f8] sm:$0xff]
        %v970 = vld [vmem:[%s140 + $0x1900] sm:$0xff]
        %v971 = vld [vmem:[%s140 + $0x1908] sm:$0xff]
        %v972 = vld [vmem:[%s140 + $0x1910] sm:$0xff]
        %v973 = vld [vmem:[%s140 + $0x1918] sm:$0xff]
        %v974 = vld [vmem:[%s140 + $0x1920] sm:$0xff]
        %v975 = vld [vmem:[%s140 + $0x1928] sm:$0xff]
        %v976 = vld [vmem:[%s140 + $0x1930] sm:$0xff]
        %v977 = vld [vmem:[%s140 + $0x1938] sm:$0xff]
        %v978 = vld [vmem:[%s140 + $0x1940] sm:$0xff]
        %v979 = vld [vmem:[%s140 + $0x1948] sm:$0xff]
        %v980 = vld [vmem:[%s140 + $0x1950] sm:$0xff]
        %v981 = vld [vmem:[%s140 + $0x1958] sm:$0xff]
        %v982 = vld [vmem:[%s140 + $0x1960] sm:$0xff]
        %v983 = vld [vmem:[%s140 + $0x1968] sm:$0xff]
        %v984 = vld [vmem:[%s140 + $0x1970] sm:$0xff]
        %v985 = vld [vmem:[%s140 + $0x1978] sm:$0xff]
        %v986 = vld [vmem:[%s140 + $0x1980] sm:$0xff]
        %v987 = vld [vmem:[%s140 + $0x1988] sm:$0xff]
        %v988 = vld [vmem:[%s140 + $0x1990] sm:$0xff]
        %v989 = vld [vmem:[%s140 + $0x1998] sm:$0xff]
        %v990 = vld [vmem:[%s140 + $0x19a0] sm:$0xff]
        %v991 = vld [vmem:[%s140 + $0x19a8] sm:$0xff]
        %v992 = vld [vmem:[%s140 + $0x19b0] sm:$0xff]
        %v993 = vld [vmem:[%s140 + $0x19b8] sm:$0xff]
        %v994 = vld [vmem:[%s140 + $0x19c0] sm:$0xff]
        %v995 = vld [vmem:[%s140 + $0x19c8] sm:$0xff]
        %v996 = vld [vmem:[%s140 + $0x19d0] sm:$0xff]
        %v997 = vld [vmem:[%s140 + $0x19d8] sm:$0xff]
        %v998 = vld [vmem:[%s140 + $0x19e0] sm:$0xff]
        %v999 = vld [vmem:[%s140 + $0x19e8] sm:$0xff]
        %v1000 = vld [vmem:[%s140 + $0x19f0] sm:$0xff]
        %v1001 = vld [vmem:[%s140 + $0x19f8] sm:$0xff]
        %v1002 = vld [vmem:[%s140 + $0x1a00] sm:$0xff]
        %v1003 = vld [vmem:[%s140 + $0x1a08] sm:$0xff]
        %v1004 = vld [vmem:[%s140 + $0x1a10] sm:$0xff]
        %v1005 = vld [vmem:[%s140 + $0x1a18] sm:$0xff]
        %v1006 = vld [vmem:[%s140 + $0x1a20] sm:$0xff]
        %v1007 = vld [vmem:[%s140 + $0x1a28] sm:$0xff]
        %v1008 = vld [vmem:[%s140 + $0x1a30] sm:$0xff]
        %v1009 = vld [vmem:[%s140 + $0x1a38] sm:$0xff]
        %v1010 = vld [vmem:[%s140 + $0x1a40] sm:$0xff]
        %v1011 = vld [vmem:[%s140 + $0x1a48] sm:$0xff]
        %v1012 = vld [vmem:[%s140 + $0x1a50] sm:$0xff]
        %v1013 = vld [vmem:[%s140 + $0x1a58] sm:$0xff]
        %v1014 = vld [vmem:[%s140 + $0x1a60] sm:$0xff]
        %v1015 = vld [vmem:[%s140 + $0x1a68] sm:$0xff]
        %v1016 = vld [vmem:[%s140 + $0x1a70] sm:$0xff]
        %v1017 = vld [vmem:[%s140 + $0x1a78] sm:$0xff]
        %v1018 = vld [vmem:[%s140 + $0x1a80] sm:$0xff]
        %v1019 = vld [vmem:[%s140 + $0x1a88] sm:$0xff]
        %v1020 = vld [vmem:[%s140 + $0x1a90] sm:$0xff]
        %v1021 = vld [vmem:[%s140 + $0x1a98] sm:$0xff]
        %v1022 = vld [vmem:[%s140 + $0x1aa0] sm:$0xff]
        %v1023 = vld [vmem:[%s140 + $0x1aa8] sm:$0xff]
        %v1024 = vld [vmem:[%s140 + $0x1ab0] sm:$0xff]
        %v1025 = vld [vmem:[%s140 + $0x1ab8] sm:$0xff]
        %v1026 = vld [vmem:[%s140 + $0x1ac0] sm:$0xff]
        %v1027 = vld [vmem:[%s140 + $0x1ac8] sm:$0xff]
        %v1028 = vld [vmem:[%s140 + $0x1ad0] sm:$0xff]
        %v1029 = vld [vmem:[%s140 + $0x1ad8] sm:$0xff]
        %v1030 = vld [vmem:[%s140 + $0x1ae0] sm:$0xff]
        %v1031 = vld [vmem:[%s140 + $0x1ae8] sm:$0xff]
        %v1032 = vld [vmem:[%s140 + $0x1af0] sm:$0xff]
        %v1033 = vld [vmem:[%s140 + $0x1af8] sm:$0xff]
        %v1034 = vld [vmem:[%s140 + $0x1b00] sm:$0xff]
        %v1035 = vld [vmem:[%s140 + $0x1b08] sm:$0xff]
        %v1036 = vld [vmem:[%s140 + $0x1b10] sm:$0xff]
        %v1037 = vld [vmem:[%s140 + $0x1b18] sm:$0xff]
        %v1038 = vld [vmem:[%s140 + $0x1b20] sm:$0xff]
        %v1039 = vld [vmem:[%s140 + $0x1b28] sm:$0xff]
        %v1040 = vld [vmem:[%s140 + $0x1b30] sm:$0xff]
        %v1041 = vld [vmem:[%s140 + $0x1b38] sm:$0xff]
        %v1042 = vld [vmem:[%s140 + $0x1b40] sm:$0xff]
        %v1043 = vld [vmem:[%s140 + $0x1b48] sm:$0xff]
        %v1044 = vld [vmem:[%s140 + $0x1b50] sm:$0xff]
        %v1045 = vld [vmem:[%s140 + $0x1b58] sm:$0xff]
        %v1046 = vld [vmem:[%s140 + $0x1b60] sm:$0xff]
        %v1047 = vld [vmem:[%s140 + $0x1b68] sm:$0xff]
        %v1048 = vld [vmem:[%s140 + $0x1b70] sm:$0xff]
        %v1049 = vld [vmem:[%s140 + $0x1b78] sm:$0xff]
        %v1050 = vld [vmem:[%s140 + $0x1b80] sm:$0xff]
        %v1051 = vld [vmem:[%s140 + $0x1b88] sm:$0xff]
        %v1052 = vld [vmem:[%s140 + $0x1b90] sm:$0xff]
        %v1053 = vld [vmem:[%s140 + $0x1b98] sm:$0xff]
        %v1054 = vld [vmem:[%s140 + $0x1ba0] sm:$0xff]
        %v1055 = vld [vmem:[%s140 + $0x1ba8] sm:$0xff]
        %v1056 = vld [vmem:[%s140 + $0x1bb0] sm:$0xff]
        %v1057 = vld [vmem:[%s140 + $0x1bb8] sm:$0xff]
        %v1058 = vld [vmem:[%s140 + $0x1bc0] sm:$0xff]
        %v1059 = vld [vmem:[%s140 + $0x1bc8] sm:$0xff]
        %v1060 = vld [vmem:[%s140 + $0x1bd0] sm:$0xff]
        %v1061 = vld [vmem:[%s140 + $0x1bd8] sm:$0xff]
        %v1062 = vld [vmem:[%s140 + $0x1be0] sm:$0xff]
        %v1063 = vld [vmem:[%s140 + $0x1be8] sm:$0xff]
        %v1064 = vld [vmem:[%s140 + $0x1bf0] sm:$0xff]
        %v1065 = vld [vmem:[%s140 + $0x1bf8] sm:$0xff]
        %v1066 = vld [vmem:[%s140 + $0x1c00] sm:$0xff]
        %v1067 = vld [vmem:[%s140 + $0x1c08] sm:$0xff]
        %v1068 = vld [vmem:[%s140 + $0x1c10] sm:$0xff]
        %v1069 = vld [vmem:[%s140 + $0x1c18] sm:$0xff]
        %v1070 = vld [vmem:[%s140 + $0x1c20] sm:$0xff]
        %v1071 = vld [vmem:[%s140 + $0x1c28] sm:$0xff]
        %v1072 = vld [vmem:[%s140 + $0x1c30] sm:$0xff]
        %v1073 = vld [vmem:[%s140 + $0x1c38] sm:$0xff]
        %v1074 = vld [vmem:[%s140 + $0x1c40] sm:$0xff]
        %v1075 = vld [vmem:[%s140 + $0x1c48] sm:$0xff]
        %v1076 = vld [vmem:[%s140 + $0x1c50] sm:$0xff]
        %v1077 = vld [vmem:[%s140 + $0x1c58] sm:$0xff]
        %v1078 = vld [vmem:[%s140 + $0x1c60] sm:$0xff]
        %v1079 = vld [vmem:[%s140 + $0x1c68] sm:$0xff]
        %v1080 = vld [vmem:[%s140 + $0x1c70] sm:$0xff]
        %v1081 = vld [vmem:[%s140 + $0x1c78] sm:$0xff]
        %v1082 = vld [vmem:[%s140 + $0x1c80] sm:$0xff]
        %v1083 = vld [vmem:[%s140 + $0x1c88] sm:$0xff]
        %v1084 = vld [vmem:[%s140 + $0x1c90] sm:$0xff]
        %v1085 = vld [vmem:[%s140 + $0x1c98] sm:$0xff]
        %v1086 = vld [vmem:[%s140 + $0x1ca0] sm:$0xff]
        %v1087 = vld [vmem:[%s140 + $0x1ca8] sm:$0xff]
        %v1088 = vld [vmem:[%s140 + $0x1cb0] sm:$0xff]
        %v1089 = vld [vmem:[%s140 + $0x1cb8] sm:$0xff]
        %v1090 = vld [vmem:[%s140 + $0x1cc0] sm:$0xff]
        %v1091 = vld [vmem:[%s140 + $0x1cc8] sm:$0xff]
        %v1092 = vld [vmem:[%s140 + $0x1cd0] sm:$0xff]
        %v1093 = vld [vmem:[%s140 + $0x1cd8] sm:$0xff]
        %v1094 = vld [vmem:[%s140 + $0x1ce0] sm:$0xff]
        %v1095 = vld [vmem:[%s140 + $0x1ce8] sm:$0xff]
        %v1096 = vld [vmem:[%s140 + $0x1cf0] sm:$0xff]
        %v1097 = vld [vmem:[%s140 + $0x1cf8] sm:$0xff]
        %v1098 = vld [vmem:[%s140 + $0x1d00] sm:$0xff]
        %v1099 = vld [vmem:[%s140 + $0x1d08] sm:$0xff]
        %v1100 = vld [vmem:[%s140 + $0x1d10] sm:$0xff]
        %v1101 = vld [vmem:[%s140 + $0x1d18] sm:$0xff]
        %v1102 = vld [vmem:[%s140 + $0x1d20] sm:$0xff]
        %v1103 = vld [vmem:[%s140 + $0x1d28] sm:$0xff]
        %v1104 = vld [vmem:[%s140 + $0x1d30] sm:$0xff]
        %v1105 = vld [vmem:[%s140 + $0x1d38] sm:$0xff]
        %v1106 = vld [vmem:[%s140 + $0x1d40] sm:$0xff]
        %v1107 = vld [vmem:[%s140 + $0x1d48] sm:$0xff]
        %v1108 = vld [vmem:[%s140 + $0x1d50] sm:$0xff]
        %v1109 = vld [vmem:[%s140 + $0x1d58] sm:$0xff]
        %v1110 = vld [vmem:[%s140 + $0x1d60] sm:$0xff]
        %v1111 = vld [vmem:[%s140 + $0x1d68] sm:$0xff]
        %v1112 = vld [vmem:[%s140 + $0x1d70] sm:$0xff]
        %v1113 = vld [vmem:[%s140 + $0x1d78] sm:$0xff]
        %v1114 = vld [vmem:[%s140 + $0x1d80] sm:$0xff]
        %v1115 = vld [vmem:[%s140 + $0x1d88] sm:$0xff]
        %v1116 = vld [vmem:[%s140 + $0x1d90] sm:$0xff]
        %v1117 = vld [vmem:[%s140 + $0x1d98] sm:$0xff]
        %v1118 = vld [vmem:[%s140 + $0x1da0] sm:$0xff]
        %v1119 = vld [vmem:[%s140 + $0x1da8] sm:$0xff]
        %v1120 = vld [vmem:[%s140 + $0x1db0] sm:$0xff]
        %v1121 = vld [vmem:[%s140 + $0x1db8] sm:$0xff]
        %v1122 = vld [vmem:[%s140 + $0x1dc0] sm:$0xff]
        %v1123 = vld [vmem:[%s140 + $0x1dc8] sm:$0xff]
        %v1124 = vld [vmem:[%s140 + $0x1dd0] sm:$0xff]
        %v1125 = vld [vmem:[%s140 + $0x1dd8] sm:$0xff]
        %v1126 = vld [vmem:[%s140 + $0x1de0] sm:$0xff]
        %v1127 = vld [vmem:[%s140 + $0x1de8] sm:$0xff]
        %v1128 = vld [vmem:[%s140 + $0x1df0] sm:$0xff]
        %v1129 = vld [vmem:[%s140 + $0x1df8] sm:$0xff]
        %v1130 = vld [vmem:[%s140 + $0x1e00] sm:$0xff]
        %v1131 = vld [vmem:[%s140 + $0x1e08] sm:$0xff]
        %v1132 = vld [vmem:[%s140 + $0x1e10] sm:$0xff]
        %v1133 = vld [vmem:[%s140 + $0x1e18] sm:$0xff]
        %v1134 = vld [vmem:[%s140 + $0x1e20] sm:$0xff]
        %v1135 = vld [vmem:[%s140 + $0x1e28] sm:$0xff]
        %v1136 = vld [vmem:[%s140 + $0x1e30] sm:$0xff]
        %v1137 = vld [vmem:[%s140 + $0x1e38] sm:$0xff]
        %v1138 = vld [vmem:[%s140 + $0x1e40] sm:$0xff]
        %v1139 = vld [vmem:[%s140 + $0x1e48] sm:$0xff]
        %v1140 = vld [vmem:[%s140 + $0x1e50] sm:$0xff]
        %v1141 = vld [vmem:[%s140 + $0x1e58] sm:$0xff]
        %v1142 = vld [vmem:[%s140 + $0x1e60] sm:$0xff]
        %v1143 = vld [vmem:[%s140 + $0x1e68] sm:$0xff]
        %v1144 = vld [vmem:[%s140 + $0x1e70] sm:$0xff]
        %v1145 = vld [vmem:[%s140 + $0x1e78] sm:$0xff]
        %v1146 = vld [vmem:[%s140 + $0x1e80] sm:$0xff]
        %v1147 = vld [vmem:[%s140 + $0x1e88] sm:$0xff]
        %v1148 = vld [vmem:[%s140 + $0x1e90] sm:$0xff]
        %v1149 = vld [vmem:[%s140 + $0x1e98] sm:$0xff]
        %v1150 = vld [vmem:[%s140 + $0x1ea0] sm:$0xff]
        %v1151 = vld [vmem:[%s140 + $0x1ea8] sm:$0xff]
        %v1152 = vld [vmem:[%s140 + $0x1eb0] sm:$0xff]
        %v1153 = vld [vmem:[%s140 + $0x1eb8] sm:$0xff]
        %v1154 = vld [vmem:[%s140 + $0x1ec0] sm:$0xff]
        %v1155 = vld [vmem:[%s140 + $0x1ec8] sm:$0xff]
        %v1156 = vld [vmem:[%s140 + $0x1ed0] sm:$0xff]
        %v1157 = vld [vmem:[%s140 + $0x1ed8] sm:$0xff]
        %v1158 = vld [vmem:[%s140 + $0x1ee0] sm:$0xff]
        %v1159 = vld [vmem:[%s140 + $0x1ee8] sm:$0xff]
        %v1160 = vld [vmem:[%s140 + $0x1ef0] sm:$0xff]
        %v1161 = vld [vmem:[%s140 + $0x1ef8] sm:$0xff]
        %v1162 = vld [vmem:[%s140 + $0x1f00] sm:$0xff]
        %v1163 = vld [vmem:[%s140 + $0x1f08] sm:$0xff]
        %v1164 = vld [vmem:[%s140 + $0x1f10] sm:$0xff]
        %v1165 = vld [vmem:[%s140 + $0x1f18] sm:$0xff]
        %v1166 = vld [vmem:[%s140 + $0x1f20] sm:$0xff]
        %v1167 = vld [vmem:[%s140 + $0x1f28] sm:$0xff]
        %v1168 = vld [vmem:[%s140 + $0x1f30] sm:$0xff]
        %v1169 = vld [vmem:[%s140 + $0x1f38] sm:$0xff]
        %v1170 = vld [vmem:[%s140 + $0x1f40] sm:$0xff]
        %v1171 = vld [vmem:[%s140 + $0x1f48] sm:$0xff]
        %v1172 = vld [vmem:[%s140 + $0x1f50] sm:$0xff]
        %v1173 = vld [vmem:[%s140 + $0x1f58] sm:$0xff]
        %v1174 = vld [vmem:[%s140 + $0x1f60] sm:$0xff]
        %v1175 = vld [vmem:[%s140 + $0x1f68] sm:$0xff]
        %v1176 = vld [vmem:[%s140 + $0x1f70] sm:$0xff]
        %v1177 = vld [vmem:[%s140 + $0x1f78] sm:$0xff]
        %v1178 = vld [vmem:[%s140 + $0x1f80] sm:$0xff]
        %v1179 = vld [vmem:[%s140 + $0x1f88] sm:$0xff]
        %v1180 = vld [vmem:[%s140 + $0x1f90] sm:$0xff]
        %v1181 = vld [vmem:[%s140 + $0x1f98] sm:$0xff]
        %v1182 = vld [vmem:[%s140 + $0x1fa0] sm:$0xff]
        %v1183 = vld [vmem:[%s140 + $0x1fa8] sm:$0xff]
        %v1184 = vld [vmem:[%s140 + $0x1fb0] sm:$0xff]
        %v1185 = vld [vmem:[%s140 + $0x1fb8] sm:$0xff]
        %v1186 = vld [vmem:[%s140 + $0x1fc0] sm:$0xff]
        %v1187 = vld [vmem:[%s140 + $0x1fc8] sm:$0xff]
        %v1188 = vld [vmem:[%s140 + $0x1fd0] sm:$0xff]
        %v1189 = vld [vmem:[%s140 + $0x1fd8] sm:$0xff]
        %v1190 = vld [vmem:[%s140 + $0x1fe0] sm:$0xff]
        %v1191 = vld [vmem:[%s140 + $0x1fe8] sm:$0xff]
        %v1192 = vld [vmem:[%s140 + $0x1ff0] sm:$0xff]
        %v1193 = vld [vmem:[%s140 + $0x1ff8] sm:$0xff]
        %v1194 = vand.u32 2147483647, %v170
        %v1195 = vand.u32 2147483647, %v171
        %v1196 = vand.u32 2147483647, %v172
        %v1197 = vand.u32 2147483647, %v173
        %v1198 = vand.u32 2147483647, %v174
        %v1199 = vand.u32 2147483647, %v175
        %v1200 = vand.u32 2147483647, %v176
        %v1201 = vand.u32 2147483647, %v177
        %v1202 = vand.u32 2147483647, %v178
        %v1203 = vand.u32 2147483647, %v179
        %v1204 = vand.u32 2147483647, %v180
        %v1205 = vand.u32 2147483647, %v181
        %v1206 = vand.u32 2147483647, %v182
        %v1207 = vand.u32 2147483647, %v183
        %v1208 = vand.u32 2147483647, %v184
        %v1209 = vand.u32 2147483647, %v185
        %v1210 = vand.u32 2147483647, %v186
        %v1211 = vand.u32 2147483647, %v187
        %v1212 = vand.u32 2147483647, %v188
        %v1213 = vand.u32 2147483647, %v189
        %v1214 = vand.u32 2147483647, %v190
        %v1215 = vand.u32 2147483647, %v191
        %v1216 = vand.u32 2147483647, %v192
        %v1217 = vand.u32 2147483647, %v193
        %v1218 = vand.u32 2147483647, %v194
        %v1219 = vand.u32 2147483647, %v195
        %v1220 = vand.u32 2147483647, %v196
        %v1221 = vand.u32 2147483647, %v197
        %v1222 = vand.u32 2147483647, %v198
        %v1223 = vand.u32 2147483647, %v199
        %v1224 = vand.u32 2147483647, %v200
        %v1225 = vand.u32 2147483647, %v201
        %v1226 = vand.u32 2147483647, %v202
        %v1227 = vand.u32 2147483647, %v203
        %v1228 = vand.u32 2147483647, %v204
        %v1229 = vand.u32 2147483647, %v205
        %v1230 = vand.u32 2147483647, %v206
        %v1231 = vand.u32 2147483647, %v207
        %v1232 = vand.u32 2147483647, %v208
        %v1233 = vand.u32 2147483647, %v209
        %v1234 = vand.u32 2147483647, %v210
        %v1235 = vand.u32 2147483647, %v211
        %v1236 = vand.u32 2147483647, %v212
        %v1237 = vand.u32 2147483647, %v213
        %v1238 = vand.u32 2147483647, %v214
        %v1239 = vand.u32 2147483647, %v215
        %v1240 = vand.u32 2147483647, %v216
        %v1241 = vand.u32 2147483647, %v217
        %v1242 = vand.u32 2147483647, %v218
        %v1243 = vand.u32 2147483647, %v219
        %v1244 = vand.u32 2147483647, %v220
        %v1245 = vand.u32 2147483647, %v221
        %v1246 = vand.u32 2147483647, %v222
        %v1247 = vand.u32 2147483647, %v223
        %v1248 = vand.u32 2147483647, %v224
        %v1249 = vand.u32 2147483647, %v225
        %v1250 = vand.u32 2147483647, %v226
        %v1251 = vand.u32 2147483647, %v227
        %v1252 = vand.u32 2147483647, %v228
        %v1253 = vand.u32 2147483647, %v229
        %v1254 = vand.u32 2147483647, %v230
        %v1255 = vand.u32 2147483647, %v231
        %v1256 = vand.u32 2147483647, %v232
        %v1257 = vand.u32 2147483647, %v233
        %v1258 = vand.u32 2147483647, %v234
        %v1259 = vand.u32 2147483647, %v235
        %v1260 = vand.u32 2147483647, %v236
        %v1261 = vand.u32 2147483647, %v237
        %v1262 = vand.u32 2147483647, %v238
        %v1263 = vand.u32 2147483647, %v239
        %v1264 = vand.u32 2147483647, %v240
        %v1265 = vand.u32 2147483647, %v241
        %v1266 = vand.u32 2147483647, %v242
        %v1267 = vand.u32 2147483647, %v243
        %v1268 = vand.u32 2147483647, %v244
        %v1269 = vand.u32 2147483647, %v245
        %v1270 = vand.u32 2147483647, %v246
        %v1271 = vand.u32 2147483647, %v247
        %v1272 = vand.u32 2147483647, %v248
        %v1273 = vand.u32 2147483647, %v249
        %v1274 = vand.u32 2147483647, %v250
        %v1275 = vand.u32 2147483647, %v251
        %v1276 = vand.u32 2147483647, %v252
        %v1277 = vand.u32 2147483647, %v253
        %v1278 = vand.u32 2147483647, %v254
        %v1279 = vand.u32 2147483647, %v255
        %v1280 = vand.u32 2147483647, %v256
        %v1281 = vand.u32 2147483647, %v257
        %v1282 = vand.u32 2147483647, %v258
        %v1283 = vand.u32 2147483647, %v259
        %v1284 = vand.u32 2147483647, %v260
        %v1285 = vand.u32 2147483647, %v261
        %v1286 = vand.u32 2147483647, %v262
        %v1287 = vand.u32 2147483647, %v263
        %v1288 = vand.u32 2147483647, %v264
        %v1289 = vand.u32 2147483647, %v265
        %v1290 = vand.u32 2147483647, %v266
        %v1291 = vand.u32 2147483647, %v267
        %v1292 = vand.u32 2147483647, %v268
        %v1293 = vand.u32 2147483647, %v269
        %v1294 = vand.u32 2147483647, %v270
        %v1295 = vand.u32 2147483647, %v271
        %v1296 = vand.u32 2147483647, %v272
        %v1297 = vand.u32 2147483647, %v273
        %v1298 = vand.u32 2147483647, %v274
        %v1299 = vand.u32 2147483647, %v275
        %v1300 = vand.u32 2147483647, %v276
        %v1301 = vand.u32 2147483647, %v277
        %v1302 = vand.u32 2147483647, %v278
        %v1303 = vand.u32 2147483647, %v279
        %v1304 = vand.u32 2147483647, %v280
        %v1305 = vand.u32 2147483647, %v281
        %v1306 = vand.u32 2147483647, %v282
        %v1307 = vand.u32 2147483647, %v283
        %v1308 = vand.u32 2147483647, %v284
        %v1309 = vand.u32 2147483647, %v285
        %v1310 = vand.u32 2147483647, %v286
        %v1311 = vand.u32 2147483647, %v287
        %v1312 = vand.u32 2147483647, %v288
        %v1313 = vand.u32 2147483647, %v289
        %v1314 = vand.u32 2147483647, %v290
        %v1315 = vand.u32 2147483647, %v291
        %v1316 = vand.u32 2147483647, %v292
        %v1317 = vand.u32 2147483647, %v293
        %v1318 = vand.u32 2147483647, %v294
        %v1319 = vand.u32 2147483647, %v295
        %v1320 = vand.u32 2147483647, %v296
        %v1321 = vand.u32 2147483647, %v297
        %v1322 = vand.u32 2147483647, %v298
        %v1323 = vand.u32 2147483647, %v299
        %v1324 = vand.u32 2147483647, %v300
        %v1325 = vand.u32 2147483647, %v301
        %v1326 = vand.u32 2147483647, %v302
        %v1327 = vand.u32 2147483647, %v303
        %v1328 = vand.u32 2147483647, %v304
        %v1329 = vand.u32 2147483647, %v305
        %v1330 = vand.u32 2147483647, %v306
        %v1331 = vand.u32 2147483647, %v307
        %v1332 = vand.u32 2147483647, %v308
        %v1333 = vand.u32 2147483647, %v309
        %v1334 = vand.u32 2147483647, %v310
        %v1335 = vand.u32 2147483647, %v311
        %v1336 = vand.u32 2147483647, %v312
        %v1337 = vand.u32 2147483647, %v313
        %v1338 = vand.u32 2147483647, %v314
        %v1339 = vand.u32 2147483647, %v315
        %v1340 = vand.u32 2147483647, %v316
        %v1341 = vand.u32 2147483647, %v317
        %v1342 = vand.u32 2147483647, %v318
        %v1343 = vand.u32 2147483647, %v319
        %v1344 = vand.u32 2147483647, %v320
        %v1345 = vand.u32 2147483647, %v321
        %v1346 = vand.u32 2147483647, %v322
        %v1347 = vand.u32 2147483647, %v323
        %v1348 = vand.u32 2147483647, %v324
        %v1349 = vand.u32 2147483647, %v325
        %v1350 = vand.u32 2147483647, %v326
        %v1351 = vand.u32 2147483647, %v327
        %v1352 = vand.u32 2147483647, %v328
        %v1353 = vand.u32 2147483647, %v329
        %v1354 = vand.u32 2147483647, %v330
        %v1355 = vand.u32 2147483647, %v331
        %v1356 = vand.u32 2147483647, %v332
        %v1357 = vand.u32 2147483647, %v333
        %v1358 = vand.u32 2147483647, %v334
        %v1359 = vand.u32 2147483647, %v335
        %v1360 = vand.u32 2147483647, %v336
        %v1361 = vand.u32 2147483647, %v337
        %v1362 = vand.u32 2147483647, %v338
        %v1363 = vand.u32 2147483647, %v339
        %v1364 = vand.u32 2147483647, %v340
        %v1365 = vand.u32 2147483647, %v341
        %v1366 = vand.u32 2147483647, %v342
        %v1367 = vand.u32 2147483647, %v343
        %v1368 = vand.u32 2147483647, %v344
        %v1369 = vand.u32 2147483647, %v345
        %v1370 = vand.u32 2147483647, %v346
        %v1371 = vand.u32 2147483647, %v347
        %v1372 = vand.u32 2147483647, %v348
        %v1373 = vand.u32 2147483647, %v349
        %v1374 = vand.u32 2147483647, %v350
        %v1375 = vand.u32 2147483647, %v351
        %v1376 = vand.u32 2147483647, %v352
        %v1377 = vand.u32 2147483647, %v353
        %v1378 = vand.u32 2147483647, %v354
        %v1379 = vand.u32 2147483647, %v355
        %v1380 = vand.u32 2147483647, %v356
        %v1381 = vand.u32 2147483647, %v357
        %v1382 = vand.u32 2147483647, %v358
        %v1383 = vand.u32 2147483647, %v359
        %v1384 = vand.u32 2147483647, %v360
        %v1385 = vand.u32 2147483647, %v361
        %v1386 = vand.u32 2147483647, %v362
        %v1387 = vand.u32 2147483647, %v363
        %v1388 = vand.u32 2147483647, %v364
        %v1389 = vand.u32 2147483647, %v365
        %v1390 = vand.u32 2147483647, %v366
        %v1391 = vand.u32 2147483647, %v367
        %v1392 = vand.u32 2147483647, %v368
        %v1393 = vand.u32 2147483647, %v369
        %v1394 = vand.u32 2147483647, %v370
        %v1395 = vand.u32 2147483647, %v371
        %v1396 = vand.u32 2147483647, %v372
        %v1397 = vand.u32 2147483647, %v373
        %v1398 = vand.u32 2147483647, %v374
        %v1399 = vand.u32 2147483647, %v375
        %v1400 = vand.u32 2147483647, %v376
        %v1401 = vand.u32 2147483647, %v377
        %v1402 = vand.u32 2147483647, %v378
        %v1403 = vand.u32 2147483647, %v379
        %v1404 = vand.u32 2147483647, %v380
        %v1405 = vand.u32 2147483647, %v381
        %v1406 = vand.u32 2147483647, %v382
        %v1407 = vand.u32 2147483647, %v383
        %v1408 = vand.u32 2147483647, %v384
        %v1409 = vand.u32 2147483647, %v385
        %v1410 = vand.u32 2147483647, %v386
        %v1411 = vand.u32 2147483647, %v387
        %v1412 = vand.u32 2147483647, %v388
        %v1413 = vand.u32 2147483647, %v389
        %v1414 = vand.u32 2147483647, %v390
        %v1415 = vand.u32 2147483647, %v391
        %v1416 = vand.u32 2147483647, %v392
        %v1417 = vand.u32 2147483647, %v393
        %v1418 = vand.u32 2147483647, %v394
        %v1419 = vand.u32 2147483647, %v395
        %v1420 = vand.u32 2147483647, %v396
        %v1421 = vand.u32 2147483647, %v397
        %v1422 = vand.u32 2147483647, %v398
        %v1423 = vand.u32 2147483647, %v399
        %v1424 = vand.u32 2147483647, %v400
        %v1425 = vand.u32 2147483647, %v401
        %v1426 = vand.u32 2147483647, %v402
        %v1427 = vand.u32 2147483647, %v403
        %v1428 = vand.u32 2147483647, %v404
        %v1429 = vand.u32 2147483647, %v405
        %v1430 = vand.u32 2147483647, %v406
        %v1431 = vand.u32 2147483647, %v407
        %v1432 = vand.u32 2147483647, %v408
        %v1433 = vand.u32 2147483647, %v409
        %v1434 = vand.u32 2147483647, %v410
        %v1435 = vand.u32 2147483647, %v411
        %v1436 = vand.u32 2147483647, %v412
        %v1437 = vand.u32 2147483647, %v413
        %v1438 = vand.u32 2147483647, %v414
        %v1439 = vand.u32 2147483647, %v415
        %v1440 = vand.u32 2147483647, %v416
        %v1441 = vand.u32 2147483647, %v417
        %v1442 = vand.u32 2147483647, %v418
        %v1443 = vand.u32 2147483647, %v419
        %v1444 = vand.u32 2147483647, %v420
        %v1445 = vand.u32 2147483647, %v421
        %v1446 = vand.u32 2147483647, %v422
        %v1447 = vand.u32 2147483647, %v423
        %v1448 = vand.u32 2147483647, %v424
        %v1449 = vand.u32 2147483647, %v425
        %v1450 = vand.u32 2147483647, %v426
        %v1451 = vand.u32 2147483647, %v427
        %v1452 = vand.u32 2147483647, %v428
        %v1453 = vand.u32 2147483647, %v429
        %v1454 = vand.u32 2147483647, %v430
        %v1455 = vand.u32 2147483647, %v431
        %v1456 = vand.u32 2147483647, %v432
        %v1457 = vand.u32 2147483647, %v433
        %v1458 = vand.u32 2147483647, %v434
        %v1459 = vand.u32 2147483647, %v435
        %v1460 = vand.u32 2147483647, %v436
        %v1461 = vand.u32 2147483647, %v437
        %v1462 = vand.u32 2147483647, %v438
        %v1463 = vand.u32 2147483647, %v439
        %v1464 = vand.u32 2147483647, %v440
        %v1465 = vand.u32 2147483647, %v441
        %v1466 = vand.u32 2147483647, %v442
        %v1467 = vand.u32 2147483647, %v443
        %v1468 = vand.u32 2147483647, %v444
        %v1469 = vand.u32 2147483647, %v445
        %v1470 = vand.u32 2147483647, %v446
        %v1471 = vand.u32 2147483647, %v447
        %v1472 = vand.u32 2147483647, %v448
        %v1473 = vand.u32 2147483647, %v449
        %v1474 = vand.u32 2147483647, %v450
        %v1475 = vand.u32 2147483647, %v451
        %v1476 = vand.u32 2147483647, %v452
        %v1477 = vand.u32 2147483647, %v453
        %v1478 = vand.u32 2147483647, %v454
        %v1479 = vand.u32 2147483647, %v455
        %v1480 = vand.u32 2147483647, %v456
        %v1481 = vand.u32 2147483647, %v457
        %v1482 = vand.u32 2147483647, %v458
        %v1483 = vand.u32 2147483647, %v459
        %v1484 = vand.u32 2147483647, %v460
        %v1485 = vand.u32 2147483647, %v461
        %v1486 = vand.u32 2147483647, %v462
        %v1487 = vand.u32 2147483647, %v463
        %v1488 = vand.u32 2147483647, %v464
        %v1489 = vand.u32 2147483647, %v465
        %v1490 = vand.u32 2147483647, %v466
        %v1491 = vand.u32 2147483647, %v467
        %v1492 = vand.u32 2147483647, %v468
        %v1493 = vand.u32 2147483647, %v469
        %v1494 = vand.u32 2147483647, %v470
        %v1495 = vand.u32 2147483647, %v471
        %v1496 = vand.u32 2147483647, %v472
        %v1497 = vand.u32 2147483647, %v473
        %v1498 = vand.u32 2147483647, %v474
        %v1499 = vand.u32 2147483647, %v475
        %v1500 = vand.u32 2147483647, %v476
        %v1501 = vand.u32 2147483647, %v477
        %v1502 = vand.u32 2147483647, %v478
        %v1503 = vand.u32 2147483647, %v479
        %v1504 = vand.u32 2147483647, %v480
        %v1505 = vand.u32 2147483647, %v481
        %v1506 = vand.u32 2147483647, %v482
        %v1507 = vand.u32 2147483647, %v483
        %v1508 = vand.u32 2147483647, %v484
        %v1509 = vand.u32 2147483647, %v485
        %v1510 = vand.u32 2147483647, %v486
        %v1511 = vand.u32 2147483647, %v487
        %v1512 = vand.u32 2147483647, %v488
        %v1513 = vand.u32 2147483647, %v489
        %v1514 = vand.u32 2147483647, %v490
        %v1515 = vand.u32 2147483647, %v491
        %v1516 = vand.u32 2147483647, %v492
        %v1517 = vand.u32 2147483647, %v493
        %v1518 = vand.u32 2147483647, %v494
        %v1519 = vand.u32 2147483647, %v495
        %v1520 = vand.u32 2147483647, %v496
        %v1521 = vand.u32 2147483647, %v497
        %v1522 = vand.u32 2147483647, %v498
        %v1523 = vand.u32 2147483647, %v499
        %v1524 = vand.u32 2147483647, %v500
        %v1525 = vand.u32 2147483647, %v501
        %v1526 = vand.u32 2147483647, %v502
        %v1527 = vand.u32 2147483647, %v503
        %v1528 = vand.u32 2147483647, %v504
        %v1529 = vand.u32 2147483647, %v505
        %v1530 = vand.u32 2147483647, %v506
        %v1531 = vand.u32 2147483647, %v507
        %v1532 = vand.u32 2147483647, %v508
        %v1533 = vand.u32 2147483647, %v509
        %v1534 = vand.u32 2147483647, %v510
        %v1535 = vand.u32 2147483647, %v511
        %v1536 = vand.u32 2147483647, %v512
        %v1537 = vand.u32 2147483647, %v513
        %v1538 = vand.u32 2147483647, %v514
        %v1539 = vand.u32 2147483647, %v515
        %v1540 = vand.u32 2147483647, %v516
        %v1541 = vand.u32 2147483647, %v517
        %v1542 = vand.u32 2147483647, %v518
        %v1543 = vand.u32 2147483647, %v519
        %v1544 = vand.u32 2147483647, %v520
        %v1545 = vand.u32 2147483647, %v521
        %v1546 = vand.u32 2147483647, %v522
        %v1547 = vand.u32 2147483647, %v523
        %v1548 = vand.u32 2147483647, %v524
        %v1549 = vand.u32 2147483647, %v525
        %v1550 = vand.u32 2147483647, %v526
        %v1551 = vand.u32 2147483647, %v527
        %v1552 = vand.u32 2147483647, %v528
        %v1553 = vand.u32 2147483647, %v529
        %v1554 = vand.u32 2147483647, %v530
        %v1555 = vand.u32 2147483647, %v531
        %v1556 = vand.u32 2147483647, %v532
        %v1557 = vand.u32 2147483647, %v533
        %v1558 = vand.u32 2147483647, %v534
        %v1559 = vand.u32 2147483647, %v535
        %v1560 = vand.u32 2147483647, %v536
        %v1561 = vand.u32 2147483647, %v537
        %v1562 = vand.u32 2147483647, %v538
        %v1563 = vand.u32 2147483647, %v539
        %v1564 = vand.u32 2147483647, %v540
        %v1565 = vand.u32 2147483647, %v541
        %v1566 = vand.u32 2147483647, %v542
        %v1567 = vand.u32 2147483647, %v543
        %v1568 = vand.u32 2147483647, %v544
        %v1569 = vand.u32 2147483647, %v545
        %v1570 = vand.u32 2147483647, %v546
        %v1571 = vand.u32 2147483647, %v547
        %v1572 = vand.u32 2147483647, %v548
        %v1573 = vand.u32 2147483647, %v549
        %v1574 = vand.u32 2147483647, %v550
        %v1575 = vand.u32 2147483647, %v551
        %v1576 = vand.u32 2147483647, %v552
        %v1577 = vand.u32 2147483647, %v553
        %v1578 = vand.u32 2147483647, %v554
        %v1579 = vand.u32 2147483647, %v555
        %v1580 = vand.u32 2147483647, %v556
        %v1581 = vand.u32 2147483647, %v557
        %v1582 = vand.u32 2147483647, %v558
        %v1583 = vand.u32 2147483647, %v559
        %v1584 = vand.u32 2147483647, %v560
        %v1585 = vand.u32 2147483647, %v561
        %v1586 = vand.u32 2147483647, %v562
        %v1587 = vand.u32 2147483647, %v563
        %v1588 = vand.u32 2147483647, %v564
        %v1589 = vand.u32 2147483647, %v565
        %v1590 = vand.u32 2147483647, %v566
        %v1591 = vand.u32 2147483647, %v567
        %v1592 = vand.u32 2147483647, %v568
        %v1593 = vand.u32 2147483647, %v569
        %v1594 = vand.u32 2147483647, %v570
        %v1595 = vand.u32 2147483647, %v571
        %v1596 = vand.u32 2147483647, %v572
        %v1597 = vand.u32 2147483647, %v573
        %v1598 = vand.u32 2147483647, %v574
        %v1599 = vand.u32 2147483647, %v575
        %v1600 = vand.u32 2147483647, %v576
        %v1601 = vand.u32 2147483647, %v577
        %v1602 = vand.u32 2147483647, %v578
        %v1603 = vand.u32 2147483647, %v579
        %v1604 = vand.u32 2147483647, %v580
        %v1605 = vand.u32 2147483647, %v581
        %v1606 = vand.u32 2147483647, %v582
        %v1607 = vand.u32 2147483647, %v583
        %v1608 = vand.u32 2147483647, %v584
        %v1609 = vand.u32 2147483647, %v585
        %v1610 = vand.u32 2147483647, %v586
        %v1611 = vand.u32 2147483647, %v587
        %v1612 = vand.u32 2147483647, %v588
        %v1613 = vand.u32 2147483647, %v589
        %v1614 = vand.u32 2147483647, %v590
        %v1615 = vand.u32 2147483647, %v591
        %v1616 = vand.u32 2147483647, %v592
        %v1617 = vand.u32 2147483647, %v593
        %v1618 = vand.u32 2147483647, %v594
        %v1619 = vand.u32 2147483647, %v595
        %v1620 = vand.u32 2147483647, %v596
        %v1621 = vand.u32 2147483647, %v597
        %v1622 = vand.u32 2147483647, %v598
        %v1623 = vand.u32 2147483647, %v599
        %v1624 = vand.u32 2147483647, %v600
        %v1625 = vand.u32 2147483647, %v601
        %v1626 = vand.u32 2147483647, %v602
        %v1627 = vand.u32 2147483647, %v603
        %v1628 = vand.u32 2147483647, %v604
        %v1629 = vand.u32 2147483647, %v605
        %v1630 = vand.u32 2147483647, %v606
        %v1631 = vand.u32 2147483647, %v607
        %v1632 = vand.u32 2147483647, %v608
        %v1633 = vand.u32 2147483647, %v609
        %v1634 = vand.u32 2147483647, %v610
        %v1635 = vand.u32 2147483647, %v611
        %v1636 = vand.u32 2147483647, %v612
        %v1637 = vand.u32 2147483647, %v613
        %v1638 = vand.u32 2147483647, %v614
        %v1639 = vand.u32 2147483647, %v615
        %v1640 = vand.u32 2147483647, %v616
        %v1641 = vand.u32 2147483647, %v617
        %v1642 = vand.u32 2147483647, %v618
        %v1643 = vand.u32 2147483647, %v619
        %v1644 = vand.u32 2147483647, %v620
        %v1645 = vand.u32 2147483647, %v621
        %v1646 = vand.u32 2147483647, %v622
        %v1647 = vand.u32 2147483647, %v623
        %v1648 = vand.u32 2147483647, %v624
        %v1649 = vand.u32 2147483647, %v625
        %v1650 = vand.u32 2147483647, %v626
        %v1651 = vand.u32 2147483647, %v627
        %v1652 = vand.u32 2147483647, %v628
        %v1653 = vand.u32 2147483647, %v629
        %v1654 = vand.u32 2147483647, %v630
        %v1655 = vand.u32 2147483647, %v631
        %v1656 = vand.u32 2147483647, %v632
        %v1657 = vand.u32 2147483647, %v633
        %v1658 = vand.u32 2147483647, %v634
        %v1659 = vand.u32 2147483647, %v635
        %v1660 = vand.u32 2147483647, %v636
        %v1661 = vand.u32 2147483647, %v637
        %v1662 = vand.u32 2147483647, %v638
        %v1663 = vand.u32 2147483647, %v639
        %v1664 = vand.u32 2147483647, %v640
        %v1665 = vand.u32 2147483647, %v641
        %v1666 = vand.u32 2147483647, %v642
        %v1667 = vand.u32 2147483647, %v643
        %v1668 = vand.u32 2147483647, %v644
        %v1669 = vand.u32 2147483647, %v645
        %v1670 = vand.u32 2147483647, %v646
        %v1671 = vand.u32 2147483647, %v647
        %v1672 = vand.u32 2147483647, %v648
        %v1673 = vand.u32 2147483647, %v649
        %v1674 = vand.u32 2147483647, %v650
        %v1675 = vand.u32 2147483647, %v651
        %v1676 = vand.u32 2147483647, %v652
        %v1677 = vand.u32 2147483647, %v653
        %v1678 = vand.u32 2147483647, %v654
        %v1679 = vand.u32 2147483647, %v655
        %v1680 = vand.u32 2147483647, %v656
        %v1681 = vand.u32 2147483647, %v657
        %v1682 = vand.u32 2147483647, %v658
        %v1683 = vand.u32 2147483647, %v659
        %v1684 = vand.u32 2147483647, %v660
        %v1685 = vand.u32 2147483647, %v661
        %v1686 = vand.u32 2147483647, %v662
        %v1687 = vand.u32 2147483647, %v663
        %v1688 = vand.u32 2147483647, %v664
        %v1689 = vand.u32 2147483647, %v665
        %v1690 = vand.u32 2147483647, %v666
        %v1691 = vand.u32 2147483647, %v667
        %v1692 = vand.u32 2147483647, %v668
        %v1693 = vand.u32 2147483647, %v669
        %v1694 = vand.u32 2147483647, %v670
        %v1695 = vand.u32 2147483647, %v671
        %v1696 = vand.u32 2147483647, %v672
        %v1697 = vand.u32 2147483647, %v673
        %v1698 = vand.u32 2147483647, %v674
        %v1699 = vand.u32 2147483647, %v675
        %v1700 = vand.u32 2147483647, %v676
        %v1701 = vand.u32 2147483647, %v677
        %v1702 = vand.u32 2147483647, %v678
        %v1703 = vand.u32 2147483647, %v679
        %v1704 = vand.u32 2147483647, %v680
        %v1705 = vand.u32 2147483647, %v681
        %v1706 = vand.u32 2147483647, %v682
        %v1707 = vand.u32 2147483647, %v683
        %v1708 = vand.u32 2147483647, %v684
        %v1709 = vand.u32 2147483647, %v685
        %v1710 = vand.u32 2147483647, %v686
        %v1711 = vand.u32 2147483647, %v687
        %v1712 = vand.u32 2147483647, %v688
        %v1713 = vand.u32 2147483647, %v689
        %v1714 = vand.u32 2147483647, %v690
        %v1715 = vand.u32 2147483647, %v691
        %v1716 = vand.u32 2147483647, %v692
        %v1717 = vand.u32 2147483647, %v693
        %v1718 = vand.u32 2147483647, %v694
        %v1719 = vand.u32 2147483647, %v695
        %v1720 = vand.u32 2147483647, %v696
        %v1721 = vand.u32 2147483647, %v697
        %v1722 = vand.u32 2147483647, %v698
        %v1723 = vand.u32 2147483647, %v699
        %v1724 = vand.u32 2147483647, %v700
        %v1725 = vand.u32 2147483647, %v701
        %v1726 = vand.u32 2147483647, %v702
        %v1727 = vand.u32 2147483647, %v703
        %v1728 = vand.u32 2147483647, %v704
        %v1729 = vand.u32 2147483647, %v705
        %v1730 = vand.u32 2147483647, %v706
        %v1731 = vand.u32 2147483647, %v707
        %v1732 = vand.u32 2147483647, %v708
        %v1733 = vand.u32 2147483647, %v709
        %v1734 = vand.u32 2147483647, %v710
        %v1735 = vand.u32 2147483647, %v711
        %v1736 = vand.u32 2147483647, %v712
        %v1737 = vand.u32 2147483647, %v713
        %v1738 = vand.u32 2147483647, %v714
        %v1739 = vand.u32 2147483647, %v715
        %v1740 = vand.u32 2147483647, %v716
        %v1741 = vand.u32 2147483647, %v717
        %v1742 = vand.u32 2147483647, %v718
        %v1743 = vand.u32 2147483647, %v719
        %v1744 = vand.u32 2147483647, %v720
        %v1745 = vand.u32 2147483647, %v721
        %v1746 = vand.u32 2147483647, %v722
        %v1747 = vand.u32 2147483647, %v723
        %v1748 = vand.u32 2147483647, %v724
        %v1749 = vand.u32 2147483647, %v725
        %v1750 = vand.u32 2147483647, %v726
        %v1751 = vand.u32 2147483647, %v727
        %v1752 = vand.u32 2147483647, %v728
        %v1753 = vand.u32 2147483647, %v729
        %v1754 = vand.u32 2147483647, %v730
        %v1755 = vand.u32 2147483647, %v731
        %v1756 = vand.u32 2147483647, %v732
        %v1757 = vand.u32 2147483647, %v733
        %v1758 = vand.u32 2147483647, %v734
        %v1759 = vand.u32 2147483647, %v735
        %v1760 = vand.u32 2147483647, %v736
        %v1761 = vand.u32 2147483647, %v737
        %v1762 = vand.u32 2147483647, %v738
        %v1763 = vand.u32 2147483647, %v739
        %v1764 = vand.u32 2147483647, %v740
        %v1765 = vand.u32 2147483647, %v741
        %v1766 = vand.u32 2147483647, %v742
        %v1767 = vand.u32 2147483647, %v743
        %v1768 = vand.u32 2147483647, %v744
        %v1769 = vand.u32 2147483647, %v745
        %v1770 = vand.u32 2147483647, %v746
        %v1771 = vand.u32 2147483647, %v747
        %v1772 = vand.u32 2147483647, %v748
        %v1773 = vand.u32 2147483647, %v749
        %v1774 = vand.u32 2147483647, %v750
        %v1775 = vand.u32 2147483647, %v751
        %v1776 = vand.u32 2147483647, %v752
        %v1777 = vand.u32 2147483647, %v753
        %v1778 = vand.u32 2147483647, %v754
        %v1779 = vand.u32 2147483647, %v755
        %v1780 = vand.u32 2147483647, %v756
        %v1781 = vand.u32 2147483647, %v757
        %v1782 = vand.u32 2147483647, %v758
        %v1783 = vand.u32 2147483647, %v759
        %v1784 = vand.u32 2147483647, %v760
        %v1785 = vand.u32 2147483647, %v761
        %v1786 = vand.u32 2147483647, %v762
        %v1787 = vand.u32 2147483647, %v763
        %v1788 = vand.u32 2147483647, %v764
        %v1789 = vand.u32 2147483647, %v765
        %v1790 = vand.u32 2147483647, %v766
        %v1791 = vand.u32 2147483647, %v767
        %v1792 = vand.u32 2147483647, %v768
        %v1793 = vand.u32 2147483647, %v769
        %v1794 = vand.u32 2147483647, %v770
        %v1795 = vand.u32 2147483647, %v771
        %v1796 = vand.u32 2147483647, %v772
        %v1797 = vand.u32 2147483647, %v773
        %v1798 = vand.u32 2147483647, %v774
        %v1799 = vand.u32 2147483647, %v775
        %v1800 = vand.u32 2147483647, %v776
        %v1801 = vand.u32 2147483647, %v777
        %v1802 = vand.u32 2147483647, %v778
        %v1803 = vand.u32 2147483647, %v779
        %v1804 = vand.u32 2147483647, %v780
        %v1805 = vand.u32 2147483647, %v781
        %v1806 = vand.u32 2147483647, %v782
        %v1807 = vand.u32 2147483647, %v783
        %v1808 = vand.u32 2147483647, %v784
        %v1809 = vand.u32 2147483647, %v785
        %v1810 = vand.u32 2147483647, %v786
        %v1811 = vand.u32 2147483647, %v787
        %v1812 = vand.u32 2147483647, %v788
        %v1813 = vand.u32 2147483647, %v789
        %v1814 = vand.u32 2147483647, %v790
        %v1815 = vand.u32 2147483647, %v791
        %v1816 = vand.u32 2147483647, %v792
        %v1817 = vand.u32 2147483647, %v793
        %v1818 = vand.u32 2147483647, %v794
        %v1819 = vand.u32 2147483647, %v795
        %v1820 = vand.u32 2147483647, %v796
        %v1821 = vand.u32 2147483647, %v797
        %v1822 = vand.u32 2147483647, %v798
        %v1823 = vand.u32 2147483647, %v799
        %v1824 = vand.u32 2147483647, %v800
        %v1825 = vand.u32 2147483647, %v801
        %v1826 = vand.u32 2147483647, %v802
        %v1827 = vand.u32 2147483647, %v803
        %v1828 = vand.u32 2147483647, %v804
        %v1829 = vand.u32 2147483647, %v805
        %v1830 = vand.u32 2147483647, %v806
        %v1831 = vand.u32 2147483647, %v807
        %v1832 = vand.u32 2147483647, %v808
        %v1833 = vand.u32 2147483647, %v809
        %v1834 = vand.u32 2147483647, %v810
        %v1835 = vand.u32 2147483647, %v811
        %v1836 = vand.u32 2147483647, %v812
        %v1837 = vand.u32 2147483647, %v813
        %v1838 = vand.u32 2147483647, %v814
        %v1839 = vand.u32 2147483647, %v815
        %v1840 = vand.u32 2147483647, %v816
        %v1841 = vand.u32 2147483647, %v817
        %v1842 = vand.u32 2147483647, %v818
        %v1843 = vand.u32 2147483647, %v819
        %v1844 = vand.u32 2147483647, %v820
        %v1845 = vand.u32 2147483647, %v821
        %v1846 = vand.u32 2147483647, %v822
        %v1847 = vand.u32 2147483647, %v823
        %v1848 = vand.u32 2147483647, %v824
        %v1849 = vand.u32 2147483647, %v825
        %v1850 = vand.u32 2147483647, %v826
        %v1851 = vand.u32 2147483647, %v827
        %v1852 = vand.u32 2147483647, %v828
        %v1853 = vand.u32 2147483647, %v829
        %v1854 = vand.u32 2147483647, %v830
        %v1855 = vand.u32 2147483647, %v831
        %v1856 = vand.u32 2147483647, %v832
        %v1857 = vand.u32 2147483647, %v833
        %v1858 = vand.u32 2147483647, %v834
        %v1859 = vand.u32 2147483647, %v835
        %v1860 = vand.u32 2147483647, %v836
        %v1861 = vand.u32 2147483647, %v837
        %v1862 = vand.u32 2147483647, %v838
        %v1863 = vand.u32 2147483647, %v839
        %v1864 = vand.u32 2147483647, %v840
        %v1865 = vand.u32 2147483647, %v841
        %v1866 = vand.u32 2147483647, %v842
        %v1867 = vand.u32 2147483647, %v843
        %v1868 = vand.u32 2147483647, %v844
        %v1869 = vand.u32 2147483647, %v845
        %v1870 = vand.u32 2147483647, %v846
        %v1871 = vand.u32 2147483647, %v847
        %v1872 = vand.u32 2147483647, %v848
        %v1873 = vand.u32 2147483647, %v849
        %v1874 = vand.u32 2147483647, %v850
        %v1875 = vand.u32 2147483647, %v851
        %v1876 = vand.u32 2147483647, %v852
        %v1877 = vand.u32 2147483647, %v853
        %v1878 = vand.u32 2147483647, %v854
        %v1879 = vand.u32 2147483647, %v855
        %v1880 = vand.u32 2147483647, %v856
        %v1881 = vand.u32 2147483647, %v857
        %v1882 = vand.u32 2147483647, %v858
        %v1883 = vand.u32 2147483647, %v859
        %v1884 = vand.u32 2147483647, %v860
        %v1885 = vand.u32 2147483647, %v861
        %v1886 = vand.u32 2147483647, %v862
        %v1887 = vand.u32 2147483647, %v863
        %v1888 = vand.u32 2147483647, %v864
        %v1889 = vand.u32 2147483647, %v865
        %v1890 = vand.u32 2147483647, %v866
        %v1891 = vand.u32 2147483647, %v867
        %v1892 = vand.u32 2147483647, %v868
        %v1893 = vand.u32 2147483647, %v869
        %v1894 = vand.u32 2147483647, %v870
        %v1895 = vand.u32 2147483647, %v871
        %v1896 = vand.u32 2147483647, %v872
        %v1897 = vand.u32 2147483647, %v873
        %v1898 = vand.u32 2147483647, %v874
        %v1899 = vand.u32 2147483647, %v875
        %v1900 = vand.u32 2147483647, %v876
        %v1901 = vand.u32 2147483647, %v877
        %v1902 = vand.u32 2147483647, %v878
        %v1903 = vand.u32 2147483647, %v879
        %v1904 = vand.u32 2147483647, %v880
        %v1905 = vand.u32 2147483647, %v881
        %v1906 = vand.u32 2147483647, %v882
        %v1907 = vand.u32 2147483647, %v883
        %v1908 = vand.u32 2147483647, %v884
        %v1909 = vand.u32 2147483647, %v885
        %v1910 = vand.u32 2147483647, %v886
        %v1911 = vand.u32 2147483647, %v887
        %v1912 = vand.u32 2147483647, %v888
        %v1913 = vand.u32 2147483647, %v889
        %v1914 = vand.u32 2147483647, %v890
        %v1915 = vand.u32 2147483647, %v891
        %v1916 = vand.u32 2147483647, %v892
        %v1917 = vand.u32 2147483647, %v893
        %v1918 = vand.u32 2147483647, %v894
        %v1919 = vand.u32 2147483647, %v895
        %v1920 = vand.u32 2147483647, %v896
        %v1921 = vand.u32 2147483647, %v897
        %v1922 = vand.u32 2147483647, %v898
        %v1923 = vand.u32 2147483647, %v899
        %v1924 = vand.u32 2147483647, %v900
        %v1925 = vand.u32 2147483647, %v901
        %v1926 = vand.u32 2147483647, %v902
        %v1927 = vand.u32 2147483647, %v903
        %v1928 = vand.u32 2147483647, %v904
        %v1929 = vand.u32 2147483647, %v905
        %v1930 = vand.u32 2147483647, %v906
        %v1931 = vand.u32 2147483647, %v907
        %v1932 = vand.u32 2147483647, %v908
        %v1933 = vand.u32 2147483647, %v909
        %v1934 = vand.u32 2147483647, %v910
        %v1935 = vand.u32 2147483647, %v911
        %v1936 = vand.u32 2147483647, %v912
        %v1937 = vand.u32 2147483647, %v913
        %v1938 = vand.u32 2147483647, %v914
        %v1939 = vand.u32 2147483647, %v915
        %v1940 = vand.u32 2147483647, %v916
        %v1941 = vand.u32 2147483647, %v917
        %v1942 = vand.u32 2147483647, %v918
        %v1943 = vand.u32 2147483647, %v919
        %v1944 = vand.u32 2147483647, %v920
        %v1945 = vand.u32 2147483647, %v921
        %v1946 = vand.u32 2147483647, %v922
        %v1947 = vand.u32 2147483647, %v923
        %v1948 = vand.u32 2147483647, %v924
        %v1949 = vand.u32 2147483647, %v925
        %v1950 = vand.u32 2147483647, %v926
        %v1951 = vand.u32 2147483647, %v927
        %v1952 = vand.u32 2147483647, %v928
        %v1953 = vand.u32 2147483647, %v929
        %v1954 = vand.u32 2147483647, %v930
        %v1955 = vand.u32 2147483647, %v931
        %v1956 = vand.u32 2147483647, %v932
        %v1957 = vand.u32 2147483647, %v933
        %v1958 = vand.u32 2147483647, %v934
        %v1959 = vand.u32 2147483647, %v935
        %v1960 = vand.u32 2147483647, %v936
        %v1961 = vand.u32 2147483647, %v937
        %v1962 = vand.u32 2147483647, %v938
        %v1963 = vand.u32 2147483647, %v939
        %v1964 = vand.u32 2147483647, %v940
        %v1965 = vand.u32 2147483647, %v941
        %v1966 = vand.u32 2147483647, %v942
        %v1967 = vand.u32 2147483647, %v943
        %v1968 = vand.u32 2147483647, %v944
        %v1969 = vand.u32 2147483647, %v945
        %v1970 = vand.u32 2147483647, %v946
        %v1971 = vand.u32 2147483647, %v947
        %v1972 = vand.u32 2147483647, %v948
        %v1973 = vand.u32 2147483647, %v949
        %v1974 = vand.u32 2147483647, %v950
        %v1975 = vand.u32 2147483647, %v951
        %v1976 = vand.u32 2147483647, %v952
        %v1977 = vand.u32 2147483647, %v953
        %v1978 = vand.u32 2147483647, %v954
        %v1979 = vand.u32 2147483647, %v955
        %v1980 = vand.u32 2147483647, %v956
        %v1981 = vand.u32 2147483647, %v957
        %v1982 = vand.u32 2147483647, %v958
        %v1983 = vand.u32 2147483647, %v959
        %v1984 = vand.u32 2147483647, %v960
        %v1985 = vand.u32 2147483647, %v961
        %v1986 = vand.u32 2147483647, %v962
        %v1987 = vand.u32 2147483647, %v963
        %v1988 = vand.u32 2147483647, %v964
        %v1989 = vand.u32 2147483647, %v965
        %v1990 = vand.u32 2147483647, %v966
        %v1991 = vand.u32 2147483647, %v967
        %v1992 = vand.u32 2147483647, %v968
        %v1993 = vand.u32 2147483647, %v969
        %v1994 = vand.u32 2147483647, %v970
        %v1995 = vand.u32 2147483647, %v971
        %v1996 = vand.u32 2147483647, %v972
        %v1997 = vand.u32 2147483647, %v973
        %v1998 = vand.u32 2147483647, %v974
        %v1999 = vand.u32 2147483647, %v975
        %v2000 = vand.u32 2147483647, %v976
        %v2001 = vand.u32 2147483647, %v977
        %v2002 = vand.u32 2147483647, %v978
        %v2003 = vand.u32 2147483647, %v979
        %v2004 = vand.u32 2147483647, %v980
        %v2005 = vand.u32 2147483647, %v981
        %v2006 = vand.u32 2147483647, %v982
        %v2007 = vand.u32 2147483647, %v983
        %v2008 = vand.u32 2147483647, %v984
        %v2009 = vand.u32 2147483647, %v985
        %v2010 = vand.u32 2147483647, %v986
        %v2011 = vand.u32 2147483647, %v987
        %v2012 = vand.u32 2147483647, %v988
        %v2013 = vand.u32 2147483647, %v989
        %v2014 = vand.u32 2147483647, %v990
        %v2015 = vand.u32 2147483647, %v991
        %v2016 = vand.u32 2147483647, %v992
        %v2017 = vand.u32 2147483647, %v993
        %v2018 = vand.u32 2147483647, %v994
        %v2019 = vand.u32 2147483647, %v995
        %v2020 = vand.u32 2147483647, %v996
        %v2021 = vand.u32 2147483647, %v997
        %v2022 = vand.u32 2147483647, %v998
        %v2023 = vand.u32 2147483647, %v999
        %v2024 = vand.u32 2147483647, %v1000
        %v2025 = vand.u32 2147483647, %v1001
        %v2026 = vand.u32 2147483647, %v1002
        %v2027 = vand.u32 2147483647, %v1003
        %v2028 = vand.u32 2147483647, %v1004
        %v2029 = vand.u32 2147483647, %v1005
        %v2030 = vand.u32 2147483647, %v1006
        %v2031 = vand.u32 2147483647, %v1007
        %v2032 = vand.u32 2147483647, %v1008
        %v2033 = vand.u32 2147483647, %v1009
        %v2034 = vand.u32 2147483647, %v1010
        %v2035 = vand.u32 2147483647, %v1011
        %v2036 = vand.u32 2147483647, %v1012
        %v2037 = vand.u32 2147483647, %v1013
        %v2038 = vand.u32 2147483647, %v1014
        %v2039 = vand.u32 2147483647, %v1015
        %v2040 = vand.u32 2147483647, %v1016
        %v2041 = vand.u32 2147483647, %v1017
        %v2042 = vand.u32 2147483647, %v1018
        %v2043 = vand.u32 2147483647, %v1019
        %v2044 = vand.u32 2147483647, %v1020
        %v2045 = vand.u32 2147483647, %v1021
        %v2046 = vand.u32 2147483647, %v1022
        %v2047 = vand.u32 2147483647, %v1023
        %v2048 = vand.u32 2147483647, %v1024
        %v2049 = vand.u32 2147483647, %v1025
        %v2050 = vand.u32 2147483647, %v1026
        %v2051 = vand.u32 2147483647, %v1027
        %v2052 = vand.u32 2147483647, %v1028
        %v2053 = vand.u32 2147483647, %v1029
        %v2054 = vand.u32 2147483647, %v1030
        %v2055 = vand.u32 2147483647, %v1031
        %v2056 = vand.u32 2147483647, %v1032
        %v2057 = vand.u32 2147483647, %v1033
        %v2058 = vand.u32 2147483647, %v1034
        %v2059 = vand.u32 2147483647, %v1035
        %v2060 = vand.u32 2147483647, %v1036
        %v2061 = vand.u32 2147483647, %v1037
        %v2062 = vand.u32 2147483647, %v1038
        %v2063 = vand.u32 2147483647, %v1039
        %v2064 = vand.u32 2147483647, %v1040
        %v2065 = vand.u32 2147483647, %v1041
        %v2066 = vand.u32 2147483647, %v1042
        %v2067 = vand.u32 2147483647, %v1043
        %v2068 = vand.u32 2147483647, %v1044
        %v2069 = vand.u32 2147483647, %v1045
        %v2070 = vand.u32 2147483647, %v1046
        %v2071 = vand.u32 2147483647, %v1047
        %v2072 = vand.u32 2147483647, %v1048
        %v2073 = vand.u32 2147483647, %v1049
        %v2074 = vand.u32 2147483647, %v1050
        %v2075 = vand.u32 2147483647, %v1051
        %v2076 = vand.u32 2147483647, %v1052
        %v2077 = vand.u32 2147483647, %v1053
        %v2078 = vand.u32 2147483647, %v1054
        %v2079 = vand.u32 2147483647, %v1055
        %v2080 = vand.u32 2147483647, %v1056
        %v2081 = vand.u32 2147483647, %v1057
        %v2082 = vand.u32 2147483647, %v1058
        %v2083 = vand.u32 2147483647, %v1059
        %v2084 = vand.u32 2147483647, %v1060
        %v2085 = vand.u32 2147483647, %v1061
        %v2086 = vand.u32 2147483647, %v1062
        %v2087 = vand.u32 2147483647, %v1063
        %v2088 = vand.u32 2147483647, %v1064
        %v2089 = vand.u32 2147483647, %v1065
        %v2090 = vand.u32 2147483647, %v1066
        %v2091 = vand.u32 2147483647, %v1067
        %v2092 = vand.u32 2147483647, %v1068
        %v2093 = vand.u32 2147483647, %v1069
        %v2094 = vand.u32 2147483647, %v1070
        %v2095 = vand.u32 2147483647, %v1071
        %v2096 = vand.u32 2147483647, %v1072
        %v2097 = vand.u32 2147483647, %v1073
        %v2098 = vand.u32 2147483647, %v1074
        %v2099 = vand.u32 2147483647, %v1075
        %v2100 = vand.u32 2147483647, %v1076
        %v2101 = vand.u32 2147483647, %v1077
        %v2102 = vand.u32 2147483647, %v1078
        %v2103 = vand.u32 2147483647, %v1079
        %v2104 = vand.u32 2147483647, %v1080
        %v2105 = vand.u32 2147483647, %v1081
        %v2106 = vand.u32 2147483647, %v1082
        %v2107 = vand.u32 2147483647, %v1083
        %v2108 = vand.u32 2147483647, %v1084
        %v2109 = vand.u32 2147483647, %v1085
        %v2110 = vand.u32 2147483647, %v1086
        %v2111 = vand.u32 2147483647, %v1087
        %v2112 = vand.u32 2147483647, %v1088
        %v2113 = vand.u32 2147483647, %v1089
        %v2114 = vand.u32 2147483647, %v1090
        %v2115 = vand.u32 2147483647, %v1091
        %v2116 = vand.u32 2147483647, %v1092
        %v2117 = vand.u32 2147483647, %v1093
        %v2118 = vand.u32 2147483647, %v1094
        %v2119 = vand.u32 2147483647, %v1095
        %v2120 = vand.u32 2147483647, %v1096
        %v2121 = vand.u32 2147483647, %v1097
        %v2122 = vand.u32 2147483647, %v1098
        %v2123 = vand.u32 2147483647, %v1099
        %v2124 = vand.u32 2147483647, %v1100
        %v2125 = vand.u32 2147483647, %v1101
        %v2126 = vand.u32 2147483647, %v1102
        %v2127 = vand.u32 2147483647, %v1103
        %v2128 = vand.u32 2147483647, %v1104
        %v2129 = vand.u32 2147483647, %v1105
        %v2130 = vand.u32 2147483647, %v1106
        %v2131 = vand.u32 2147483647, %v1107
        %v2132 = vand.u32 2147483647, %v1108
        %v2133 = vand.u32 2147483647, %v1109
        %v2134 = vand.u32 2147483647, %v1110
        %v2135 = vand.u32 2147483647, %v1111
        %v2136 = vand.u32 2147483647, %v1112
        %v2137 = vand.u32 2147483647, %v1113
        %v2138 = vand.u32 2147483647, %v1114
        %v2139 = vand.u32 2147483647, %v1115
        %v2140 = vand.u32 2147483647, %v1116
        %v2141 = vand.u32 2147483647, %v1117
        %v2142 = vand.u32 2147483647, %v1118
        %v2143 = vand.u32 2147483647, %v1119
        %v2144 = vand.u32 2147483647, %v1120
        %v2145 = vand.u32 2147483647, %v1121
        %v2146 = vand.u32 2147483647, %v1122
        %v2147 = vand.u32 2147483647, %v1123
        %v2148 = vand.u32 2147483647, %v1124
        %v2149 = vand.u32 2147483647, %v1125
        %v2150 = vand.u32 2147483647, %v1126
        %v2151 = vand.u32 2147483647, %v1127
        %v2152 = vand.u32 2147483647, %v1128
        %v2153 = vand.u32 2147483647, %v1129
        %v2154 = vand.u32 2147483647, %v1130
        %v2155 = vand.u32 2147483647, %v1131
        %v2156 = vand.u32 2147483647, %v1132
        %v2157 = vand.u32 2147483647, %v1133
        %v2158 = vand.u32 2147483647, %v1134
        %v2159 = vand.u32 2147483647, %v1135
        %v2160 = vand.u32 2147483647, %v1136
        %v2161 = vand.u32 2147483647, %v1137
        %v2162 = vand.u32 2147483647, %v1138
        %v2163 = vand.u32 2147483647, %v1139
        %v2164 = vand.u32 2147483647, %v1140
        %v2165 = vand.u32 2147483647, %v1141
        %v2166 = vand.u32 2147483647, %v1142
        %v2167 = vand.u32 2147483647, %v1143
        %v2168 = vand.u32 2147483647, %v1144
        %v2169 = vand.u32 2147483647, %v1145
        %v2170 = vand.u32 2147483647, %v1146
        %v2171 = vand.u32 2147483647, %v1147
        %v2172 = vand.u32 2147483647, %v1148
        %v2173 = vand.u32 2147483647, %v1149
        %v2174 = vand.u32 2147483647, %v1150
        %v2175 = vand.u32 2147483647, %v1151
        %v2176 = vand.u32 2147483647, %v1152
        %v2177 = vand.u32 2147483647, %v1153
        %v2178 = vand.u32 2147483647, %v1154
        %v2179 = vand.u32 2147483647, %v1155
        %v2180 = vand.u32 2147483647, %v1156
        %v2181 = vand.u32 2147483647, %v1157
        %v2182 = vand.u32 2147483647, %v1158
        %v2183 = vand.u32 2147483647, %v1159
        %v2184 = vand.u32 2147483647, %v1160
        %v2185 = vand.u32 2147483647, %v1161
        %v2186 = vand.u32 2147483647, %v1162
        %v2187 = vand.u32 2147483647, %v1163
        %v2188 = vand.u32 2147483647, %v1164
        %v2189 = vand.u32 2147483647, %v1165
        %v2190 = vand.u32 2147483647, %v1166
        %v2191 = vand.u32 2147483647, %v1167
        %v2192 = vand.u32 2147483647, %v1168
        %v2193 = vand.u32 2147483647, %v1169
        %v2194 = vand.u32 2147483647, %v1170
        %v2195 = vand.u32 2147483647, %v1171
        %v2196 = vand.u32 2147483647, %v1172
        %v2197 = vand.u32 2147483647, %v1173
        %v2198 = vand.u32 2147483647, %v1174
        %v2199 = vand.u32 2147483647, %v1175
        %v2200 = vand.u32 2147483647, %v1176
        %v2201 = vand.u32 2147483647, %v1177
        %v2202 = vand.u32 2147483647, %v1178
        %v2203 = vand.u32 2147483647, %v1179
        %v2204 = vand.u32 2147483647, %v1180
        %v2205 = vand.u32 2147483647, %v1181
        %v2206 = vand.u32 2147483647, %v1182
        %v2207 = vand.u32 2147483647, %v1183
        %v2208 = vand.u32 2147483647, %v1184
        %v2209 = vand.u32 2147483647, %v1185
        %v2210 = vand.u32 2147483647, %v1186
        %v2211 = vand.u32 2147483647, %v1187
        %v2212 = vand.u32 2147483647, %v1188
        %v2213 = vand.u32 2147483647, %v1189
        %v2214 = vand.u32 2147483647, %v1190
        %v2215 = vand.u32 2147483647, %v1191
        %v2216 = vand.u32 2147483647, %v1192
        %v2217 = vand.u32 2147483647, %v1193
        %p2218 = scmp.lt.s32.totalorder %s163, 2
        // Predicated region
        $region33: #{tpu_custom_call.1} parent=23 // pred_check
          %p2219 = pneg %p2218
        $region34: #{tpu_custom_call.1} parent=23 // pred_check_branch
          %2221 = sbr.rel (%p2219) target = $region36
        $region35: #{tpu_custom_call.1} parent=23 // pred_region
          %v2222 = vld [vmem:[#allocation5] sm:$0xff]
          %v2223 = vld [vmem:[#allocation5 + $0x8] sm:$0xff]
          %v2224 = vadd.f32 %v1194, %v1196
          %v2225 = vadd.f32 %v2224, %v1198
          %v2226 = vadd.f32 %v2225, %v1200
          %v2227 = vadd.f32 %v2226, %v1202
          %v2228 = vadd.f32 %v2227, %v1204
          %v2229 = vadd.f32 %v2228, %v1206
          %v2230 = vadd.f32 %v2229, %v1208
          %v2231 = vadd.f32 %v2230, %v1210
          %v2232 = vadd.f32 %v2231, %v1212
          %v2233 = vadd.f32 %v2232, %v1214
          %v2234 = vadd.f32 %v2233, %v1216
          %v2235 = vadd.f32 %v2234, %v1218
          %v2236 = vadd.f32 %v2235, %v1220
          %v2237 = vadd.f32 %v2236, %v1222
          %v2238 = vadd.f32 %v2237, %v1224
          %v2239 = vadd.f32 %v2238, %v1226
          %v2240 = vadd.f32 %v2239, %v1228
          %v2241 = vadd.f32 %v2240, %v1230
          %v2242 = vadd.f32 %v2241, %v1232
          %v2243 = vadd.f32 %v2242, %v1234
          %v2244 = vadd.f32 %v2243, %v1236
          %v2245 = vadd.f32 %v2244, %v1238
          %v2246 = vadd.f32 %v2245, %v1240
          %v2247 = vadd.f32 %v2246, %v1242
          %v2248 = vadd.f32 %v2247, %v1244
          %v2249 = vadd.f32 %v2248, %v1246
          %v2250 = vadd.f32 %v2249, %v1248
          %v2251 = vadd.f32 %v2250, %v1250
          %v2252 = vadd.f32 %v2251, %v1252
          %v2253 = vadd.f32 %v2252, %v1254
          %v2254 = vadd.f32 %v2253, %v1256
          %v2255 = vadd.f32 %v2254, %v1258
          %v2256 = vadd.f32 %v2255, %v1260
          %v2257 = vadd.f32 %v2256, %v1262
          %v2258 = vadd.f32 %v2257, %v1264
          %v2259 = vadd.f32 %v2258, %v1266
          %v2260 = vadd.f32 %v2259, %v1268
          %v2261 = vadd.f32 %v2260, %v1270
          %v2262 = vadd.f32 %v2261, %v1272
          %v2263 = vadd.f32 %v2262, %v1274
          %v2264 = vadd.f32 %v2263, %v1276
          %v2265 = vadd.f32 %v2264, %v1278
          %v2266 = vadd.f32 %v2265, %v1280
          %v2267 = vadd.f32 %v2266, %v1282
          %v2268 = vadd.f32 %v2267, %v1284
          %v2269 = vadd.f32 %v2268, %v1286
          %v2270 = vadd.f32 %v2269, %v1288
          %v2271 = vadd.f32 %v2270, %v1290
          %v2272 = vadd.f32 %v2271, %v1292
          %v2273 = vadd.f32 %v2272, %v1294
          %v2274 = vadd.f32 %v2273, %v1296
          %v2275 = vadd.f32 %v2274, %v1298
          %v2276 = vadd.f32 %v2275, %v1300
          %v2277 = vadd.f32 %v2276, %v1302
          %v2278 = vadd.f32 %v2277, %v1304
          %v2279 = vadd.f32 %v2278, %v1306
          %v2280 = vadd.f32 %v2279, %v1308
          %v2281 = vadd.f32 %v2280, %v1310
          %v2282 = vadd.f32 %v2281, %v1312
          %v2283 = vadd.f32 %v2282, %v1314
          %v2284 = vadd.f32 %v2283, %v1316
          %v2285 = vadd.f32 %v2284, %v1318
          %v2286 = vadd.f32 %v2285, %v1320
          %v2287 = vadd.f32 %v2286, %v1322
          %v2288 = vadd.f32 %v2287, %v1324
          %v2289 = vadd.f32 %v2288, %v1326
          %v2290 = vadd.f32 %v2289, %v1328
          %v2291 = vadd.f32 %v2290, %v1330
          %v2292 = vadd.f32 %v2291, %v1332
          %v2293 = vadd.f32 %v2292, %v1334
          %v2294 = vadd.f32 %v2293, %v1336
          %v2295 = vadd.f32 %v2294, %v1338
          %v2296 = vadd.f32 %v2295, %v1340
          %v2297 = vadd.f32 %v2296, %v1342
          %v2298 = vadd.f32 %v2297, %v1344
          %v2299 = vadd.f32 %v2298, %v1346
          %v2300 = vadd.f32 %v2299, %v1348
          %v2301 = vadd.f32 %v2300, %v1350
          %v2302 = vadd.f32 %v2301, %v1352
          %v2303 = vadd.f32 %v2302, %v1354
          %v2304 = vadd.f32 %v2303, %v1356
          %v2305 = vadd.f32 %v2304, %v1358
          %v2306 = vadd.f32 %v2305, %v1360
          %v2307 = vadd.f32 %v2306, %v1362
          %v2308 = vadd.f32 %v2307, %v1364
          %v2309 = vadd.f32 %v2308, %v1366
          %v2310 = vadd.f32 %v2309, %v1368
          %v2311 = vadd.f32 %v2310, %v1370
          %v2312 = vadd.f32 %v2311, %v1372
          %v2313 = vadd.f32 %v2312, %v1374
          %v2314 = vadd.f32 %v2313, %v1376
          %v2315 = vadd.f32 %v2314, %v1378
          %v2316 = vadd.f32 %v2315, %v1380
          %v2317 = vadd.f32 %v2316, %v1382
          %v2318 = vadd.f32 %v2317, %v1384
          %v2319 = vadd.f32 %v2318, %v1386
          %v2320 = vadd.f32 %v2319, %v1388
          %v2321 = vadd.f32 %v2320, %v1390
          %v2322 = vadd.f32 %v2321, %v1392
          %v2323 = vadd.f32 %v2322, %v1394
          %v2324 = vadd.f32 %v2323, %v1396
          %v2325 = vadd.f32 %v2324, %v1398
          %v2326 = vadd.f32 %v2325, %v1400
          %v2327 = vadd.f32 %v2326, %v1402
          %v2328 = vadd.f32 %v2327, %v1404
          %v2329 = vadd.f32 %v2328, %v1406
          %v2330 = vadd.f32 %v2329, %v1408
          %v2331 = vadd.f32 %v2330, %v1410
          %v2332 = vadd.f32 %v2331, %v1412
          %v2333 = vadd.f32 %v2332, %v1414
          %v2334 = vadd.f32 %v2333, %v1416
          %v2335 = vadd.f32 %v2334, %v1418
          %v2336 = vadd.f32 %v2335, %v1420
          %v2337 = vadd.f32 %v2336, %v1422
          %v2338 = vadd.f32 %v2337, %v1424
          %v2339 = vadd.f32 %v2338, %v1426
          %v2340 = vadd.f32 %v2339, %v1428
          %v2341 = vadd.f32 %v2340, %v1430
          %v2342 = vadd.f32 %v2341, %v1432
          %v2343 = vadd.f32 %v2342, %v1434
          %v2344 = vadd.f32 %v2343, %v1436
          %v2345 = vadd.f32 %v2344, %v1438
          %v2346 = vadd.f32 %v2345, %v1440
          %v2347 = vadd.f32 %v2346, %v1442
          %v2348 = vadd.f32 %v2347, %v1444
          %v2349 = vadd.f32 %v2348, %v1446
          %v2350 = vadd.f32 %v2349, %v1448
          %v2351 = vadd.f32 %v2350, %v1450
          %v2352 = vadd.f32 %v2351, %v1452
          %v2353 = vadd.f32 %v2352, %v1454
          %v2354 = vadd.f32 %v2353, %v1456
          %v2355 = vadd.f32 %v2354, %v1458
          %v2356 = vadd.f32 %v2355, %v1460
          %v2357 = vadd.f32 %v2356, %v1462
          %v2358 = vadd.f32 %v2357, %v1464
          %v2359 = vadd.f32 %v2358, %v1466
          %v2360 = vadd.f32 %v2359, %v1468
          %v2361 = vadd.f32 %v2360, %v1470
          %v2362 = vadd.f32 %v2361, %v1472
          %v2363 = vadd.f32 %v2362, %v1474
          %v2364 = vadd.f32 %v2363, %v1476
          %v2365 = vadd.f32 %v2364, %v1478
          %v2366 = vadd.f32 %v2365, %v1480
          %v2367 = vadd.f32 %v2366, %v1482
          %v2368 = vadd.f32 %v2367, %v1484
          %v2369 = vadd.f32 %v2368, %v1486
          %v2370 = vadd.f32 %v2369, %v1488
          %v2371 = vadd.f32 %v2370, %v1490
          %v2372 = vadd.f32 %v2371, %v1492
          %v2373 = vadd.f32 %v2372, %v1494
          %v2374 = vadd.f32 %v2373, %v1496
          %v2375 = vadd.f32 %v2374, %v1498
          %v2376 = vadd.f32 %v2375, %v1500
          %v2377 = vadd.f32 %v2376, %v1502
          %v2378 = vadd.f32 %v2377, %v1504
          %v2379 = vadd.f32 %v2378, %v1506
          %v2380 = vadd.f32 %v2379, %v1508
          %v2381 = vadd.f32 %v2380, %v1510
          %v2382 = vadd.f32 %v2381, %v1512
          %v2383 = vadd.f32 %v2382, %v1514
          %v2384 = vadd.f32 %v2383, %v1516
          %v2385 = vadd.f32 %v2384, %v1518
          %v2386 = vadd.f32 %v2385, %v1520
          %v2387 = vadd.f32 %v2386, %v1522
          %v2388 = vadd.f32 %v2387, %v1524
          %v2389 = vadd.f32 %v2388, %v1526
          %v2390 = vadd.f32 %v2389, %v1528
          %v2391 = vadd.f32 %v2390, %v1530
          %v2392 = vadd.f32 %v2391, %v1532
          %v2393 = vadd.f32 %v2392, %v1534
          %v2394 = vadd.f32 %v2393, %v1536
          %v2395 = vadd.f32 %v2394, %v1538
          %v2396 = vadd.f32 %v2395, %v1540
          %v2397 = vadd.f32 %v2396, %v1542
          %v2398 = vadd.f32 %v2397, %v1544
          %v2399 = vadd.f32 %v2398, %v1546
          %v2400 = vadd.f32 %v2399, %v1548
          %v2401 = vadd.f32 %v2400, %v1550
          %v2402 = vadd.f32 %v2401, %v1552
          %v2403 = vadd.f32 %v2402, %v1554
          %v2404 = vadd.f32 %v2403, %v1556
          %v2405 = vadd.f32 %v2404, %v1558
          %v2406 = vadd.f32 %v2405, %v1560
          %v2407 = vadd.f32 %v2406, %v1562
          %v2408 = vadd.f32 %v2407, %v1564
          %v2409 = vadd.f32 %v2408, %v1566
          %v2410 = vadd.f32 %v2409, %v1568
          %v2411 = vadd.f32 %v2410, %v1570
          %v2412 = vadd.f32 %v2411, %v1572
          %v2413 = vadd.f32 %v2412, %v1574
          %v2414 = vadd.f32 %v2413, %v1576
          %v2415 = vadd.f32 %v2414, %v1578
          %v2416 = vadd.f32 %v2415, %v1580
          %v2417 = vadd.f32 %v2416, %v1582
          %v2418 = vadd.f32 %v2417, %v1584
          %v2419 = vadd.f32 %v2418, %v1586
          %v2420 = vadd.f32 %v2419, %v1588
          %v2421 = vadd.f32 %v2420, %v1590
          %v2422 = vadd.f32 %v2421, %v1592
          %v2423 = vadd.f32 %v2422, %v1594
          %v2424 = vadd.f32 %v2423, %v1596
          %v2425 = vadd.f32 %v2424, %v1598
          %v2426 = vadd.f32 %v2425, %v1600
          %v2427 = vadd.f32 %v2426, %v1602
          %v2428 = vadd.f32 %v2427, %v1604
          %v2429 = vadd.f32 %v2428, %v1606
          %v2430 = vadd.f32 %v2429, %v1608
          %v2431 = vadd.f32 %v2430, %v1610
          %v2432 = vadd.f32 %v2431, %v1612
          %v2433 = vadd.f32 %v2432, %v1614
          %v2434 = vadd.f32 %v2433, %v1616
          %v2435 = vadd.f32 %v2434, %v1618
          %v2436 = vadd.f32 %v2435, %v1620
          %v2437 = vadd.f32 %v2436, %v1622
          %v2438 = vadd.f32 %v2437, %v1624
          %v2439 = vadd.f32 %v2438, %v1626
          %v2440 = vadd.f32 %v2439, %v1628
          %v2441 = vadd.f32 %v2440, %v1630
          %v2442 = vadd.f32 %v2441, %v1632
          %v2443 = vadd.f32 %v2442, %v1634
          %v2444 = vadd.f32 %v2443, %v1636
          %v2445 = vadd.f32 %v2444, %v1638
          %v2446 = vadd.f32 %v2445, %v1640
          %v2447 = vadd.f32 %v2446, %v1642
          %v2448 = vadd.f32 %v2447, %v1644
          %v2449 = vadd.f32 %v2448, %v1646
          %v2450 = vadd.f32 %v2449, %v1648
          %v2451 = vadd.f32 %v2450, %v1650
          %v2452 = vadd.f32 %v2451, %v1652
          %v2453 = vadd.f32 %v2452, %v1654
          %v2454 = vadd.f32 %v2453, %v1656
          %v2455 = vadd.f32 %v2454, %v1658
          %v2456 = vadd.f32 %v2455, %v1660
          %v2457 = vadd.f32 %v2456, %v1662
          %v2458 = vadd.f32 %v2457, %v1664
          %v2459 = vadd.f32 %v2458, %v1666
          %v2460 = vadd.f32 %v2459, %v1668
          %v2461 = vadd.f32 %v2460, %v1670
          %v2462 = vadd.f32 %v2461, %v1672
          %v2463 = vadd.f32 %v2462, %v1674
          %v2464 = vadd.f32 %v2463, %v1676
          %v2465 = vadd.f32 %v2464, %v1678
          %v2466 = vadd.f32 %v2465, %v1680
          %v2467 = vadd.f32 %v2466, %v1682
          %v2468 = vadd.f32 %v2467, %v1684
          %v2469 = vadd.f32 %v2468, %v1686
          %v2470 = vadd.f32 %v2469, %v1688
          %v2471 = vadd.f32 %v2470, %v1690
          %v2472 = vadd.f32 %v2471, %v1692
          %v2473 = vadd.f32 %v2472, %v1694
          %v2474 = vadd.f32 %v2473, %v1696
          %v2475 = vadd.f32 %v2474, %v1698
          %v2476 = vadd.f32 %v2475, %v1700
          %v2477 = vadd.f32 %v2476, %v1702
          %v2478 = vadd.f32 %v2477, %v1704
          %v2479 = vadd.f32 %v2478, %v1706
          %v2480 = vadd.f32 %v2479, %v1708
          %v2481 = vadd.f32 %v2480, %v1710
          %v2482 = vadd.f32 %v2481, %v1712
          %v2483 = vadd.f32 %v2482, %v1714
          %v2484 = vadd.f32 %v2483, %v1716
          %v2485 = vadd.f32 %v2484, %v1718
          %v2486 = vadd.f32 %v2485, %v1720
          %v2487 = vadd.f32 %v2486, %v1722
          %v2488 = vadd.f32 %v2487, %v1724
          %v2489 = vadd.f32 %v2488, %v1726
          %v2490 = vadd.f32 %v2489, %v1728
          %v2491 = vadd.f32 %v2490, %v1730
          %v2492 = vadd.f32 %v2491, %v1732
          %v2493 = vadd.f32 %v2492, %v1734
          %v2494 = vadd.f32 %v2493, %v1736
          %v2495 = vadd.f32 %v2494, %v1738
          %v2496 = vadd.f32 %v2495, %v1740
          %v2497 = vadd.f32 %v2496, %v1742
          %v2498 = vadd.f32 %v2497, %v1744
          %v2499 = vadd.f32 %v2498, %v1746
          %v2500 = vadd.f32 %v2499, %v1748
          %v2501 = vadd.f32 %v2500, %v1750
          %v2502 = vadd.f32 %v2501, %v1752
          %v2503 = vadd.f32 %v2502, %v1754
          %v2504 = vadd.f32 %v2503, %v1756
          %v2505 = vadd.f32 %v2504, %v1758
          %v2506 = vadd.f32 %v2505, %v1760
          %v2507 = vadd.f32 %v2506, %v1762
          %v2508 = vadd.f32 %v2507, %v1764
          %v2509 = vadd.f32 %v2508, %v1766
          %v2510 = vadd.f32 %v2509, %v1768
          %v2511 = vadd.f32 %v2510, %v1770
          %v2512 = vadd.f32 %v2511, %v1772
          %v2513 = vadd.f32 %v2512, %v1774
          %v2514 = vadd.f32 %v2513, %v1776
          %v2515 = vadd.f32 %v2514, %v1778
          %v2516 = vadd.f32 %v2515, %v1780
          %v2517 = vadd.f32 %v2516, %v1782
          %v2518 = vadd.f32 %v2517, %v1784
          %v2519 = vadd.f32 %v2518, %v1786
          %v2520 = vadd.f32 %v2519, %v1788
          %v2521 = vadd.f32 %v2520, %v1790
          %v2522 = vadd.f32 %v2521, %v1792
          %v2523 = vadd.f32 %v2522, %v1794
          %v2524 = vadd.f32 %v2523, %v1796
          %v2525 = vadd.f32 %v2524, %v1798
          %v2526 = vadd.f32 %v2525, %v1800
          %v2527 = vadd.f32 %v2526, %v1802
          %v2528 = vadd.f32 %v2527, %v1804
          %v2529 = vadd.f32 %v2528, %v1806
          %v2530 = vadd.f32 %v2529, %v1808
          %v2531 = vadd.f32 %v2530, %v1810
          %v2532 = vadd.f32 %v2531, %v1812
          %v2533 = vadd.f32 %v2532, %v1814
          %v2534 = vadd.f32 %v2533, %v1816
          %v2535 = vadd.f32 %v2534, %v1818
          %v2536 = vadd.f32 %v2535, %v1820
          %v2537 = vadd.f32 %v2536, %v1822
          %v2538 = vadd.f32 %v2537, %v1824
          %v2539 = vadd.f32 %v2538, %v1826
          %v2540 = vadd.f32 %v2539, %v1828
          %v2541 = vadd.f32 %v2540, %v1830
          %v2542 = vadd.f32 %v2541, %v1832
          %v2543 = vadd.f32 %v2542, %v1834
          %v2544 = vadd.f32 %v2543, %v1836
          %v2545 = vadd.f32 %v2544, %v1838
          %v2546 = vadd.f32 %v2545, %v1840
          %v2547 = vadd.f32 %v2546, %v1842
          %v2548 = vadd.f32 %v2547, %v1844
          %v2549 = vadd.f32 %v2548, %v1846
          %v2550 = vadd.f32 %v2549, %v1848
          %v2551 = vadd.f32 %v2550, %v1850
          %v2552 = vadd.f32 %v2551, %v1852
          %v2553 = vadd.f32 %v2552, %v1854
          %v2554 = vadd.f32 %v2553, %v1856
          %v2555 = vadd.f32 %v2554, %v1858
          %v2556 = vadd.f32 %v2555, %v1860
          %v2557 = vadd.f32 %v2556, %v1862
          %v2558 = vadd.f32 %v2557, %v1864
          %v2559 = vadd.f32 %v2558, %v1866
          %v2560 = vadd.f32 %v2559, %v1868
          %v2561 = vadd.f32 %v2560, %v1870
          %v2562 = vadd.f32 %v2561, %v1872
          %v2563 = vadd.f32 %v2562, %v1874
          %v2564 = vadd.f32 %v2563, %v1876
          %v2565 = vadd.f32 %v2564, %v1878
          %v2566 = vadd.f32 %v2565, %v1880
          %v2567 = vadd.f32 %v2566, %v1882
          %v2568 = vadd.f32 %v2567, %v1884
          %v2569 = vadd.f32 %v2568, %v1886
          %v2570 = vadd.f32 %v2569, %v1888
          %v2571 = vadd.f32 %v2570, %v1890
          %v2572 = vadd.f32 %v2571, %v1892
          %v2573 = vadd.f32 %v2572, %v1894
          %v2574 = vadd.f32 %v2573, %v1896
          %v2575 = vadd.f32 %v2574, %v1898
          %v2576 = vadd.f32 %v2575, %v1900
          %v2577 = vadd.f32 %v2576, %v1902
          %v2578 = vadd.f32 %v2577, %v1904
          %v2579 = vadd.f32 %v2578, %v1906
          %v2580 = vadd.f32 %v2579, %v1908
          %v2581 = vadd.f32 %v2580, %v1910
          %v2582 = vadd.f32 %v2581, %v1912
          %v2583 = vadd.f32 %v2582, %v1914
          %v2584 = vadd.f32 %v2583, %v1916
          %v2585 = vadd.f32 %v2584, %v1918
          %v2586 = vadd.f32 %v2585, %v1920
          %v2587 = vadd.f32 %v2586, %v1922
          %v2588 = vadd.f32 %v2587, %v1924
          %v2589 = vadd.f32 %v2588, %v1926
          %v2590 = vadd.f32 %v2589, %v1928
          %v2591 = vadd.f32 %v2590, %v1930
          %v2592 = vadd.f32 %v2591, %v1932
          %v2593 = vadd.f32 %v2592, %v1934
          %v2594 = vadd.f32 %v2593, %v1936
          %v2595 = vadd.f32 %v2594, %v1938
          %v2596 = vadd.f32 %v2595, %v1940
          %v2597 = vadd.f32 %v2596, %v1942
          %v2598 = vadd.f32 %v2597, %v1944
          %v2599 = vadd.f32 %v2598, %v1946
          %v2600 = vadd.f32 %v2599, %v1948
          %v2601 = vadd.f32 %v2600, %v1950
          %v2602 = vadd.f32 %v2601, %v1952
          %v2603 = vadd.f32 %v2602, %v1954
          %v2604 = vadd.f32 %v2603, %v1956
          %v2605 = vadd.f32 %v2604, %v1958
          %v2606 = vadd.f32 %v2605, %v1960
          %v2607 = vadd.f32 %v2606, %v1962
          %v2608 = vadd.f32 %v2607, %v1964
          %v2609 = vadd.f32 %v2608, %v1966
          %v2610 = vadd.f32 %v2609, %v1968
          %v2611 = vadd.f32 %v2610, %v1970
          %v2612 = vadd.f32 %v2611, %v1972
          %v2613 = vadd.f32 %v2612, %v1974
          %v2614 = vadd.f32 %v2613, %v1976
          %v2615 = vadd.f32 %v2614, %v1978
          %v2616 = vadd.f32 %v2615, %v1980
          %v2617 = vadd.f32 %v2616, %v1982
          %v2618 = vadd.f32 %v2617, %v1984
          %v2619 = vadd.f32 %v2618, %v1986
          %v2620 = vadd.f32 %v2619, %v1988
          %v2621 = vadd.f32 %v2620, %v1990
          %v2622 = vadd.f32 %v2621, %v1992
          %v2623 = vadd.f32 %v2622, %v1994
          %v2624 = vadd.f32 %v2623, %v1996
          %v2625 = vadd.f32 %v2624, %v1998
          %v2626 = vadd.f32 %v2625, %v2000
          %v2627 = vadd.f32 %v2626, %v2002
          %v2628 = vadd.f32 %v2627, %v2004
          %v2629 = vadd.f32 %v2628, %v2006
          %v2630 = vadd.f32 %v2629, %v2008
          %v2631 = vadd.f32 %v2630, %v2010
          %v2632 = vadd.f32 %v2631, %v2012
          %v2633 = vadd.f32 %v2632, %v2014
          %v2634 = vadd.f32 %v2633, %v2016
          %v2635 = vadd.f32 %v2634, %v2018
          %v2636 = vadd.f32 %v2635, %v2020
          %v2637 = vadd.f32 %v2636, %v2022
          %v2638 = vadd.f32 %v2637, %v2024
          %v2639 = vadd.f32 %v2638, %v2026
          %v2640 = vadd.f32 %v2639, %v2028
          %v2641 = vadd.f32 %v2640, %v2030
          %v2642 = vadd.f32 %v2641, %v2032
          %v2643 = vadd.f32 %v2642, %v2034
          %v2644 = vadd.f32 %v2643, %v2036
          %v2645 = vadd.f32 %v2644, %v2038
          %v2646 = vadd.f32 %v2645, %v2040
          %v2647 = vadd.f32 %v2646, %v2042
          %v2648 = vadd.f32 %v2647, %v2044
          %v2649 = vadd.f32 %v2648, %v2046
          %v2650 = vadd.f32 %v2649, %v2048
          %v2651 = vadd.f32 %v2650, %v2050
          %v2652 = vadd.f32 %v2651, %v2052
          %v2653 = vadd.f32 %v2652, %v2054
          %v2654 = vadd.f32 %v2653, %v2056
          %v2655 = vadd.f32 %v2654, %v2058
          %v2656 = vadd.f32 %v2655, %v2060
          %v2657 = vadd.f32 %v2656, %v2062
          %v2658 = vadd.f32 %v2657, %v2064
          %v2659 = vadd.f32 %v2658, %v2066
          %v2660 = vadd.f32 %v2659, %v2068
          %v2661 = vadd.f32 %v2660, %v2070
          %v2662 = vadd.f32 %v2661, %v2072
          %v2663 = vadd.f32 %v2662, %v2074
          %v2664 = vadd.f32 %v2663, %v2076
          %v2665 = vadd.f32 %v2664, %v2078
          %v2666 = vadd.f32 %v2665, %v2080
          %v2667 = vadd.f32 %v2666, %v2082
          %v2668 = vadd.f32 %v2667, %v2084
          %v2669 = vadd.f32 %v2668, %v2086
          %v2670 = vadd.f32 %v2669, %v2088
          %v2671 = vadd.f32 %v2670, %v2090
          %v2672 = vadd.f32 %v2671, %v2092
          %v2673 = vadd.f32 %v2672, %v2094
          %v2674 = vadd.f32 %v2673, %v2096
          %v2675 = vadd.f32 %v2674, %v2098
          %v2676 = vadd.f32 %v2675, %v2100
          %v2677 = vadd.f32 %v2676, %v2102
          %v2678 = vadd.f32 %v2677, %v2104
          %v2679 = vadd.f32 %v2678, %v2106
          %v2680 = vadd.f32 %v2679, %v2108
          %v2681 = vadd.f32 %v2680, %v2110
          %v2682 = vadd.f32 %v2681, %v2112
          %v2683 = vadd.f32 %v2682, %v2114
          %v2684 = vadd.f32 %v2683, %v2116
          %v2685 = vadd.f32 %v2684, %v2118
          %v2686 = vadd.f32 %v2685, %v2120
          %v2687 = vadd.f32 %v2686, %v2122
          %v2688 = vadd.f32 %v2687, %v2124
          %v2689 = vadd.f32 %v2688, %v2126
          %v2690 = vadd.f32 %v2689, %v2128
          %v2691 = vadd.f32 %v2690, %v2130
          %v2692 = vadd.f32 %v2691, %v2132
          %v2693 = vadd.f32 %v2692, %v2134
          %v2694 = vadd.f32 %v2693, %v2136
          %v2695 = vadd.f32 %v2694, %v2138
          %v2696 = vadd.f32 %v2695, %v2140
          %v2697 = vadd.f32 %v2696, %v2142
          %v2698 = vadd.f32 %v2697, %v2144
          %v2699 = vadd.f32 %v2698, %v2146
          %v2700 = vadd.f32 %v2699, %v2148
          %v2701 = vadd.f32 %v2700, %v2150
          %v2702 = vadd.f32 %v2701, %v2152
          %v2703 = vadd.f32 %v2702, %v2154
          %v2704 = vadd.f32 %v2703, %v2156
          %v2705 = vadd.f32 %v2704, %v2158
          %v2706 = vadd.f32 %v2705, %v2160
          %v2707 = vadd.f32 %v2706, %v2162
          %v2708 = vadd.f32 %v2707, %v2164
          %v2709 = vadd.f32 %v2708, %v2166
          %v2710 = vadd.f32 %v2709, %v2168
          %v2711 = vadd.f32 %v2710, %v2170
          %v2712 = vadd.f32 %v2711, %v2172
          %v2713 = vadd.f32 %v2712, %v2174
          %v2714 = vadd.f32 %v2713, %v2176
          %v2715 = vadd.f32 %v2714, %v2178
          %v2716 = vadd.f32 %v2715, %v2180
          %v2717 = vadd.f32 %v2716, %v2182
          %v2718 = vadd.f32 %v2717, %v2184
          %v2719 = vadd.f32 %v2718, %v2186
          %v2720 = vadd.f32 %v2719, %v2188
          %v2721 = vadd.f32 %v2720, %v2190
          %v2722 = vadd.f32 %v2721, %v2192
          %v2723 = vadd.f32 %v2722, %v2194
          %v2724 = vadd.f32 %v2723, %v2196
          %v2725 = vadd.f32 %v2724, %v2198
          %v2726 = vadd.f32 %v2725, %v2200
          %v2727 = vadd.f32 %v2726, %v2202
          %v2728 = vadd.f32 %v2727, %v2204
          %v2729 = vadd.f32 %v2728, %v2206
          %v2730 = vadd.f32 %v2729, %v2208
          %v2731 = vadd.f32 %v2730, %v2210
          %v2732 = vadd.f32 %v2731, %v2212
          %v2733 = vadd.f32 %v2732, %v2214
          %v2734 = vadd.f32 %v2733, %v2216
          %v2735 = vadd.f32 %v1195, %v1197
          %v2736 = vadd.f32 %v2735, %v1199
          %v2737 = vadd.f32 %v2736, %v1201
          %v2738 = vadd.f32 %v2737, %v1203
          %v2739 = vadd.f32 %v2738, %v1205
          %v2740 = vadd.f32 %v2739, %v1207
          %v2741 = vadd.f32 %v2740, %v1209
          %v2742 = vadd.f32 %v2741, %v1211
          %v2743 = vadd.f32 %v2742, %v1213
          %v2744 = vadd.f32 %v2743, %v1215
          %v2745 = vadd.f32 %v2744, %v1217
          %v2746 = vadd.f32 %v2745, %v1219
          %v2747 = vadd.f32 %v2746, %v1221
          %v2748 = vadd.f32 %v2747, %v1223
          %v2749 = vadd.f32 %v2748, %v1225
          %v2750 = vadd.f32 %v2749, %v1227
          %v2751 = vadd.f32 %v2750, %v1229
          %v2752 = vadd.f32 %v2751, %v1231
          %v2753 = vadd.f32 %v2752, %v1233
          %v2754 = vadd.f32 %v2753, %v1235
          %v2755 = vadd.f32 %v2754, %v1237
          %v2756 = vadd.f32 %v2755, %v1239
          %v2757 = vadd.f32 %v2756, %v1241
          %v2758 = vadd.f32 %v2757, %v1243
          %v2759 = vadd.f32 %v2758, %v1245
          %v2760 = vadd.f32 %v2759, %v1247
          %v2761 = vadd.f32 %v2760, %v1249
          %v2762 = vadd.f32 %v2761, %v1251
          %v2763 = vadd.f32 %v2762, %v1253
          %v2764 = vadd.f32 %v2763, %v1255
          %v2765 = vadd.f32 %v2764, %v1257
          %v2766 = vadd.f32 %v2765, %v1259
          %v2767 = vadd.f32 %v2766, %v1261
          %v2768 = vadd.f32 %v2767, %v1263
          %v2769 = vadd.f32 %v2768, %v1265
          %v2770 = vadd.f32 %v2769, %v1267
          %v2771 = vadd.f32 %v2770, %v1269
          %v2772 = vadd.f32 %v2771, %v1271
          %v2773 = vadd.f32 %v2772, %v1273
          %v2774 = vadd.f32 %v2773, %v1275
          %v2775 = vadd.f32 %v2774, %v1277
          %v2776 = vadd.f32 %v2775, %v1279
          %v2777 = vadd.f32 %v2776, %v1281
          %v2778 = vadd.f32 %v2777, %v1283
          %v2779 = vadd.f32 %v2778, %v1285
          %v2780 = vadd.f32 %v2779, %v1287
          %v2781 = vadd.f32 %v2780, %v1289
          %v2782 = vadd.f32 %v2781, %v1291
          %v2783 = vadd.f32 %v2782, %v1293
          %v2784 = vadd.f32 %v2783, %v1295
          %v2785 = vadd.f32 %v2784, %v1297
          %v2786 = vadd.f32 %v2785, %v1299
          %v2787 = vadd.f32 %v2786, %v1301
          %v2788 = vadd.f32 %v2787, %v1303
          %v2789 = vadd.f32 %v2788, %v1305
          %v2790 = vadd.f32 %v2789, %v1307
          %v2791 = vadd.f32 %v2790, %v1309
          %v2792 = vadd.f32 %v2791, %v1311
          %v2793 = vadd.f32 %v2792, %v1313
          %v2794 = vadd.f32 %v2793, %v1315
          %v2795 = vadd.f32 %v2794, %v1317
          %v2796 = vadd.f32 %v2795, %v1319
          %v2797 = vadd.f32 %v2796, %v1321
          %v2798 = vadd.f32 %v2797, %v1323
          %v2799 = vadd.f32 %v2798, %v1325
          %v2800 = vadd.f32 %v2799, %v1327
          %v2801 = vadd.f32 %v2800, %v1329
          %v2802 = vadd.f32 %v2801, %v1331
          %v2803 = vadd.f32 %v2802, %v1333
          %v2804 = vadd.f32 %v2803, %v1335
          %v2805 = vadd.f32 %v2804, %v1337
          %v2806 = vadd.f32 %v2805, %v1339
          %v2807 = vadd.f32 %v2806, %v1341
          %v2808 = vadd.f32 %v2807, %v1343
          %v2809 = vadd.f32 %v2808, %v1345
          %v2810 = vadd.f32 %v2809, %v1347
          %v2811 = vadd.f32 %v2810, %v1349
          %v2812 = vadd.f32 %v2811, %v1351
          %v2813 = vadd.f32 %v2812, %v1353
          %v2814 = vadd.f32 %v2813, %v1355
          %v2815 = vadd.f32 %v2814, %v1357
          %v2816 = vadd.f32 %v2815, %v1359
          %v2817 = vadd.f32 %v2816, %v1361
          %v2818 = vadd.f32 %v2817, %v1363
          %v2819 = vadd.f32 %v2818, %v1365
          %v2820 = vadd.f32 %v2819, %v1367
          %v2821 = vadd.f32 %v2820, %v1369
          %v2822 = vadd.f32 %v2821, %v1371
          %v2823 = vadd.f32 %v2822, %v1373
          %v2824 = vadd.f32 %v2823, %v1375
          %v2825 = vadd.f32 %v2824, %v1377
          %v2826 = vadd.f32 %v2825, %v1379
          %v2827 = vadd.f32 %v2826, %v1381
          %v2828 = vadd.f32 %v2827, %v1383
          %v2829 = vadd.f32 %v2828, %v1385
          %v2830 = vadd.f32 %v2829, %v1387
          %v2831 = vadd.f32 %v2830, %v1389
          %v2832 = vadd.f32 %v2831, %v1391
          %v2833 = vadd.f32 %v2832, %v1393
          %v2834 = vadd.f32 %v2833, %v1395
          %v2835 = vadd.f32 %v2834, %v1397
          %v2836 = vadd.f32 %v2835, %v1399
          %v2837 = vadd.f32 %v2836, %v1401
          %v2838 = vadd.f32 %v2837, %v1403
          %v2839 = vadd.f32 %v2838, %v1405
          %v2840 = vadd.f32 %v2839, %v1407
          %v2841 = vadd.f32 %v2840, %v1409
          %v2842 = vadd.f32 %v2841, %v1411
          %v2843 = vadd.f32 %v2842, %v1413
          %v2844 = vadd.f32 %v2843, %v1415
          %v2845 = vadd.f32 %v2844, %v1417
          %v2846 = vadd.f32 %v2845, %v1419
          %v2847 = vadd.f32 %v2846, %v1421
          %v2848 = vadd.f32 %v2847, %v1423
          %v2849 = vadd.f32 %v2848, %v1425
          %v2850 = vadd.f32 %v2849, %v1427
          %v2851 = vadd.f32 %v2850, %v1429
          %v2852 = vadd.f32 %v2851, %v1431
          %v2853 = vadd.f32 %v2852, %v1433
          %v2854 = vadd.f32 %v2853, %v1435
          %v2855 = vadd.f32 %v2854, %v1437
          %v2856 = vadd.f32 %v2855, %v1439
          %v2857 = vadd.f32 %v2856, %v1441
          %v2858 = vadd.f32 %v2857, %v1443
          %v2859 = vadd.f32 %v2858, %v1445
          %v2860 = vadd.f32 %v2859, %v1447
          %v2861 = vadd.f32 %v2860, %v1449
          %v2862 = vadd.f32 %v2861, %v1451
          %v2863 = vadd.f32 %v2862, %v1453
          %v2864 = vadd.f32 %v2863, %v1455
          %v2865 = vadd.f32 %v2864, %v1457
          %v2866 = vadd.f32 %v2865, %v1459
          %v2867 = vadd.f32 %v2866, %v1461
          %v2868 = vadd.f32 %v2867, %v1463
          %v2869 = vadd.f32 %v2868, %v1465
          %v2870 = vadd.f32 %v2869, %v1467
          %v2871 = vadd.f32 %v2870, %v1469
          %v2872 = vadd.f32 %v2871, %v1471
          %v2873 = vadd.f32 %v2872, %v1473
          %v2874 = vadd.f32 %v2873, %v1475
          %v2875 = vadd.f32 %v2874, %v1477
          %v2876 = vadd.f32 %v2875, %v1479
          %v2877 = vadd.f32 %v2876, %v1481
          %v2878 = vadd.f32 %v2877, %v1483
          %v2879 = vadd.f32 %v2878, %v1485
          %v2880 = vadd.f32 %v2879, %v1487
          %v2881 = vadd.f32 %v2880, %v1489
          %v2882 = vadd.f32 %v2881, %v1491
          %v2883 = vadd.f32 %v2882, %v1493
          %v2884 = vadd.f32 %v2883, %v1495
          %v2885 = vadd.f32 %v2884, %v1497
          %v2886 = vadd.f32 %v2885, %v1499
          %v2887 = vadd.f32 %v2886, %v1501
          %v2888 = vadd.f32 %v2887, %v1503
          %v2889 = vadd.f32 %v2888, %v1505
          %v2890 = vadd.f32 %v2889, %v1507
          %v2891 = vadd.f32 %v2890, %v1509
          %v2892 = vadd.f32 %v2891, %v1511
          %v2893 = vadd.f32 %v2892, %v1513
          %v2894 = vadd.f32 %v2893, %v1515
          %v2895 = vadd.f32 %v2894, %v1517
          %v2896 = vadd.f32 %v2895, %v1519
          %v2897 = vadd.f32 %v2896, %v1521
          %v2898 = vadd.f32 %v2897, %v1523
          %v2899 = vadd.f32 %v2898, %v1525
          %v2900 = vadd.f32 %v2899, %v1527
          %v2901 = vadd.f32 %v2900, %v1529
          %v2902 = vadd.f32 %v2901, %v1531
          %v2903 = vadd.f32 %v2902, %v1533
          %v2904 = vadd.f32 %v2903, %v1535
          %v2905 = vadd.f32 %v2904, %v1537
          %v2906 = vadd.f32 %v2905, %v1539
          %v2907 = vadd.f32 %v2906, %v1541
          %v2908 = vadd.f32 %v2907, %v1543
          %v2909 = vadd.f32 %v2908, %v1545
          %v2910 = vadd.f32 %v2909, %v1547
          %v2911 = vadd.f32 %v2910, %v1549
          %v2912 = vadd.f32 %v2911, %v1551
          %v2913 = vadd.f32 %v2912, %v1553
          %v2914 = vadd.f32 %v2913, %v1555
          %v2915 = vadd.f32 %v2914, %v1557
          %v2916 = vadd.f32 %v2915, %v1559
          %v2917 = vadd.f32 %v2916, %v1561
          %v2918 = vadd.f32 %v2917, %v1563
          %v2919 = vadd.f32 %v2918, %v1565
          %v2920 = vadd.f32 %v2919, %v1567
          %v2921 = vadd.f32 %v2920, %v1569
          %v2922 = vadd.f32 %v2921, %v1571
          %v2923 = vadd.f32 %v2922, %v1573
          %v2924 = vadd.f32 %v2923, %v1575
          %v2925 = vadd.f32 %v2924, %v1577
          %v2926 = vadd.f32 %v2925, %v1579
          %v2927 = vadd.f32 %v2926, %v1581
          %v2928 = vadd.f32 %v2927, %v1583
          %v2929 = vadd.f32 %v2928, %v1585
          %v2930 = vadd.f32 %v2929, %v1587
          %v2931 = vadd.f32 %v2930, %v1589
          %v2932 = vadd.f32 %v2931, %v1591
          %v2933 = vadd.f32 %v2932, %v1593
          %v2934 = vadd.f32 %v2933, %v1595
          %v2935 = vadd.f32 %v2934, %v1597
          %v2936 = vadd.f32 %v2935, %v1599
          %v2937 = vadd.f32 %v2936, %v1601
          %v2938 = vadd.f32 %v2937, %v1603
          %v2939 = vadd.f32 %v2938, %v1605
          %v2940 = vadd.f32 %v2939, %v1607
          %v2941 = vadd.f32 %v2940, %v1609
          %v2942 = vadd.f32 %v2941, %v1611
          %v2943 = vadd.f32 %v2942, %v1613
          %v2944 = vadd.f32 %v2943, %v1615
          %v2945 = vadd.f32 %v2944, %v1617
          %v2946 = vadd.f32 %v2945, %v1619
          %v2947 = vadd.f32 %v2946, %v1621
          %v2948 = vadd.f32 %v2947, %v1623
          %v2949 = vadd.f32 %v2948, %v1625
          %v2950 = vadd.f32 %v2949, %v1627
          %v2951 = vadd.f32 %v2950, %v1629
          %v2952 = vadd.f32 %v2951, %v1631
          %v2953 = vadd.f32 %v2952, %v1633
          %v2954 = vadd.f32 %v2953, %v1635
          %v2955 = vadd.f32 %v2954, %v1637
          %v2956 = vadd.f32 %v2955, %v1639
          %v2957 = vadd.f32 %v2956, %v1641
          %v2958 = vadd.f32 %v2957, %v1643
          %v2959 = vadd.f32 %v2958, %v1645
          %v2960 = vadd.f32 %v2959, %v1647
          %v2961 = vadd.f32 %v2960, %v1649
          %v2962 = vadd.f32 %v2961, %v1651
          %v2963 = vadd.f32 %v2962, %v1653
          %v2964 = vadd.f32 %v2963, %v1655
          %v2965 = vadd.f32 %v2964, %v1657
          %v2966 = vadd.f32 %v2965, %v1659
          %v2967 = vadd.f32 %v2966, %v1661
          %v2968 = vadd.f32 %v2967, %v1663
          %v2969 = vadd.f32 %v2968, %v1665
          %v2970 = vadd.f32 %v2969, %v1667
          %v2971 = vadd.f32 %v2970, %v1669
          %v2972 = vadd.f32 %v2971, %v1671
          %v2973 = vadd.f32 %v2972, %v1673
          %v2974 = vadd.f32 %v2973, %v1675
          %v2975 = vadd.f32 %v2974, %v1677
          %v2976 = vadd.f32 %v2975, %v1679
          %v2977 = vadd.f32 %v2976, %v1681
          %v2978 = vadd.f32 %v2977, %v1683
          %v2979 = vadd.f32 %v2978, %v1685
          %v2980 = vadd.f32 %v2979, %v1687
          %v2981 = vadd.f32 %v2980, %v1689
          %v2982 = vadd.f32 %v2981, %v1691
          %v2983 = vadd.f32 %v2982, %v1693
          %v2984 = vadd.f32 %v2983, %v1695
          %v2985 = vadd.f32 %v2984, %v1697
          %v2986 = vadd.f32 %v2985, %v1699
          %v2987 = vadd.f32 %v2986, %v1701
          %v2988 = vadd.f32 %v2987, %v1703
          %v2989 = vadd.f32 %v2988, %v1705
          %v2990 = vadd.f32 %v2989, %v1707
          %v2991 = vadd.f32 %v2990, %v1709
          %v2992 = vadd.f32 %v2991, %v1711
          %v2993 = vadd.f32 %v2992, %v1713
          %v2994 = vadd.f32 %v2993, %v1715
          %v2995 = vadd.f32 %v2994, %v1717
          %v2996 = vadd.f32 %v2995, %v1719
          %v2997 = vadd.f32 %v2996, %v1721
          %v2998 = vadd.f32 %v2997, %v1723
          %v2999 = vadd.f32 %v2998, %v1725
          %v3000 = vadd.f32 %v2999, %v1727
          %v3001 = vadd.f32 %v3000, %v1729
          %v3002 = vadd.f32 %v3001, %v1731
          %v3003 = vadd.f32 %v3002, %v1733
          %v3004 = vadd.f32 %v3003, %v1735
          %v3005 = vadd.f32 %v3004, %v1737
          %v3006 = vadd.f32 %v3005, %v1739
          %v3007 = vadd.f32 %v3006, %v1741
          %v3008 = vadd.f32 %v3007, %v1743
          %v3009 = vadd.f32 %v3008, %v1745
          %v3010 = vadd.f32 %v3009, %v1747
          %v3011 = vadd.f32 %v3010, %v1749
          %v3012 = vadd.f32 %v3011, %v1751
          %v3013 = vadd.f32 %v3012, %v1753
          %v3014 = vadd.f32 %v3013, %v1755
          %v3015 = vadd.f32 %v3014, %v1757
          %v3016 = vadd.f32 %v3015, %v1759
          %v3017 = vadd.f32 %v3016, %v1761
          %v3018 = vadd.f32 %v3017, %v1763
          %v3019 = vadd.f32 %v3018, %v1765
          %v3020 = vadd.f32 %v3019, %v1767
          %v3021 = vadd.f32 %v3020, %v1769
          %v3022 = vadd.f32 %v3021, %v1771
          %v3023 = vadd.f32 %v3022, %v1773
          %v3024 = vadd.f32 %v3023, %v1775
          %v3025 = vadd.f32 %v3024, %v1777
          %v3026 = vadd.f32 %v3025, %v1779
          %v3027 = vadd.f32 %v3026, %v1781
          %v3028 = vadd.f32 %v3027, %v1783
          %v3029 = vadd.f32 %v3028, %v1785
          %v3030 = vadd.f32 %v3029, %v1787
          %v3031 = vadd.f32 %v3030, %v1789
          %v3032 = vadd.f32 %v3031, %v1791
          %v3033 = vadd.f32 %v3032, %v1793
          %v3034 = vadd.f32 %v3033, %v1795
          %v3035 = vadd.f32 %v3034, %v1797
          %v3036 = vadd.f32 %v3035, %v1799
          %v3037 = vadd.f32 %v3036, %v1801
          %v3038 = vadd.f32 %v3037, %v1803
          %v3039 = vadd.f32 %v3038, %v1805
          %v3040 = vadd.f32 %v3039, %v1807
          %v3041 = vadd.f32 %v3040, %v1809
          %v3042 = vadd.f32 %v3041, %v1811
          %v3043 = vadd.f32 %v3042, %v1813
          %v3044 = vadd.f32 %v3043, %v1815
          %v3045 = vadd.f32 %v3044, %v1817
          %v3046 = vadd.f32 %v3045, %v1819
          %v3047 = vadd.f32 %v3046, %v1821
          %v3048 = vadd.f32 %v3047, %v1823
          %v3049 = vadd.f32 %v3048, %v1825
          %v3050 = vadd.f32 %v3049, %v1827
          %v3051 = vadd.f32 %v3050, %v1829
          %v3052 = vadd.f32 %v3051, %v1831
          %v3053 = vadd.f32 %v3052, %v1833
          %v3054 = vadd.f32 %v3053, %v1835
          %v3055 = vadd.f32 %v3054, %v1837
          %v3056 = vadd.f32 %v3055, %v1839
          %v3057 = vadd.f32 %v3056, %v1841
          %v3058 = vadd.f32 %v3057, %v1843
          %v3059 = vadd.f32 %v3058, %v1845
          %v3060 = vadd.f32 %v3059, %v1847
          %v3061 = vadd.f32 %v3060, %v1849
          %v3062 = vadd.f32 %v3061, %v1851
          %v3063 = vadd.f32 %v3062, %v1853
          %v3064 = vadd.f32 %v3063, %v1855
          %v3065 = vadd.f32 %v3064, %v1857
          %v3066 = vadd.f32 %v3065, %v1859
          %v3067 = vadd.f32 %v3066, %v1861
          %v3068 = vadd.f32 %v3067, %v1863
          %v3069 = vadd.f32 %v3068, %v1865
          %v3070 = vadd.f32 %v3069, %v1867
          %v3071 = vadd.f32 %v3070, %v1869
          %v3072 = vadd.f32 %v3071, %v1871
          %v3073 = vadd.f32 %v3072, %v1873
          %v3074 = vadd.f32 %v3073, %v1875
          %v3075 = vadd.f32 %v3074, %v1877
          %v3076 = vadd.f32 %v3075, %v1879
          %v3077 = vadd.f32 %v3076, %v1881
          %v3078 = vadd.f32 %v3077, %v1883
          %v3079 = vadd.f32 %v3078, %v1885
          %v3080 = vadd.f32 %v3079, %v1887
          %v3081 = vadd.f32 %v3080, %v1889
          %v3082 = vadd.f32 %v3081, %v1891
          %v3083 = vadd.f32 %v3082, %v1893
          %v3084 = vadd.f32 %v3083, %v1895
          %v3085 = vadd.f32 %v3084, %v1897
          %v3086 = vadd.f32 %v3085, %v1899
          %v3087 = vadd.f32 %v3086, %v1901
          %v3088 = vadd.f32 %v3087, %v1903
          %v3089 = vadd.f32 %v3088, %v1905
          %v3090 = vadd.f32 %v3089, %v1907
          %v3091 = vadd.f32 %v3090, %v1909
          %v3092 = vadd.f32 %v3091, %v1911
          %v3093 = vadd.f32 %v3092, %v1913
          %v3094 = vadd.f32 %v3093, %v1915
          %v3095 = vadd.f32 %v3094, %v1917
          %v3096 = vadd.f32 %v3095, %v1919
          %v3097 = vadd.f32 %v3096, %v1921
          %v3098 = vadd.f32 %v3097, %v1923
          %v3099 = vadd.f32 %v3098, %v1925
          %v3100 = vadd.f32 %v3099, %v1927
          %v3101 = vadd.f32 %v3100, %v1929
          %v3102 = vadd.f32 %v3101, %v1931
          %v3103 = vadd.f32 %v3102, %v1933
          %v3104 = vadd.f32 %v3103, %v1935
          %v3105 = vadd.f32 %v3104, %v1937
          %v3106 = vadd.f32 %v3105, %v1939
          %v3107 = vadd.f32 %v3106, %v1941
          %v3108 = vadd.f32 %v3107, %v1943
          %v3109 = vadd.f32 %v3108, %v1945
          %v3110 = vadd.f32 %v3109, %v1947
          %v3111 = vadd.f32 %v3110, %v1949
          %v3112 = vadd.f32 %v3111, %v1951
          %v3113 = vadd.f32 %v3112, %v1953
          %v3114 = vadd.f32 %v3113, %v1955
          %v3115 = vadd.f32 %v3114, %v1957
          %v3116 = vadd.f32 %v3115, %v1959
          %v3117 = vadd.f32 %v3116, %v1961
          %v3118 = vadd.f32 %v3117, %v1963
          %v3119 = vadd.f32 %v3118, %v1965
          %v3120 = vadd.f32 %v3119, %v1967
          %v3121 = vadd.f32 %v3120, %v1969
          %v3122 = vadd.f32 %v3121, %v1971
          %v3123 = vadd.f32 %v3122, %v1973
          %v3124 = vadd.f32 %v3123, %v1975
          %v3125 = vadd.f32 %v3124, %v1977
          %v3126 = vadd.f32 %v3125, %v1979
          %v3127 = vadd.f32 %v3126, %v1981
          %v3128 = vadd.f32 %v3127, %v1983
          %v3129 = vadd.f32 %v3128, %v1985
          %v3130 = vadd.f32 %v3129, %v1987
          %v3131 = vadd.f32 %v3130, %v1989
          %v3132 = vadd.f32 %v3131, %v1991
          %v3133 = vadd.f32 %v3132, %v1993
          %v3134 = vadd.f32 %v3133, %v1995
          %v3135 = vadd.f32 %v3134, %v1997
          %v3136 = vadd.f32 %v3135, %v1999
          %v3137 = vadd.f32 %v3136, %v2001
          %v3138 = vadd.f32 %v3137, %v2003
          %v3139 = vadd.f32 %v3138, %v2005
          %v3140 = vadd.f32 %v3139, %v2007
          %v3141 = vadd.f32 %v3140, %v2009
          %v3142 = vadd.f32 %v3141, %v2011
          %v3143 = vadd.f32 %v3142, %v2013
          %v3144 = vadd.f32 %v3143, %v2015
          %v3145 = vadd.f32 %v3144, %v2017
          %v3146 = vadd.f32 %v3145, %v2019
          %v3147 = vadd.f32 %v3146, %v2021
          %v3148 = vadd.f32 %v3147, %v2023
          %v3149 = vadd.f32 %v3148, %v2025
          %v3150 = vadd.f32 %v3149, %v2027
          %v3151 = vadd.f32 %v3150, %v2029
          %v3152 = vadd.f32 %v3151, %v2031
          %v3153 = vadd.f32 %v3152, %v2033
          %v3154 = vadd.f32 %v3153, %v2035
          %v3155 = vadd.f32 %v3154, %v2037
          %v3156 = vadd.f32 %v3155, %v2039
          %v3157 = vadd.f32 %v3156, %v2041
          %v3158 = vadd.f32 %v3157, %v2043
          %v3159 = vadd.f32 %v3158, %v2045
          %v3160 = vadd.f32 %v3159, %v2047
          %v3161 = vadd.f32 %v3160, %v2049
          %v3162 = vadd.f32 %v3161, %v2051
          %v3163 = vadd.f32 %v3162, %v2053
          %v3164 = vadd.f32 %v3163, %v2055
          %v3165 = vadd.f32 %v3164, %v2057
          %v3166 = vadd.f32 %v3165, %v2059
          %v3167 = vadd.f32 %v3166, %v2061
          %v3168 = vadd.f32 %v3167, %v2063
          %v3169 = vadd.f32 %v3168, %v2065
          %v3170 = vadd.f32 %v3169, %v2067
          %v3171 = vadd.f32 %v3170, %v2069
          %v3172 = vadd.f32 %v3171, %v2071
          %v3173 = vadd.f32 %v3172, %v2073
          %v3174 = vadd.f32 %v3173, %v2075
          %v3175 = vadd.f32 %v3174, %v2077
          %v3176 = vadd.f32 %v3175, %v2079
          %v3177 = vadd.f32 %v3176, %v2081
          %v3178 = vadd.f32 %v3177, %v2083
          %v3179 = vadd.f32 %v3178, %v2085
          %v3180 = vadd.f32 %v3179, %v2087
          %v3181 = vadd.f32 %v3180, %v2089
          %v3182 = vadd.f32 %v3181, %v2091
          %v3183 = vadd.f32 %v3182, %v2093
          %v3184 = vadd.f32 %v3183, %v2095
          %v3185 = vadd.f32 %v3184, %v2097
          %v3186 = vadd.f32 %v3185, %v2099
          %v3187 = vadd.f32 %v3186, %v2101
          %v3188 = vadd.f32 %v3187, %v2103
          %v3189 = vadd.f32 %v3188, %v2105
          %v3190 = vadd.f32 %v3189, %v2107
          %v3191 = vadd.f32 %v3190, %v2109
          %v3192 = vadd.f32 %v3191, %v2111
          %v3193 = vadd.f32 %v3192, %v2113
          %v3194 = vadd.f32 %v3193, %v2115
          %v3195 = vadd.f32 %v3194, %v2117
          %v3196 = vadd.f32 %v3195, %v2119
          %v3197 = vadd.f32 %v3196, %v2121
          %v3198 = vadd.f32 %v3197, %v2123
          %v3199 = vadd.f32 %v3198, %v2125
          %v3200 = vadd.f32 %v3199, %v2127
          %v3201 = vadd.f32 %v3200, %v2129
          %v3202 = vadd.f32 %v3201, %v2131
          %v3203 = vadd.f32 %v3202, %v2133
          %v3204 = vadd.f32 %v3203, %v2135
          %v3205 = vadd.f32 %v3204, %v2137
          %v3206 = vadd.f32 %v3205, %v2139
          %v3207 = vadd.f32 %v3206, %v2141
          %v3208 = vadd.f32 %v3207, %v2143
          %v3209 = vadd.f32 %v3208, %v2145
          %v3210 = vadd.f32 %v3209, %v2147
          %v3211 = vadd.f32 %v3210, %v2149
          %v3212 = vadd.f32 %v3211, %v2151
          %v3213 = vadd.f32 %v3212, %v2153
          %v3214 = vadd.f32 %v3213, %v2155
          %v3215 = vadd.f32 %v3214, %v2157
          %v3216 = vadd.f32 %v3215, %v2159
          %v3217 = vadd.f32 %v3216, %v2161
          %v3218 = vadd.f32 %v3217, %v2163
          %v3219 = vadd.f32 %v3218, %v2165
          %v3220 = vadd.f32 %v3219, %v2167
          %v3221 = vadd.f32 %v3220, %v2169
          %v3222 = vadd.f32 %v3221, %v2171
          %v3223 = vadd.f32 %v3222, %v2173
          %v3224 = vadd.f32 %v3223, %v2175
          %v3225 = vadd.f32 %v3224, %v2177
          %v3226 = vadd.f32 %v3225, %v2179
          %v3227 = vadd.f32 %v3226, %v2181
          %v3228 = vadd.f32 %v3227, %v2183
          %v3229 = vadd.f32 %v3228, %v2185
          %v3230 = vadd.f32 %v3229, %v2187
          %v3231 = vadd.f32 %v3230, %v2189
          %v3232 = vadd.f32 %v3231, %v2191
          %v3233 = vadd.f32 %v3232, %v2193
          %v3234 = vadd.f32 %v3233, %v2195
          %v3235 = vadd.f32 %v3234, %v2197
          %v3236 = vadd.f32 %v3235, %v2199
          %v3237 = vadd.f32 %v3236, %v2201
          %v3238 = vadd.f32 %v3237, %v2203
          %v3239 = vadd.f32 %v3238, %v2205
          %v3240 = vadd.f32 %v3239, %v2207
          %v3241 = vadd.f32 %v3240, %v2209
          %v3242 = vadd.f32 %v3241, %v2211
          %v3243 = vadd.f32 %v3242, %v2213
          %v3244 = vadd.f32 %v3243, %v2215
          %v3245 = vadd.f32 %v3244, %v2217
          %v3246 = vadd.f32 %v2222, %v2734
          %v3247 = vadd.f32 %v2223, %v3245
          %3248 = vst [vmem:[#allocation5] sm:$0xff] %v3246
          %3249 = vst [vmem:[#allocation5 + $0x8] sm:$0xff] %v3247
        $region36: #{tpu_custom_call.1} parent=23 // pred_fallthru
          _
        %p3250 = scmp.eq.s32.totalorder %s163, 2
        // Predicated region
        $region37: #{tpu_custom_call.1} parent=23 // pred_check
          %p3251 = pneg %p3250
        $region38: #{tpu_custom_call.1} parent=23 // pred_check_branch
          %3253 = sbr.rel (%p3251) target = $region40
        $region39: #{tpu_custom_call.1} parent=23 // pred_region
          %s3254 = smul.u32 %s163, 4096
          %v3255 = vlaneseq
          %v3256 = vshrl.u32 %v3255, 7
          %v3257 = vadd.s32 %v3256, 8
          %v3258 = vadd.s32 %v3256, 16
          %v3259 = vadd.s32 %v3256, 24
          %v3260 = vadd.s32 %v3256, 32
          %v3261 = vadd.s32 %v3256, 40
          %v3262 = vadd.s32 %v3256, 48
          %v3263 = vadd.s32 %v3256, 56
          %v3264 = vadd.s32 %v3256, 64
          %v3265 = vadd.s32 %v3256, 72
          %v3266 = vadd.s32 %v3256, 80
          %v3267 = vadd.s32 %v3256, 88
          %v3268 = vadd.s32 %v3256, 96
          %v3269 = vadd.s32 %v3256, 104
          %v3270 = vadd.s32 %v3256, 112
          %v3271 = vadd.s32 %v3256, 120
          %v3272 = vadd.s32 %v3256, 128
          %v3273 = vadd.s32 %v3256, 136
          %v3274 = vadd.s32 %v3256, 144
          %v3275 = vadd.s32 %v3256, 152
          %v3276 = vadd.s32 %v3256, 160
          %v3277 = vadd.s32 %v3256, 168
          %v3278 = vadd.s32 %v3256, 176
          %v3279 = vadd.s32 %v3256, 184
          %v3280 = vadd.s32 %v3256, 192
          %v3281 = vadd.s32 %v3256, 200
          %v3282 = vadd.s32 %v3256, 208
          %v3283 = vadd.s32 %v3256, 216
          %v3284 = vadd.s32 %v3256, 224
          %v3285 = vadd.s32 %v3256, 232
          %v3286 = vadd.s32 %v3256, 240
          %v3287 = vadd.s32 %v3256, 248
          %v3288 = vadd.s32 %v3256, 256
          %v3289 = vadd.s32 %v3256, 264
          %v3290 = vadd.s32 %v3256, 272
          %v3291 = vadd.s32 %v3256, 280
          %v3292 = vadd.s32 %v3256, 288
          %v3293 = vadd.s32 %v3256, 296
          %v3294 = vadd.s32 %v3256, 304
          %v3295 = vadd.s32 %v3256, 312
          %v3296 = vadd.s32 %v3256, 320
          %v3297 = vadd.s32 %v3256, 328
          %v3298 = vadd.s32 %v3256, 336
          %v3299 = vadd.s32 %v3256, 344
          %v3300 = vadd.s32 %v3256, 352
          %v3301 = vadd.s32 %v3256, 360
          %v3302 = vadd.s32 %v3256, 368
          %v3303 = vadd.s32 %v3256, 376
          %v3304 = vadd.s32 %v3256, 384
          %v3305 = vadd.s32 %v3256, 392
          %v3306 = vadd.s32 %v3256, 400
          %v3307 = vadd.s32 %v3256, 408
          %v3308 = vadd.s32 %v3256, 416
          %v3309 = vadd.s32 %v3256, 424
          %v3310 = vadd.s32 %v3256, 432
          %v3311 = vadd.s32 %v3256, 440
          %v3312 = vadd.s32 %v3256, 448
          %v3313 = vadd.s32 %v3256, 456
          %v3314 = vadd.s32 %v3256, 464
          %v3315 = vadd.s32 %v3256, 472
          %v3316 = vadd.s32 %v3256, 480
          %v3317 = vadd.s32 %v3256, 488
          %v3318 = vadd.s32 %v3256, 496
          %v3319 = vadd.s32 %v3256, 504
          %v3320 = vadd.s32 %v3256, 512
          %v3321 = vadd.s32 %v3256, 520
          %v3322 = vadd.s32 %v3256, 528
          %v3323 = vadd.s32 %v3256, 536
          %v3324 = vadd.s32 %v3256, 544
          %v3325 = vadd.s32 %v3256, 552
          %v3326 = vadd.s32 %v3256, 560
          %v3327 = vadd.s32 %v3256, 568
          %v3328 = vadd.s32 %v3256, 576
          %v3329 = vadd.s32 %v3256, 584
          %v3330 = vadd.s32 %v3256, 592
          %v3331 = vadd.s32 %v3256, 600
          %v3332 = vadd.s32 %v3256, 608
          %v3333 = vadd.s32 %v3256, 616
          %v3334 = vadd.s32 %v3256, 624
          %v3335 = vadd.s32 %v3256, 632
          %v3336 = vadd.s32 %v3256, 640
          %v3337 = vadd.s32 %v3256, 648
          %v3338 = vadd.s32 %v3256, 656
          %v3339 = vadd.s32 %v3256, 664
          %v3340 = vadd.s32 %v3256, 672
          %v3341 = vadd.s32 %v3256, 680
          %v3342 = vadd.s32 %v3256, 688
          %v3343 = vadd.s32 %v3256, 696
          %v3344 = vadd.s32 %v3256, 704
          %v3345 = vadd.s32 %v3256, 712
          %v3346 = vadd.s32 %v3256, 720
          %v3347 = vadd.s32 %v3256, 728
          %v3348 = vadd.s32 %v3256, 736
          %v3349 = vadd.s32 %v3256, 744
          %v3350 = vadd.s32 %v3256, 752
          %v3351 = vadd.s32 %v3256, 760
          %v3352 = vadd.s32 %v3256, 768
          %v3353 = vadd.s32 %v3256, 776
          %v3354 = vadd.s32 %v3256, 784
          %v3355 = vadd.s32 %v3256, 792
          %v3356 = vadd.s32 %v3256, 800
          %v3357 = vadd.s32 %v3256, 808
          %v3358 = vadd.s32 %v3256, 816
          %v3359 = vadd.s32 %v3256, 824
          %v3360 = vadd.s32 %v3256, 832
          %v3361 = vadd.s32 %v3256, 840
          %v3362 = vadd.s32 %v3256, 848
          %v3363 = vadd.s32 %v3256, 856
          %v3364 = vadd.s32 %v3256, 864
          %v3365 = vadd.s32 %v3256, 872
          %v3366 = vadd.s32 %v3256, 880
          %v3367 = vadd.s32 %v3256, 888
          %v3368 = vadd.s32 %v3256, 896
          %v3369 = vadd.s32 %v3256, 904
          %v3370 = vadd.s32 %v3256, 912
          %v3371 = vadd.s32 %v3256, 920
          %v3372 = vadd.s32 %v3256, 928
          %v3373 = vadd.s32 %v3256, 936
          %v3374 = vadd.s32 %v3256, 944
          %v3375 = vadd.s32 %v3256, 952
          %v3376 = vadd.s32 %v3256, 960
          %v3377 = vadd.s32 %v3256, 968
          %v3378 = vadd.s32 %v3256, 976
          %v3379 = vadd.s32 %v3256, 984
          %v3380 = vadd.s32 %v3256, 992
          %v3381 = vadd.s32 %v3256, 1000
          %v3382 = vadd.s32 %v3256, 1008
          %v3383 = vadd.s32 %v3256, 1016
          %v3384 = vadd.s32 %v3256, 1024
          %v3385 = vadd.s32 %v3256, 1032
          %v3386 = vadd.s32 %v3256, 1040
          %v3387 = vadd.s32 %v3256, 1048
          %v3388 = vadd.s32 %v3256, 1056
          %v3389 = vadd.s32 %v3256, 1064
          %v3390 = vadd.s32 %v3256, 1072
          %v3391 = vadd.s32 %v3256, 1080
          %v3392 = vadd.s32 %v3256, 1088
          %v3393 = vadd.s32 %v3256, 1096
          %v3394 = vadd.s32 %v3256, 1104
          %v3395 = vadd.s32 %v3256, 1112
          %v3396 = vadd.s32 %v3256, 1120
          %v3397 = vadd.s32 %v3256, 1128
          %v3398 = vadd.s32 %v3256, 1136
          %v3399 = vadd.s32 %v3256, 1144
          %v3400 = vadd.s32 %v3256, 1152
          %v3401 = vadd.s32 %v3256, 1160
          %v3402 = vadd.s32 %v3256, 1168
          %v3403 = vadd.s32 %v3256, 1176
          %v3404 = vadd.s32 %v3256, 1184
          %v3405 = vadd.s32 %v3256, 1192
          %v3406 = vadd.s32 %v3256, 1200
          %v3407 = vadd.s32 %v3256, 1208
          %v3408 = vadd.s32 %v3256, 1216
          %v3409 = vadd.s32 %v3256, 1224
          %v3410 = vadd.s32 %v3256, 1232
          %v3411 = vadd.s32 %v3256, 1240
          %v3412 = vadd.s32 %v3256, 1248
          %v3413 = vadd.s32 %v3256, 1256
          %v3414 = vadd.s32 %v3256, 1264
          %v3415 = vadd.s32 %v3256, 1272
          %v3416 = vadd.s32 %v3256, 1280
          %v3417 = vadd.s32 %v3256, 1288
          %v3418 = vadd.s32 %v3256, 1296
          %v3419 = vadd.s32 %v3256, 1304
          %v3420 = vadd.s32 %v3256, 1312
          %v3421 = vadd.s32 %v3256, 1320
          %v3422 = vadd.s32 %v3256, 1328
          %v3423 = vadd.s32 %v3256, 1336
          %v3424 = vadd.s32 %v3256, 1344
          %v3425 = vadd.s32 %v3256, 1352
          %v3426 = vadd.s32 %v3256, 1360
          %v3427 = vadd.s32 %v3256, 1368
          %v3428 = vadd.s32 %v3256, 1376
          %v3429 = vadd.s32 %v3256, 1384
          %v3430 = vadd.s32 %v3256, 1392
          %v3431 = vadd.s32 %v3256, 1400
          %v3432 = vadd.s32 %v3256, 1408
          %v3433 = vadd.s32 %v3256, 1416
          %v3434 = vadd.s32 %v3256, 1424
          %v3435 = vadd.s32 %v3256, 1432
          %v3436 = vadd.s32 %v3256, 1440
          %v3437 = vadd.s32 %v3256, 1448
          %v3438 = vadd.s32 %v3256, 1456
          %v3439 = vadd.s32 %v3256, 1464
          %v3440 = vadd.s32 %v3256, 1472
          %v3441 = vadd.s32 %v3256, 1480
          %v3442 = vadd.s32 %v3256, 1488
          %v3443 = vadd.s32 %v3256, 1496
          %v3444 = vadd.s32 %v3256, 1504
          %v3445 = vadd.s32 %v3256, 1512
          %v3446 = vadd.s32 %v3256, 1520
          %v3447 = vadd.s32 %v3256, 1528
          %v3448 = vadd.s32 %v3256, 1536
          %v3449 = vadd.s32 %v3256, 1544
          %v3450 = vadd.s32 %v3256, 1552
          %v3451 = vadd.s32 %v3256, 1560
          %v3452 = vadd.s32 %v3256, 1568
          %v3453 = vadd.s32 %v3256, 1576
          %v3454 = vadd.s32 %v3256, 1584
          %v3455 = vadd.s32 %v3256, 1592
          %v3456 = vadd.s32 %v3256, 1600
          %v3457 = vadd.s32 %v3256, 1608
          %v3458 = vadd.s32 %v3256, 1616
          %v3459 = vadd.s32 %v3256, 1624
          %v3460 = vadd.s32 %v3256, 1632
          %v3461 = vadd.s32 %v3256, 1640
          %v3462 = vadd.s32 %v3256, 1648
          %v3463 = vadd.s32 %v3256, 1656
          %v3464 = vadd.s32 %v3256, 1664
          %v3465 = vadd.s32 %v3256, 1672
          %v3466 = vadd.s32 %v3256, 1680
          %v3467 = vadd.s32 %v3256, 1688
          %v3468 = vadd.s32 %v3256, 1696
          %v3469 = vadd.s32 %v3256, 1704
          %v3470 = vadd.s32 %v3256, 1712
          %v3471 = vadd.s32 %v3256, 1720
          %v3472 = vadd.s32 %v3256, 1728
          %v3473 = vadd.s32 %v3256, 1736
          %v3474 = vadd.s32 %v3256, 1744
          %v3475 = vadd.s32 %v3256, 1752
          %v3476 = vadd.s32 %v3256, 1760
          %v3477 = vadd.s32 %v3256, 1768
          %v3478 = vadd.s32 %v3256, 1776
          %v3479 = vadd.s32 %v3256, 1784
          %v3480 = vadd.s32 %v3256, 1792
          %v3481 = vadd.s32 %v3256, 1800
          %v3482 = vadd.s32 %v3256, 1808
          %v3483 = vadd.s32 %v3256, 1816
          %v3484 = vadd.s32 %v3256, 1824
          %v3485 = vadd.s32 %v3256, 1832
          %v3486 = vadd.s32 %v3256, 1840
          %v3487 = vadd.s32 %v3256, 1848
          %v3488 = vadd.s32 %v3256, 1856
          %v3489 = vadd.s32 %v3256, 1864
          %v3490 = vadd.s32 %v3256, 1872
          %v3491 = vadd.s32 %v3256, 1880
          %v3492 = vadd.s32 %v3256, 1888
          %v3493 = vadd.s32 %v3256, 1896
          %v3494 = vadd.s32 %v3256, 1904
          %v3495 = vadd.s32 %v3256, 1912
          %v3496 = vadd.s32 %v3256, 1920
          %v3497 = vadd.s32 %v3256, 1928
          %v3498 = vadd.s32 %v3256, 1936
          %v3499 = vadd.s32 %v3256, 1944
          %v3500 = vadd.s32 %v3256, 1952
          %v3501 = vadd.s32 %v3256, 1960
          %v3502 = vadd.s32 %v3256, 1968
          %v3503 = vadd.s32 %v3256, 1976
          %v3504 = vadd.s32 %v3256, 1984
          %v3505 = vadd.s32 %v3256, 1992
          %v3506 = vadd.s32 %v3256, 2000
          %v3507 = vadd.s32 %v3256, 2008
          %v3508 = vadd.s32 %v3256, 2016
          %v3509 = vadd.s32 %v3256, 2024
          %v3510 = vadd.s32 %v3256, 2032
          %v3511 = vadd.s32 %v3256, 2040
          %v3512 = vadd.s32 %v3256, 2048
          %v3513 = vadd.s32 %v3256, 2056
          %v3514 = vadd.s32 %v3256, 2064
          %v3515 = vadd.s32 %v3256, 2072
          %v3516 = vadd.s32 %v3256, 2080
          %v3517 = vadd.s32 %v3256, 2088
          %v3518 = vadd.s32 %v3256, 2096
          %v3519 = vadd.s32 %v3256, 2104
          %v3520 = vadd.s32 %v3256, 2112
          %v3521 = vadd.s32 %v3256, 2120
          %v3522 = vadd.s32 %v3256, 2128
          %v3523 = vadd.s32 %v3256, 2136
          %v3524 = vadd.s32 %v3256, 2144
          %v3525 = vadd.s32 %v3256, 2152
          %v3526 = vadd.s32 %v3256, 2160
          %v3527 = vadd.s32 %v3256, 2168
          %v3528 = vadd.s32 %v3256, 2176
          %v3529 = vadd.s32 %v3256, 2184
          %v3530 = vadd.s32 %v3256, 2192
          %v3531 = vadd.s32 %v3256, 2200
          %v3532 = vadd.s32 %v3256, 2208
          %v3533 = vadd.s32 %v3256, 2216
          %v3534 = vadd.s32 %v3256, 2224
          %v3535 = vadd.s32 %v3256, 2232
          %v3536 = vadd.s32 %v3256, 2240
          %v3537 = vadd.s32 %v3256, 2248
          %v3538 = vadd.s32 %v3256, 2256
          %v3539 = vadd.s32 %v3256, 2264
          %v3540 = vadd.s32 %v3256, 2272
          %v3541 = vadd.s32 %v3256, 2280
          %v3542 = vadd.s32 %v3256, 2288
          %v3543 = vadd.s32 %v3256, 2296
          %v3544 = vadd.s32 %v3256, 2304
          %v3545 = vadd.s32 %v3256, 2312
          %v3546 = vadd.s32 %v3256, 2320
          %v3547 = vadd.s32 %v3256, 2328
          %v3548 = vadd.s32 %v3256, 2336
          %v3549 = vadd.s32 %v3256, 2344
          %v3550 = vadd.s32 %v3256, 2352
          %v3551 = vadd.s32 %v3256, 2360
          %v3552 = vadd.s32 %v3256, 2368
          %v3553 = vadd.s32 %v3256, 2376
          %v3554 = vadd.s32 %v3256, 2384
          %v3555 = vadd.s32 %v3256, 2392
          %v3556 = vadd.s32 %v3256, 2400
          %v3557 = vadd.s32 %v3256, 2408
          %v3558 = vadd.s32 %v3256, 2416
          %v3559 = vadd.s32 %v3256, 2424
          %v3560 = vadd.s32 %v3256, 2432
          %v3561 = vadd.s32 %v3256, 2440
          %v3562 = vadd.s32 %v3256, 2448
          %v3563 = vadd.s32 %v3256, 2456
          %v3564 = vadd.s32 %v3256, 2464
          %v3565 = vadd.s32 %v3256, 2472
          %v3566 = vadd.s32 %v3256, 2480
          %v3567 = vadd.s32 %v3256, 2488
          %v3568 = vadd.s32 %v3256, 2496
          %v3569 = vadd.s32 %v3256, 2504
          %v3570 = vadd.s32 %v3256, 2512
          %v3571 = vadd.s32 %v3256, 2520
          %v3572 = vadd.s32 %v3256, 2528
          %v3573 = vadd.s32 %v3256, 2536
          %v3574 = vadd.s32 %v3256, 2544
          %v3575 = vadd.s32 %v3256, 2552
          %v3576 = vadd.s32 %v3256, 2560
          %v3577 = vadd.s32 %v3256, 2568
          %v3578 = vadd.s32 %v3256, 2576
          %v3579 = vadd.s32 %v3256, 2584
          %v3580 = vadd.s32 %v3256, 2592
          %v3581 = vadd.s32 %v3256, 2600
          %v3582 = vadd.s32 %v3256, 2608
          %v3583 = vadd.s32 %v3256, 2616
          %v3584 = vadd.s32 %v3256, 2624
          %v3585 = vadd.s32 %v3256, 2632
          %v3586 = vadd.s32 %v3256, 2640
          %v3587 = vadd.s32 %v3256, 2648
          %v3588 = vadd.s32 %v3256, 2656
          %v3589 = vadd.s32 %v3256, 2664
          %v3590 = vadd.s32 %v3256, 2672
          %v3591 = vadd.s32 %v3256, 2680
          %v3592 = vadd.s32 %v3256, 2688
          %v3593 = vadd.s32 %v3256, 2696
          %v3594 = vadd.s32 %v3256, 2704
          %v3595 = vadd.s32 %v3256, 2712
          %v3596 = vadd.s32 %v3256, 2720
          %v3597 = vadd.s32 %v3256, 2728
          %v3598 = vadd.s32 %v3256, 2736
          %v3599 = vadd.s32 %v3256, 2744
          %v3600 = vadd.s32 %v3256, 2752
          %v3601 = vadd.s32 %v3256, 2760
          %v3602 = vadd.s32 %v3256, 2768
          %v3603 = vadd.s32 %v3256, 2776
          %v3604 = vadd.s32 %v3256, 2784
          %v3605 = vadd.s32 %v3256, 2792
          %v3606 = vadd.s32 %v3256, 2800
          %v3607 = vadd.s32 %v3256, 2808
          %v3608 = vadd.s32 %v3256, 2816
          %v3609 = vadd.s32 %v3256, 2824
          %v3610 = vadd.s32 %v3256, 2832
          %v3611 = vadd.s32 %v3256, 2840
          %v3612 = vadd.s32 %v3256, 2848
          %v3613 = vadd.s32 %v3256, 2856
          %v3614 = vadd.s32 %v3256, 2864
          %v3615 = vadd.s32 %v3256, 2872
          %v3616 = vadd.s32 %v3256, 2880
          %v3617 = vadd.s32 %v3256, 2888
          %v3618 = vadd.s32 %v3256, 2896
          %v3619 = vadd.s32 %v3256, 2904
          %v3620 = vadd.s32 %v3256, 2912
          %v3621 = vadd.s32 %v3256, 2920
          %v3622 = vadd.s32 %v3256, 2928
          %v3623 = vadd.s32 %v3256, 2936
          %v3624 = vadd.s32 %v3256, 2944
          %v3625 = vadd.s32 %v3256, 2952
          %v3626 = vadd.s32 %v3256, 2960
          %v3627 = vadd.s32 %v3256, 2968
          %v3628 = vadd.s32 %v3256, 2976
          %v3629 = vadd.s32 %v3256, 2984
          %v3630 = vadd.s32 %v3256, 2992
          %v3631 = vadd.s32 %v3256, 3000
          %v3632 = vadd.s32 %v3256, 3008
          %v3633 = vadd.s32 %v3256, 3016
          %v3634 = vadd.s32 %v3256, 3024
          %v3635 = vadd.s32 %v3256, 3032
          %v3636 = vadd.s32 %v3256, 3040
          %v3637 = vadd.s32 %v3256, 3048
          %v3638 = vadd.s32 %v3256, 3056
          %v3639 = vadd.s32 %v3256, 3064
          %v3640 = vadd.s32 %v3256, 3072
          %v3641 = vadd.s32 %v3256, 3080
          %v3642 = vadd.s32 %v3256, 3088
          %v3643 = vadd.s32 %v3256, 3096
          %v3644 = vadd.s32 %v3256, 3104
          %v3645 = vadd.s32 %v3256, 3112
          %v3646 = vadd.s32 %v3256, 3120
          %v3647 = vadd.s32 %v3256, 3128
          %v3648 = vadd.s32 %v3256, 3136
          %v3649 = vadd.s32 %v3256, 3144
          %v3650 = vadd.s32 %v3256, 3152
          %v3651 = vadd.s32 %v3256, 3160
          %v3652 = vadd.s32 %v3256, 3168
          %v3653 = vadd.s32 %v3256, 3176
          %v3654 = vadd.s32 %v3256, 3184
          %v3655 = vadd.s32 %v3256, 3192
          %v3656 = vadd.s32 %v3256, 3200
          %v3657 = vadd.s32 %v3256, 3208
          %v3658 = vadd.s32 %v3256, 3216
          %v3659 = vadd.s32 %v3256, 3224
          %v3660 = vadd.s32 %v3256, 3232
          %v3661 = vadd.s32 %v3256, 3240
          %v3662 = vadd.s32 %v3256, 3248
          %v3663 = vadd.s32 %v3256, 3256
          %v3664 = vadd.s32 %v3256, 3264
          %v3665 = vadd.s32 %v3256, 3272
          %v3666 = vadd.s32 %v3256, 3280
          %v3667 = vadd.s32 %v3256, 3288
          %v3668 = vadd.s32 %v3256, 3296
          %v3669 = vadd.s32 %v3256, 3304
          %v3670 = vadd.s32 %v3256, 3312
          %v3671 = vadd.s32 %v3256, 3320
          %v3672 = vadd.s32 %v3256, 3328
          %v3673 = vadd.s32 %v3256, 3336
          %v3674 = vadd.s32 %v3256, 3344
          %v3675 = vadd.s32 %v3256, 3352
          %v3676 = vadd.s32 %v3256, 3360
          %v3677 = vadd.s32 %v3256, 3368
          %v3678 = vadd.s32 %v3256, 3376
          %v3679 = vadd.s32 %v3256, 3384
          %v3680 = vadd.s32 %v3256, 3392
          %v3681 = vadd.s32 %v3256, 3400
          %v3682 = vadd.s32 %v3256, 3408
          %v3683 = vadd.s32 %v3256, 3416
          %v3684 = vadd.s32 %v3256, 3424
          %v3685 = vadd.s32 %v3256, 3432
          %v3686 = vadd.s32 %v3256, 3440
          %v3687 = vadd.s32 %v3256, 3448
          %v3688 = vadd.s32 %v3256, 3456
          %v3689 = vadd.s32 %v3256, 3464
          %v3690 = vadd.s32 %v3256, 3472
          %v3691 = vadd.s32 %v3256, 3480
          %v3692 = vadd.s32 %v3256, 3488
          %v3693 = vadd.s32 %v3256, 3496
          %v3694 = vadd.s32 %v3256, 3504
          %v3695 = vadd.s32 %v3256, 3512
          %v3696 = vadd.s32 %v3256, 3520
          %v3697 = vadd.s32 %v3256, 3528
          %v3698 = vadd.s32 %v3256, 3536
          %v3699 = vadd.s32 %v3256, 3544
          %v3700 = vadd.s32 %v3256, 3552
          %v3701 = vadd.s32 %v3256, 3560
          %v3702 = vadd.s32 %v3256, 3568
          %v3703 = vadd.s32 %v3256, 3576
          %v3704 = vadd.s32 %v3256, 3584
          %v3705 = vadd.s32 %v3256, 3592
          %v3706 = vadd.s32 %v3256, 3600
          %v3707 = vadd.s32 %v3256, 3608
          %v3708 = vadd.s32 %v3256, 3616
          %v3709 = vadd.s32 %v3256, 3624
          %v3710 = vadd.s32 %v3256, 3632
          %v3711 = vadd.s32 %v3256, 3640
          %v3712 = vadd.s32 %v3256, 3648
          %v3713 = vadd.s32 %v3256, 3656
          %v3714 = vadd.s32 %v3256, 3664
          %v3715 = vadd.s32 %v3256, 3672
          %v3716 = vadd.s32 %v3256, 3680
          %v3717 = vadd.s32 %v3256, 3688
          %v3718 = vadd.s32 %v3256, 3696
          %v3719 = vadd.s32 %v3256, 3704
          %v3720 = vadd.s32 %v3256, 3712
          %v3721 = vadd.s32 %v3256, 3720
          %v3722 = vadd.s32 %v3256, 3728
          %v3723 = vadd.s32 %v3256, 3736
          %v3724 = vadd.s32 %v3256, 3744
          %v3725 = vadd.s32 %v3256, 3752
          %v3726 = vadd.s32 %v3256, 3760
          %v3727 = vadd.s32 %v3256, 3768
          %v3728 = vadd.s32 %v3256, 3776
          %v3729 = vadd.s32 %v3256, 3784
          %v3730 = vadd.s32 %v3256, 3792
          %v3731 = vadd.s32 %v3256, 3800
          %v3732 = vadd.s32 %v3256, 3808
          %v3733 = vadd.s32 %v3256, 3816
          %v3734 = vadd.s32 %v3256, 3824
          %v3735 = vadd.s32 %v3256, 3832
          %v3736 = vadd.s32 %v3256, 3840
          %v3737 = vadd.s32 %v3256, 3848
          %v3738 = vadd.s32 %v3256, 3856
          %v3739 = vadd.s32 %v3256, 3864
          %v3740 = vadd.s32 %v3256, 3872
          %v3741 = vadd.s32 %v3256, 3880
          %v3742 = vadd.s32 %v3256, 3888
          %v3743 = vadd.s32 %v3256, 3896
          %v3744 = vadd.s32 %v3256, 3904
          %v3745 = vadd.s32 %v3256, 3912
          %v3746 = vadd.s32 %v3256, 3920
          %v3747 = vadd.s32 %v3256, 3928
          %v3748 = vadd.s32 %v3256, 3936
          %v3749 = vadd.s32 %v3256, 3944
          %v3750 = vadd.s32 %v3256, 3952
          %v3751 = vadd.s32 %v3256, 3960
          %v3752 = vadd.s32 %v3256, 3968
          %v3753 = vadd.s32 %v3256, 3976
          %v3754 = vadd.s32 %v3256, 3984
          %v3755 = vadd.s32 %v3256, 3992
          %v3756 = vadd.s32 %v3256, 4000
          %v3757 = vadd.s32 %v3256, 4008
          %v3758 = vadd.s32 %v3256, 4016
          %v3759 = vadd.s32 %v3256, 4024
          %v3760 = vadd.s32 %v3256, 4032
          %v3761 = vadd.s32 %v3256, 4040
          %v3762 = vadd.s32 %v3256, 4048
          %v3763 = vadd.s32 %v3256, 4056
          %v3764 = vadd.s32 %v3256, 4064
          %v3765 = vadd.s32 %v3256, 4072
          %v3766 = vadd.s32 %v3256, 4080
          %v3767 = vadd.s32 %v3256, 4088
          %v3768 = vstv %s3254
          %v3769 = vadd.s32 %v3768, %v3256
          %v3770 = vadd.s32 %v3768, %v3257
          %v3771 = vadd.s32 %v3768, %v3258
          %v3772 = vadd.s32 %v3768, %v3259
          %v3773 = vadd.s32 %v3768, %v3260
          %v3774 = vadd.s32 %v3768, %v3261
          %v3775 = vadd.s32 %v3768, %v3262
          %v3776 = vadd.s32 %v3768, %v3263
          %v3777 = vadd.s32 %v3768, %v3264
          %v3778 = vadd.s32 %v3768, %v3265
          %v3779 = vadd.s32 %v3768, %v3266
          %v3780 = vadd.s32 %v3768, %v3267
          %v3781 = vadd.s32 %v3768, %v3268
          %v3782 = vadd.s32 %v3768, %v3269
          %v3783 = vadd.s32 %v3768, %v3270
          %v3784 = vadd.s32 %v3768, %v3271
          %v3785 = vadd.s32 %v3768, %v3272
          %v3786 = vadd.s32 %v3768, %v3273
          %v3787 = vadd.s32 %v3768, %v3274
          %v3788 = vadd.s32 %v3768, %v3275
          %v3789 = vadd.s32 %v3768, %v3276
          %v3790 = vadd.s32 %v3768, %v3277
          %v3791 = vadd.s32 %v3768, %v3278
          %v3792 = vadd.s32 %v3768, %v3279
          %v3793 = vadd.s32 %v3768, %v3280
          %v3794 = vadd.s32 %v3768, %v3281
          %v3795 = vadd.s32 %v3768, %v3282
          %v3796 = vadd.s32 %v3768, %v3283
          %v3797 = vadd.s32 %v3768, %v3284
          %v3798 = vadd.s32 %v3768, %v3285
          %v3799 = vadd.s32 %v3768, %v3286
          %v3800 = vadd.s32 %v3768, %v3287
          %v3801 = vadd.s32 %v3768, %v3288
          %v3802 = vadd.s32 %v3768, %v3289
          %v3803 = vadd.s32 %v3768, %v3290
          %v3804 = vadd.s32 %v3768, %v3291
          %v3805 = vadd.s32 %v3768, %v3292
          %v3806 = vadd.s32 %v3768, %v3293
          %v3807 = vadd.s32 %v3768, %v3294
          %v3808 = vadd.s32 %v3768, %v3295
          %v3809 = vadd.s32 %v3768, %v3296
          %v3810 = vadd.s32 %v3768, %v3297
          %v3811 = vadd.s32 %v3768, %v3298
          %v3812 = vadd.s32 %v3768, %v3299
          %v3813 = vadd.s32 %v3768, %v3300
          %v3814 = vadd.s32 %v3768, %v3301
          %v3815 = vadd.s32 %v3768, %v3302
          %v3816 = vadd.s32 %v3768, %v3303
          %v3817 = vadd.s32 %v3768, %v3304
          %v3818 = vadd.s32 %v3768, %v3305
          %v3819 = vadd.s32 %v3768, %v3306
          %v3820 = vadd.s32 %v3768, %v3307
          %v3821 = vadd.s32 %v3768, %v3308
          %v3822 = vadd.s32 %v3768, %v3309
          %v3823 = vadd.s32 %v3768, %v3310
          %v3824 = vadd.s32 %v3768, %v3311
          %v3825 = vadd.s32 %v3768, %v3312
          %v3826 = vadd.s32 %v3768, %v3313
          %v3827 = vadd.s32 %v3768, %v3314
          %v3828 = vadd.s32 %v3768, %v3315
          %v3829 = vadd.s32 %v3768, %v3316
          %v3830 = vadd.s32 %v3768, %v3317
          %v3831 = vadd.s32 %v3768, %v3318
          %v3832 = vadd.s32 %v3768, %v3319
          %v3833 = vadd.s32 %v3768, %v3320
          %v3834 = vadd.s32 %v3768, %v3321
          %v3835 = vadd.s32 %v3768, %v3322
          %v3836 = vadd.s32 %v3768, %v3323
          %v3837 = vadd.s32 %v3768, %v3324
          %v3838 = vadd.s32 %v3768, %v3325
          %v3839 = vadd.s32 %v3768, %v3326
          %v3840 = vadd.s32 %v3768, %v3327
          %v3841 = vadd.s32 %v3768, %v3328
          %v3842 = vadd.s32 %v3768, %v3329
          %v3843 = vadd.s32 %v3768, %v3330
          %v3844 = vadd.s32 %v3768, %v3331
          %v3845 = vadd.s32 %v3768, %v3332
          %v3846 = vadd.s32 %v3768, %v3333
          %v3847 = vadd.s32 %v3768, %v3334
          %v3848 = vadd.s32 %v3768, %v3335
          %v3849 = vadd.s32 %v3768, %v3336
          %v3850 = vadd.s32 %v3768, %v3337
          %v3851 = vadd.s32 %v3768, %v3338
          %v3852 = vadd.s32 %v3768, %v3339
          %v3853 = vadd.s32 %v3768, %v3340
          %v3854 = vadd.s32 %v3768, %v3341
          %v3855 = vadd.s32 %v3768, %v3342
          %v3856 = vadd.s32 %v3768, %v3343
          %v3857 = vadd.s32 %v3768, %v3344
          %v3858 = vadd.s32 %v3768, %v3345
          %v3859 = vadd.s32 %v3768, %v3346
          %v3860 = vadd.s32 %v3768, %v3347
          %v3861 = vadd.s32 %v3768, %v3348
          %v3862 = vadd.s32 %v3768, %v3349
          %v3863 = vadd.s32 %v3768, %v3350
          %v3864 = vadd.s32 %v3768, %v3351
          %v3865 = vadd.s32 %v3768, %v3352
          %v3866 = vadd.s32 %v3768, %v3353
          %v3867 = vadd.s32 %v3768, %v3354
          %v3868 = vadd.s32 %v3768, %v3355
          %v3869 = vadd.s32 %v3768, %v3356
          %v3870 = vadd.s32 %v3768, %v3357
          %v3871 = vadd.s32 %v3768, %v3358
          %v3872 = vadd.s32 %v3768, %v3359
          %v3873 = vadd.s32 %v3768, %v3360
          %v3874 = vadd.s32 %v3768, %v3361
          %v3875 = vadd.s32 %v3768, %v3362
          %v3876 = vadd.s32 %v3768, %v3363
          %v3877 = vadd.s32 %v3768, %v3364
          %v3878 = vadd.s32 %v3768, %v3365
          %v3879 = vadd.s32 %v3768, %v3366
          %v3880 = vadd.s32 %v3768, %v3367
          %v3881 = vadd.s32 %v3768, %v3368
          %v3882 = vadd.s32 %v3768, %v3369
          %v3883 = vadd.s32 %v3768, %v3370
          %v3884 = vadd.s32 %v3768, %v3371
          %v3885 = vadd.s32 %v3768, %v3372
          %v3886 = vadd.s32 %v3768, %v3373
          %v3887 = vadd.s32 %v3768, %v3374
          %v3888 = vadd.s32 %v3768, %v3375
          %v3889 = vadd.s32 %v3768, %v3376
          %v3890 = vadd.s32 %v3768, %v3377
          %v3891 = vadd.s32 %v3768, %v3378
          %v3892 = vadd.s32 %v3768, %v3379
          %v3893 = vadd.s32 %v3768, %v3380
          %v3894 = vadd.s32 %v3768, %v3381
          %v3895 = vadd.s32 %v3768, %v3382
          %v3896 = vadd.s32 %v3768, %v3383
          %v3897 = vadd.s32 %v3768, %v3384
          %v3898 = vadd.s32 %v3768, %v3385
          %v3899 = vadd.s32 %v3768, %v3386
          %v3900 = vadd.s32 %v3768, %v3387
          %v3901 = vadd.s32 %v3768, %v3388
          %v3902 = vadd.s32 %v3768, %v3389
          %v3903 = vadd.s32 %v3768, %v3390
          %v3904 = vadd.s32 %v3768, %v3391
          %v3905 = vadd.s32 %v3768, %v3392
          %v3906 = vadd.s32 %v3768, %v3393
          %v3907 = vadd.s32 %v3768, %v3394
          %v3908 = vadd.s32 %v3768, %v3395
          %v3909 = vadd.s32 %v3768, %v3396
          %v3910 = vadd.s32 %v3768, %v3397
          %v3911 = vadd.s32 %v3768, %v3398
          %v3912 = vadd.s32 %v3768, %v3399
          %v3913 = vadd.s32 %v3768, %v3400
          %v3914 = vadd.s32 %v3768, %v3401
          %v3915 = vadd.s32 %v3768, %v3402
          %v3916 = vadd.s32 %v3768, %v3403
          %v3917 = vadd.s32 %v3768, %v3404
          %v3918 = vadd.s32 %v3768, %v3405
          %v3919 = vadd.s32 %v3768, %v3406
          %v3920 = vadd.s32 %v3768, %v3407
          %v3921 = vadd.s32 %v3768, %v3408
          %v3922 = vadd.s32 %v3768, %v3409
          %v3923 = vadd.s32 %v3768, %v3410
          %v3924 = vadd.s32 %v3768, %v3411
          %v3925 = vadd.s32 %v3768, %v3412
          %v3926 = vadd.s32 %v3768, %v3413
          %v3927 = vadd.s32 %v3768, %v3414
          %v3928 = vadd.s32 %v3768, %v3415
          %v3929 = vadd.s32 %v3768, %v3416
          %v3930 = vadd.s32 %v3768, %v3417
          %v3931 = vadd.s32 %v3768, %v3418
          %v3932 = vadd.s32 %v3768, %v3419
          %v3933 = vadd.s32 %v3768, %v3420
          %v3934 = vadd.s32 %v3768, %v3421
          %v3935 = vadd.s32 %v3768, %v3422
          %v3936 = vadd.s32 %v3768, %v3423
          %v3937 = vadd.s32 %v3768, %v3424
          %v3938 = vadd.s32 %v3768, %v3425
          %v3939 = vadd.s32 %v3768, %v3426
          %v3940 = vadd.s32 %v3768, %v3427
          %v3941 = vadd.s32 %v3768, %v3428
          %v3942 = vadd.s32 %v3768, %v3429
          %v3943 = vadd.s32 %v3768, %v3430
          %v3944 = vadd.s32 %v3768, %v3431
          %v3945 = vadd.s32 %v3768, %v3432
          %v3946 = vadd.s32 %v3768, %v3433
          %v3947 = vadd.s32 %v3768, %v3434
          %v3948 = vadd.s32 %v3768, %v3435
          %v3949 = vadd.s32 %v3768, %v3436
          %v3950 = vadd.s32 %v3768, %v3437
          %v3951 = vadd.s32 %v3768, %v3438
          %v3952 = vadd.s32 %v3768, %v3439
          %v3953 = vadd.s32 %v3768, %v3440
          %v3954 = vadd.s32 %v3768, %v3441
          %v3955 = vadd.s32 %v3768, %v3442
          %v3956 = vadd.s32 %v3768, %v3443
          %v3957 = vadd.s32 %v3768, %v3444
          %v3958 = vadd.s32 %v3768, %v3445
          %v3959 = vadd.s32 %v3768, %v3446
          %v3960 = vadd.s32 %v3768, %v3447
          %v3961 = vadd.s32 %v3768, %v3448
          %v3962 = vadd.s32 %v3768, %v3449
          %v3963 = vadd.s32 %v3768, %v3450
          %v3964 = vadd.s32 %v3768, %v3451
          %v3965 = vadd.s32 %v3768, %v3452
          %v3966 = vadd.s32 %v3768, %v3453
          %v3967 = vadd.s32 %v3768, %v3454
          %v3968 = vadd.s32 %v3768, %v3455
          %v3969 = vadd.s32 %v3768, %v3456
          %v3970 = vadd.s32 %v3768, %v3457
          %v3971 = vadd.s32 %v3768, %v3458
          %v3972 = vadd.s32 %v3768, %v3459
          %v3973 = vadd.s32 %v3768, %v3460
          %v3974 = vadd.s32 %v3768, %v3461
          %v3975 = vadd.s32 %v3768, %v3462
          %v3976 = vadd.s32 %v3768, %v3463
          %v3977 = vadd.s32 %v3768, %v3464
          %v3978 = vadd.s32 %v3768, %v3465
          %v3979 = vadd.s32 %v3768, %v3466
          %v3980 = vadd.s32 %v3768, %v3467
          %v3981 = vadd.s32 %v3768, %v3468
          %v3982 = vadd.s32 %v3768, %v3469
          %v3983 = vadd.s32 %v3768, %v3470
          %v3984 = vadd.s32 %v3768, %v3471
          %v3985 = vadd.s32 %v3768, %v3472
          %v3986 = vadd.s32 %v3768, %v3473
          %v3987 = vadd.s32 %v3768, %v3474
          %v3988 = vadd.s32 %v3768, %v3475
          %v3989 = vadd.s32 %v3768, %v3476
          %v3990 = vadd.s32 %v3768, %v3477
          %v3991 = vadd.s32 %v3768, %v3478
          %v3992 = vadd.s32 %v3768, %v3479
          %v3993 = vadd.s32 %v3768, %v3480
          %v3994 = vadd.s32 %v3768, %v3481
          %v3995 = vadd.s32 %v3768, %v3482
          %v3996 = vadd.s32 %v3768, %v3483
          %v3997 = vadd.s32 %v3768, %v3484
          %v3998 = vadd.s32 %v3768, %v3485
          %v3999 = vadd.s32 %v3768, %v3486
          %v4000 = vadd.s32 %v3768, %v3487
          %v4001 = vadd.s32 %v3768, %v3488
          %v4002 = vadd.s32 %v3768, %v3489
          %v4003 = vadd.s32 %v3768, %v3490
          %v4004 = vadd.s32 %v3768, %v3491
          %v4005 = vadd.s32 %v3768, %v3492
          %v4006 = vadd.s32 %v3768, %v3493
          %v4007 = vadd.s32 %v3768, %v3494
          %v4008 = vadd.s32 %v3768, %v3495
          %v4009 = vadd.s32 %v3768, %v3496
          %v4010 = vadd.s32 %v3768, %v3497
          %v4011 = vadd.s32 %v3768, %v3498
          %v4012 = vadd.s32 %v3768, %v3499
          %v4013 = vadd.s32 %v3768, %v3500
          %v4014 = vadd.s32 %v3768, %v3501
          %v4015 = vadd.s32 %v3768, %v3502
          %v4016 = vadd.s32 %v3768, %v3503
          %v4017 = vadd.s32 %v3768, %v3504
          %v4018 = vadd.s32 %v3768, %v3505
          %v4019 = vadd.s32 %v3768, %v3506
          %v4020 = vadd.s32 %v3768, %v3507
          %v4021 = vadd.s32 %v3768, %v3508
          %v4022 = vadd.s32 %v3768, %v3509
          %v4023 = vadd.s32 %v3768, %v3510
          %v4024 = vadd.s32 %v3768, %v3511
          %v4025 = vadd.s32 %v3768, %v3512
          %v4026 = vadd.s32 %v3768, %v3513
          %v4027 = vadd.s32 %v3768, %v3514
          %v4028 = vadd.s32 %v3768, %v3515
          %v4029 = vadd.s32 %v3768, %v3516
          %v4030 = vadd.s32 %v3768, %v3517
          %v4031 = vadd.s32 %v3768, %v3518
          %v4032 = vadd.s32 %v3768, %v3519
          %v4033 = vadd.s32 %v3768, %v3520
          %v4034 = vadd.s32 %v3768, %v3521
          %v4035 = vadd.s32 %v3768, %v3522
          %v4036 = vadd.s32 %v3768, %v3523
          %v4037 = vadd.s32 %v3768, %v3524
          %v4038 = vadd.s32 %v3768, %v3525
          %v4039 = vadd.s32 %v3768, %v3526
          %v4040 = vadd.s32 %v3768, %v3527
          %v4041 = vadd.s32 %v3768, %v3528
          %v4042 = vadd.s32 %v3768, %v3529
          %v4043 = vadd.s32 %v3768, %v3530
          %v4044 = vadd.s32 %v3768, %v3531
          %v4045 = vadd.s32 %v3768, %v3532
          %v4046 = vadd.s32 %v3768, %v3533
          %v4047 = vadd.s32 %v3768, %v3534
          %v4048 = vadd.s32 %v3768, %v3535
          %v4049 = vadd.s32 %v3768, %v3536
          %v4050 = vadd.s32 %v3768, %v3537
          %v4051 = vadd.s32 %v3768, %v3538
          %v4052 = vadd.s32 %v3768, %v3539
          %v4053 = vadd.s32 %v3768, %v3540
          %v4054 = vadd.s32 %v3768, %v3541
          %v4055 = vadd.s32 %v3768, %v3542
          %v4056 = vadd.s32 %v3768, %v3543
          %v4057 = vadd.s32 %v3768, %v3544
          %v4058 = vadd.s32 %v3768, %v3545
          %v4059 = vadd.s32 %v3768, %v3546
          %v4060 = vadd.s32 %v3768, %v3547
          %v4061 = vadd.s32 %v3768, %v3548
          %v4062 = vadd.s32 %v3768, %v3549
          %v4063 = vadd.s32 %v3768, %v3550
          %v4064 = vadd.s32 %v3768, %v3551
          %v4065 = vadd.s32 %v3768, %v3552
          %v4066 = vadd.s32 %v3768, %v3553
          %v4067 = vadd.s32 %v3768, %v3554
          %v4068 = vadd.s32 %v3768, %v3555
          %v4069 = vadd.s32 %v3768, %v3556
          %v4070 = vadd.s32 %v3768, %v3557
          %v4071 = vadd.s32 %v3768, %v3558
          %v4072 = vadd.s32 %v3768, %v3559
          %v4073 = vadd.s32 %v3768, %v3560
          %v4074 = vadd.s32 %v3768, %v3561
          %v4075 = vadd.s32 %v3768, %v3562
          %v4076 = vadd.s32 %v3768, %v3563
          %v4077 = vadd.s32 %v3768, %v3564
          %v4078 = vadd.s32 %v3768, %v3565
          %v4079 = vadd.s32 %v3768, %v3566
          %v4080 = vadd.s32 %v3768, %v3567
          %v4081 = vadd.s32 %v3768, %v3568
          %v4082 = vadd.s32 %v3768, %v3569
          %v4083 = vadd.s32 %v3768, %v3570
          %v4084 = vadd.s32 %v3768, %v3571
          %v4085 = vadd.s32 %v3768, %v3572
          %v4086 = vadd.s32 %v3768, %v3573
          %v4087 = vadd.s32 %v3768, %v3574
          %v4088 = vadd.s32 %v3768, %v3575
          %v4089 = vadd.s32 %v3768, %v3576
          %v4090 = vadd.s32 %v3768, %v3577
          %v4091 = vadd.s32 %v3768, %v3578
          %v4092 = vadd.s32 %v3768, %v3579
          %v4093 = vadd.s32 %v3768, %v3580
          %v4094 = vadd.s32 %v3768, %v3581
          %v4095 = vadd.s32 %v3768, %v3582
          %v4096 = vadd.s32 %v3768, %v3583
          %v4097 = vadd.s32 %v3768, %v3584
          %v4098 = vadd.s32 %v3768, %v3585
          %v4099 = vadd.s32 %v3768, %v3586
          %v4100 = vadd.s32 %v3768, %v3587
          %v4101 = vadd.s32 %v3768, %v3588
          %v4102 = vadd.s32 %v3768, %v3589
          %v4103 = vadd.s32 %v3768, %v3590
          %v4104 = vadd.s32 %v3768, %v3591
          %v4105 = vadd.s32 %v3768, %v3592
          %v4106 = vadd.s32 %v3768, %v3593
          %v4107 = vadd.s32 %v3768, %v3594
          %v4108 = vadd.s32 %v3768, %v3595
          %v4109 = vadd.s32 %v3768, %v3596
          %v4110 = vadd.s32 %v3768, %v3597
          %v4111 = vadd.s32 %v3768, %v3598
          %v4112 = vadd.s32 %v3768, %v3599
          %v4113 = vadd.s32 %v3768, %v3600
          %v4114 = vadd.s32 %v3768, %v3601
          %v4115 = vadd.s32 %v3768, %v3602
          %v4116 = vadd.s32 %v3768, %v3603
          %v4117 = vadd.s32 %v3768, %v3604
          %v4118 = vadd.s32 %v3768, %v3605
          %v4119 = vadd.s32 %v3768, %v3606
          %v4120 = vadd.s32 %v3768, %v3607
          %v4121 = vadd.s32 %v3768, %v3608
          %v4122 = vadd.s32 %v3768, %v3609
          %v4123 = vadd.s32 %v3768, %v3610
          %v4124 = vadd.s32 %v3768, %v3611
          %v4125 = vadd.s32 %v3768, %v3612
          %v4126 = vadd.s32 %v3768, %v3613
          %v4127 = vadd.s32 %v3768, %v3614
          %v4128 = vadd.s32 %v3768, %v3615
          %v4129 = vadd.s32 %v3768, %v3616
          %v4130 = vadd.s32 %v3768, %v3617
          %v4131 = vadd.s32 %v3768, %v3618
          %v4132 = vadd.s32 %v3768, %v3619
          %v4133 = vadd.s32 %v3768, %v3620
          %v4134 = vadd.s32 %v3768, %v3621
          %v4135 = vadd.s32 %v3768, %v3622
          %v4136 = vadd.s32 %v3768, %v3623
          %v4137 = vadd.s32 %v3768, %v3624
          %v4138 = vadd.s32 %v3768, %v3625
          %v4139 = vadd.s32 %v3768, %v3626
          %v4140 = vadd.s32 %v3768, %v3627
          %v4141 = vadd.s32 %v3768, %v3628
          %v4142 = vadd.s32 %v3768, %v3629
          %v4143 = vadd.s32 %v3768, %v3630
          %v4144 = vadd.s32 %v3768, %v3631
          %v4145 = vadd.s32 %v3768, %v3632
          %v4146 = vadd.s32 %v3768, %v3633
          %v4147 = vadd.s32 %v3768, %v3634
          %v4148 = vadd.s32 %v3768, %v3635
          %v4149 = vadd.s32 %v3768, %v3636
          %v4150 = vadd.s32 %v3768, %v3637
          %v4151 = vadd.s32 %v3768, %v3638
          %v4152 = vadd.s32 %v3768, %v3639
          %v4153 = vadd.s32 %v3768, %v3640
          %v4154 = vadd.s32 %v3768, %v3641
          %v4155 = vadd.s32 %v3768, %v3642
          %v4156 = vadd.s32 %v3768, %v3643
          %v4157 = vadd.s32 %v3768, %v3644
          %v4158 = vadd.s32 %v3768, %v3645
          %v4159 = vadd.s32 %v3768, %v3646
          %v4160 = vadd.s32 %v3768, %v3647
          %v4161 = vadd.s32 %v3768, %v3648
          %v4162 = vadd.s32 %v3768, %v3649
          %v4163 = vadd.s32 %v3768, %v3650
          %v4164 = vadd.s32 %v3768, %v3651
          %v4165 = vadd.s32 %v3768, %v3652
          %v4166 = vadd.s32 %v3768, %v3653
          %v4167 = vadd.s32 %v3768, %v3654
          %v4168 = vadd.s32 %v3768, %v3655
          %v4169 = vadd.s32 %v3768, %v3656
          %v4170 = vadd.s32 %v3768, %v3657
          %v4171 = vadd.s32 %v3768, %v3658
          %v4172 = vadd.s32 %v3768, %v3659
          %v4173 = vadd.s32 %v3768, %v3660
          %v4174 = vadd.s32 %v3768, %v3661
          %v4175 = vadd.s32 %v3768, %v3662
          %v4176 = vadd.s32 %v3768, %v3663
          %v4177 = vadd.s32 %v3768, %v3664
          %v4178 = vadd.s32 %v3768, %v3665
          %v4179 = vadd.s32 %v3768, %v3666
          %v4180 = vadd.s32 %v3768, %v3667
          %v4181 = vadd.s32 %v3768, %v3668
          %v4182 = vadd.s32 %v3768, %v3669
          %v4183 = vadd.s32 %v3768, %v3670
          %v4184 = vadd.s32 %v3768, %v3671
          %v4185 = vadd.s32 %v3768, %v3672
          %v4186 = vadd.s32 %v3768, %v3673
          %v4187 = vadd.s32 %v3768, %v3674
          %v4188 = vadd.s32 %v3768, %v3675
          %v4189 = vadd.s32 %v3768, %v3676
          %v4190 = vadd.s32 %v3768, %v3677
          %v4191 = vadd.s32 %v3768, %v3678
          %v4192 = vadd.s32 %v3768, %v3679
          %v4193 = vadd.s32 %v3768, %v3680
          %v4194 = vadd.s32 %v3768, %v3681
          %v4195 = vadd.s32 %v3768, %v3682
          %v4196 = vadd.s32 %v3768, %v3683
          %v4197 = vadd.s32 %v3768, %v3684
          %v4198 = vadd.s32 %v3768, %v3685
          %v4199 = vadd.s32 %v3768, %v3686
          %v4200 = vadd.s32 %v3768, %v3687
          %v4201 = vadd.s32 %v3768, %v3688
          %v4202 = vadd.s32 %v3768, %v3689
          %v4203 = vadd.s32 %v3768, %v3690
          %v4204 = vadd.s32 %v3768, %v3691
          %v4205 = vadd.s32 %v3768, %v3692
          %v4206 = vadd.s32 %v3768, %v3693
          %v4207 = vadd.s32 %v3768, %v3694
          %v4208 = vadd.s32 %v3768, %v3695
          %v4209 = vadd.s32 %v3768, %v3696
          %v4210 = vadd.s32 %v3768, %v3697
          %v4211 = vadd.s32 %v3768, %v3698
          %v4212 = vadd.s32 %v3768, %v3699
          %v4213 = vadd.s32 %v3768, %v3700
          %v4214 = vadd.s32 %v3768, %v3701
          %v4215 = vadd.s32 %v3768, %v3702
          %v4216 = vadd.s32 %v3768, %v3703
          %v4217 = vadd.s32 %v3768, %v3704
          %v4218 = vadd.s32 %v3768, %v3705
          %v4219 = vadd.s32 %v3768, %v3706
          %v4220 = vadd.s32 %v3768, %v3707
          %v4221 = vadd.s32 %v3768, %v3708
          %v4222 = vadd.s32 %v3768, %v3709
          %v4223 = vadd.s32 %v3768, %v3710
          %v4224 = vadd.s32 %v3768, %v3711
          %v4225 = vadd.s32 %v3768, %v3712
          %v4226 = vadd.s32 %v3768, %v3713
          %v4227 = vadd.s32 %v3768, %v3714
          %v4228 = vadd.s32 %v3768, %v3715
          %v4229 = vadd.s32 %v3768, %v3716
          %v4230 = vadd.s32 %v3768, %v3717
          %v4231 = vadd.s32 %v3768, %v3718
          %v4232 = vadd.s32 %v3768, %v3719
          %v4233 = vadd.s32 %v3768, %v3720
          %v4234 = vadd.s32 %v3768, %v3721
          %v4235 = vadd.s32 %v3768, %v3722
          %v4236 = vadd.s32 %v3768, %v3723
          %v4237 = vadd.s32 %v3768, %v3724
          %v4238 = vadd.s32 %v3768, %v3725
          %v4239 = vadd.s32 %v3768, %v3726
          %v4240 = vadd.s32 %v3768, %v3727
          %v4241 = vadd.s32 %v3768, %v3728
          %v4242 = vadd.s32 %v3768, %v3729
          %v4243 = vadd.s32 %v3768, %v3730
          %v4244 = vadd.s32 %v3768, %v3731
          %v4245 = vadd.s32 %v3768, %v3732
          %v4246 = vadd.s32 %v3768, %v3733
          %v4247 = vadd.s32 %v3768, %v3734
          %v4248 = vadd.s32 %v3768, %v3735
          %v4249 = vadd.s32 %v3768, %v3736
          %v4250 = vadd.s32 %v3768, %v3737
          %v4251 = vadd.s32 %v3768, %v3738
          %v4252 = vadd.s32 %v3768, %v3739
          %v4253 = vadd.s32 %v3768, %v3740
          %v4254 = vadd.s32 %v3768, %v3741
          %v4255 = vadd.s32 %v3768, %v3742
          %v4256 = vadd.s32 %v3768, %v3743
          %v4257 = vadd.s32 %v3768, %v3744
          %v4258 = vadd.s32 %v3768, %v3745
          %v4259 = vadd.s32 %v3768, %v3746
          %v4260 = vadd.s32 %v3768, %v3747
          %v4261 = vadd.s32 %v3768, %v3748
          %v4262 = vadd.s32 %v3768, %v3749
          %v4263 = vadd.s32 %v3768, %v3750
          %v4264 = vadd.s32 %v3768, %v3751
          %v4265 = vadd.s32 %v3768, %v3752
          %v4266 = vadd.s32 %v3768, %v3753
          %v4267 = vadd.s32 %v3768, %v3754
          %v4268 = vadd.s32 %v3768, %v3755
          %v4269 = vadd.s32 %v3768, %v3756
          %v4270 = vadd.s32 %v3768, %v3757
          %v4271 = vadd.s32 %v3768, %v3758
          %v4272 = vadd.s32 %v3768, %v3759
          %v4273 = vadd.s32 %v3768, %v3760
          %v4274 = vadd.s32 %v3768, %v3761
          %v4275 = vadd.s32 %v3768, %v3762
          %v4276 = vadd.s32 %v3768, %v3763
          %v4277 = vadd.s32 %v3768, %v3764
          %v4278 = vadd.s32 %v3768, %v3765
          %v4279 = vadd.s32 %v3768, %v3766
          %v4280 = vadd.s32 %v3768, %v3767
          %vm4281 = vcmp.lt.s32.totalorder %v3769, 9000
          %vm4282 = vcmp.lt.s32.totalorder %v3770, 9000
          %vm4283 = vcmp.lt.s32.totalorder %v3771, 9000
          %vm4284 = vcmp.lt.s32.totalorder %v3772, 9000
          %vm4285 = vcmp.lt.s32.totalorder %v3773, 9000
          %vm4286 = vcmp.lt.s32.totalorder %v3774, 9000
          %vm4287 = vcmp.lt.s32.totalorder %v3775, 9000
          %vm4288 = vcmp.lt.s32.totalorder %v3776, 9000
          %vm4289 = vcmp.lt.s32.totalorder %v3777, 9000
          %vm4290 = vcmp.lt.s32.totalorder %v3778, 9000
          %vm4291 = vcmp.lt.s32.totalorder %v3779, 9000
          %vm4292 = vcmp.lt.s32.totalorder %v3780, 9000
          %vm4293 = vcmp.lt.s32.totalorder %v3781, 9000
          %vm4294 = vcmp.lt.s32.totalorder %v3782, 9000
          %vm4295 = vcmp.lt.s32.totalorder %v3783, 9000
          %vm4296 = vcmp.lt.s32.totalorder %v3784, 9000
          %vm4297 = vcmp.lt.s32.totalorder %v3785, 9000
          %vm4298 = vcmp.lt.s32.totalorder %v3786, 9000
          %vm4299 = vcmp.lt.s32.totalorder %v3787, 9000
          %vm4300 = vcmp.lt.s32.totalorder %v3788, 9000
          %vm4301 = vcmp.lt.s32.totalorder %v3789, 9000
          %vm4302 = vcmp.lt.s32.totalorder %v3790, 9000
          %vm4303 = vcmp.lt.s32.totalorder %v3791, 9000
          %vm4304 = vcmp.lt.s32.totalorder %v3792, 9000
          %vm4305 = vcmp.lt.s32.totalorder %v3793, 9000
          %vm4306 = vcmp.lt.s32.totalorder %v3794, 9000
          %vm4307 = vcmp.lt.s32.totalorder %v3795, 9000
          %vm4308 = vcmp.lt.s32.totalorder %v3796, 9000
          %vm4309 = vcmp.lt.s32.totalorder %v3797, 9000
          %vm4310 = vcmp.lt.s32.totalorder %v3798, 9000
          %vm4311 = vcmp.lt.s32.totalorder %v3799, 9000
          %vm4312 = vcmp.lt.s32.totalorder %v3800, 9000
          %vm4313 = vcmp.lt.s32.totalorder %v3801, 9000
          %vm4314 = vcmp.lt.s32.totalorder %v3802, 9000
          %vm4315 = vcmp.lt.s32.totalorder %v3803, 9000
          %vm4316 = vcmp.lt.s32.totalorder %v3804, 9000
          %vm4317 = vcmp.lt.s32.totalorder %v3805, 9000
          %vm4318 = vcmp.lt.s32.totalorder %v3806, 9000
          %vm4319 = vcmp.lt.s32.totalorder %v3807, 9000
          %vm4320 = vcmp.lt.s32.totalorder %v3808, 9000
          %vm4321 = vcmp.lt.s32.totalorder %v3809, 9000
          %vm4322 = vcmp.lt.s32.totalorder %v3810, 9000
          %vm4323 = vcmp.lt.s32.totalorder %v3811, 9000
          %vm4324 = vcmp.lt.s32.totalorder %v3812, 9000
          %vm4325 = vcmp.lt.s32.totalorder %v3813, 9000
          %vm4326 = vcmp.lt.s32.totalorder %v3814, 9000
          %vm4327 = vcmp.lt.s32.totalorder %v3815, 9000
          %vm4328 = vcmp.lt.s32.totalorder %v3816, 9000
          %vm4329 = vcmp.lt.s32.totalorder %v3817, 9000
          %vm4330 = vcmp.lt.s32.totalorder %v3818, 9000
          %vm4331 = vcmp.lt.s32.totalorder %v3819, 9000
          %vm4332 = vcmp.lt.s32.totalorder %v3820, 9000
          %vm4333 = vcmp.lt.s32.totalorder %v3821, 9000
          %vm4334 = vcmp.lt.s32.totalorder %v3822, 9000
          %vm4335 = vcmp.lt.s32.totalorder %v3823, 9000
          %vm4336 = vcmp.lt.s32.totalorder %v3824, 9000
          %vm4337 = vcmp.lt.s32.totalorder %v3825, 9000
          %vm4338 = vcmp.lt.s32.totalorder %v3826, 9000
          %vm4339 = vcmp.lt.s32.totalorder %v3827, 9000
          %vm4340 = vcmp.lt.s32.totalorder %v3828, 9000
          %vm4341 = vcmp.lt.s32.totalorder %v3829, 9000
          %vm4342 = vcmp.lt.s32.totalorder %v3830, 9000
          %vm4343 = vcmp.lt.s32.totalorder %v3831, 9000
          %vm4344 = vcmp.lt.s32.totalorder %v3832, 9000
          %vm4345 = vcmp.lt.s32.totalorder %v3833, 9000
          %vm4346 = vcmp.lt.s32.totalorder %v3834, 9000
          %vm4347 = vcmp.lt.s32.totalorder %v3835, 9000
          %vm4348 = vcmp.lt.s32.totalorder %v3836, 9000
          %vm4349 = vcmp.lt.s32.totalorder %v3837, 9000
          %vm4350 = vcmp.lt.s32.totalorder %v3838, 9000
          %vm4351 = vcmp.lt.s32.totalorder %v3839, 9000
          %vm4352 = vcmp.lt.s32.totalorder %v3840, 9000
          %vm4353 = vcmp.lt.s32.totalorder %v3841, 9000
          %vm4354 = vcmp.lt.s32.totalorder %v3842, 9000
          %vm4355 = vcmp.lt.s32.totalorder %v3843, 9000
          %vm4356 = vcmp.lt.s32.totalorder %v3844, 9000
          %vm4357 = vcmp.lt.s32.totalorder %v3845, 9000
          %vm4358 = vcmp.lt.s32.totalorder %v3846, 9000
          %vm4359 = vcmp.lt.s32.totalorder %v3847, 9000
          %vm4360 = vcmp.lt.s32.totalorder %v3848, 9000
          %vm4361 = vcmp.lt.s32.totalorder %v3849, 9000
          %vm4362 = vcmp.lt.s32.totalorder %v3850, 9000
          %vm4363 = vcmp.lt.s32.totalorder %v3851, 9000
          %vm4364 = vcmp.lt.s32.totalorder %v3852, 9000
          %vm4365 = vcmp.lt.s32.totalorder %v3853, 9000
          %vm4366 = vcmp.lt.s32.totalorder %v3854, 9000
          %vm4367 = vcmp.lt.s32.totalorder %v3855, 9000
          %vm4368 = vcmp.lt.s32.totalorder %v3856, 9000
          %vm4369 = vcmp.lt.s32.totalorder %v3857, 9000
          %vm4370 = vcmp.lt.s32.totalorder %v3858, 9000
          %vm4371 = vcmp.lt.s32.totalorder %v3859, 9000
          %vm4372 = vcmp.lt.s32.totalorder %v3860, 9000
          %vm4373 = vcmp.lt.s32.totalorder %v3861, 9000
          %vm4374 = vcmp.lt.s32.totalorder %v3862, 9000
          %vm4375 = vcmp.lt.s32.totalorder %v3863, 9000
          %vm4376 = vcmp.lt.s32.totalorder %v3864, 9000
          %vm4377 = vcmp.lt.s32.totalorder %v3865, 9000
          %vm4378 = vcmp.lt.s32.totalorder %v3866, 9000
          %vm4379 = vcmp.lt.s32.totalorder %v3867, 9000
          %vm4380 = vcmp.lt.s32.totalorder %v3868, 9000
          %vm4381 = vcmp.lt.s32.totalorder %v3869, 9000
          %vm4382 = vcmp.lt.s32.totalorder %v3870, 9000
          %vm4383 = vcmp.lt.s32.totalorder %v3871, 9000
          %vm4384 = vcmp.lt.s32.totalorder %v3872, 9000
          %vm4385 = vcmp.lt.s32.totalorder %v3873, 9000
          %vm4386 = vcmp.lt.s32.totalorder %v3874, 9000
          %vm4387 = vcmp.lt.s32.totalorder %v3875, 9000
          %vm4388 = vcmp.lt.s32.totalorder %v3876, 9000
          %vm4389 = vcmp.lt.s32.totalorder %v3877, 9000
          %vm4390 = vcmp.lt.s32.totalorder %v3878, 9000
          %vm4391 = vcmp.lt.s32.totalorder %v3879, 9000
          %vm4392 = vcmp.lt.s32.totalorder %v3880, 9000
          %vm4393 = vcmp.lt.s32.totalorder %v3881, 9000
          %vm4394 = vcmp.lt.s32.totalorder %v3882, 9000
          %vm4395 = vcmp.lt.s32.totalorder %v3883, 9000
          %vm4396 = vcmp.lt.s32.totalorder %v3884, 9000
          %vm4397 = vcmp.lt.s32.totalorder %v3885, 9000
          %vm4398 = vcmp.lt.s32.totalorder %v3886, 9000
          %vm4399 = vcmp.lt.s32.totalorder %v3887, 9000
          %vm4400 = vcmp.lt.s32.totalorder %v3888, 9000
          %vm4401 = vcmp.lt.s32.totalorder %v3889, 9000
          %vm4402 = vcmp.lt.s32.totalorder %v3890, 9000
          %vm4403 = vcmp.lt.s32.totalorder %v3891, 9000
          %vm4404 = vcmp.lt.s32.totalorder %v3892, 9000
          %vm4405 = vcmp.lt.s32.totalorder %v3893, 9000
          %vm4406 = vcmp.lt.s32.totalorder %v3894, 9000
          %vm4407 = vcmp.lt.s32.totalorder %v3895, 9000
          %vm4408 = vcmp.lt.s32.totalorder %v3896, 9000
          %vm4409 = vcmp.lt.s32.totalorder %v3897, 9000
          %vm4410 = vcmp.lt.s32.totalorder %v3898, 9000
          %vm4411 = vcmp.lt.s32.totalorder %v3899, 9000
          %vm4412 = vcmp.lt.s32.totalorder %v3900, 9000
          %vm4413 = vcmp.lt.s32.totalorder %v3901, 9000
          %vm4414 = vcmp.lt.s32.totalorder %v3902, 9000
          %vm4415 = vcmp.lt.s32.totalorder %v3903, 9000
          %vm4416 = vcmp.lt.s32.totalorder %v3904, 9000
          %vm4417 = vcmp.lt.s32.totalorder %v3905, 9000
          %vm4418 = vcmp.lt.s32.totalorder %v3906, 9000
          %vm4419 = vcmp.lt.s32.totalorder %v3907, 9000
          %vm4420 = vcmp.lt.s32.totalorder %v3908, 9000
          %vm4421 = vcmp.lt.s32.totalorder %v3909, 9000
          %vm4422 = vcmp.lt.s32.totalorder %v3910, 9000
          %vm4423 = vcmp.lt.s32.totalorder %v3911, 9000
          %vm4424 = vcmp.lt.s32.totalorder %v3912, 9000
          %vm4425 = vcmp.lt.s32.totalorder %v3913, 9000
          %vm4426 = vcmp.lt.s32.totalorder %v3914, 9000
          %vm4427 = vcmp.lt.s32.totalorder %v3915, 9000
          %vm4428 = vcmp.lt.s32.totalorder %v3916, 9000
          %vm4429 = vcmp.lt.s32.totalorder %v3917, 9000
          %vm4430 = vcmp.lt.s32.totalorder %v3918, 9000
          %vm4431 = vcmp.lt.s32.totalorder %v3919, 9000
          %vm4432 = vcmp.lt.s32.totalorder %v3920, 9000
          %vm4433 = vcmp.lt.s32.totalorder %v3921, 9000
          %vm4434 = vcmp.lt.s32.totalorder %v3922, 9000
          %vm4435 = vcmp.lt.s32.totalorder %v3923, 9000
          %vm4436 = vcmp.lt.s32.totalorder %v3924, 9000
          %vm4437 = vcmp.lt.s32.totalorder %v3925, 9000
          %vm4438 = vcmp.lt.s32.totalorder %v3926, 9000
          %vm4439 = vcmp.lt.s32.totalorder %v3927, 9000
          %vm4440 = vcmp.lt.s32.totalorder %v3928, 9000
          %vm4441 = vcmp.lt.s32.totalorder %v3929, 9000
          %vm4442 = vcmp.lt.s32.totalorder %v3930, 9000
          %vm4443 = vcmp.lt.s32.totalorder %v3931, 9000
          %vm4444 = vcmp.lt.s32.totalorder %v3932, 9000
          %vm4445 = vcmp.lt.s32.totalorder %v3933, 9000
          %vm4446 = vcmp.lt.s32.totalorder %v3934, 9000
          %vm4447 = vcmp.lt.s32.totalorder %v3935, 9000
          %vm4448 = vcmp.lt.s32.totalorder %v3936, 9000
          %vm4449 = vcmp.lt.s32.totalorder %v3937, 9000
          %vm4450 = vcmp.lt.s32.totalorder %v3938, 9000
          %vm4451 = vcmp.lt.s32.totalorder %v3939, 9000
          %vm4452 = vcmp.lt.s32.totalorder %v3940, 9000
          %vm4453 = vcmp.lt.s32.totalorder %v3941, 9000
          %vm4454 = vcmp.lt.s32.totalorder %v3942, 9000
          %vm4455 = vcmp.lt.s32.totalorder %v3943, 9000
          %vm4456 = vcmp.lt.s32.totalorder %v3944, 9000
          %vm4457 = vcmp.lt.s32.totalorder %v3945, 9000
          %vm4458 = vcmp.lt.s32.totalorder %v3946, 9000
          %vm4459 = vcmp.lt.s32.totalorder %v3947, 9000
          %vm4460 = vcmp.lt.s32.totalorder %v3948, 9000
          %vm4461 = vcmp.lt.s32.totalorder %v3949, 9000
          %vm4462 = vcmp.lt.s32.totalorder %v3950, 9000
          %vm4463 = vcmp.lt.s32.totalorder %v3951, 9000
          %vm4464 = vcmp.lt.s32.totalorder %v3952, 9000
          %vm4465 = vcmp.lt.s32.totalorder %v3953, 9000
          %vm4466 = vcmp.lt.s32.totalorder %v3954, 9000
          %vm4467 = vcmp.lt.s32.totalorder %v3955, 9000
          %vm4468 = vcmp.lt.s32.totalorder %v3956, 9000
          %vm4469 = vcmp.lt.s32.totalorder %v3957, 9000
          %vm4470 = vcmp.lt.s32.totalorder %v3958, 9000
          %vm4471 = vcmp.lt.s32.totalorder %v3959, 9000
          %vm4472 = vcmp.lt.s32.totalorder %v3960, 9000
          %vm4473 = vcmp.lt.s32.totalorder %v3961, 9000
          %vm4474 = vcmp.lt.s32.totalorder %v3962, 9000
          %vm4475 = vcmp.lt.s32.totalorder %v3963, 9000
          %vm4476 = vcmp.lt.s32.totalorder %v3964, 9000
          %vm4477 = vcmp.lt.s32.totalorder %v3965, 9000
          %vm4478 = vcmp.lt.s32.totalorder %v3966, 9000
          %vm4479 = vcmp.lt.s32.totalorder %v3967, 9000
          %vm4480 = vcmp.lt.s32.totalorder %v3968, 9000
          %vm4481 = vcmp.lt.s32.totalorder %v3969, 9000
          %vm4482 = vcmp.lt.s32.totalorder %v3970, 9000
          %vm4483 = vcmp.lt.s32.totalorder %v3971, 9000
          %vm4484 = vcmp.lt.s32.totalorder %v3972, 9000
          %vm4485 = vcmp.lt.s32.totalorder %v3973, 9000
          %vm4486 = vcmp.lt.s32.totalorder %v3974, 9000
          %vm4487 = vcmp.lt.s32.totalorder %v3975, 9000
          %vm4488 = vcmp.lt.s32.totalorder %v3976, 9000
          %vm4489 = vcmp.lt.s32.totalorder %v3977, 9000
          %vm4490 = vcmp.lt.s32.totalorder %v3978, 9000
          %vm4491 = vcmp.lt.s32.totalorder %v3979, 9000
          %vm4492 = vcmp.lt.s32.totalorder %v3980, 9000
          %vm4493 = vcmp.lt.s32.totalorder %v3981, 9000
          %vm4494 = vcmp.lt.s32.totalorder %v3982, 9000
          %vm4495 = vcmp.lt.s32.totalorder %v3983, 9000
          %vm4496 = vcmp.lt.s32.totalorder %v3984, 9000
          %vm4497 = vcmp.lt.s32.totalorder %v3985, 9000
          %vm4498 = vcmp.lt.s32.totalorder %v3986, 9000
          %vm4499 = vcmp.lt.s32.totalorder %v3987, 9000
          %vm4500 = vcmp.lt.s32.totalorder %v3988, 9000
          %vm4501 = vcmp.lt.s32.totalorder %v3989, 9000
          %vm4502 = vcmp.lt.s32.totalorder %v3990, 9000
          %vm4503 = vcmp.lt.s32.totalorder %v3991, 9000
          %vm4504 = vcmp.lt.s32.totalorder %v3992, 9000
          %vm4505 = vcmp.lt.s32.totalorder %v3993, 9000
          %vm4506 = vcmp.lt.s32.totalorder %v3994, 9000
          %vm4507 = vcmp.lt.s32.totalorder %v3995, 9000
          %vm4508 = vcmp.lt.s32.totalorder %v3996, 9000
          %vm4509 = vcmp.lt.s32.totalorder %v3997, 9000
          %vm4510 = vcmp.lt.s32.totalorder %v3998, 9000
          %vm4511 = vcmp.lt.s32.totalorder %v3999, 9000
          %vm4512 = vcmp.lt.s32.totalorder %v4000, 9000
          %vm4513 = vcmp.lt.s32.totalorder %v4001, 9000
          %vm4514 = vcmp.lt.s32.totalorder %v4002, 9000
          %vm4515 = vcmp.lt.s32.totalorder %v4003, 9000
          %vm4516 = vcmp.lt.s32.totalorder %v4004, 9000
          %vm4517 = vcmp.lt.s32.totalorder %v4005, 9000
          %vm4518 = vcmp.lt.s32.totalorder %v4006, 9000
          %vm4519 = vcmp.lt.s32.totalorder %v4007, 9000
          %vm4520 = vcmp.lt.s32.totalorder %v4008, 9000
          %vm4521 = vcmp.lt.s32.totalorder %v4009, 9000
          %vm4522 = vcmp.lt.s32.totalorder %v4010, 9000
          %vm4523 = vcmp.lt.s32.totalorder %v4011, 9000
          %vm4524 = vcmp.lt.s32.totalorder %v4012, 9000
          %vm4525 = vcmp.lt.s32.totalorder %v4013, 9000
          %vm4526 = vcmp.lt.s32.totalorder %v4014, 9000
          %vm4527 = vcmp.lt.s32.totalorder %v4015, 9000
          %vm4528 = vcmp.lt.s32.totalorder %v4016, 9000
          %vm4529 = vcmp.lt.s32.totalorder %v4017, 9000
          %vm4530 = vcmp.lt.s32.totalorder %v4018, 9000
          %vm4531 = vcmp.lt.s32.totalorder %v4019, 9000
          %vm4532 = vcmp.lt.s32.totalorder %v4020, 9000
          %vm4533 = vcmp.lt.s32.totalorder %v4021, 9000
          %vm4534 = vcmp.lt.s32.totalorder %v4022, 9000
          %vm4535 = vcmp.lt.s32.totalorder %v4023, 9000
          %vm4536 = vcmp.lt.s32.totalorder %v4024, 9000
          %vm4537 = vcmp.lt.s32.totalorder %v4025, 9000
          %vm4538 = vcmp.lt.s32.totalorder %v4026, 9000
          %vm4539 = vcmp.lt.s32.totalorder %v4027, 9000
          %vm4540 = vcmp.lt.s32.totalorder %v4028, 9000
          %vm4541 = vcmp.lt.s32.totalorder %v4029, 9000
          %vm4542 = vcmp.lt.s32.totalorder %v4030, 9000
          %vm4543 = vcmp.lt.s32.totalorder %v4031, 9000
          %vm4544 = vcmp.lt.s32.totalorder %v4032, 9000
          %vm4545 = vcmp.lt.s32.totalorder %v4033, 9000
          %vm4546 = vcmp.lt.s32.totalorder %v4034, 9000
          %vm4547 = vcmp.lt.s32.totalorder %v4035, 9000
          %vm4548 = vcmp.lt.s32.totalorder %v4036, 9000
          %vm4549 = vcmp.lt.s32.totalorder %v4037, 9000
          %vm4550 = vcmp.lt.s32.totalorder %v4038, 9000
          %vm4551 = vcmp.lt.s32.totalorder %v4039, 9000
          %vm4552 = vcmp.lt.s32.totalorder %v4040, 9000
          %vm4553 = vcmp.lt.s32.totalorder %v4041, 9000
          %vm4554 = vcmp.lt.s32.totalorder %v4042, 9000
          %vm4555 = vcmp.lt.s32.totalorder %v4043, 9000
          %vm4556 = vcmp.lt.s32.totalorder %v4044, 9000
          %vm4557 = vcmp.lt.s32.totalorder %v4045, 9000
          %vm4558 = vcmp.lt.s32.totalorder %v4046, 9000
          %vm4559 = vcmp.lt.s32.totalorder %v4047, 9000
          %vm4560 = vcmp.lt.s32.totalorder %v4048, 9000
          %vm4561 = vcmp.lt.s32.totalorder %v4049, 9000
          %vm4562 = vcmp.lt.s32.totalorder %v4050, 9000
          %vm4563 = vcmp.lt.s32.totalorder %v4051, 9000
          %vm4564 = vcmp.lt.s32.totalorder %v4052, 9000
          %vm4565 = vcmp.lt.s32.totalorder %v4053, 9000
          %vm4566 = vcmp.lt.s32.totalorder %v4054, 9000
          %vm4567 = vcmp.lt.s32.totalorder %v4055, 9000
          %vm4568 = vcmp.lt.s32.totalorder %v4056, 9000
          %vm4569 = vcmp.lt.s32.totalorder %v4057, 9000
          %vm4570 = vcmp.lt.s32.totalorder %v4058, 9000
          %vm4571 = vcmp.lt.s32.totalorder %v4059, 9000
          %vm4572 = vcmp.lt.s32.totalorder %v4060, 9000
          %vm4573 = vcmp.lt.s32.totalorder %v4061, 9000
          %vm4574 = vcmp.lt.s32.totalorder %v4062, 9000
          %vm4575 = vcmp.lt.s32.totalorder %v4063, 9000
          %vm4576 = vcmp.lt.s32.totalorder %v4064, 9000
          %vm4577 = vcmp.lt.s32.totalorder %v4065, 9000
          %vm4578 = vcmp.lt.s32.totalorder %v4066, 9000
          %vm4579 = vcmp.lt.s32.totalorder %v4067, 9000
          %vm4580 = vcmp.lt.s32.totalorder %v4068, 9000
          %vm4581 = vcmp.lt.s32.totalorder %v4069, 9000
          %vm4582 = vcmp.lt.s32.totalorder %v4070, 9000
          %vm4583 = vcmp.lt.s32.totalorder %v4071, 9000
          %vm4584 = vcmp.lt.s32.totalorder %v4072, 9000
          %vm4585 = vcmp.lt.s32.totalorder %v4073, 9000
          %vm4586 = vcmp.lt.s32.totalorder %v4074, 9000
          %vm4587 = vcmp.lt.s32.totalorder %v4075, 9000
          %vm4588 = vcmp.lt.s32.totalorder %v4076, 9000
          %vm4589 = vcmp.lt.s32.totalorder %v4077, 9000
          %vm4590 = vcmp.lt.s32.totalorder %v4078, 9000
          %vm4591 = vcmp.lt.s32.totalorder %v4079, 9000
          %vm4592 = vcmp.lt.s32.totalorder %v4080, 9000
          %vm4593 = vcmp.lt.s32.totalorder %v4081, 9000
          %vm4594 = vcmp.lt.s32.totalorder %v4082, 9000
          %vm4595 = vcmp.lt.s32.totalorder %v4083, 9000
          %vm4596 = vcmp.lt.s32.totalorder %v4084, 9000
          %vm4597 = vcmp.lt.s32.totalorder %v4085, 9000
          %vm4598 = vcmp.lt.s32.totalorder %v4086, 9000
          %vm4599 = vcmp.lt.s32.totalorder %v4087, 9000
          %vm4600 = vcmp.lt.s32.totalorder %v4088, 9000
          %vm4601 = vcmp.lt.s32.totalorder %v4089, 9000
          %vm4602 = vcmp.lt.s32.totalorder %v4090, 9000
          %vm4603 = vcmp.lt.s32.totalorder %v4091, 9000
          %vm4604 = vcmp.lt.s32.totalorder %v4092, 9000
          %vm4605 = vcmp.lt.s32.totalorder %v4093, 9000
          %vm4606 = vcmp.lt.s32.totalorder %v4094, 9000
          %vm4607 = vcmp.lt.s32.totalorder %v4095, 9000
          %vm4608 = vcmp.lt.s32.totalorder %v4096, 9000
          %vm4609 = vcmp.lt.s32.totalorder %v4097, 9000
          %vm4610 = vcmp.lt.s32.totalorder %v4098, 9000
          %vm4611 = vcmp.lt.s32.totalorder %v4099, 9000
          %vm4612 = vcmp.lt.s32.totalorder %v4100, 9000
          %vm4613 = vcmp.lt.s32.totalorder %v4101, 9000
          %vm4614 = vcmp.lt.s32.totalorder %v4102, 9000
          %vm4615 = vcmp.lt.s32.totalorder %v4103, 9000
          %vm4616 = vcmp.lt.s32.totalorder %v4104, 9000
          %vm4617 = vcmp.lt.s32.totalorder %v4105, 9000
          %vm4618 = vcmp.lt.s32.totalorder %v4106, 9000
          %vm4619 = vcmp.lt.s32.totalorder %v4107, 9000
          %vm4620 = vcmp.lt.s32.totalorder %v4108, 9000
          %vm4621 = vcmp.lt.s32.totalorder %v4109, 9000
          %vm4622 = vcmp.lt.s32.totalorder %v4110, 9000
          %vm4623 = vcmp.lt.s32.totalorder %v4111, 9000
          %vm4624 = vcmp.lt.s32.totalorder %v4112, 9000
          %vm4625 = vcmp.lt.s32.totalorder %v4113, 9000
          %vm4626 = vcmp.lt.s32.totalorder %v4114, 9000
          %vm4627 = vcmp.lt.s32.totalorder %v4115, 9000
          %vm4628 = vcmp.lt.s32.totalorder %v4116, 9000
          %vm4629 = vcmp.lt.s32.totalorder %v4117, 9000
          %vm4630 = vcmp.lt.s32.totalorder %v4118, 9000
          %vm4631 = vcmp.lt.s32.totalorder %v4119, 9000
          %vm4632 = vcmp.lt.s32.totalorder %v4120, 9000
          %vm4633 = vcmp.lt.s32.totalorder %v4121, 9000
          %vm4634 = vcmp.lt.s32.totalorder %v4122, 9000
          %vm4635 = vcmp.lt.s32.totalorder %v4123, 9000
          %vm4636 = vcmp.lt.s32.totalorder %v4124, 9000
          %vm4637 = vcmp.lt.s32.totalorder %v4125, 9000
          %vm4638 = vcmp.lt.s32.totalorder %v4126, 9000
          %vm4639 = vcmp.lt.s32.totalorder %v4127, 9000
          %vm4640 = vcmp.lt.s32.totalorder %v4128, 9000
          %vm4641 = vcmp.lt.s32.totalorder %v4129, 9000
          %vm4642 = vcmp.lt.s32.totalorder %v4130, 9000
          %vm4643 = vcmp.lt.s32.totalorder %v4131, 9000
          %vm4644 = vcmp.lt.s32.totalorder %v4132, 9000
          %vm4645 = vcmp.lt.s32.totalorder %v4133, 9000
          %vm4646 = vcmp.lt.s32.totalorder %v4134, 9000
          %vm4647 = vcmp.lt.s32.totalorder %v4135, 9000
          %vm4648 = vcmp.lt.s32.totalorder %v4136, 9000
          %vm4649 = vcmp.lt.s32.totalorder %v4137, 9000
          %vm4650 = vcmp.lt.s32.totalorder %v4138, 9000
          %vm4651 = vcmp.lt.s32.totalorder %v4139, 9000
          %vm4652 = vcmp.lt.s32.totalorder %v4140, 9000
          %vm4653 = vcmp.lt.s32.totalorder %v4141, 9000
          %vm4654 = vcmp.lt.s32.totalorder %v4142, 9000
          %vm4655 = vcmp.lt.s32.totalorder %v4143, 9000
          %vm4656 = vcmp.lt.s32.totalorder %v4144, 9000
          %vm4657 = vcmp.lt.s32.totalorder %v4145, 9000
          %vm4658 = vcmp.lt.s32.totalorder %v4146, 9000
          %vm4659 = vcmp.lt.s32.totalorder %v4147, 9000
          %vm4660 = vcmp.lt.s32.totalorder %v4148, 9000
          %vm4661 = vcmp.lt.s32.totalorder %v4149, 9000
          %vm4662 = vcmp.lt.s32.totalorder %v4150, 9000
          %vm4663 = vcmp.lt.s32.totalorder %v4151, 9000
          %vm4664 = vcmp.lt.s32.totalorder %v4152, 9000
          %vm4665 = vcmp.lt.s32.totalorder %v4153, 9000
          %vm4666 = vcmp.lt.s32.totalorder %v4154, 9000
          %vm4667 = vcmp.lt.s32.totalorder %v4155, 9000
          %vm4668 = vcmp.lt.s32.totalorder %v4156, 9000
          %vm4669 = vcmp.lt.s32.totalorder %v4157, 9000
          %vm4670 = vcmp.lt.s32.totalorder %v4158, 9000
          %vm4671 = vcmp.lt.s32.totalorder %v4159, 9000
          %vm4672 = vcmp.lt.s32.totalorder %v4160, 9000
          %vm4673 = vcmp.lt.s32.totalorder %v4161, 9000
          %vm4674 = vcmp.lt.s32.totalorder %v4162, 9000
          %vm4675 = vcmp.lt.s32.totalorder %v4163, 9000
          %vm4676 = vcmp.lt.s32.totalorder %v4164, 9000
          %vm4677 = vcmp.lt.s32.totalorder %v4165, 9000
          %vm4678 = vcmp.lt.s32.totalorder %v4166, 9000
          %vm4679 = vcmp.lt.s32.totalorder %v4167, 9000
          %vm4680 = vcmp.lt.s32.totalorder %v4168, 9000
          %vm4681 = vcmp.lt.s32.totalorder %v4169, 9000
          %vm4682 = vcmp.lt.s32.totalorder %v4170, 9000
          %vm4683 = vcmp.lt.s32.totalorder %v4171, 9000
          %vm4684 = vcmp.lt.s32.totalorder %v4172, 9000
          %vm4685 = vcmp.lt.s32.totalorder %v4173, 9000
          %vm4686 = vcmp.lt.s32.totalorder %v4174, 9000
          %vm4687 = vcmp.lt.s32.totalorder %v4175, 9000
          %vm4688 = vcmp.lt.s32.totalorder %v4176, 9000
          %vm4689 = vcmp.lt.s32.totalorder %v4177, 9000
          %vm4690 = vcmp.lt.s32.totalorder %v4178, 9000
          %vm4691 = vcmp.lt.s32.totalorder %v4179, 9000
          %vm4692 = vcmp.lt.s32.totalorder %v4180, 9000
          %vm4693 = vcmp.lt.s32.totalorder %v4181, 9000
          %vm4694 = vcmp.lt.s32.totalorder %v4182, 9000
          %vm4695 = vcmp.lt.s32.totalorder %v4183, 9000
          %vm4696 = vcmp.lt.s32.totalorder %v4184, 9000
          %vm4697 = vcmp.lt.s32.totalorder %v4185, 9000
          %vm4698 = vcmp.lt.s32.totalorder %v4186, 9000
          %vm4699 = vcmp.lt.s32.totalorder %v4187, 9000
          %vm4700 = vcmp.lt.s32.totalorder %v4188, 9000
          %vm4701 = vcmp.lt.s32.totalorder %v4189, 9000
          %vm4702 = vcmp.lt.s32.totalorder %v4190, 9000
          %vm4703 = vcmp.lt.s32.totalorder %v4191, 9000
          %vm4704 = vcmp.lt.s32.totalorder %v4192, 9000
          %vm4705 = vcmp.lt.s32.totalorder %v4193, 9000
          %vm4706 = vcmp.lt.s32.totalorder %v4194, 9000
          %vm4707 = vcmp.lt.s32.totalorder %v4195, 9000
          %vm4708 = vcmp.lt.s32.totalorder %v4196, 9000
          %vm4709 = vcmp.lt.s32.totalorder %v4197, 9000
          %vm4710 = vcmp.lt.s32.totalorder %v4198, 9000
          %vm4711 = vcmp.lt.s32.totalorder %v4199, 9000
          %vm4712 = vcmp.lt.s32.totalorder %v4200, 9000
          %vm4713 = vcmp.lt.s32.totalorder %v4201, 9000
          %vm4714 = vcmp.lt.s32.totalorder %v4202, 9000
          %vm4715 = vcmp.lt.s32.totalorder %v4203, 9000
          %vm4716 = vcmp.lt.s32.totalorder %v4204, 9000
          %vm4717 = vcmp.lt.s32.totalorder %v4205, 9000
          %vm4718 = vcmp.lt.s32.totalorder %v4206, 9000
          %vm4719 = vcmp.lt.s32.totalorder %v4207, 9000
          %vm4720 = vcmp.lt.s32.totalorder %v4208, 9000
          %vm4721 = vcmp.lt.s32.totalorder %v4209, 9000
          %vm4722 = vcmp.lt.s32.totalorder %v4210, 9000
          %vm4723 = vcmp.lt.s32.totalorder %v4211, 9000
          %vm4724 = vcmp.lt.s32.totalorder %v4212, 9000
          %vm4725 = vcmp.lt.s32.totalorder %v4213, 9000
          %vm4726 = vcmp.lt.s32.totalorder %v4214, 9000
          %vm4727 = vcmp.lt.s32.totalorder %v4215, 9000
          %vm4728 = vcmp.lt.s32.totalorder %v4216, 9000
          %vm4729 = vcmp.lt.s32.totalorder %v4217, 9000
          %vm4730 = vcmp.lt.s32.totalorder %v4218, 9000
          %vm4731 = vcmp.lt.s32.totalorder %v4219, 9000
          %vm4732 = vcmp.lt.s32.totalorder %v4220, 9000
          %vm4733 = vcmp.lt.s32.totalorder %v4221, 9000
          %vm4734 = vcmp.lt.s32.totalorder %v4222, 9000
          %vm4735 = vcmp.lt.s32.totalorder %v4223, 9000
          %vm4736 = vcmp.lt.s32.totalorder %v4224, 9000
          %vm4737 = vcmp.lt.s32.totalorder %v4225, 9000
          %vm4738 = vcmp.lt.s32.totalorder %v4226, 9000
          %vm4739 = vcmp.lt.s32.totalorder %v4227, 9000
          %vm4740 = vcmp.lt.s32.totalorder %v4228, 9000
          %vm4741 = vcmp.lt.s32.totalorder %v4229, 9000
          %vm4742 = vcmp.lt.s32.totalorder %v4230, 9000
          %vm4743 = vcmp.lt.s32.totalorder %v4231, 9000
          %vm4744 = vcmp.lt.s32.totalorder %v4232, 9000
          %vm4745 = vcmp.lt.s32.totalorder %v4233, 9000
          %vm4746 = vcmp.lt.s32.totalorder %v4234, 9000
          %vm4747 = vcmp.lt.s32.totalorder %v4235, 9000
          %vm4748 = vcmp.lt.s32.totalorder %v4236, 9000
          %vm4749 = vcmp.lt.s32.totalorder %v4237, 9000
          %vm4750 = vcmp.lt.s32.totalorder %v4238, 9000
          %vm4751 = vcmp.lt.s32.totalorder %v4239, 9000
          %vm4752 = vcmp.lt.s32.totalorder %v4240, 9000
          %vm4753 = vcmp.lt.s32.totalorder %v4241, 9000
          %vm4754 = vcmp.lt.s32.totalorder %v4242, 9000
          %vm4755 = vcmp.lt.s32.totalorder %v4243, 9000
          %vm4756 = vcmp.lt.s32.totalorder %v4244, 9000
          %vm4757 = vcmp.lt.s32.totalorder %v4245, 9000
          %vm4758 = vcmp.lt.s32.totalorder %v4246, 9000
          %vm4759 = vcmp.lt.s32.totalorder %v4247, 9000
          %vm4760 = vcmp.lt.s32.totalorder %v4248, 9000
          %vm4761 = vcmp.lt.s32.totalorder %v4249, 9000
          %vm4762 = vcmp.lt.s32.totalorder %v4250, 9000
          %vm4763 = vcmp.lt.s32.totalorder %v4251, 9000
          %vm4764 = vcmp.lt.s32.totalorder %v4252, 9000
          %vm4765 = vcmp.lt.s32.totalorder %v4253, 9000
          %vm4766 = vcmp.lt.s32.totalorder %v4254, 9000
          %vm4767 = vcmp.lt.s32.totalorder %v4255, 9000
          %vm4768 = vcmp.lt.s32.totalorder %v4256, 9000
          %vm4769 = vcmp.lt.s32.totalorder %v4257, 9000
          %vm4770 = vcmp.lt.s32.totalorder %v4258, 9000
          %vm4771 = vcmp.lt.s32.totalorder %v4259, 9000
          %vm4772 = vcmp.lt.s32.totalorder %v4260, 9000
          %vm4773 = vcmp.lt.s32.totalorder %v4261, 9000
          %vm4774 = vcmp.lt.s32.totalorder %v4262, 9000
          %vm4775 = vcmp.lt.s32.totalorder %v4263, 9000
          %vm4776 = vcmp.lt.s32.totalorder %v4264, 9000
          %vm4777 = vcmp.lt.s32.totalorder %v4265, 9000
          %vm4778 = vcmp.lt.s32.totalorder %v4266, 9000
          %vm4779 = vcmp.lt.s32.totalorder %v4267, 9000
          %vm4780 = vcmp.lt.s32.totalorder %v4268, 9000
          %vm4781 = vcmp.lt.s32.totalorder %v4269, 9000
          %vm4782 = vcmp.lt.s32.totalorder %v4270, 9000
          %vm4783 = vcmp.lt.s32.totalorder %v4271, 9000
          %vm4784 = vcmp.lt.s32.totalorder %v4272, 9000
          %vm4785 = vcmp.lt.s32.totalorder %v4273, 9000
          %vm4786 = vcmp.lt.s32.totalorder %v4274, 9000
          %vm4787 = vcmp.lt.s32.totalorder %v4275, 9000
          %vm4788 = vcmp.lt.s32.totalorder %v4276, 9000
          %vm4789 = vcmp.lt.s32.totalorder %v4277, 9000
          %vm4790 = vcmp.lt.s32.totalorder %v4278, 9000
          %vm4791 = vcmp.lt.s32.totalorder %v4279, 9000
          %vm4792 = vcmp.lt.s32.totalorder %v4280, 9000
          %v4793 = vsel %vm4281, %v1194, 0.0
          %v4794 = vsel %vm4281, %v1195, 0.0
          %v4795 = vsel %vm4282, %v1196, 0.0
          %v4796 = vsel %vm4282, %v1197, 0.0
          %v4797 = vsel %vm4283, %v1198, 0.0
          %v4798 = vsel %vm4283, %v1199, 0.0
          %v4799 = vsel %vm4284, %v1200, 0.0
          %v4800 = vsel %vm4284, %v1201, 0.0
          %v4801 = vsel %vm4285, %v1202, 0.0
          %v4802 = vsel %vm4285, %v1203, 0.0
          %v4803 = vsel %vm4286, %v1204, 0.0
          %v4804 = vsel %vm4286, %v1205, 0.0
          %v4805 = vsel %vm4287, %v1206, 0.0
          %v4806 = vsel %vm4287, %v1207, 0.0
          %v4807 = vsel %vm4288, %v1208, 0.0
          %v4808 = vsel %vm4288, %v1209, 0.0
          %v4809 = vsel %vm4289, %v1210, 0.0
          %v4810 = vsel %vm4289, %v1211, 0.0
          %v4811 = vsel %vm4290, %v1212, 0.0
          %v4812 = vsel %vm4290, %v1213, 0.0
          %v4813 = vsel %vm4291, %v1214, 0.0
          %v4814 = vsel %vm4291, %v1215, 0.0
          %v4815 = vsel %vm4292, %v1216, 0.0
          %v4816 = vsel %vm4292, %v1217, 0.0
          %v4817 = vsel %vm4293, %v1218, 0.0
          %v4818 = vsel %vm4293, %v1219, 0.0
          %v4819 = vsel %vm4294, %v1220, 0.0
          %v4820 = vsel %vm4294, %v1221, 0.0
          %v4821 = vsel %vm4295, %v1222, 0.0
          %v4822 = vsel %vm4295, %v1223, 0.0
          %v4823 = vsel %vm4296, %v1224, 0.0
          %v4824 = vsel %vm4296, %v1225, 0.0
          %v4825 = vsel %vm4297, %v1226, 0.0
          %v4826 = vsel %vm4297, %v1227, 0.0
          %v4827 = vsel %vm4298, %v1228, 0.0
          %v4828 = vsel %vm4298, %v1229, 0.0
          %v4829 = vsel %vm4299, %v1230, 0.0
          %v4830 = vsel %vm4299, %v1231, 0.0
          %v4831 = vsel %vm4300, %v1232, 0.0
          %v4832 = vsel %vm4300, %v1233, 0.0
          %v4833 = vsel %vm4301, %v1234, 0.0
          %v4834 = vsel %vm4301, %v1235, 0.0
          %v4835 = vsel %vm4302, %v1236, 0.0
          %v4836 = vsel %vm4302, %v1237, 0.0
          %v4837 = vsel %vm4303, %v1238, 0.0
          %v4838 = vsel %vm4303, %v1239, 0.0
          %v4839 = vsel %vm4304, %v1240, 0.0
          %v4840 = vsel %vm4304, %v1241, 0.0
          %v4841 = vsel %vm4305, %v1242, 0.0
          %v4842 = vsel %vm4305, %v1243, 0.0
          %v4843 = vsel %vm4306, %v1244, 0.0
          %v4844 = vsel %vm4306, %v1245, 0.0
          %v4845 = vsel %vm4307, %v1246, 0.0
          %v4846 = vsel %vm4307, %v1247, 0.0
          %v4847 = vsel %vm4308, %v1248, 0.0
          %v4848 = vsel %vm4308, %v1249, 0.0
          %v4849 = vsel %vm4309, %v1250, 0.0
          %v4850 = vsel %vm4309, %v1251, 0.0
          %v4851 = vsel %vm4310, %v1252, 0.0
          %v4852 = vsel %vm4310, %v1253, 0.0
          %v4853 = vsel %vm4311, %v1254, 0.0
          %v4854 = vsel %vm4311, %v1255, 0.0
          %v4855 = vsel %vm4312, %v1256, 0.0
          %v4856 = vsel %vm4312, %v1257, 0.0
          %v4857 = vsel %vm4313, %v1258, 0.0
          %v4858 = vsel %vm4313, %v1259, 0.0
          %v4859 = vsel %vm4314, %v1260, 0.0
          %v4860 = vsel %vm4314, %v1261, 0.0
          %v4861 = vsel %vm4315, %v1262, 0.0
          %v4862 = vsel %vm4315, %v1263, 0.0
          %v4863 = vsel %vm4316, %v1264, 0.0
          %v4864 = vsel %vm4316, %v1265, 0.0
          %v4865 = vsel %vm4317, %v1266, 0.0
          %v4866 = vsel %vm4317, %v1267, 0.0
          %v4867 = vsel %vm4318, %v1268, 0.0
          %v4868 = vsel %vm4318, %v1269, 0.0
          %v4869 = vsel %vm4319, %v1270, 0.0
          %v4870 = vsel %vm4319, %v1271, 0.0
          %v4871 = vsel %vm4320, %v1272, 0.0
          %v4872 = vsel %vm4320, %v1273, 0.0
          %v4873 = vsel %vm4321, %v1274, 0.0
          %v4874 = vsel %vm4321, %v1275, 0.0
          %v4875 = vsel %vm4322, %v1276, 0.0
          %v4876 = vsel %vm4322, %v1277, 0.0
          %v4877 = vsel %vm4323, %v1278, 0.0
          %v4878 = vsel %vm4323, %v1279, 0.0
          %v4879 = vsel %vm4324, %v1280, 0.0
          %v4880 = vsel %vm4324, %v1281, 0.0
          %v4881 = vsel %vm4325, %v1282, 0.0
          %v4882 = vsel %vm4325, %v1283, 0.0
          %v4883 = vsel %vm4326, %v1284, 0.0
          %v4884 = vsel %vm4326, %v1285, 0.0
          %v4885 = vsel %vm4327, %v1286, 0.0
          %v4886 = vsel %vm4327, %v1287, 0.0
          %v4887 = vsel %vm4328, %v1288, 0.0
          %v4888 = vsel %vm4328, %v1289, 0.0
          %v4889 = vsel %vm4329, %v1290, 0.0
          %v4890 = vsel %vm4329, %v1291, 0.0
          %v4891 = vsel %vm4330, %v1292, 0.0
          %v4892 = vsel %vm4330, %v1293, 0.0
          %v4893 = vsel %vm4331, %v1294, 0.0
          %v4894 = vsel %vm4331, %v1295, 0.0
          %v4895 = vsel %vm4332, %v1296, 0.0
          %v4896 = vsel %vm4332, %v1297, 0.0
          %v4897 = vsel %vm4333, %v1298, 0.0
          %v4898 = vsel %vm4333, %v1299, 0.0
          %v4899 = vsel %vm4334, %v1300, 0.0
          %v4900 = vsel %vm4334, %v1301, 0.0
          %v4901 = vsel %vm4335, %v1302, 0.0
          %v4902 = vsel %vm4335, %v1303, 0.0
          %v4903 = vsel %vm4336, %v1304, 0.0
          %v4904 = vsel %vm4336, %v1305, 0.0
          %v4905 = vsel %vm4337, %v1306, 0.0
          %v4906 = vsel %vm4337, %v1307, 0.0
          %v4907 = vsel %vm4338, %v1308, 0.0
          %v4908 = vsel %vm4338, %v1309, 0.0
          %v4909 = vsel %vm4339, %v1310, 0.0
          %v4910 = vsel %vm4339, %v1311, 0.0
          %v4911 = vsel %vm4340, %v1312, 0.0
          %v4912 = vsel %vm4340, %v1313, 0.0
          %v4913 = vsel %vm4341, %v1314, 0.0
          %v4914 = vsel %vm4341, %v1315, 0.0
          %v4915 = vsel %vm4342, %v1316, 0.0
          %v4916 = vsel %vm4342, %v1317, 0.0
          %v4917 = vsel %vm4343, %v1318, 0.0
          %v4918 = vsel %vm4343, %v1319, 0.0
          %v4919 = vsel %vm4344, %v1320, 0.0
          %v4920 = vsel %vm4344, %v1321, 0.0
          %v4921 = vsel %vm4345, %v1322, 0.0
          %v4922 = vsel %vm4345, %v1323, 0.0
          %v4923 = vsel %vm4346, %v1324, 0.0
          %v4924 = vsel %vm4346, %v1325, 0.0
          %v4925 = vsel %vm4347, %v1326, 0.0
          %v4926 = vsel %vm4347, %v1327, 0.0
          %v4927 = vsel %vm4348, %v1328, 0.0
          %v4928 = vsel %vm4348, %v1329, 0.0
          %v4929 = vsel %vm4349, %v1330, 0.0
          %v4930 = vsel %vm4349, %v1331, 0.0
          %v4931 = vsel %vm4350, %v1332, 0.0
          %v4932 = vsel %vm4350, %v1333, 0.0
          %v4933 = vsel %vm4351, %v1334, 0.0
          %v4934 = vsel %vm4351, %v1335, 0.0
          %v4935 = vsel %vm4352, %v1336, 0.0
          %v4936 = vsel %vm4352, %v1337, 0.0
          %v4937 = vsel %vm4353, %v1338, 0.0
          %v4938 = vsel %vm4353, %v1339, 0.0
          %v4939 = vsel %vm4354, %v1340, 0.0
          %v4940 = vsel %vm4354, %v1341, 0.0
          %v4941 = vsel %vm4355, %v1342, 0.0
          %v4942 = vsel %vm4355, %v1343, 0.0
          %v4943 = vsel %vm4356, %v1344, 0.0
          %v4944 = vsel %vm4356, %v1345, 0.0
          %v4945 = vsel %vm4357, %v1346, 0.0
          %v4946 = vsel %vm4357, %v1347, 0.0
          %v4947 = vsel %vm4358, %v1348, 0.0
          %v4948 = vsel %vm4358, %v1349, 0.0
          %v4949 = vsel %vm4359, %v1350, 0.0
          %v4950 = vsel %vm4359, %v1351, 0.0
          %v4951 = vsel %vm4360, %v1352, 0.0
          %v4952 = vsel %vm4360, %v1353, 0.0
          %v4953 = vsel %vm4361, %v1354, 0.0
          %v4954 = vsel %vm4361, %v1355, 0.0
          %v4955 = vsel %vm4362, %v1356, 0.0
          %v4956 = vsel %vm4362, %v1357, 0.0
          %v4957 = vsel %vm4363, %v1358, 0.0
          %v4958 = vsel %vm4363, %v1359, 0.0
          %v4959 = vsel %vm4364, %v1360, 0.0
          %v4960 = vsel %vm4364, %v1361, 0.0
          %v4961 = vsel %vm4365, %v1362, 0.0
          %v4962 = vsel %vm4365, %v1363, 0.0
          %v4963 = vsel %vm4366, %v1364, 0.0
          %v4964 = vsel %vm4366, %v1365, 0.0
          %v4965 = vsel %vm4367, %v1366, 0.0
          %v4966 = vsel %vm4367, %v1367, 0.0
          %v4967 = vsel %vm4368, %v1368, 0.0
          %v4968 = vsel %vm4368, %v1369, 0.0
          %v4969 = vsel %vm4369, %v1370, 0.0
          %v4970 = vsel %vm4369, %v1371, 0.0
          %v4971 = vsel %vm4370, %v1372, 0.0
          %v4972 = vsel %vm4370, %v1373, 0.0
          %v4973 = vsel %vm4371, %v1374, 0.0
          %v4974 = vsel %vm4371, %v1375, 0.0
          %v4975 = vsel %vm4372, %v1376, 0.0
          %v4976 = vsel %vm4372, %v1377, 0.0
          %v4977 = vsel %vm4373, %v1378, 0.0
          %v4978 = vsel %vm4373, %v1379, 0.0
          %v4979 = vsel %vm4374, %v1380, 0.0
          %v4980 = vsel %vm4374, %v1381, 0.0
          %v4981 = vsel %vm4375, %v1382, 0.0
          %v4982 = vsel %vm4375, %v1383, 0.0
          %v4983 = vsel %vm4376, %v1384, 0.0
          %v4984 = vsel %vm4376, %v1385, 0.0
          %v4985 = vsel %vm4377, %v1386, 0.0
          %v4986 = vsel %vm4377, %v1387, 0.0
          %v4987 = vsel %vm4378, %v1388, 0.0
          %v4988 = vsel %vm4378, %v1389, 0.0
          %v4989 = vsel %vm4379, %v1390, 0.0
          %v4990 = vsel %vm4379, %v1391, 0.0
          %v4991 = vsel %vm4380, %v1392, 0.0
          %v4992 = vsel %vm4380, %v1393, 0.0
          %v4993 = vsel %vm4381, %v1394, 0.0
          %v4994 = vsel %vm4381, %v1395, 0.0
          %v4995 = vsel %vm4382, %v1396, 0.0
          %v4996 = vsel %vm4382, %v1397, 0.0
          %v4997 = vsel %vm4383, %v1398, 0.0
          %v4998 = vsel %vm4383, %v1399, 0.0
          %v4999 = vsel %vm4384, %v1400, 0.0
          %v5000 = vsel %vm4384, %v1401, 0.0
          %v5001 = vsel %vm4385, %v1402, 0.0
          %v5002 = vsel %vm4385, %v1403, 0.0
          %v5003 = vsel %vm4386, %v1404, 0.0
          %v5004 = vsel %vm4386, %v1405, 0.0
          %v5005 = vsel %vm4387, %v1406, 0.0
          %v5006 = vsel %vm4387, %v1407, 0.0
          %v5007 = vsel %vm4388, %v1408, 0.0
          %v5008 = vsel %vm4388, %v1409, 0.0
          %v5009 = vsel %vm4389, %v1410, 0.0
          %v5010 = vsel %vm4389, %v1411, 0.0
          %v5011 = vsel %vm4390, %v1412, 0.0
          %v5012 = vsel %vm4390, %v1413, 0.0
          %v5013 = vsel %vm4391, %v1414, 0.0
          %v5014 = vsel %vm4391, %v1415, 0.0
          %v5015 = vsel %vm4392, %v1416, 0.0
          %v5016 = vsel %vm4392, %v1417, 0.0
          %v5017 = vsel %vm4393, %v1418, 0.0
          %v5018 = vsel %vm4393, %v1419, 0.0
          %v5019 = vsel %vm4394, %v1420, 0.0
          %v5020 = vsel %vm4394, %v1421, 0.0
          %v5021 = vsel %vm4395, %v1422, 0.0
          %v5022 = vsel %vm4395, %v1423, 0.0
          %v5023 = vsel %vm4396, %v1424, 0.0
          %v5024 = vsel %vm4396, %v1425, 0.0
          %v5025 = vsel %vm4397, %v1426, 0.0
          %v5026 = vsel %vm4397, %v1427, 0.0
          %v5027 = vsel %vm4398, %v1428, 0.0
          %v5028 = vsel %vm4398, %v1429, 0.0
          %v5029 = vsel %vm4399, %v1430, 0.0
          %v5030 = vsel %vm4399, %v1431, 0.0
          %v5031 = vsel %vm4400, %v1432, 0.0
          %v5032 = vsel %vm4400, %v1433, 0.0
          %v5033 = vsel %vm4401, %v1434, 0.0
          %v5034 = vsel %vm4401, %v1435, 0.0
          %v5035 = vsel %vm4402, %v1436, 0.0
          %v5036 = vsel %vm4402, %v1437, 0.0
          %v5037 = vsel %vm4403, %v1438, 0.0
          %v5038 = vsel %vm4403, %v1439, 0.0
          %v5039 = vsel %vm4404, %v1440, 0.0
          %v5040 = vsel %vm4404, %v1441, 0.0
          %v5041 = vsel %vm4405, %v1442, 0.0
          %v5042 = vsel %vm4405, %v1443, 0.0
          %v5043 = vsel %vm4406, %v1444, 0.0
          %v5044 = vsel %vm4406, %v1445, 0.0
          %v5045 = vsel %vm4407, %v1446, 0.0
          %v5046 = vsel %vm4407, %v1447, 0.0
          %v5047 = vsel %vm4408, %v1448, 0.0
          %v5048 = vsel %vm4408, %v1449, 0.0
          %v5049 = vsel %vm4409, %v1450, 0.0
          %v5050 = vsel %vm4409, %v1451, 0.0
          %v5051 = vsel %vm4410, %v1452, 0.0
          %v5052 = vsel %vm4410, %v1453, 0.0
          %v5053 = vsel %vm4411, %v1454, 0.0
          %v5054 = vsel %vm4411, %v1455, 0.0
          %v5055 = vsel %vm4412, %v1456, 0.0
          %v5056 = vsel %vm4412, %v1457, 0.0
          %v5057 = vsel %vm4413, %v1458, 0.0
          %v5058 = vsel %vm4413, %v1459, 0.0
          %v5059 = vsel %vm4414, %v1460, 0.0
          %v5060 = vsel %vm4414, %v1461, 0.0
          %v5061 = vsel %vm4415, %v1462, 0.0
          %v5062 = vsel %vm4415, %v1463, 0.0
          %v5063 = vsel %vm4416, %v1464, 0.0
          %v5064 = vsel %vm4416, %v1465, 0.0
          %v5065 = vsel %vm4417, %v1466, 0.0
          %v5066 = vsel %vm4417, %v1467, 0.0
          %v5067 = vsel %vm4418, %v1468, 0.0
          %v5068 = vsel %vm4418, %v1469, 0.0
          %v5069 = vsel %vm4419, %v1470, 0.0
          %v5070 = vsel %vm4419, %v1471, 0.0
          %v5071 = vsel %vm4420, %v1472, 0.0
          %v5072 = vsel %vm4420, %v1473, 0.0
          %v5073 = vsel %vm4421, %v1474, 0.0
          %v5074 = vsel %vm4421, %v1475, 0.0
          %v5075 = vsel %vm4422, %v1476, 0.0
          %v5076 = vsel %vm4422, %v1477, 0.0
          %v5077 = vsel %vm4423, %v1478, 0.0
          %v5078 = vsel %vm4423, %v1479, 0.0
          %v5079 = vsel %vm4424, %v1480, 0.0
          %v5080 = vsel %vm4424, %v1481, 0.0
          %v5081 = vsel %vm4425, %v1482, 0.0
          %v5082 = vsel %vm4425, %v1483, 0.0
          %v5083 = vsel %vm4426, %v1484, 0.0
          %v5084 = vsel %vm4426, %v1485, 0.0
          %v5085 = vsel %vm4427, %v1486, 0.0
          %v5086 = vsel %vm4427, %v1487, 0.0
          %v5087 = vsel %vm4428, %v1488, 0.0
          %v5088 = vsel %vm4428, %v1489, 0.0
          %v5089 = vsel %vm4429, %v1490, 0.0
          %v5090 = vsel %vm4429, %v1491, 0.0
          %v5091 = vsel %vm4430, %v1492, 0.0
          %v5092 = vsel %vm4430, %v1493, 0.0
          %v5093 = vsel %vm4431, %v1494, 0.0
          %v5094 = vsel %vm4431, %v1495, 0.0
          %v5095 = vsel %vm4432, %v1496, 0.0
          %v5096 = vsel %vm4432, %v1497, 0.0
          %v5097 = vsel %vm4433, %v1498, 0.0
          %v5098 = vsel %vm4433, %v1499, 0.0
          %v5099 = vsel %vm4434, %v1500, 0.0
          %v5100 = vsel %vm4434, %v1501, 0.0
          %v5101 = vsel %vm4435, %v1502, 0.0
          %v5102 = vsel %vm4435, %v1503, 0.0
          %v5103 = vsel %vm4436, %v1504, 0.0
          %v5104 = vsel %vm4436, %v1505, 0.0
          %v5105 = vsel %vm4437, %v1506, 0.0
          %v5106 = vsel %vm4437, %v1507, 0.0
          %v5107 = vsel %vm4438, %v1508, 0.0
          %v5108 = vsel %vm4438, %v1509, 0.0
          %v5109 = vsel %vm4439, %v1510, 0.0
          %v5110 = vsel %vm4439, %v1511, 0.0
          %v5111 = vsel %vm4440, %v1512, 0.0
          %v5112 = vsel %vm4440, %v1513, 0.0
          %v5113 = vsel %vm4441, %v1514, 0.0
          %v5114 = vsel %vm4441, %v1515, 0.0
          %v5115 = vsel %vm4442, %v1516, 0.0
          %v5116 = vsel %vm4442, %v1517, 0.0
          %v5117 = vsel %vm4443, %v1518, 0.0
          %v5118 = vsel %vm4443, %v1519, 0.0
          %v5119 = vsel %vm4444, %v1520, 0.0
          %v5120 = vsel %vm4444, %v1521, 0.0
          %v5121 = vsel %vm4445, %v1522, 0.0
          %v5122 = vsel %vm4445, %v1523, 0.0
          %v5123 = vsel %vm4446, %v1524, 0.0
          %v5124 = vsel %vm4446, %v1525, 0.0
          %v5125 = vsel %vm4447, %v1526, 0.0
          %v5126 = vsel %vm4447, %v1527, 0.0
          %v5127 = vsel %vm4448, %v1528, 0.0
          %v5128 = vsel %vm4448, %v1529, 0.0
          %v5129 = vsel %vm4449, %v1530, 0.0
          %v5130 = vsel %vm4449, %v1531, 0.0
          %v5131 = vsel %vm4450, %v1532, 0.0
          %v5132 = vsel %vm4450, %v1533, 0.0
          %v5133 = vsel %vm4451, %v1534, 0.0
          %v5134 = vsel %vm4451, %v1535, 0.0
          %v5135 = vsel %vm4452, %v1536, 0.0
          %v5136 = vsel %vm4452, %v1537, 0.0
          %v5137 = vsel %vm4453, %v1538, 0.0
          %v5138 = vsel %vm4453, %v1539, 0.0
          %v5139 = vsel %vm4454, %v1540, 0.0
          %v5140 = vsel %vm4454, %v1541, 0.0
          %v5141 = vsel %vm4455, %v1542, 0.0
          %v5142 = vsel %vm4455, %v1543, 0.0
          %v5143 = vsel %vm4456, %v1544, 0.0
          %v5144 = vsel %vm4456, %v1545, 0.0
          %v5145 = vsel %vm4457, %v1546, 0.0
          %v5146 = vsel %vm4457, %v1547, 0.0
          %v5147 = vsel %vm4458, %v1548, 0.0
          %v5148 = vsel %vm4458, %v1549, 0.0
          %v5149 = vsel %vm4459, %v1550, 0.0
          %v5150 = vsel %vm4459, %v1551, 0.0
          %v5151 = vsel %vm4460, %v1552, 0.0
          %v5152 = vsel %vm4460, %v1553, 0.0
          %v5153 = vsel %vm4461, %v1554, 0.0
          %v5154 = vsel %vm4461, %v1555, 0.0
          %v5155 = vsel %vm4462, %v1556, 0.0
          %v5156 = vsel %vm4462, %v1557, 0.0
          %v5157 = vsel %vm4463, %v1558, 0.0
          %v5158 = vsel %vm4463, %v1559, 0.0
          %v5159 = vsel %vm4464, %v1560, 0.0
          %v5160 = vsel %vm4464, %v1561, 0.0
          %v5161 = vsel %vm4465, %v1562, 0.0
          %v5162 = vsel %vm4465, %v1563, 0.0
          %v5163 = vsel %vm4466, %v1564, 0.0
          %v5164 = vsel %vm4466, %v1565, 0.0
          %v5165 = vsel %vm4467, %v1566, 0.0
          %v5166 = vsel %vm4467, %v1567, 0.0
          %v5167 = vsel %vm4468, %v1568, 0.0
          %v5168 = vsel %vm4468, %v1569, 0.0
          %v5169 = vsel %vm4469, %v1570, 0.0
          %v5170 = vsel %vm4469, %v1571, 0.0
          %v5171 = vsel %vm4470, %v1572, 0.0
          %v5172 = vsel %vm4470, %v1573, 0.0
          %v5173 = vsel %vm4471, %v1574, 0.0
          %v5174 = vsel %vm4471, %v1575, 0.0
          %v5175 = vsel %vm4472, %v1576, 0.0
          %v5176 = vsel %vm4472, %v1577, 0.0
          %v5177 = vsel %vm4473, %v1578, 0.0
          %v5178 = vsel %vm4473, %v1579, 0.0
          %v5179 = vsel %vm4474, %v1580, 0.0
          %v5180 = vsel %vm4474, %v1581, 0.0
          %v5181 = vsel %vm4475, %v1582, 0.0
          %v5182 = vsel %vm4475, %v1583, 0.0
          %v5183 = vsel %vm4476, %v1584, 0.0
          %v5184 = vsel %vm4476, %v1585, 0.0
          %v5185 = vsel %vm4477, %v1586, 0.0
          %v5186 = vsel %vm4477, %v1587, 0.0
          %v5187 = vsel %vm4478, %v1588, 0.0
          %v5188 = vsel %vm4478, %v1589, 0.0
          %v5189 = vsel %vm4479, %v1590, 0.0
          %v5190 = vsel %vm4479, %v1591, 0.0
          %v5191 = vsel %vm4480, %v1592, 0.0
          %v5192 = vsel %vm4480, %v1593, 0.0
          %v5193 = vsel %vm4481, %v1594, 0.0
          %v5194 = vsel %vm4481, %v1595, 0.0
          %v5195 = vsel %vm4482, %v1596, 0.0
          %v5196 = vsel %vm4482, %v1597, 0.0
          %v5197 = vsel %vm4483, %v1598, 0.0
          %v5198 = vsel %vm4483, %v1599, 0.0
          %v5199 = vsel %vm4484, %v1600, 0.0
          %v5200 = vsel %vm4484, %v1601, 0.0
          %v5201 = vsel %vm4485, %v1602, 0.0
          %v5202 = vsel %vm4485, %v1603, 0.0
          %v5203 = vsel %vm4486, %v1604, 0.0
          %v5204 = vsel %vm4486, %v1605, 0.0
          %v5205 = vsel %vm4487, %v1606, 0.0
          %v5206 = vsel %vm4487, %v1607, 0.0
          %v5207 = vsel %vm4488, %v1608, 0.0
          %v5208 = vsel %vm4488, %v1609, 0.0
          %v5209 = vsel %vm4489, %v1610, 0.0
          %v5210 = vsel %vm4489, %v1611, 0.0
          %v5211 = vsel %vm4490, %v1612, 0.0
          %v5212 = vsel %vm4490, %v1613, 0.0
          %v5213 = vsel %vm4491, %v1614, 0.0
          %v5214 = vsel %vm4491, %v1615, 0.0
          %v5215 = vsel %vm4492, %v1616, 0.0
          %v5216 = vsel %vm4492, %v1617, 0.0
          %v5217 = vsel %vm4493, %v1618, 0.0
          %v5218 = vsel %vm4493, %v1619, 0.0
          %v5219 = vsel %vm4494, %v1620, 0.0
          %v5220 = vsel %vm4494, %v1621, 0.0
          %v5221 = vsel %vm4495, %v1622, 0.0
          %v5222 = vsel %vm4495, %v1623, 0.0
          %v5223 = vsel %vm4496, %v1624, 0.0
          %v5224 = vsel %vm4496, %v1625, 0.0
          %v5225 = vsel %vm4497, %v1626, 0.0
          %v5226 = vsel %vm4497, %v1627, 0.0
          %v5227 = vsel %vm4498, %v1628, 0.0
          %v5228 = vsel %vm4498, %v1629, 0.0
          %v5229 = vsel %vm4499, %v1630, 0.0
          %v5230 = vsel %vm4499, %v1631, 0.0
          %v5231 = vsel %vm4500, %v1632, 0.0
          %v5232 = vsel %vm4500, %v1633, 0.0
          %v5233 = vsel %vm4501, %v1634, 0.0
          %v5234 = vsel %vm4501, %v1635, 0.0
          %v5235 = vsel %vm4502, %v1636, 0.0
          %v5236 = vsel %vm4502, %v1637, 0.0
          %v5237 = vsel %vm4503, %v1638, 0.0
          %v5238 = vsel %vm4503, %v1639, 0.0
          %v5239 = vsel %vm4504, %v1640, 0.0
          %v5240 = vsel %vm4504, %v1641, 0.0
          %v5241 = vsel %vm4505, %v1642, 0.0
          %v5242 = vsel %vm4505, %v1643, 0.0
          %v5243 = vsel %vm4506, %v1644, 0.0
          %v5244 = vsel %vm4506, %v1645, 0.0
          %v5245 = vsel %vm4507, %v1646, 0.0
          %v5246 = vsel %vm4507, %v1647, 0.0
          %v5247 = vsel %vm4508, %v1648, 0.0
          %v5248 = vsel %vm4508, %v1649, 0.0
          %v5249 = vsel %vm4509, %v1650, 0.0
          %v5250 = vsel %vm4509, %v1651, 0.0
          %v5251 = vsel %vm4510, %v1652, 0.0
          %v5252 = vsel %vm4510, %v1653, 0.0
          %v5253 = vsel %vm4511, %v1654, 0.0
          %v5254 = vsel %vm4511, %v1655, 0.0
          %v5255 = vsel %vm4512, %v1656, 0.0
          %v5256 = vsel %vm4512, %v1657, 0.0
          %v5257 = vsel %vm4513, %v1658, 0.0
          %v5258 = vsel %vm4513, %v1659, 0.0
          %v5259 = vsel %vm4514, %v1660, 0.0
          %v5260 = vsel %vm4514, %v1661, 0.0
          %v5261 = vsel %vm4515, %v1662, 0.0
          %v5262 = vsel %vm4515, %v1663, 0.0
          %v5263 = vsel %vm4516, %v1664, 0.0
          %v5264 = vsel %vm4516, %v1665, 0.0
          %v5265 = vsel %vm4517, %v1666, 0.0
          %v5266 = vsel %vm4517, %v1667, 0.0
          %v5267 = vsel %vm4518, %v1668, 0.0
          %v5268 = vsel %vm4518, %v1669, 0.0
          %v5269 = vsel %vm4519, %v1670, 0.0
          %v5270 = vsel %vm4519, %v1671, 0.0
          %v5271 = vsel %vm4520, %v1672, 0.0
          %v5272 = vsel %vm4520, %v1673, 0.0
          %v5273 = vsel %vm4521, %v1674, 0.0
          %v5274 = vsel %vm4521, %v1675, 0.0
          %v5275 = vsel %vm4522, %v1676, 0.0
          %v5276 = vsel %vm4522, %v1677, 0.0
          %v5277 = vsel %vm4523, %v1678, 0.0
          %v5278 = vsel %vm4523, %v1679, 0.0
          %v5279 = vsel %vm4524, %v1680, 0.0
          %v5280 = vsel %vm4524, %v1681, 0.0
          %v5281 = vsel %vm4525, %v1682, 0.0
          %v5282 = vsel %vm4525, %v1683, 0.0
          %v5283 = vsel %vm4526, %v1684, 0.0
          %v5284 = vsel %vm4526, %v1685, 0.0
          %v5285 = vsel %vm4527, %v1686, 0.0
          %v5286 = vsel %vm4527, %v1687, 0.0
          %v5287 = vsel %vm4528, %v1688, 0.0
          %v5288 = vsel %vm4528, %v1689, 0.0
          %v5289 = vsel %vm4529, %v1690, 0.0
          %v5290 = vsel %vm4529, %v1691, 0.0
          %v5291 = vsel %vm4530, %v1692, 0.0
          %v5292 = vsel %vm4530, %v1693, 0.0
          %v5293 = vsel %vm4531, %v1694, 0.0
          %v5294 = vsel %vm4531, %v1695, 0.0
          %v5295 = vsel %vm4532, %v1696, 0.0
          %v5296 = vsel %vm4532, %v1697, 0.0
          %v5297 = vsel %vm4533, %v1698, 0.0
          %v5298 = vsel %vm4533, %v1699, 0.0
          %v5299 = vsel %vm4534, %v1700, 0.0
          %v5300 = vsel %vm4534, %v1701, 0.0
          %v5301 = vsel %vm4535, %v1702, 0.0
          %v5302 = vsel %vm4535, %v1703, 0.0
          %v5303 = vsel %vm4536, %v1704, 0.0
          %v5304 = vsel %vm4536, %v1705, 0.0
          %v5305 = vsel %vm4537, %v1706, 0.0
          %v5306 = vsel %vm4537, %v1707, 0.0
          %v5307 = vsel %vm4538, %v1708, 0.0
          %v5308 = vsel %vm4538, %v1709, 0.0
          %v5309 = vsel %vm4539, %v1710, 0.0
          %v5310 = vsel %vm4539, %v1711, 0.0
          %v5311 = vsel %vm4540, %v1712, 0.0
          %v5312 = vsel %vm4540, %v1713, 0.0
          %v5313 = vsel %vm4541, %v1714, 0.0
          %v5314 = vsel %vm4541, %v1715, 0.0
          %v5315 = vsel %vm4542, %v1716, 0.0
          %v5316 = vsel %vm4542, %v1717, 0.0
          %v5317 = vsel %vm4543, %v1718, 0.0
          %v5318 = vsel %vm4543, %v1719, 0.0
          %v5319 = vsel %vm4544, %v1720, 0.0
          %v5320 = vsel %vm4544, %v1721, 0.0
          %v5321 = vsel %vm4545, %v1722, 0.0
          %v5322 = vsel %vm4545, %v1723, 0.0
          %v5323 = vsel %vm4546, %v1724, 0.0
          %v5324 = vsel %vm4546, %v1725, 0.0
          %v5325 = vsel %vm4547, %v1726, 0.0
          %v5326 = vsel %vm4547, %v1727, 0.0
          %v5327 = vsel %vm4548, %v1728, 0.0
          %v5328 = vsel %vm4548, %v1729, 0.0
          %v5329 = vsel %vm4549, %v1730, 0.0
          %v5330 = vsel %vm4549, %v1731, 0.0
          %v5331 = vsel %vm4550, %v1732, 0.0
          %v5332 = vsel %vm4550, %v1733, 0.0
          %v5333 = vsel %vm4551, %v1734, 0.0
          %v5334 = vsel %vm4551, %v1735, 0.0
          %v5335 = vsel %vm4552, %v1736, 0.0
          %v5336 = vsel %vm4552, %v1737, 0.0
          %v5337 = vsel %vm4553, %v1738, 0.0
          %v5338 = vsel %vm4553, %v1739, 0.0
          %v5339 = vsel %vm4554, %v1740, 0.0
          %v5340 = vsel %vm4554, %v1741, 0.0
          %v5341 = vsel %vm4555, %v1742, 0.0
          %v5342 = vsel %vm4555, %v1743, 0.0
          %v5343 = vsel %vm4556, %v1744, 0.0
          %v5344 = vsel %vm4556, %v1745, 0.0
          %v5345 = vsel %vm4557, %v1746, 0.0
          %v5346 = vsel %vm4557, %v1747, 0.0
          %v5347 = vsel %vm4558, %v1748, 0.0
          %v5348 = vsel %vm4558, %v1749, 0.0
          %v5349 = vsel %vm4559, %v1750, 0.0
          %v5350 = vsel %vm4559, %v1751, 0.0
          %v5351 = vsel %vm4560, %v1752, 0.0
          %v5352 = vsel %vm4560, %v1753, 0.0
          %v5353 = vsel %vm4561, %v1754, 0.0
          %v5354 = vsel %vm4561, %v1755, 0.0
          %v5355 = vsel %vm4562, %v1756, 0.0
          %v5356 = vsel %vm4562, %v1757, 0.0
          %v5357 = vsel %vm4563, %v1758, 0.0
          %v5358 = vsel %vm4563, %v1759, 0.0
          %v5359 = vsel %vm4564, %v1760, 0.0
          %v5360 = vsel %vm4564, %v1761, 0.0
          %v5361 = vsel %vm4565, %v1762, 0.0
          %v5362 = vsel %vm4565, %v1763, 0.0
          %v5363 = vsel %vm4566, %v1764, 0.0
          %v5364 = vsel %vm4566, %v1765, 0.0
          %v5365 = vsel %vm4567, %v1766, 0.0
          %v5366 = vsel %vm4567, %v1767, 0.0
          %v5367 = vsel %vm4568, %v1768, 0.0
          %v5368 = vsel %vm4568, %v1769, 0.0
          %v5369 = vsel %vm4569, %v1770, 0.0
          %v5370 = vsel %vm4569, %v1771, 0.0
          %v5371 = vsel %vm4570, %v1772, 0.0
          %v5372 = vsel %vm4570, %v1773, 0.0
          %v5373 = vsel %vm4571, %v1774, 0.0
          %v5374 = vsel %vm4571, %v1775, 0.0
          %v5375 = vsel %vm4572, %v1776, 0.0
          %v5376 = vsel %vm4572, %v1777, 0.0
          %v5377 = vsel %vm4573, %v1778, 0.0
          %v5378 = vsel %vm4573, %v1779, 0.0
          %v5379 = vsel %vm4574, %v1780, 0.0
          %v5380 = vsel %vm4574, %v1781, 0.0
          %v5381 = vsel %vm4575, %v1782, 0.0
          %v5382 = vsel %vm4575, %v1783, 0.0
          %v5383 = vsel %vm4576, %v1784, 0.0
          %v5384 = vsel %vm4576, %v1785, 0.0
          %v5385 = vsel %vm4577, %v1786, 0.0
          %v5386 = vsel %vm4577, %v1787, 0.0
          %v5387 = vsel %vm4578, %v1788, 0.0
          %v5388 = vsel %vm4578, %v1789, 0.0
          %v5389 = vsel %vm4579, %v1790, 0.0
          %v5390 = vsel %vm4579, %v1791, 0.0
          %v5391 = vsel %vm4580, %v1792, 0.0
          %v5392 = vsel %vm4580, %v1793, 0.0
          %v5393 = vsel %vm4581, %v1794, 0.0
          %v5394 = vsel %vm4581, %v1795, 0.0
          %v5395 = vsel %vm4582, %v1796, 0.0
          %v5396 = vsel %vm4582, %v1797, 0.0
          %v5397 = vsel %vm4583, %v1798, 0.0
          %v5398 = vsel %vm4583, %v1799, 0.0
          %v5399 = vsel %vm4584, %v1800, 0.0
          %v5400 = vsel %vm4584, %v1801, 0.0
          %v5401 = vsel %vm4585, %v1802, 0.0
          %v5402 = vsel %vm4585, %v1803, 0.0
          %v5403 = vsel %vm4586, %v1804, 0.0
          %v5404 = vsel %vm4586, %v1805, 0.0
          %v5405 = vsel %vm4587, %v1806, 0.0
          %v5406 = vsel %vm4587, %v1807, 0.0
          %v5407 = vsel %vm4588, %v1808, 0.0
          %v5408 = vsel %vm4588, %v1809, 0.0
          %v5409 = vsel %vm4589, %v1810, 0.0
          %v5410 = vsel %vm4589, %v1811, 0.0
          %v5411 = vsel %vm4590, %v1812, 0.0
          %v5412 = vsel %vm4590, %v1813, 0.0
          %v5413 = vsel %vm4591, %v1814, 0.0
          %v5414 = vsel %vm4591, %v1815, 0.0
          %v5415 = vsel %vm4592, %v1816, 0.0
          %v5416 = vsel %vm4592, %v1817, 0.0
          %v5417 = vsel %vm4593, %v1818, 0.0
          %v5418 = vsel %vm4593, %v1819, 0.0
          %v5419 = vsel %vm4594, %v1820, 0.0
          %v5420 = vsel %vm4594, %v1821, 0.0
          %v5421 = vsel %vm4595, %v1822, 0.0
          %v5422 = vsel %vm4595, %v1823, 0.0
          %v5423 = vsel %vm4596, %v1824, 0.0
          %v5424 = vsel %vm4596, %v1825, 0.0
          %v5425 = vsel %vm4597, %v1826, 0.0
          %v5426 = vsel %vm4597, %v1827, 0.0
          %v5427 = vsel %vm4598, %v1828, 0.0
          %v5428 = vsel %vm4598, %v1829, 0.0
          %v5429 = vsel %vm4599, %v1830, 0.0
          %v5430 = vsel %vm4599, %v1831, 0.0
          %v5431 = vsel %vm4600, %v1832, 0.0
          %v5432 = vsel %vm4600, %v1833, 0.0
          %v5433 = vsel %vm4601, %v1834, 0.0
          %v5434 = vsel %vm4601, %v1835, 0.0
          %v5435 = vsel %vm4602, %v1836, 0.0
          %v5436 = vsel %vm4602, %v1837, 0.0
          %v5437 = vsel %vm4603, %v1838, 0.0
          %v5438 = vsel %vm4603, %v1839, 0.0
          %v5439 = vsel %vm4604, %v1840, 0.0
          %v5440 = vsel %vm4604, %v1841, 0.0
          %v5441 = vsel %vm4605, %v1842, 0.0
          %v5442 = vsel %vm4605, %v1843, 0.0
          %v5443 = vsel %vm4606, %v1844, 0.0
          %v5444 = vsel %vm4606, %v1845, 0.0
          %v5445 = vsel %vm4607, %v1846, 0.0
          %v5446 = vsel %vm4607, %v1847, 0.0
          %v5447 = vsel %vm4608, %v1848, 0.0
          %v5448 = vsel %vm4608, %v1849, 0.0
          %v5449 = vsel %vm4609, %v1850, 0.0
          %v5450 = vsel %vm4609, %v1851, 0.0
          %v5451 = vsel %vm4610, %v1852, 0.0
          %v5452 = vsel %vm4610, %v1853, 0.0
          %v5453 = vsel %vm4611, %v1854, 0.0
          %v5454 = vsel %vm4611, %v1855, 0.0
          %v5455 = vsel %vm4612, %v1856, 0.0
          %v5456 = vsel %vm4612, %v1857, 0.0
          %v5457 = vsel %vm4613, %v1858, 0.0
          %v5458 = vsel %vm4613, %v1859, 0.0
          %v5459 = vsel %vm4614, %v1860, 0.0
          %v5460 = vsel %vm4614, %v1861, 0.0
          %v5461 = vsel %vm4615, %v1862, 0.0
          %v5462 = vsel %vm4615, %v1863, 0.0
          %v5463 = vsel %vm4616, %v1864, 0.0
          %v5464 = vsel %vm4616, %v1865, 0.0
          %v5465 = vsel %vm4617, %v1866, 0.0
          %v5466 = vsel %vm4617, %v1867, 0.0
          %v5467 = vsel %vm4618, %v1868, 0.0
          %v5468 = vsel %vm4618, %v1869, 0.0
          %v5469 = vsel %vm4619, %v1870, 0.0
          %v5470 = vsel %vm4619, %v1871, 0.0
          %v5471 = vsel %vm4620, %v1872, 0.0
          %v5472 = vsel %vm4620, %v1873, 0.0
          %v5473 = vsel %vm4621, %v1874, 0.0
          %v5474 = vsel %vm4621, %v1875, 0.0
          %v5475 = vsel %vm4622, %v1876, 0.0
          %v5476 = vsel %vm4622, %v1877, 0.0
          %v5477 = vsel %vm4623, %v1878, 0.0
          %v5478 = vsel %vm4623, %v1879, 0.0
          %v5479 = vsel %vm4624, %v1880, 0.0
          %v5480 = vsel %vm4624, %v1881, 0.0
          %v5481 = vsel %vm4625, %v1882, 0.0
          %v5482 = vsel %vm4625, %v1883, 0.0
          %v5483 = vsel %vm4626, %v1884, 0.0
          %v5484 = vsel %vm4626, %v1885, 0.0
          %v5485 = vsel %vm4627, %v1886, 0.0
          %v5486 = vsel %vm4627, %v1887, 0.0
          %v5487 = vsel %vm4628, %v1888, 0.0
          %v5488 = vsel %vm4628, %v1889, 0.0
          %v5489 = vsel %vm4629, %v1890, 0.0
          %v5490 = vsel %vm4629, %v1891, 0.0
          %v5491 = vsel %vm4630, %v1892, 0.0
          %v5492 = vsel %vm4630, %v1893, 0.0
          %v5493 = vsel %vm4631, %v1894, 0.0
          %v5494 = vsel %vm4631, %v1895, 0.0
          %v5495 = vsel %vm4632, %v1896, 0.0
          %v5496 = vsel %vm4632, %v1897, 0.0
          %v5497 = vsel %vm4633, %v1898, 0.0
          %v5498 = vsel %vm4633, %v1899, 0.0
          %v5499 = vsel %vm4634, %v1900, 0.0
          %v5500 = vsel %vm4634, %v1901, 0.0
          %v5501 = vsel %vm4635, %v1902, 0.0
          %v5502 = vsel %vm4635, %v1903, 0.0
          %v5503 = vsel %vm4636, %v1904, 0.0
          %v5504 = vsel %vm4636, %v1905, 0.0
          %v5505 = vsel %vm4637, %v1906, 0.0
          %v5506 = vsel %vm4637, %v1907, 0.0
          %v5507 = vsel %vm4638, %v1908, 0.0
          %v5508 = vsel %vm4638, %v1909, 0.0
          %v5509 = vsel %vm4639, %v1910, 0.0
          %v5510 = vsel %vm4639, %v1911, 0.0
          %v5511 = vsel %vm4640, %v1912, 0.0
          %v5512 = vsel %vm4640, %v1913, 0.0
          %v5513 = vsel %vm4641, %v1914, 0.0
          %v5514 = vsel %vm4641, %v1915, 0.0
          %v5515 = vsel %vm4642, %v1916, 0.0
          %v5516 = vsel %vm4642, %v1917, 0.0
          %v5517 = vsel %vm4643, %v1918, 0.0
          %v5518 = vsel %vm4643, %v1919, 0.0
          %v5519 = vsel %vm4644, %v1920, 0.0
          %v5520 = vsel %vm4644, %v1921, 0.0
          %v5521 = vsel %vm4645, %v1922, 0.0
          %v5522 = vsel %vm4645, %v1923, 0.0
          %v5523 = vsel %vm4646, %v1924, 0.0
          %v5524 = vsel %vm4646, %v1925, 0.0
          %v5525 = vsel %vm4647, %v1926, 0.0
          %v5526 = vsel %vm4647, %v1927, 0.0
          %v5527 = vsel %vm4648, %v1928, 0.0
          %v5528 = vsel %vm4648, %v1929, 0.0
          %v5529 = vsel %vm4649, %v1930, 0.0
          %v5530 = vsel %vm4649, %v1931, 0.0
          %v5531 = vsel %vm4650, %v1932, 0.0
          %v5532 = vsel %vm4650, %v1933, 0.0
          %v5533 = vsel %vm4651, %v1934, 0.0
          %v5534 = vsel %vm4651, %v1935, 0.0
          %v5535 = vsel %vm4652, %v1936, 0.0
          %v5536 = vsel %vm4652, %v1937, 0.0
          %v5537 = vsel %vm4653, %v1938, 0.0
          %v5538 = vsel %vm4653, %v1939, 0.0
          %v5539 = vsel %vm4654, %v1940, 0.0
          %v5540 = vsel %vm4654, %v1941, 0.0
          %v5541 = vsel %vm4655, %v1942, 0.0
          %v5542 = vsel %vm4655, %v1943, 0.0
          %v5543 = vsel %vm4656, %v1944, 0.0
          %v5544 = vsel %vm4656, %v1945, 0.0
          %v5545 = vsel %vm4657, %v1946, 0.0
          %v5546 = vsel %vm4657, %v1947, 0.0
          %v5547 = vsel %vm4658, %v1948, 0.0
          %v5548 = vsel %vm4658, %v1949, 0.0
          %v5549 = vsel %vm4659, %v1950, 0.0
          %v5550 = vsel %vm4659, %v1951, 0.0
          %v5551 = vsel %vm4660, %v1952, 0.0
          %v5552 = vsel %vm4660, %v1953, 0.0
          %v5553 = vsel %vm4661, %v1954, 0.0
          %v5554 = vsel %vm4661, %v1955, 0.0
          %v5555 = vsel %vm4662, %v1956, 0.0
          %v5556 = vsel %vm4662, %v1957, 0.0
          %v5557 = vsel %vm4663, %v1958, 0.0
          %v5558 = vsel %vm4663, %v1959, 0.0
          %v5559 = vsel %vm4664, %v1960, 0.0
          %v5560 = vsel %vm4664, %v1961, 0.0
          %v5561 = vsel %vm4665, %v1962, 0.0
          %v5562 = vsel %vm4665, %v1963, 0.0
          %v5563 = vsel %vm4666, %v1964, 0.0
          %v5564 = vsel %vm4666, %v1965, 0.0
          %v5565 = vsel %vm4667, %v1966, 0.0
          %v5566 = vsel %vm4667, %v1967, 0.0
          %v5567 = vsel %vm4668, %v1968, 0.0
          %v5568 = vsel %vm4668, %v1969, 0.0
          %v5569 = vsel %vm4669, %v1970, 0.0
          %v5570 = vsel %vm4669, %v1971, 0.0
          %v5571 = vsel %vm4670, %v1972, 0.0
          %v5572 = vsel %vm4670, %v1973, 0.0
          %v5573 = vsel %vm4671, %v1974, 0.0
          %v5574 = vsel %vm4671, %v1975, 0.0
          %v5575 = vsel %vm4672, %v1976, 0.0
          %v5576 = vsel %vm4672, %v1977, 0.0
          %v5577 = vsel %vm4673, %v1978, 0.0
          %v5578 = vsel %vm4673, %v1979, 0.0
          %v5579 = vsel %vm4674, %v1980, 0.0
          %v5580 = vsel %vm4674, %v1981, 0.0
          %v5581 = vsel %vm4675, %v1982, 0.0
          %v5582 = vsel %vm4675, %v1983, 0.0
          %v5583 = vsel %vm4676, %v1984, 0.0
          %v5584 = vsel %vm4676, %v1985, 0.0
          %v5585 = vsel %vm4677, %v1986, 0.0
          %v5586 = vsel %vm4677, %v1987, 0.0
          %v5587 = vsel %vm4678, %v1988, 0.0
          %v5588 = vsel %vm4678, %v1989, 0.0
          %v5589 = vsel %vm4679, %v1990, 0.0
          %v5590 = vsel %vm4679, %v1991, 0.0
          %v5591 = vsel %vm4680, %v1992, 0.0
          %v5592 = vsel %vm4680, %v1993, 0.0
          %v5593 = vsel %vm4681, %v1994, 0.0
          %v5594 = vsel %vm4681, %v1995, 0.0
          %v5595 = vsel %vm4682, %v1996, 0.0
          %v5596 = vsel %vm4682, %v1997, 0.0
          %v5597 = vsel %vm4683, %v1998, 0.0
          %v5598 = vsel %vm4683, %v1999, 0.0
          %v5599 = vsel %vm4684, %v2000, 0.0
          %v5600 = vsel %vm4684, %v2001, 0.0
          %v5601 = vsel %vm4685, %v2002, 0.0
          %v5602 = vsel %vm4685, %v2003, 0.0
          %v5603 = vsel %vm4686, %v2004, 0.0
          %v5604 = vsel %vm4686, %v2005, 0.0
          %v5605 = vsel %vm4687, %v2006, 0.0
          %v5606 = vsel %vm4687, %v2007, 0.0
          %v5607 = vsel %vm4688, %v2008, 0.0
          %v5608 = vsel %vm4688, %v2009, 0.0
          %v5609 = vsel %vm4689, %v2010, 0.0
          %v5610 = vsel %vm4689, %v2011, 0.0
          %v5611 = vsel %vm4690, %v2012, 0.0
          %v5612 = vsel %vm4690, %v2013, 0.0
          %v5613 = vsel %vm4691, %v2014, 0.0
          %v5614 = vsel %vm4691, %v2015, 0.0
          %v5615 = vsel %vm4692, %v2016, 0.0
          %v5616 = vsel %vm4692, %v2017, 0.0
          %v5617 = vsel %vm4693, %v2018, 0.0
          %v5618 = vsel %vm4693, %v2019, 0.0
          %v5619 = vsel %vm4694, %v2020, 0.0
          %v5620 = vsel %vm4694, %v2021, 0.0
          %v5621 = vsel %vm4695, %v2022, 0.0
          %v5622 = vsel %vm4695, %v2023, 0.0
          %v5623 = vsel %vm4696, %v2024, 0.0
          %v5624 = vsel %vm4696, %v2025, 0.0
          %v5625 = vsel %vm4697, %v2026, 0.0
          %v5626 = vsel %vm4697, %v2027, 0.0
          %v5627 = vsel %vm4698, %v2028, 0.0
          %v5628 = vsel %vm4698, %v2029, 0.0
          %v5629 = vsel %vm4699, %v2030, 0.0
          %v5630 = vsel %vm4699, %v2031, 0.0
          %v5631 = vsel %vm4700, %v2032, 0.0
          %v5632 = vsel %vm4700, %v2033, 0.0
          %v5633 = vsel %vm4701, %v2034, 0.0
          %v5634 = vsel %vm4701, %v2035, 0.0
          %v5635 = vsel %vm4702, %v2036, 0.0
          %v5636 = vsel %vm4702, %v2037, 0.0
          %v5637 = vsel %vm4703, %v2038, 0.0
          %v5638 = vsel %vm4703, %v2039, 0.0
          %v5639 = vsel %vm4704, %v2040, 0.0
          %v5640 = vsel %vm4704, %v2041, 0.0
          %v5641 = vsel %vm4705, %v2042, 0.0
          %v5642 = vsel %vm4705, %v2043, 0.0
          %v5643 = vsel %vm4706, %v2044, 0.0
          %v5644 = vsel %vm4706, %v2045, 0.0
          %v5645 = vsel %vm4707, %v2046, 0.0
          %v5646 = vsel %vm4707, %v2047, 0.0
          %v5647 = vsel %vm4708, %v2048, 0.0
          %v5648 = vsel %vm4708, %v2049, 0.0
          %v5649 = vsel %vm4709, %v2050, 0.0
          %v5650 = vsel %vm4709, %v2051, 0.0
          %v5651 = vsel %vm4710, %v2052, 0.0
          %v5652 = vsel %vm4710, %v2053, 0.0
          %v5653 = vsel %vm4711, %v2054, 0.0
          %v5654 = vsel %vm4711, %v2055, 0.0
          %v5655 = vsel %vm4712, %v2056, 0.0
          %v5656 = vsel %vm4712, %v2057, 0.0
          %v5657 = vsel %vm4713, %v2058, 0.0
          %v5658 = vsel %vm4713, %v2059, 0.0
          %v5659 = vsel %vm4714, %v2060, 0.0
          %v5660 = vsel %vm4714, %v2061, 0.0
          %v5661 = vsel %vm4715, %v2062, 0.0
          %v5662 = vsel %vm4715, %v2063, 0.0
          %v5663 = vsel %vm4716, %v2064, 0.0
          %v5664 = vsel %vm4716, %v2065, 0.0
          %v5665 = vsel %vm4717, %v2066, 0.0
          %v5666 = vsel %vm4717, %v2067, 0.0
          %v5667 = vsel %vm4718, %v2068, 0.0
          %v5668 = vsel %vm4718, %v2069, 0.0
          %v5669 = vsel %vm4719, %v2070, 0.0
          %v5670 = vsel %vm4719, %v2071, 0.0
          %v5671 = vsel %vm4720, %v2072, 0.0
          %v5672 = vsel %vm4720, %v2073, 0.0
          %v5673 = vsel %vm4721, %v2074, 0.0
          %v5674 = vsel %vm4721, %v2075, 0.0
          %v5675 = vsel %vm4722, %v2076, 0.0
          %v5676 = vsel %vm4722, %v2077, 0.0
          %v5677 = vsel %vm4723, %v2078, 0.0
          %v5678 = vsel %vm4723, %v2079, 0.0
          %v5679 = vsel %vm4724, %v2080, 0.0
          %v5680 = vsel %vm4724, %v2081, 0.0
          %v5681 = vsel %vm4725, %v2082, 0.0
          %v5682 = vsel %vm4725, %v2083, 0.0
          %v5683 = vsel %vm4726, %v2084, 0.0
          %v5684 = vsel %vm4726, %v2085, 0.0
          %v5685 = vsel %vm4727, %v2086, 0.0
          %v5686 = vsel %vm4727, %v2087, 0.0
          %v5687 = vsel %vm4728, %v2088, 0.0
          %v5688 = vsel %vm4728, %v2089, 0.0
          %v5689 = vsel %vm4729, %v2090, 0.0
          %v5690 = vsel %vm4729, %v2091, 0.0
          %v5691 = vsel %vm4730, %v2092, 0.0
          %v5692 = vsel %vm4730, %v2093, 0.0
          %v5693 = vsel %vm4731, %v2094, 0.0
          %v5694 = vsel %vm4731, %v2095, 0.0
          %v5695 = vsel %vm4732, %v2096, 0.0
          %v5696 = vsel %vm4732, %v2097, 0.0
          %v5697 = vsel %vm4733, %v2098, 0.0
          %v5698 = vsel %vm4733, %v2099, 0.0
          %v5699 = vsel %vm4734, %v2100, 0.0
          %v5700 = vsel %vm4734, %v2101, 0.0
          %v5701 = vsel %vm4735, %v2102, 0.0
          %v5702 = vsel %vm4735, %v2103, 0.0
          %v5703 = vsel %vm4736, %v2104, 0.0
          %v5704 = vsel %vm4736, %v2105, 0.0
          %v5705 = vsel %vm4737, %v2106, 0.0
          %v5706 = vsel %vm4737, %v2107, 0.0
          %v5707 = vsel %vm4738, %v2108, 0.0
          %v5708 = vsel %vm4738, %v2109, 0.0
          %v5709 = vsel %vm4739, %v2110, 0.0
          %v5710 = vsel %vm4739, %v2111, 0.0
          %v5711 = vsel %vm4740, %v2112, 0.0
          %v5712 = vsel %vm4740, %v2113, 0.0
          %v5713 = vsel %vm4741, %v2114, 0.0
          %v5714 = vsel %vm4741, %v2115, 0.0
          %v5715 = vsel %vm4742, %v2116, 0.0
          %v5716 = vsel %vm4742, %v2117, 0.0
          %v5717 = vsel %vm4743, %v2118, 0.0
          %v5718 = vsel %vm4743, %v2119, 0.0
          %v5719 = vsel %vm4744, %v2120, 0.0
          %v5720 = vsel %vm4744, %v2121, 0.0
          %v5721 = vsel %vm4745, %v2122, 0.0
          %v5722 = vsel %vm4745, %v2123, 0.0
          %v5723 = vsel %vm4746, %v2124, 0.0
          %v5724 = vsel %vm4746, %v2125, 0.0
          %v5725 = vsel %vm4747, %v2126, 0.0
          %v5726 = vsel %vm4747, %v2127, 0.0
          %v5727 = vsel %vm4748, %v2128, 0.0
          %v5728 = vsel %vm4748, %v2129, 0.0
          %v5729 = vsel %vm4749, %v2130, 0.0
          %v5730 = vsel %vm4749, %v2131, 0.0
          %v5731 = vsel %vm4750, %v2132, 0.0
          %v5732 = vsel %vm4750, %v2133, 0.0
          %v5733 = vsel %vm4751, %v2134, 0.0
          %v5734 = vsel %vm4751, %v2135, 0.0
          %v5735 = vsel %vm4752, %v2136, 0.0
          %v5736 = vsel %vm4752, %v2137, 0.0
          %v5737 = vsel %vm4753, %v2138, 0.0
          %v5738 = vsel %vm4753, %v2139, 0.0
          %v5739 = vsel %vm4754, %v2140, 0.0
          %v5740 = vsel %vm4754, %v2141, 0.0
          %v5741 = vsel %vm4755, %v2142, 0.0
          %v5742 = vsel %vm4755, %v2143, 0.0
          %v5743 = vsel %vm4756, %v2144, 0.0
          %v5744 = vsel %vm4756, %v2145, 0.0
          %v5745 = vsel %vm4757, %v2146, 0.0
          %v5746 = vsel %vm4757, %v2147, 0.0
          %v5747 = vsel %vm4758, %v2148, 0.0
          %v5748 = vsel %vm4758, %v2149, 0.0
          %v5749 = vsel %vm4759, %v2150, 0.0
          %v5750 = vsel %vm4759, %v2151, 0.0
          %v5751 = vsel %vm4760, %v2152, 0.0
          %v5752 = vsel %vm4760, %v2153, 0.0
          %v5753 = vsel %vm4761, %v2154, 0.0
          %v5754 = vsel %vm4761, %v2155, 0.0
          %v5755 = vsel %vm4762, %v2156, 0.0
          %v5756 = vsel %vm4762, %v2157, 0.0
          %v5757 = vsel %vm4763, %v2158, 0.0
          %v5758 = vsel %vm4763, %v2159, 0.0
          %v5759 = vsel %vm4764, %v2160, 0.0
          %v5760 = vsel %vm4764, %v2161, 0.0
          %v5761 = vsel %vm4765, %v2162, 0.0
          %v5762 = vsel %vm4765, %v2163, 0.0
          %v5763 = vsel %vm4766, %v2164, 0.0
          %v5764 = vsel %vm4766, %v2165, 0.0
          %v5765 = vsel %vm4767, %v2166, 0.0
          %v5766 = vsel %vm4767, %v2167, 0.0
          %v5767 = vsel %vm4768, %v2168, 0.0
          %v5768 = vsel %vm4768, %v2169, 0.0
          %v5769 = vsel %vm4769, %v2170, 0.0
          %v5770 = vsel %vm4769, %v2171, 0.0
          %v5771 = vsel %vm4770, %v2172, 0.0
          %v5772 = vsel %vm4770, %v2173, 0.0
          %v5773 = vsel %vm4771, %v2174, 0.0
          %v5774 = vsel %vm4771, %v2175, 0.0
          %v5775 = vsel %vm4772, %v2176, 0.0
          %v5776 = vsel %vm4772, %v2177, 0.0
          %v5777 = vsel %vm4773, %v2178, 0.0
          %v5778 = vsel %vm4773, %v2179, 0.0
          %v5779 = vsel %vm4774, %v2180, 0.0
          %v5780 = vsel %vm4774, %v2181, 0.0
          %v5781 = vsel %vm4775, %v2182, 0.0
          %v5782 = vsel %vm4775, %v2183, 0.0
          %v5783 = vsel %vm4776, %v2184, 0.0
          %v5784 = vsel %vm4776, %v2185, 0.0
          %v5785 = vsel %vm4777, %v2186, 0.0
          %v5786 = vsel %vm4777, %v2187, 0.0
          %v5787 = vsel %vm4778, %v2188, 0.0
          %v5788 = vsel %vm4778, %v2189, 0.0
          %v5789 = vsel %vm4779, %v2190, 0.0
          %v5790 = vsel %vm4779, %v2191, 0.0
          %v5791 = vsel %vm4780, %v2192, 0.0
          %v5792 = vsel %vm4780, %v2193, 0.0
          %v5793 = vsel %vm4781, %v2194, 0.0
          %v5794 = vsel %vm4781, %v2195, 0.0
          %v5795 = vsel %vm4782, %v2196, 0.0
          %v5796 = vsel %vm4782, %v2197, 0.0
          %v5797 = vsel %vm4783, %v2198, 0.0
          %v5798 = vsel %vm4783, %v2199, 0.0
          %v5799 = vsel %vm4784, %v2200, 0.0
          %v5800 = vsel %vm4784, %v2201, 0.0
          %v5801 = vsel %vm4785, %v2202, 0.0
          %v5802 = vsel %vm4785, %v2203, 0.0
          %v5803 = vsel %vm4786, %v2204, 0.0
          %v5804 = vsel %vm4786, %v2205, 0.0
          %v5805 = vsel %vm4787, %v2206, 0.0
          %v5806 = vsel %vm4787, %v2207, 0.0
          %v5807 = vsel %vm4788, %v2208, 0.0
          %v5808 = vsel %vm4788, %v2209, 0.0
          %v5809 = vsel %vm4789, %v2210, 0.0
          %v5810 = vsel %vm4789, %v2211, 0.0
          %v5811 = vsel %vm4790, %v2212, 0.0
          %v5812 = vsel %vm4790, %v2213, 0.0
          %v5813 = vsel %vm4791, %v2214, 0.0
          %v5814 = vsel %vm4791, %v2215, 0.0
          %v5815 = vsel %vm4792, %v2216, 0.0
          %v5816 = vsel %vm4792, %v2217, 0.0
          %v5817 = vld [vmem:[#allocation5] sm:$0xff]
          %v5818 = vld [vmem:[#allocation5 + $0x8] sm:$0xff]
          %v5819 = vadd.f32 %v4793, %v4795
          %v5820 = vadd.f32 %v5819, %v4797
          %v5821 = vadd.f32 %v5820, %v4799
          %v5822 = vadd.f32 %v5821, %v4801
          %v5823 = vadd.f32 %v5822, %v4803
          %v5824 = vadd.f32 %v5823, %v4805
          %v5825 = vadd.f32 %v5824, %v4807
          %v5826 = vadd.f32 %v5825, %v4809
          %v5827 = vadd.f32 %v5826, %v4811
          %v5828 = vadd.f32 %v5827, %v4813
          %v5829 = vadd.f32 %v5828, %v4815
          %v5830 = vadd.f32 %v5829, %v4817
          %v5831 = vadd.f32 %v5830, %v4819
          %v5832 = vadd.f32 %v5831, %v4821
          %v5833 = vadd.f32 %v5832, %v4823
          %v5834 = vadd.f32 %v5833, %v4825
          %v5835 = vadd.f32 %v5834, %v4827
          %v5836 = vadd.f32 %v5835, %v4829
          %v5837 = vadd.f32 %v5836, %v4831
          %v5838 = vadd.f32 %v5837, %v4833
          %v5839 = vadd.f32 %v5838, %v4835
          %v5840 = vadd.f32 %v5839, %v4837
          %v5841 = vadd.f32 %v5840, %v4839
          %v5842 = vadd.f32 %v5841, %v4841
          %v5843 = vadd.f32 %v5842, %v4843
          %v5844 = vadd.f32 %v5843, %v4845
          %v5845 = vadd.f32 %v5844, %v4847
          %v5846 = vadd.f32 %v5845, %v4849
          %v5847 = vadd.f32 %v5846, %v4851
          %v5848 = vadd.f32 %v5847, %v4853
          %v5849 = vadd.f32 %v5848, %v4855
          %v5850 = vadd.f32 %v5849, %v4857
          %v5851 = vadd.f32 %v5850, %v4859
          %v5852 = vadd.f32 %v5851, %v4861
          %v5853 = vadd.f32 %v5852, %v4863
          %v5854 = vadd.f32 %v5853, %v4865
          %v5855 = vadd.f32 %v5854, %v4867
          %v5856 = vadd.f32 %v5855, %v4869
          %v5857 = vadd.f32 %v5856, %v4871
          %v5858 = vadd.f32 %v5857, %v4873
          %v5859 = vadd.f32 %v5858, %v4875
          %v5860 = vadd.f32 %v5859, %v4877
          %v5861 = vadd.f32 %v5860, %v4879
          %v5862 = vadd.f32 %v5861, %v4881
          %v5863 = vadd.f32 %v5862, %v4883
          %v5864 = vadd.f32 %v5863, %v4885
          %v5865 = vadd.f32 %v5864, %v4887
          %v5866 = vadd.f32 %v5865, %v4889
          %v5867 = vadd.f32 %v5866, %v4891
          %v5868 = vadd.f32 %v5867, %v4893
          %v5869 = vadd.f32 %v5868, %v4895
          %v5870 = vadd.f32 %v5869, %v4897
          %v5871 = vadd.f32 %v5870, %v4899
          %v5872 = vadd.f32 %v5871, %v4901
          %v5873 = vadd.f32 %v5872, %v4903
          %v5874 = vadd.f32 %v5873, %v4905
          %v5875 = vadd.f32 %v5874, %v4907
          %v5876 = vadd.f32 %v5875, %v4909
          %v5877 = vadd.f32 %v5876, %v4911
          %v5878 = vadd.f32 %v5877, %v4913
          %v5879 = vadd.f32 %v5878, %v4915
          %v5880 = vadd.f32 %v5879, %v4917
          %v5881 = vadd.f32 %v5880, %v4919
          %v5882 = vadd.f32 %v5881, %v4921
          %v5883 = vadd.f32 %v5882, %v4923
          %v5884 = vadd.f32 %v5883, %v4925
          %v5885 = vadd.f32 %v5884, %v4927
          %v5886 = vadd.f32 %v5885, %v4929
          %v5887 = vadd.f32 %v5886, %v4931
          %v5888 = vadd.f32 %v5887, %v4933
          %v5889 = vadd.f32 %v5888, %v4935
          %v5890 = vadd.f32 %v5889, %v4937
          %v5891 = vadd.f32 %v5890, %v4939
          %v5892 = vadd.f32 %v5891, %v4941
          %v5893 = vadd.f32 %v5892, %v4943
          %v5894 = vadd.f32 %v5893, %v4945
          %v5895 = vadd.f32 %v5894, %v4947
          %v5896 = vadd.f32 %v5895, %v4949
          %v5897 = vadd.f32 %v5896, %v4951
          %v5898 = vadd.f32 %v5897, %v4953
          %v5899 = vadd.f32 %v5898, %v4955
          %v5900 = vadd.f32 %v5899, %v4957
          %v5901 = vadd.f32 %v5900, %v4959
          %v5902 = vadd.f32 %v5901, %v4961
          %v5903 = vadd.f32 %v5902, %v4963
          %v5904 = vadd.f32 %v5903, %v4965
          %v5905 = vadd.f32 %v5904, %v4967
          %v5906 = vadd.f32 %v5905, %v4969
          %v5907 = vadd.f32 %v5906, %v4971
          %v5908 = vadd.f32 %v5907, %v4973
          %v5909 = vadd.f32 %v5908, %v4975
          %v5910 = vadd.f32 %v5909, %v4977
          %v5911 = vadd.f32 %v5910, %v4979
          %v5912 = vadd.f32 %v5911, %v4981
          %v5913 = vadd.f32 %v5912, %v4983
          %v5914 = vadd.f32 %v5913, %v4985
          %v5915 = vadd.f32 %v5914, %v4987
          %v5916 = vadd.f32 %v5915, %v4989
          %v5917 = vadd.f32 %v5916, %v4991
          %v5918 = vadd.f32 %v5917, %v4993
          %v5919 = vadd.f32 %v5918, %v4995
          %v5920 = vadd.f32 %v5919, %v4997
          %v5921 = vadd.f32 %v5920, %v4999
          %v5922 = vadd.f32 %v5921, %v5001
          %v5923 = vadd.f32 %v5922, %v5003
          %v5924 = vadd.f32 %v5923, %v5005
          %v5925 = vadd.f32 %v5924, %v5007
          %v5926 = vadd.f32 %v5925, %v5009
          %v5927 = vadd.f32 %v5926, %v5011
          %v5928 = vadd.f32 %v5927, %v5013
          %v5929 = vadd.f32 %v5928, %v5015
          %v5930 = vadd.f32 %v5929, %v5017
          %v5931 = vadd.f32 %v5930, %v5019
          %v5932 = vadd.f32 %v5931, %v5021
          %v5933 = vadd.f32 %v5932, %v5023
          %v5934 = vadd.f32 %v5933, %v5025
          %v5935 = vadd.f32 %v5934, %v5027
          %v5936 = vadd.f32 %v5935, %v5029
          %v5937 = vadd.f32 %v5936, %v5031
          %v5938 = vadd.f32 %v5937, %v5033
          %v5939 = vadd.f32 %v5938, %v5035
          %v5940 = vadd.f32 %v5939, %v5037
          %v5941 = vadd.f32 %v5940, %v5039
          %v5942 = vadd.f32 %v5941, %v5041
          %v5943 = vadd.f32 %v5942, %v5043
          %v5944 = vadd.f32 %v5943, %v5045
          %v5945 = vadd.f32 %v5944, %v5047
          %v5946 = vadd.f32 %v5945, %v5049
          %v5947 = vadd.f32 %v5946, %v5051
          %v5948 = vadd.f32 %v5947, %v5053
          %v5949 = vadd.f32 %v5948, %v5055
          %v5950 = vadd.f32 %v5949, %v5057
          %v5951 = vadd.f32 %v5950, %v5059
          %v5952 = vadd.f32 %v5951, %v5061
          %v5953 = vadd.f32 %v5952, %v5063
          %v5954 = vadd.f32 %v5953, %v5065
          %v5955 = vadd.f32 %v5954, %v5067
          %v5956 = vadd.f32 %v5955, %v5069
          %v5957 = vadd.f32 %v5956, %v5071
          %v5958 = vadd.f32 %v5957, %v5073
          %v5959 = vadd.f32 %v5958, %v5075
          %v5960 = vadd.f32 %v5959, %v5077
          %v5961 = vadd.f32 %v5960, %v5079
          %v5962 = vadd.f32 %v5961, %v5081
          %v5963 = vadd.f32 %v5962, %v5083
          %v5964 = vadd.f32 %v5963, %v5085
          %v5965 = vadd.f32 %v5964, %v5087
          %v5966 = vadd.f32 %v5965, %v5089
          %v5967 = vadd.f32 %v5966, %v5091
          %v5968 = vadd.f32 %v5967, %v5093
          %v5969 = vadd.f32 %v5968, %v5095
          %v5970 = vadd.f32 %v5969, %v5097
          %v5971 = vadd.f32 %v5970, %v5099
          %v5972 = vadd.f32 %v5971, %v5101
          %v5973 = vadd.f32 %v5972, %v5103
          %v5974 = vadd.f32 %v5973, %v5105
          %v5975 = vadd.f32 %v5974, %v5107
          %v5976 = vadd.f32 %v5975, %v5109
          %v5977 = vadd.f32 %v5976, %v5111
          %v5978 = vadd.f32 %v5977, %v5113
          %v5979 = vadd.f32 %v5978, %v5115
          %v5980 = vadd.f32 %v5979, %v5117
          %v5981 = vadd.f32 %v5980, %v5119
          %v5982 = vadd.f32 %v5981, %v5121
          %v5983 = vadd.f32 %v5982, %v5123
          %v5984 = vadd.f32 %v5983, %v5125
          %v5985 = vadd.f32 %v5984, %v5127
          %v5986 = vadd.f32 %v5985, %v5129
          %v5987 = vadd.f32 %v5986, %v5131
          %v5988 = vadd.f32 %v5987, %v5133
          %v5989 = vadd.f32 %v5988, %v5135
          %v5990 = vadd.f32 %v5989, %v5137
          %v5991 = vadd.f32 %v5990, %v5139
          %v5992 = vadd.f32 %v5991, %v5141
          %v5993 = vadd.f32 %v5992, %v5143
          %v5994 = vadd.f32 %v5993, %v5145
          %v5995 = vadd.f32 %v5994, %v5147
          %v5996 = vadd.f32 %v5995, %v5149
          %v5997 = vadd.f32 %v5996, %v5151
          %v5998 = vadd.f32 %v5997, %v5153
          %v5999 = vadd.f32 %v5998, %v5155
          %v6000 = vadd.f32 %v5999, %v5157
          %v6001 = vadd.f32 %v6000, %v5159
          %v6002 = vadd.f32 %v6001, %v5161
          %v6003 = vadd.f32 %v6002, %v5163
          %v6004 = vadd.f32 %v6003, %v5165
          %v6005 = vadd.f32 %v6004, %v5167
          %v6006 = vadd.f32 %v6005, %v5169
          %v6007 = vadd.f32 %v6006, %v5171
          %v6008 = vadd.f32 %v6007, %v5173
          %v6009 = vadd.f32 %v6008, %v5175
          %v6010 = vadd.f32 %v6009, %v5177
          %v6011 = vadd.f32 %v6010, %v5179
          %v6012 = vadd.f32 %v6011, %v5181
          %v6013 = vadd.f32 %v6012, %v5183
          %v6014 = vadd.f32 %v6013, %v5185
          %v6015 = vadd.f32 %v6014, %v5187
          %v6016 = vadd.f32 %v6015, %v5189
          %v6017 = vadd.f32 %v6016, %v5191
          %v6018 = vadd.f32 %v6017, %v5193
          %v6019 = vadd.f32 %v6018, %v5195
          %v6020 = vadd.f32 %v6019, %v5197
          %v6021 = vadd.f32 %v6020, %v5199
          %v6022 = vadd.f32 %v6021, %v5201
          %v6023 = vadd.f32 %v6022, %v5203
          %v6024 = vadd.f32 %v6023, %v5205
          %v6025 = vadd.f32 %v6024, %v5207
          %v6026 = vadd.f32 %v6025, %v5209
          %v6027 = vadd.f32 %v6026, %v5211
          %v6028 = vadd.f32 %v6027, %v5213
          %v6029 = vadd.f32 %v6028, %v5215
          %v6030 = vadd.f32 %v6029, %v5217
          %v6031 = vadd.f32 %v6030, %v5219
          %v6032 = vadd.f32 %v6031, %v5221
          %v6033 = vadd.f32 %v6032, %v5223
          %v6034 = vadd.f32 %v6033, %v5225
          %v6035 = vadd.f32 %v6034, %v5227
          %v6036 = vadd.f32 %v6035, %v5229
          %v6037 = vadd.f32 %v6036, %v5231
          %v6038 = vadd.f32 %v6037, %v5233
          %v6039 = vadd.f32 %v6038, %v5235
          %v6040 = vadd.f32 %v6039, %v5237
          %v6041 = vadd.f32 %v6040, %v5239
          %v6042 = vadd.f32 %v6041, %v5241
          %v6043 = vadd.f32 %v6042, %v5243
          %v6044 = vadd.f32 %v6043, %v5245
          %v6045 = vadd.f32 %v6044, %v5247
          %v6046 = vadd.f32 %v6045, %v5249
          %v6047 = vadd.f32 %v6046, %v5251
          %v6048 = vadd.f32 %v6047, %v5253
          %v6049 = vadd.f32 %v6048, %v5255
          %v6050 = vadd.f32 %v6049, %v5257
          %v6051 = vadd.f32 %v6050, %v5259
          %v6052 = vadd.f32 %v6051, %v5261
          %v6053 = vadd.f32 %v6052, %v5263
          %v6054 = vadd.f32 %v6053, %v5265
          %v6055 = vadd.f32 %v6054, %v5267
          %v6056 = vadd.f32 %v6055, %v5269
          %v6057 = vadd.f32 %v6056, %v5271
          %v6058 = vadd.f32 %v6057, %v5273
          %v6059 = vadd.f32 %v6058, %v5275
          %v6060 = vadd.f32 %v6059, %v5277
          %v6061 = vadd.f32 %v6060, %v5279
          %v6062 = vadd.f32 %v6061, %v5281
          %v6063 = vadd.f32 %v6062, %v5283
          %v6064 = vadd.f32 %v6063, %v5285
          %v6065 = vadd.f32 %v6064, %v5287
          %v6066 = vadd.f32 %v6065, %v5289
          %v6067 = vadd.f32 %v6066, %v5291
          %v6068 = vadd.f32 %v6067, %v5293
          %v6069 = vadd.f32 %v6068, %v5295
          %v6070 = vadd.f32 %v6069, %v5297
          %v6071 = vadd.f32 %v6070, %v5299
          %v6072 = vadd.f32 %v6071, %v5301
          %v6073 = vadd.f32 %v6072, %v5303
          %v6074 = vadd.f32 %v6073, %v5305
          %v6075 = vadd.f32 %v6074, %v5307
          %v6076 = vadd.f32 %v6075, %v5309
          %v6077 = vadd.f32 %v6076, %v5311
          %v6078 = vadd.f32 %v6077, %v5313
          %v6079 = vadd.f32 %v6078, %v5315
          %v6080 = vadd.f32 %v6079, %v5317
          %v6081 = vadd.f32 %v6080, %v5319
          %v6082 = vadd.f32 %v6081, %v5321
          %v6083 = vadd.f32 %v6082, %v5323
          %v6084 = vadd.f32 %v6083, %v5325
          %v6085 = vadd.f32 %v6084, %v5327
          %v6086 = vadd.f32 %v6085, %v5329
          %v6087 = vadd.f32 %v6086, %v5331
          %v6088 = vadd.f32 %v6087, %v5333
          %v6089 = vadd.f32 %v6088, %v5335
          %v6090 = vadd.f32 %v6089, %v5337
          %v6091 = vadd.f32 %v6090, %v5339
          %v6092 = vadd.f32 %v6091, %v5341
          %v6093 = vadd.f32 %v6092, %v5343
          %v6094 = vadd.f32 %v6093, %v5345
          %v6095 = vadd.f32 %v6094, %v5347
          %v6096 = vadd.f32 %v6095, %v5349
          %v6097 = vadd.f32 %v6096, %v5351
          %v6098 = vadd.f32 %v6097, %v5353
          %v6099 = vadd.f32 %v6098, %v5355
          %v6100 = vadd.f32 %v6099, %v5357
          %v6101 = vadd.f32 %v6100, %v5359
          %v6102 = vadd.f32 %v6101, %v5361
          %v6103 = vadd.f32 %v6102, %v5363
          %v6104 = vadd.f32 %v6103, %v5365
          %v6105 = vadd.f32 %v6104, %v5367
          %v6106 = vadd.f32 %v6105, %v5369
          %v6107 = vadd.f32 %v6106, %v5371
          %v6108 = vadd.f32 %v6107, %v5373
          %v6109 = vadd.f32 %v6108, %v5375
          %v6110 = vadd.f32 %v6109, %v5377
          %v6111 = vadd.f32 %v6110, %v5379
          %v6112 = vadd.f32 %v6111, %v5381
          %v6113 = vadd.f32 %v6112, %v5383
          %v6114 = vadd.f32 %v6113, %v5385
          %v6115 = vadd.f32 %v6114, %v5387
          %v6116 = vadd.f32 %v6115, %v5389
          %v6117 = vadd.f32 %v6116, %v5391
          %v6118 = vadd.f32 %v6117, %v5393
          %v6119 = vadd.f32 %v6118, %v5395
          %v6120 = vadd.f32 %v6119, %v5397
          %v6121 = vadd.f32 %v6120, %v5399
          %v6122 = vadd.f32 %v6121, %v5401
          %v6123 = vadd.f32 %v6122, %v5403
          %v6124 = vadd.f32 %v6123, %v5405
          %v6125 = vadd.f32 %v6124, %v5407
          %v6126 = vadd.f32 %v6125, %v5409
          %v6127 = vadd.f32 %v6126, %v5411
          %v6128 = vadd.f32 %v6127, %v5413
          %v6129 = vadd.f32 %v6128, %v5415
          %v6130 = vadd.f32 %v6129, %v5417
          %v6131 = vadd.f32 %v6130, %v5419
          %v6132 = vadd.f32 %v6131, %v5421
          %v6133 = vadd.f32 %v6132, %v5423
          %v6134 = vadd.f32 %v6133, %v5425
          %v6135 = vadd.f32 %v6134, %v5427
          %v6136 = vadd.f32 %v6135, %v5429
          %v6137 = vadd.f32 %v6136, %v5431
          %v6138 = vadd.f32 %v6137, %v5433
          %v6139 = vadd.f32 %v6138, %v5435
          %v6140 = vadd.f32 %v6139, %v5437
          %v6141 = vadd.f32 %v6140, %v5439
          %v6142 = vadd.f32 %v6141, %v5441
          %v6143 = vadd.f32 %v6142, %v5443
          %v6144 = vadd.f32 %v6143, %v5445
          %v6145 = vadd.f32 %v6144, %v5447
          %v6146 = vadd.f32 %v6145, %v5449
          %v6147 = vadd.f32 %v6146, %v5451
          %v6148 = vadd.f32 %v6147, %v5453
          %v6149 = vadd.f32 %v6148, %v5455
          %v6150 = vadd.f32 %v6149, %v5457
          %v6151 = vadd.f32 %v6150, %v5459
          %v6152 = vadd.f32 %v6151, %v5461
          %v6153 = vadd.f32 %v6152, %v5463
          %v6154 = vadd.f32 %v6153, %v5465
          %v6155 = vadd.f32 %v6154, %v5467
          %v6156 = vadd.f32 %v6155, %v5469
          %v6157 = vadd.f32 %v6156, %v5471
          %v6158 = vadd.f32 %v6157, %v5473
          %v6159 = vadd.f32 %v6158, %v5475
          %v6160 = vadd.f32 %v6159, %v5477
          %v6161 = vadd.f32 %v6160, %v5479
          %v6162 = vadd.f32 %v6161, %v5481
          %v6163 = vadd.f32 %v6162, %v5483
          %v6164 = vadd.f32 %v6163, %v5485
          %v6165 = vadd.f32 %v6164, %v5487
          %v6166 = vadd.f32 %v6165, %v5489
          %v6167 = vadd.f32 %v6166, %v5491
          %v6168 = vadd.f32 %v6167, %v5493
          %v6169 = vadd.f32 %v6168, %v5495
          %v6170 = vadd.f32 %v6169, %v5497
          %v6171 = vadd.f32 %v6170, %v5499
          %v6172 = vadd.f32 %v6171, %v5501
          %v6173 = vadd.f32 %v6172, %v5503
          %v6174 = vadd.f32 %v6173, %v5505
          %v6175 = vadd.f32 %v6174, %v5507
          %v6176 = vadd.f32 %v6175, %v5509
          %v6177 = vadd.f32 %v6176, %v5511
          %v6178 = vadd.f32 %v6177, %v5513
          %v6179 = vadd.f32 %v6178, %v5515
          %v6180 = vadd.f32 %v6179, %v5517
          %v6181 = vadd.f32 %v6180, %v5519
          %v6182 = vadd.f32 %v6181, %v5521
          %v6183 = vadd.f32 %v6182, %v5523
          %v6184 = vadd.f32 %v6183, %v5525
          %v6185 = vadd.f32 %v6184, %v5527
          %v6186 = vadd.f32 %v6185, %v5529
          %v6187 = vadd.f32 %v6186, %v5531
          %v6188 = vadd.f32 %v6187, %v5533
          %v6189 = vadd.f32 %v6188, %v5535
          %v6190 = vadd.f32 %v6189, %v5537
          %v6191 = vadd.f32 %v6190, %v5539
          %v6192 = vadd.f32 %v6191, %v5541
          %v6193 = vadd.f32 %v6192, %v5543
          %v6194 = vadd.f32 %v6193, %v5545
          %v6195 = vadd.f32 %v6194, %v5547
          %v6196 = vadd.f32 %v6195, %v5549
          %v6197 = vadd.f32 %v6196, %v5551
          %v6198 = vadd.f32 %v6197, %v5553
          %v6199 = vadd.f32 %v6198, %v5555
          %v6200 = vadd.f32 %v6199, %v5557
          %v6201 = vadd.f32 %v6200, %v5559
          %v6202 = vadd.f32 %v6201, %v5561
          %v6203 = vadd.f32 %v6202, %v5563
          %v6204 = vadd.f32 %v6203, %v5565
          %v6205 = vadd.f32 %v6204, %v5567
          %v6206 = vadd.f32 %v6205, %v5569
          %v6207 = vadd.f32 %v6206, %v5571
          %v6208 = vadd.f32 %v6207, %v5573
          %v6209 = vadd.f32 %v6208, %v5575
          %v6210 = vadd.f32 %v6209, %v5577
          %v6211 = vadd.f32 %v6210, %v5579
          %v6212 = vadd.f32 %v6211, %v5581
          %v6213 = vadd.f32 %v6212, %v5583
          %v6214 = vadd.f32 %v6213, %v5585
          %v6215 = vadd.f32 %v6214, %v5587
          %v6216 = vadd.f32 %v6215, %v5589
          %v6217 = vadd.f32 %v6216, %v5591
          %v6218 = vadd.f32 %v6217, %v5593
          %v6219 = vadd.f32 %v6218, %v5595
          %v6220 = vadd.f32 %v6219, %v5597
          %v6221 = vadd.f32 %v6220, %v5599
          %v6222 = vadd.f32 %v6221, %v5601
          %v6223 = vadd.f32 %v6222, %v5603
          %v6224 = vadd.f32 %v6223, %v5605
          %v6225 = vadd.f32 %v6224, %v5607
          %v6226 = vadd.f32 %v6225, %v5609
          %v6227 = vadd.f32 %v6226, %v5611
          %v6228 = vadd.f32 %v6227, %v5613
          %v6229 = vadd.f32 %v6228, %v5615
          %v6230 = vadd.f32 %v6229, %v5617
          %v6231 = vadd.f32 %v6230, %v5619
          %v6232 = vadd.f32 %v6231, %v5621
          %v6233 = vadd.f32 %v6232, %v5623
          %v6234 = vadd.f32 %v6233, %v5625
          %v6235 = vadd.f32 %v6234, %v5627
          %v6236 = vadd.f32 %v6235, %v5629
          %v6237 = vadd.f32 %v6236, %v5631
          %v6238 = vadd.f32 %v6237, %v5633
          %v6239 = vadd.f32 %v6238, %v5635
          %v6240 = vadd.f32 %v6239, %v5637
          %v6241 = vadd.f32 %v6240, %v5639
          %v6242 = vadd.f32 %v6241, %v5641
          %v6243 = vadd.f32 %v6242, %v5643
          %v6244 = vadd.f32 %v6243, %v5645
          %v6245 = vadd.f32 %v6244, %v5647
          %v6246 = vadd.f32 %v6245, %v5649
          %v6247 = vadd.f32 %v6246, %v5651
          %v6248 = vadd.f32 %v6247, %v5653
          %v6249 = vadd.f32 %v6248, %v5655
          %v6250 = vadd.f32 %v6249, %v5657
          %v6251 = vadd.f32 %v6250, %v5659
          %v6252 = vadd.f32 %v6251, %v5661
          %v6253 = vadd.f32 %v6252, %v5663
          %v6254 = vadd.f32 %v6253, %v5665
          %v6255 = vadd.f32 %v6254, %v5667
          %v6256 = vadd.f32 %v6255, %v5669
          %v6257 = vadd.f32 %v6256, %v5671
          %v6258 = vadd.f32 %v6257, %v5673
          %v6259 = vadd.f32 %v6258, %v5675
          %v6260 = vadd.f32 %v6259, %v5677
          %v6261 = vadd.f32 %v6260, %v5679
          %v6262 = vadd.f32 %v6261, %v5681
          %v6263 = vadd.f32 %v6262, %v5683
          %v6264 = vadd.f32 %v6263, %v5685
          %v6265 = vadd.f32 %v6264, %v5687
          %v6266 = vadd.f32 %v6265, %v5689
          %v6267 = vadd.f32 %v6266, %v5691
          %v6268 = vadd.f32 %v6267, %v5693
          %v6269 = vadd.f32 %v6268, %v5695
          %v6270 = vadd.f32 %v6269, %v5697
          %v6271 = vadd.f32 %v6270, %v5699
          %v6272 = vadd.f32 %v6271, %v5701
          %v6273 = vadd.f32 %v6272, %v5703
          %v6274 = vadd.f32 %v6273, %v5705
          %v6275 = vadd.f32 %v6274, %v5707
          %v6276 = vadd.f32 %v6275, %v5709
          %v6277 = vadd.f32 %v6276, %v5711
          %v6278 = vadd.f32 %v6277, %v5713
          %v6279 = vadd.f32 %v6278, %v5715
          %v6280 = vadd.f32 %v6279, %v5717
          %v6281 = vadd.f32 %v6280, %v5719
          %v6282 = vadd.f32 %v6281, %v5721
          %v6283 = vadd.f32 %v6282, %v5723
          %v6284 = vadd.f32 %v6283, %v5725
          %v6285 = vadd.f32 %v6284, %v5727
          %v6286 = vadd.f32 %v6285, %v5729
          %v6287 = vadd.f32 %v6286, %v5731
          %v6288 = vadd.f32 %v6287, %v5733
          %v6289 = vadd.f32 %v6288, %v5735
          %v6290 = vadd.f32 %v6289, %v5737
          %v6291 = vadd.f32 %v6290, %v5739
          %v6292 = vadd.f32 %v6291, %v5741
          %v6293 = vadd.f32 %v6292, %v5743
          %v6294 = vadd.f32 %v6293, %v5745
          %v6295 = vadd.f32 %v6294, %v5747
          %v6296 = vadd.f32 %v6295, %v5749
          %v6297 = vadd.f32 %v6296, %v5751
          %v6298 = vadd.f32 %v6297, %v5753
          %v6299 = vadd.f32 %v6298, %v5755
          %v6300 = vadd.f32 %v6299, %v5757
          %v6301 = vadd.f32 %v6300, %v5759
          %v6302 = vadd.f32 %v6301, %v5761
          %v6303 = vadd.f32 %v6302, %v5763
          %v6304 = vadd.f32 %v6303, %v5765
          %v6305 = vadd.f32 %v6304, %v5767
          %v6306 = vadd.f32 %v6305, %v5769
          %v6307 = vadd.f32 %v6306, %v5771
          %v6308 = vadd.f32 %v6307, %v5773
          %v6309 = vadd.f32 %v6308, %v5775
          %v6310 = vadd.f32 %v6309, %v5777
          %v6311 = vadd.f32 %v6310, %v5779
          %v6312 = vadd.f32 %v6311, %v5781
          %v6313 = vadd.f32 %v6312, %v5783
          %v6314 = vadd.f32 %v6313, %v5785
          %v6315 = vadd.f32 %v6314, %v5787
          %v6316 = vadd.f32 %v6315, %v5789
          %v6317 = vadd.f32 %v6316, %v5791
          %v6318 = vadd.f32 %v6317, %v5793
          %v6319 = vadd.f32 %v6318, %v5795
          %v6320 = vadd.f32 %v6319, %v5797
          %v6321 = vadd.f32 %v6320, %v5799
          %v6322 = vadd.f32 %v6321, %v5801
          %v6323 = vadd.f32 %v6322, %v5803
          %v6324 = vadd.f32 %v6323, %v5805
          %v6325 = vadd.f32 %v6324, %v5807
          %v6326 = vadd.f32 %v6325, %v5809
          %v6327 = vadd.f32 %v6326, %v5811
          %v6328 = vadd.f32 %v6327, %v5813
          %v6329 = vadd.f32 %v6328, %v5815
          %v6330 = vadd.f32 %v4794, %v4796
          %v6331 = vadd.f32 %v6330, %v4798
          %v6332 = vadd.f32 %v6331, %v4800
          %v6333 = vadd.f32 %v6332, %v4802
          %v6334 = vadd.f32 %v6333, %v4804
          %v6335 = vadd.f32 %v6334, %v4806
          %v6336 = vadd.f32 %v6335, %v4808
          %v6337 = vadd.f32 %v6336, %v4810
          %v6338 = vadd.f32 %v6337, %v4812
          %v6339 = vadd.f32 %v6338, %v4814
          %v6340 = vadd.f32 %v6339, %v4816
          %v6341 = vadd.f32 %v6340, %v4818
          %v6342 = vadd.f32 %v6341, %v4820
          %v6343 = vadd.f32 %v6342, %v4822
          %v6344 = vadd.f32 %v6343, %v4824
          %v6345 = vadd.f32 %v6344, %v4826
          %v6346 = vadd.f32 %v6345, %v4828
          %v6347 = vadd.f32 %v6346, %v4830
          %v6348 = vadd.f32 %v6347, %v4832
          %v6349 = vadd.f32 %v6348, %v4834
          %v6350 = vadd.f32 %v6349, %v4836
          %v6351 = vadd.f32 %v6350, %v4838
          %v6352 = vadd.f32 %v6351, %v4840
          %v6353 = vadd.f32 %v6352, %v4842
          %v6354 = vadd.f32 %v6353, %v4844
          %v6355 = vadd.f32 %v6354, %v4846
          %v6356 = vadd.f32 %v6355, %v4848
          %v6357 = vadd.f32 %v6356, %v4850
          %v6358 = vadd.f32 %v6357, %v4852
          %v6359 = vadd.f32 %v6358, %v4854
          %v6360 = vadd.f32 %v6359, %v4856
          %v6361 = vadd.f32 %v6360, %v4858
          %v6362 = vadd.f32 %v6361, %v4860
          %v6363 = vadd.f32 %v6362, %v4862
          %v6364 = vadd.f32 %v6363, %v4864
          %v6365 = vadd.f32 %v6364, %v4866
          %v6366 = vadd.f32 %v6365, %v4868
          %v6367 = vadd.f32 %v6366, %v4870
          %v6368 = vadd.f32 %v6367, %v4872
          %v6369 = vadd.f32 %v6368, %v4874
          %v6370 = vadd.f32 %v6369, %v4876
          %v6371 = vadd.f32 %v6370, %v4878
          %v6372 = vadd.f32 %v6371, %v4880
          %v6373 = vadd.f32 %v6372, %v4882
          %v6374 = vadd.f32 %v6373, %v4884
          %v6375 = vadd.f32 %v6374, %v4886
          %v6376 = vadd.f32 %v6375, %v4888
          %v6377 = vadd.f32 %v6376, %v4890
          %v6378 = vadd.f32 %v6377, %v4892
          %v6379 = vadd.f32 %v6378, %v4894
          %v6380 = vadd.f32 %v6379, %v4896
          %v6381 = vadd.f32 %v6380, %v4898
          %v6382 = vadd.f32 %v6381, %v4900
          %v6383 = vadd.f32 %v6382, %v4902
          %v6384 = vadd.f32 %v6383, %v4904
          %v6385 = vadd.f32 %v6384, %v4906
          %v6386 = vadd.f32 %v6385, %v4908
          %v6387 = vadd.f32 %v6386, %v4910
          %v6388 = vadd.f32 %v6387, %v4912
          %v6389 = vadd.f32 %v6388, %v4914
          %v6390 = vadd.f32 %v6389, %v4916
          %v6391 = vadd.f32 %v6390, %v4918
          %v6392 = vadd.f32 %v6391, %v4920
          %v6393 = vadd.f32 %v6392, %v4922
          %v6394 = vadd.f32 %v6393, %v4924
          %v6395 = vadd.f32 %v6394, %v4926
          %v6396 = vadd.f32 %v6395, %v4928
          %v6397 = vadd.f32 %v6396, %v4930
          %v6398 = vadd.f32 %v6397, %v4932
          %v6399 = vadd.f32 %v6398, %v4934
          %v6400 = vadd.f32 %v6399, %v4936
          %v6401 = vadd.f32 %v6400, %v4938
          %v6402 = vadd.f32 %v6401, %v4940
          %v6403 = vadd.f32 %v6402, %v4942
          %v6404 = vadd.f32 %v6403, %v4944
          %v6405 = vadd.f32 %v6404, %v4946
          %v6406 = vadd.f32 %v6405, %v4948
          %v6407 = vadd.f32 %v6406, %v4950
          %v6408 = vadd.f32 %v6407, %v4952
          %v6409 = vadd.f32 %v6408, %v4954
          %v6410 = vadd.f32 %v6409, %v4956
          %v6411 = vadd.f32 %v6410, %v4958
          %v6412 = vadd.f32 %v6411, %v4960
          %v6413 = vadd.f32 %v6412, %v4962
          %v6414 = vadd.f32 %v6413, %v4964
          %v6415 = vadd.f32 %v6414, %v4966
          %v6416 = vadd.f32 %v6415, %v4968
          %v6417 = vadd.f32 %v6416, %v4970
          %v6418 = vadd.f32 %v6417, %v4972
          %v6419 = vadd.f32 %v6418, %v4974
          %v6420 = vadd.f32 %v6419, %v4976
          %v6421 = vadd.f32 %v6420, %v4978
          %v6422 = vadd.f32 %v6421, %v4980
          %v6423 = vadd.f32 %v6422, %v4982
          %v6424 = vadd.f32 %v6423, %v4984
          %v6425 = vadd.f32 %v6424, %v4986
          %v6426 = vadd.f32 %v6425, %v4988
          %v6427 = vadd.f32 %v6426, %v4990
          %v6428 = vadd.f32 %v6427, %v4992
          %v6429 = vadd.f32 %v6428, %v4994
          %v6430 = vadd.f32 %v6429, %v4996
          %v6431 = vadd.f32 %v6430, %v4998
          %v6432 = vadd.f32 %v6431, %v5000
          %v6433 = vadd.f32 %v6432, %v5002
          %v6434 = vadd.f32 %v6433, %v5004
          %v6435 = vadd.f32 %v6434, %v5006
          %v6436 = vadd.f32 %v6435, %v5008
          %v6437 = vadd.f32 %v6436, %v5010
          %v6438 = vadd.f32 %v6437, %v5012
          %v6439 = vadd.f32 %v6438, %v5014
          %v6440 = vadd.f32 %v6439, %v5016
          %v6441 = vadd.f32 %v6440, %v5018
          %v6442 = vadd.f32 %v6441, %v5020
          %v6443 = vadd.f32 %v6442, %v5022
          %v6444 = vadd.f32 %v6443, %v5024
          %v6445 = vadd.f32 %v6444, %v5026
          %v6446 = vadd.f32 %v6445, %v5028
          %v6447 = vadd.f32 %v6446, %v5030
          %v6448 = vadd.f32 %v6447, %v5032
          %v6449 = vadd.f32 %v6448, %v5034
          %v6450 = vadd.f32 %v6449, %v5036
          %v6451 = vadd.f32 %v6450, %v5038
          %v6452 = vadd.f32 %v6451, %v5040
          %v6453 = vadd.f32 %v6452, %v5042
          %v6454 = vadd.f32 %v6453, %v5044
          %v6455 = vadd.f32 %v6454, %v5046
          %v6456 = vadd.f32 %v6455, %v5048
          %v6457 = vadd.f32 %v6456, %v5050
          %v6458 = vadd.f32 %v6457, %v5052
          %v6459 = vadd.f32 %v6458, %v5054
          %v6460 = vadd.f32 %v6459, %v5056
          %v6461 = vadd.f32 %v6460, %v5058
          %v6462 = vadd.f32 %v6461, %v5060
          %v6463 = vadd.f32 %v6462, %v5062
          %v6464 = vadd.f32 %v6463, %v5064
          %v6465 = vadd.f32 %v6464, %v5066
          %v6466 = vadd.f32 %v6465, %v5068
          %v6467 = vadd.f32 %v6466, %v5070
          %v6468 = vadd.f32 %v6467, %v5072
          %v6469 = vadd.f32 %v6468, %v5074
          %v6470 = vadd.f32 %v6469, %v5076
          %v6471 = vadd.f32 %v6470, %v5078
          %v6472 = vadd.f32 %v6471, %v5080
          %v6473 = vadd.f32 %v6472, %v5082
          %v6474 = vadd.f32 %v6473, %v5084
          %v6475 = vadd.f32 %v6474, %v5086
          %v6476 = vadd.f32 %v6475, %v5088
          %v6477 = vadd.f32 %v6476, %v5090
          %v6478 = vadd.f32 %v6477, %v5092
          %v6479 = vadd.f32 %v6478, %v5094
          %v6480 = vadd.f32 %v6479, %v5096
          %v6481 = vadd.f32 %v6480, %v5098
          %v6482 = vadd.f32 %v6481, %v5100
          %v6483 = vadd.f32 %v6482, %v5102
          %v6484 = vadd.f32 %v6483, %v5104
          %v6485 = vadd.f32 %v6484, %v5106
          %v6486 = vadd.f32 %v6485, %v5108
          %v6487 = vadd.f32 %v6486, %v5110
          %v6488 = vadd.f32 %v6487, %v5112
          %v6489 = vadd.f32 %v6488, %v5114
          %v6490 = vadd.f32 %v6489, %v5116
          %v6491 = vadd.f32 %v6490, %v5118
          %v6492 = vadd.f32 %v6491, %v5120
          %v6493 = vadd.f32 %v6492, %v5122
          %v6494 = vadd.f32 %v6493, %v5124
          %v6495 = vadd.f32 %v6494, %v5126
          %v6496 = vadd.f32 %v6495, %v5128
          %v6497 = vadd.f32 %v6496, %v5130
          %v6498 = vadd.f32 %v6497, %v5132
          %v6499 = vadd.f32 %v6498, %v5134
          %v6500 = vadd.f32 %v6499, %v5136
          %v6501 = vadd.f32 %v6500, %v5138
          %v6502 = vadd.f32 %v6501, %v5140
          %v6503 = vadd.f32 %v6502, %v5142
          %v6504 = vadd.f32 %v6503, %v5144
          %v6505 = vadd.f32 %v6504, %v5146
          %v6506 = vadd.f32 %v6505, %v5148
          %v6507 = vadd.f32 %v6506, %v5150
          %v6508 = vadd.f32 %v6507, %v5152
          %v6509 = vadd.f32 %v6508, %v5154
          %v6510 = vadd.f32 %v6509, %v5156
          %v6511 = vadd.f32 %v6510, %v5158
          %v6512 = vadd.f32 %v6511, %v5160
          %v6513 = vadd.f32 %v6512, %v5162
          %v6514 = vadd.f32 %v6513, %v5164
          %v6515 = vadd.f32 %v6514, %v5166
          %v6516 = vadd.f32 %v6515, %v5168
          %v6517 = vadd.f32 %v6516, %v5170
          %v6518 = vadd.f32 %v6517, %v5172
          %v6519 = vadd.f32 %v6518, %v5174
          %v6520 = vadd.f32 %v6519, %v5176
          %v6521 = vadd.f32 %v6520, %v5178
          %v6522 = vadd.f32 %v6521, %v5180
          %v6523 = vadd.f32 %v6522, %v5182
          %v6524 = vadd.f32 %v6523, %v5184
          %v6525 = vadd.f32 %v6524, %v5186
          %v6526 = vadd.f32 %v6525, %v5188
          %v6527 = vadd.f32 %v6526, %v5190
          %v6528 = vadd.f32 %v6527, %v5192
          %v6529 = vadd.f32 %v6528, %v5194
          %v6530 = vadd.f32 %v6529, %v5196
          %v6531 = vadd.f32 %v6530, %v5198
          %v6532 = vadd.f32 %v6531, %v5200
          %v6533 = vadd.f32 %v6532, %v5202
          %v6534 = vadd.f32 %v6533, %v5204
          %v6535 = vadd.f32 %v6534, %v5206
          %v6536 = vadd.f32 %v6535, %v5208
          %v6537 = vadd.f32 %v6536, %v5210
          %v6538 = vadd.f32 %v6537, %v5212
          %v6539 = vadd.f32 %v6538, %v5214
          %v6540 = vadd.f32 %v6539, %v5216
          %v6541 = vadd.f32 %v6540, %v5218
          %v6542 = vadd.f32 %v6541, %v5220
          %v6543 = vadd.f32 %v6542, %v5222
          %v6544 = vadd.f32 %v6543, %v5224
          %v6545 = vadd.f32 %v6544, %v5226
          %v6546 = vadd.f32 %v6545, %v5228
          %v6547 = vadd.f32 %v6546, %v5230
          %v6548 = vadd.f32 %v6547, %v5232
          %v6549 = vadd.f32 %v6548, %v5234
          %v6550 = vadd.f32 %v6549, %v5236
          %v6551 = vadd.f32 %v6550, %v5238
          %v6552 = vadd.f32 %v6551, %v5240
          %v6553 = vadd.f32 %v6552, %v5242
          %v6554 = vadd.f32 %v6553, %v5244
          %v6555 = vadd.f32 %v6554, %v5246
          %v6556 = vadd.f32 %v6555, %v5248
          %v6557 = vadd.f32 %v6556, %v5250
          %v6558 = vadd.f32 %v6557, %v5252
          %v6559 = vadd.f32 %v6558, %v5254
          %v6560 = vadd.f32 %v6559, %v5256
          %v6561 = vadd.f32 %v6560, %v5258
          %v6562 = vadd.f32 %v6561, %v5260
          %v6563 = vadd.f32 %v6562, %v5262
          %v6564 = vadd.f32 %v6563, %v5264
          %v6565 = vadd.f32 %v6564, %v5266
          %v6566 = vadd.f32 %v6565, %v5268
          %v6567 = vadd.f32 %v6566, %v5270
          %v6568 = vadd.f32 %v6567, %v5272
          %v6569 = vadd.f32 %v6568, %v5274
          %v6570 = vadd.f32 %v6569, %v5276
          %v6571 = vadd.f32 %v6570, %v5278
          %v6572 = vadd.f32 %v6571, %v5280
          %v6573 = vadd.f32 %v6572, %v5282
          %v6574 = vadd.f32 %v6573, %v5284
          %v6575 = vadd.f32 %v6574, %v5286
          %v6576 = vadd.f32 %v6575, %v5288
          %v6577 = vadd.f32 %v6576, %v5290
          %v6578 = vadd.f32 %v6577, %v5292
          %v6579 = vadd.f32 %v6578, %v5294
          %v6580 = vadd.f32 %v6579, %v5296
          %v6581 = vadd.f32 %v6580, %v5298
          %v6582 = vadd.f32 %v6581, %v5300
          %v6583 = vadd.f32 %v6582, %v5302
          %v6584 = vadd.f32 %v6583, %v5304
          %v6585 = vadd.f32 %v6584, %v5306
          %v6586 = vadd.f32 %v6585, %v5308
          %v6587 = vadd.f32 %v6586, %v5310
          %v6588 = vadd.f32 %v6587, %v5312
          %v6589 = vadd.f32 %v6588, %v5314
          %v6590 = vadd.f32 %v6589, %v5316
          %v6591 = vadd.f32 %v6590, %v5318
          %v6592 = vadd.f32 %v6591, %v5320
          %v6593 = vadd.f32 %v6592, %v5322
          %v6594 = vadd.f32 %v6593, %v5324
          %v6595 = vadd.f32 %v6594, %v5326
          %v6596 = vadd.f32 %v6595, %v5328
          %v6597 = vadd.f32 %v6596, %v5330
          %v6598 = vadd.f32 %v6597, %v5332
          %v6599 = vadd.f32 %v6598, %v5334
          %v6600 = vadd.f32 %v6599, %v5336
          %v6601 = vadd.f32 %v6600, %v5338
          %v6602 = vadd.f32 %v6601, %v5340
          %v6603 = vadd.f32 %v6602, %v5342
          %v6604 = vadd.f32 %v6603, %v5344
          %v6605 = vadd.f32 %v6604, %v5346
          %v6606 = vadd.f32 %v6605, %v5348
          %v6607 = vadd.f32 %v6606, %v5350
          %v6608 = vadd.f32 %v6607, %v5352
          %v6609 = vadd.f32 %v6608, %v5354
          %v6610 = vadd.f32 %v6609, %v5356
          %v6611 = vadd.f32 %v6610, %v5358
          %v6612 = vadd.f32 %v6611, %v5360
          %v6613 = vadd.f32 %v6612, %v5362
          %v6614 = vadd.f32 %v6613, %v5364
          %v6615 = vadd.f32 %v6614, %v5366
          %v6616 = vadd.f32 %v6615, %v5368
          %v6617 = vadd.f32 %v6616, %v5370
          %v6618 = vadd.f32 %v6617, %v5372
          %v6619 = vadd.f32 %v6618, %v5374
          %v6620 = vadd.f32 %v6619, %v5376
          %v6621 = vadd.f32 %v6620, %v5378
          %v6622 = vadd.f32 %v6621, %v5380
          %v6623 = vadd.f32 %v6622, %v5382
          %v6624 = vadd.f32 %v6623, %v5384
          %v6625 = vadd.f32 %v6624, %v5386
          %v6626 = vadd.f32 %v6625, %v5388
          %v6627 = vadd.f32 %v6626, %v5390
          %v6628 = vadd.f32 %v6627, %v5392
          %v6629 = vadd.f32 %v6628, %v5394
          %v6630 = vadd.f32 %v6629, %v5396
          %v6631 = vadd.f32 %v6630, %v5398
          %v6632 = vadd.f32 %v6631, %v5400
          %v6633 = vadd.f32 %v6632, %v5402
          %v6634 = vadd.f32 %v6633, %v5404
          %v6635 = vadd.f32 %v6634, %v5406
          %v6636 = vadd.f32 %v6635, %v5408
          %v6637 = vadd.f32 %v6636, %v5410
          %v6638 = vadd.f32 %v6637, %v5412
          %v6639 = vadd.f32 %v6638, %v5414
          %v6640 = vadd.f32 %v6639, %v5416
          %v6641 = vadd.f32 %v6640, %v5418
          %v6642 = vadd.f32 %v6641, %v5420
          %v6643 = vadd.f32 %v6642, %v5422
          %v6644 = vadd.f32 %v6643, %v5424
          %v6645 = vadd.f32 %v6644, %v5426
          %v6646 = vadd.f32 %v6645, %v5428
          %v6647 = vadd.f32 %v6646, %v5430
          %v6648 = vadd.f32 %v6647, %v5432
          %v6649 = vadd.f32 %v6648, %v5434
          %v6650 = vadd.f32 %v6649, %v5436
          %v6651 = vadd.f32 %v6650, %v5438
          %v6652 = vadd.f32 %v6651, %v5440
          %v6653 = vadd.f32 %v6652, %v5442
          %v6654 = vadd.f32 %v6653, %v5444
          %v6655 = vadd.f32 %v6654, %v5446
          %v6656 = vadd.f32 %v6655, %v5448
          %v6657 = vadd.f32 %v6656, %v5450
          %v6658 = vadd.f32 %v6657, %v5452
          %v6659 = vadd.f32 %v6658, %v5454
          %v6660 = vadd.f32 %v6659, %v5456
          %v6661 = vadd.f32 %v6660, %v5458
          %v6662 = vadd.f32 %v6661, %v5460
          %v6663 = vadd.f32 %v6662, %v5462
          %v6664 = vadd.f32 %v6663, %v5464
          %v6665 = vadd.f32 %v6664, %v5466
          %v6666 = vadd.f32 %v6665, %v5468
          %v6667 = vadd.f32 %v6666, %v5470
          %v6668 = vadd.f32 %v6667, %v5472
          %v6669 = vadd.f32 %v6668, %v5474
          %v6670 = vadd.f32 %v6669, %v5476
          %v6671 = vadd.f32 %v6670, %v5478
          %v6672 = vadd.f32 %v6671, %v5480
          %v6673 = vadd.f32 %v6672, %v5482
          %v6674 = vadd.f32 %v6673, %v5484
          %v6675 = vadd.f32 %v6674, %v5486
          %v6676 = vadd.f32 %v6675, %v5488
          %v6677 = vadd.f32 %v6676, %v5490
          %v6678 = vadd.f32 %v6677, %v5492
          %v6679 = vadd.f32 %v6678, %v5494
          %v6680 = vadd.f32 %v6679, %v5496
          %v6681 = vadd.f32 %v6680, %v5498
          %v6682 = vadd.f32 %v6681, %v5500
          %v6683 = vadd.f32 %v6682, %v5502
          %v6684 = vadd.f32 %v6683, %v5504
          %v6685 = vadd.f32 %v6684, %v5506
          %v6686 = vadd.f32 %v6685, %v5508
          %v6687 = vadd.f32 %v6686, %v5510
          %v6688 = vadd.f32 %v6687, %v5512
          %v6689 = vadd.f32 %v6688, %v5514
          %v6690 = vadd.f32 %v6689, %v5516
          %v6691 = vadd.f32 %v6690, %v5518
          %v6692 = vadd.f32 %v6691, %v5520
          %v6693 = vadd.f32 %v6692, %v5522
          %v6694 = vadd.f32 %v6693, %v5524
          %v6695 = vadd.f32 %v6694, %v5526
          %v6696 = vadd.f32 %v6695, %v5528
          %v6697 = vadd.f32 %v6696, %v5530
          %v6698 = vadd.f32 %v6697, %v5532
          %v6699 = vadd.f32 %v6698, %v5534
          %v6700 = vadd.f32 %v6699, %v5536
          %v6701 = vadd.f32 %v6700, %v5538
          %v6702 = vadd.f32 %v6701, %v5540
          %v6703 = vadd.f32 %v6702, %v5542
          %v6704 = vadd.f32 %v6703, %v5544
          %v6705 = vadd.f32 %v6704, %v5546
          %v6706 = vadd.f32 %v6705, %v5548
          %v6707 = vadd.f32 %v6706, %v5550
          %v6708 = vadd.f32 %v6707, %v5552
          %v6709 = vadd.f32 %v6708, %v5554
          %v6710 = vadd.f32 %v6709, %v5556
          %v6711 = vadd.f32 %v6710, %v5558
          %v6712 = vadd.f32 %v6711, %v5560
          %v6713 = vadd.f32 %v6712, %v5562
          %v6714 = vadd.f32 %v6713, %v5564
          %v6715 = vadd.f32 %v6714, %v5566
          %v6716 = vadd.f32 %v6715, %v5568
          %v6717 = vadd.f32 %v6716, %v5570
          %v6718 = vadd.f32 %v6717, %v5572
          %v6719 = vadd.f32 %v6718, %v5574
          %v6720 = vadd.f32 %v6719, %v5576
          %v6721 = vadd.f32 %v6720, %v5578
          %v6722 = vadd.f32 %v6721, %v5580
          %v6723 = vadd.f32 %v6722, %v5582
          %v6724 = vadd.f32 %v6723, %v5584
          %v6725 = vadd.f32 %v6724, %v5586
          %v6726 = vadd.f32 %v6725, %v5588
          %v6727 = vadd.f32 %v6726, %v5590
          %v6728 = vadd.f32 %v6727, %v5592
          %v6729 = vadd.f32 %v6728, %v5594
          %v6730 = vadd.f32 %v6729, %v5596
          %v6731 = vadd.f32 %v6730, %v5598
          %v6732 = vadd.f32 %v6731, %v5600
          %v6733 = vadd.f32 %v6732, %v5602
          %v6734 = vadd.f32 %v6733, %v5604
          %v6735 = vadd.f32 %v6734, %v5606
          %v6736 = vadd.f32 %v6735, %v5608
          %v6737 = vadd.f32 %v6736, %v5610
          %v6738 = vadd.f32 %v6737, %v5612
          %v6739 = vadd.f32 %v6738, %v5614
          %v6740 = vadd.f32 %v6739, %v5616
          %v6741 = vadd.f32 %v6740, %v5618
          %v6742 = vadd.f32 %v6741, %v5620
          %v6743 = vadd.f32 %v6742, %v5622
          %v6744 = vadd.f32 %v6743, %v5624
          %v6745 = vadd.f32 %v6744, %v5626
          %v6746 = vadd.f32 %v6745, %v5628
          %v6747 = vadd.f32 %v6746, %v5630
          %v6748 = vadd.f32 %v6747, %v5632
          %v6749 = vadd.f32 %v6748, %v5634
          %v6750 = vadd.f32 %v6749, %v5636
          %v6751 = vadd.f32 %v6750, %v5638
          %v6752 = vadd.f32 %v6751, %v5640
          %v6753 = vadd.f32 %v6752, %v5642
          %v6754 = vadd.f32 %v6753, %v5644
          %v6755 = vadd.f32 %v6754, %v5646
          %v6756 = vadd.f32 %v6755, %v5648
          %v6757 = vadd.f32 %v6756, %v5650
          %v6758 = vadd.f32 %v6757, %v5652
          %v6759 = vadd.f32 %v6758, %v5654
          %v6760 = vadd.f32 %v6759, %v5656
          %v6761 = vadd.f32 %v6760, %v5658
          %v6762 = vadd.f32 %v6761, %v5660
          %v6763 = vadd.f32 %v6762, %v5662
          %v6764 = vadd.f32 %v6763, %v5664
          %v6765 = vadd.f32 %v6764, %v5666
          %v6766 = vadd.f32 %v6765, %v5668
          %v6767 = vadd.f32 %v6766, %v5670
          %v6768 = vadd.f32 %v6767, %v5672
          %v6769 = vadd.f32 %v6768, %v5674
          %v6770 = vadd.f32 %v6769, %v5676
          %v6771 = vadd.f32 %v6770, %v5678
          %v6772 = vadd.f32 %v6771, %v5680
          %v6773 = vadd.f32 %v6772, %v5682
          %v6774 = vadd.f32 %v6773, %v5684
          %v6775 = vadd.f32 %v6774, %v5686
          %v6776 = vadd.f32 %v6775, %v5688
          %v6777 = vadd.f32 %v6776, %v5690
          %v6778 = vadd.f32 %v6777, %v5692
          %v6779 = vadd.f32 %v6778, %v5694
          %v6780 = vadd.f32 %v6779, %v5696
          %v6781 = vadd.f32 %v6780, %v5698
          %v6782 = vadd.f32 %v6781, %v5700
          %v6783 = vadd.f32 %v6782, %v5702
          %v6784 = vadd.f32 %v6783, %v5704
          %v6785 = vadd.f32 %v6784, %v5706
          %v6786 = vadd.f32 %v6785, %v5708
          %v6787 = vadd.f32 %v6786, %v5710
          %v6788 = vadd.f32 %v6787, %v5712
          %v6789 = vadd.f32 %v6788, %v5714
          %v6790 = vadd.f32 %v6789, %v5716
          %v6791 = vadd.f32 %v6790, %v5718
          %v6792 = vadd.f32 %v6791, %v5720
          %v6793 = vadd.f32 %v6792, %v5722
          %v6794 = vadd.f32 %v6793, %v5724
          %v6795 = vadd.f32 %v6794, %v5726
          %v6796 = vadd.f32 %v6795, %v5728
          %v6797 = vadd.f32 %v6796, %v5730
          %v6798 = vadd.f32 %v6797, %v5732
          %v6799 = vadd.f32 %v6798, %v5734
          %v6800 = vadd.f32 %v6799, %v5736
          %v6801 = vadd.f32 %v6800, %v5738
          %v6802 = vadd.f32 %v6801, %v5740
          %v6803 = vadd.f32 %v6802, %v5742
          %v6804 = vadd.f32 %v6803, %v5744
          %v6805 = vadd.f32 %v6804, %v5746
          %v6806 = vadd.f32 %v6805, %v5748
          %v6807 = vadd.f32 %v6806, %v5750
          %v6808 = vadd.f32 %v6807, %v5752
          %v6809 = vadd.f32 %v6808, %v5754
          %v6810 = vadd.f32 %v6809, %v5756
          %v6811 = vadd.f32 %v6810, %v5758
          %v6812 = vadd.f32 %v6811, %v5760
          %v6813 = vadd.f32 %v6812, %v5762
          %v6814 = vadd.f32 %v6813, %v5764
          %v6815 = vadd.f32 %v6814, %v5766
          %v6816 = vadd.f32 %v6815, %v5768
          %v6817 = vadd.f32 %v6816, %v5770
          %v6818 = vadd.f32 %v6817, %v5772
          %v6819 = vadd.f32 %v6818, %v5774
          %v6820 = vadd.f32 %v6819, %v5776
          %v6821 = vadd.f32 %v6820, %v5778
          %v6822 = vadd.f32 %v6821, %v5780
          %v6823 = vadd.f32 %v6822, %v5782
          %v6824 = vadd.f32 %v6823, %v5784
          %v6825 = vadd.f32 %v6824, %v5786
          %v6826 = vadd.f32 %v6825, %v5788
          %v6827 = vadd.f32 %v6826, %v5790
          %v6828 = vadd.f32 %v6827, %v5792
          %v6829 = vadd.f32 %v6828, %v5794
          %v6830 = vadd.f32 %v6829, %v5796
          %v6831 = vadd.f32 %v6830, %v5798
          %v6832 = vadd.f32 %v6831, %v5800
          %v6833 = vadd.f32 %v6832, %v5802
          %v6834 = vadd.f32 %v6833, %v5804
          %v6835 = vadd.f32 %v6834, %v5806
          %v6836 = vadd.f32 %v6835, %v5808
          %v6837 = vadd.f32 %v6836, %v5810
          %v6838 = vadd.f32 %v6837, %v5812
          %v6839 = vadd.f32 %v6838, %v5814
          %v6840 = vadd.f32 %v6839, %v5816
          %v6841 = vadd.f32 %v5817, %v6329
          %v6842 = vadd.f32 %v5818, %v6840
          %6843 = vst [vmem:[#allocation5] sm:$0xff] %v6841
          %6844 = vst [vmem:[#allocation5 + $0x8] sm:$0xff] %v6842
        $region40: #{tpu_custom_call.1} parent=23 // pred_fallthru
          _
        // Predicated region
        $region41: #{tpu_custom_call.1} parent=23 // pred_check
          %p6845 = pneg %p76
        $region42: #{tpu_custom_call.1} parent=23 // pred_check_branch
          %6847 = sbr.rel (%p6845) target = $region44
        $region43: #{tpu_custom_call.1} parent=23 // pred_region
          %s6849 = ssub.s32 256, 256
          %6850 = vsyncadd [#allocation4], %s6849
          %s6851 = smul.addr %s20, 2
          %s6852 = smul.addr %s6851, 128
          %s6853 = scalar_lea.hbm %s1, %s6852
          %s6855 = sshll.u32 [#allocation5], 4
          %s6856 = int_to_ptr.vmem [resolvable:$true] %s6855
          %6858 = dma.vmem_to_hbm [thread:$0]  %s6856, 256, %s6853, [#allocation4]
        $region44: #{tpu_custom_call.1} parent=23 // pred_fallthru
          _
        // Predicated region
        $region45: #{tpu_custom_call.1} parent=23 // pred_check
          %p6859 = pneg %p76
        $region46: #{tpu_custom_call.1} parent=23 // pred_check_branch
          %6861 = sbr.rel (%p6859) target = $region48
        $region47: #{tpu_custom_call.1} parent=23 // pred_region
          %6862 = dma.done [#allocation4], 256
        $region48: #{tpu_custom_call.1} parent=23 // pred_fallthru
          _
      $region24: #{tpu_custom_call.1} parent=5 // pred_fallthru
        _
      %p6863 = scmp.le.s32.totalorder 2, %s11
      // Predicated region
      $region49: #{tpu_custom_call.1} parent=5 // pred_check
        %p6864 = pneg %p6863
      $region50: #{tpu_custom_call.1} parent=5 // pred_check_branch
        %6866 = sbr.rel (%p6864) target = $region52
      $region51: #{tpu_custom_call.1} parent=5 // pred_region
        %s6867 = ssub.s32 %s11, 2
      $region52: #{tpu_custom_call.1} parent=5 // pred_fallthru
        _
    $region6: #{tpu_custom_call.1} parent=1 // loop_footer
      %s15 = sadd.s32 1, %s11
    $region7: #{tpu_custom_call.1} parent=1 // loop_footer_branch
      %10 = sbr.rel target = $region3
    $region8: #{tpu_custom_call.1} parent=1 // loop_exit
      _
    %6868 = vsyncpa [#allocation3], 1
    %s6869 = scalar_lea.sflag [#allocation3], 1
    %6870 = vsyncpa %s6869, 1
    %6871 = vsyncpa [#allocation4], 1
    %s6872 = scalar_lea.sflag [#allocation4], 1
    %6873 = vsyncpa %s6872, 1

</llo_original>
